<compile_context>
chip_gen: v5e
topology: v5e:2x2
jax: 0.10.0
libtpu: 0.0.40
codegen_flags: <defaults>
</compile_context>

<pallas_src>
import math

import jax
import jax.numpy as jnp
from jax import lax
from jax.experimental import pallas as pl
from jax.experimental.pallas import tpu as pltpu

# --------------------------- model dimensions (small) ------------------------
B = 2            # real batch
BP = 8           # batch padded to one sublane tile
T = 8            # sequence length
M = T * BP       # flat rows, row = t*BP + b
X_DIM = 4        # encoder output dim (GRU input dim)
H_DIM = 32       # hidden dim of MLPs
Z_DIM = 8        # latent dim
R_DIM = 2 * H_DIM    # r_dim = 2 * h_dim (default) = 64
G = 128              # lane-tile stride: gate g / sd live at lane offset g*128
GATES_W = 3 * G      # fused [r|z|n] gate width (each gate padded to a lane tile)
HEAD_W = 2 * G       # fused [mu|sd] head width

_HALF_LOG_2PI = 0.5 * math.log(2.0 * math.pi)
_SD_EPS = 1e-6

# ---- row offsets inside the fused weight blobs (all multiples of 8) ----------
GRU_D_IH, GRU_D_HH = 0, 8
GRU_A_IHX, GRU_A_IHD, GRU_A_HH = 72, 80, 144
GRU_ROWS = 208

MLP_Q_W1D, MLP_Q_W1Z, MLP_Q_W2, MLP_Q_W3 = 0, 64, 72, 104
MLP_P_W1D, MLP_P_W1Z, MLP_P_W2, MLP_P_W3 = 136, 200, 208, 240
MLP_DEC_W1Z, MLP_DEC_W1D, MLP_DEC_W2 = 272, 280, 344
MLP_ROWS = 376

HEAD_Q, HEAD_P, HEAD_LIK, HEAD_ROWS = 0, 32, 64, 96
N_BIAS_GROUPS = 8


def _lrelu(x):
    return jnp.where(x > 0, x, 0.01 * x)


def _dot(a, b):
    return jnp.dot(a, b, preferred_element_type=jnp.float32)


# -----------------------------------------------------------------------------
# The single fused SRNN forward kernel.
# -----------------------------------------------------------------------------
def _srnn_kernel(x_sl_ref, x_ref, eps_z_ref, eps_rec_ref,
                 gruw_ref, mlpw_ref, headw_ref, bias_ref,
                 seq_out, state_out, stats_out,
                 gd_scr, ga_scr, qpre_scr):
    f32 = jnp.float32

    # ---- biases (pre-broadcast to BP rows host-side, lane-tile aligned slots) ----
    bb = [bias_ref[g] for g in range(N_BIAS_GROUPS)]          # each (BP, 3G)
    d_gate_b = bb[0][0:1, :]
    a_gate_b = bb[1][0:1, :]
    d_bh_n = bb[2][:, 0:R_DIM]
    a_bh_n = bb[2][:, G:G + R_DIM]
    dec_b1 = bb[2][0:1, 2 * G:2 * G + H_DIM]
    q_b1 = bb[3][0:1, 0:H_DIM]
    q_b2 = bb[3][:, G:G + H_DIM]
    q_b3 = bb[3][:, 2 * G:2 * G + H_DIM]
    p_b1 = bb[4][0:1, 0:H_DIM]
    p_b2 = bb[4][0:1, G:G + H_DIM]
    p_b3 = bb[4][0:1, 2 * G:2 * G + H_DIM]
    q_bmu = bb[5][:, 0:Z_DIM]
    q_bsd = bb[5][:, G:G + Z_DIM]
    dec_b2 = bb[5][0:1, 2 * G:2 * G + H_DIM]
    p_bmu = bb[6][0:1, 0:Z_DIM]
    p_bsd = bb[6][0:1, G:G + Z_DIM]
    enc_w = bb[6][0:1, 2 * G:2 * G + X_DIM]
    enc_b = bb[7][0:1, 0:X_DIM]
    lik_bmu = bb[7][0:1, G:G + 1]
    lik_bsd = bb[7][0:1, 2 * G:2 * G + 1]

    # ---- sequence lengths (SMEM), reversal index table, sequence mask ------------
    lengths = [x_sl_ref[b] for b in range(B)]
    # reverse_sequences index: s -> L-1-s inside the valid range, identity after
    rev_idx = [[jnp.where(s < lengths[b], lengths[b] - 1 - s, s)
                for b in range(B)] for s in range(T)]

    b_iota = lax.broadcasted_iota(jnp.int32, (BP, 1), 0)
    len_col = jnp.zeros((BP, 1), jnp.int32)
    for b in range(B):
        len_col = jnp.where(b_iota == b, lengths[b], len_col)      # padded rows -> 0
    mask_f = jnp.concatenate([(t < len_col).astype(f32) for t in range(T)],
                             axis=0)                                # (M, 1)

    x_col = x_ref[...]                                              # (M, 1) == y

    # ---- encoder: per-timestep Linear(1, X) + LeakyReLU (batched over M) ---------
    x_enc = _lrelu(x_col * enc_w + enc_b)                           # (M, X)

    # ---- forward GRU over u = shift(x_enc); fused-gate input proj hoisted --------
    dW_ih = gruw_ref[GRU_D_IH:GRU_D_IH + X_DIM, :]                  # (X, 3G)
    dW_hh = gruw_ref[GRU_D_HH:GRU_D_HH + R_DIM, :]                  # (R, 3G)

    u_flat = jnp.concatenate(
        [jnp.zeros((BP, X_DIM), f32), x_enc[0:(T - 1) * BP]], axis=0)
    gd = _dot(u_flat, dW_ih) + d_gate_b                             # (M, 3G) batched
    for t in range(T):
        gd_scr[t] = gd[t * BP:(t + 1) * BP]

    h = jnp.zeros((BP, R_DIM), f32)
    d_list = []
    for t in range(T):                      # unrolled; ONE fused gate matmul / step
        d_list.append(h)                    # d[t] = state BEFORE consuming u[t]
        gt = gd_scr[t]
        gh = _dot(h, dW_hh)                                         # (BP, 3G)
        rg = jax.nn.sigmoid(gt[:, 0:R_DIM] + gh[:, 0:R_DIM])
        zg = jax.nn.sigmoid(gt[:, G:G + R_DIM] + gh[:, G:G + R_DIM])
        ng = jnp.tanh(gt[:, 2 * G:2 * G + R_DIM]
                      + rg * (gh[:, 2 * G:2 * G + R_DIM] + d_bh_n))
        h = (1.0 - zg) * ng + zg * h
    d_n = h                                 # == d_full[-1] (post-update final state)
    d_flat = jnp.concatenate(d_list, axis=0)                        # (M, R)

    # ---- backward GRU: project inputs first (batched), then reverse projected ----
    aW_ihx = gruw_ref[GRU_A_IHX:GRU_A_IHX + X_DIM, :]
    aW_ihd = gruw_ref[GRU_A_IHD:GRU_A_IHD + R_DIM, :]
    aW_hh = gruw_ref[GRU_A_HH:GRU_A_HH + R_DIM, :]

    ga = _dot(x_enc, aW_ihx) + _dot(d_flat, aW_ihd) + a_gate_b      # (M, 3G) batched
    for t in range(T):
        ga_scr[t] = ga[t * BP:(t + 1) * BP]

    riota_g = lax.broadcasted_iota(jnp.int32, (BP, GATES_W), 0)
    riota_h = lax.broadcasted_iota(jnp.int32, (BP, H_DIM), 0)

    def gather_slab(scr, idx, riota):
        # row b of result = scr[idx[b]][b]  (per-sequence reversal gather)
        slab = scr[idx[0]]
        for b in range(1, B):
            slab = jnp.where(riota == b, scr[idx[b]], slab)
        return slab

    ha = jnp.zeros((BP, R_DIM), f32)
    arev_list = []
    for s in range(T):
        gt = gather_slab(ga_scr, rev_idx[s], riota_g)               # reversed input
        gh = _dot(ha, aW_hh)                                        # ONE fused matmul
        rg = jax.nn.sigmoid(gt[:, 0:R_DIM] + gh[:, 0:R_DIM])
        zg = jax.nn.sigmoid(gt[:, G:G + R_DIM] + gh[:, G:G + R_DIM])
        ng = jnp.tanh(gt[:, 2 * G:2 * G + R_DIM]
                      + rg * (gh[:, 2 * G:2 * G + R_DIM] + a_bh_n))
        ha = (1.0 - zg) * ng + zg * ha
        arev_list.append(ha)
    a_n = ha                               # final backward state (== reference a_n)
    a_rev = jnp.concatenate(arev_list, axis=0)                      # (M, R), reversed

    # ---- posterior layer-1 a-term: project (batched), reverse 32-wide rows -------
    qW1d = mlpw_ref[MLP_Q_W1D:MLP_Q_W1D + R_DIM, :]
    q_pre_rev = _dot(a_rev, qW1d) + q_b1                            # (M, H) batched
    for t in range(T):
        qpre_scr[t] = q_pre_rev[t * BP:(t + 1) * BP]
    q_pre = [gather_slab(qpre_scr, rev_idx[t], riota_h) for t in range(T)]

    # ---- posterior: only the z-dependent part stays sequential (4 matmuls/step) --
    qW1z = mlpw_ref[MLP_Q_W1Z:MLP_Q_W1Z + Z_DIM, :]
    qW2 = mlpw_ref[MLP_Q_W2:MLP_Q_W2 + H_DIM, :]
    qW3 = mlpw_ref[MLP_Q_W3:MLP_Q_W3 + H_DIM, :]
    qWh = headw_ref[HEAD_Q:HEAD_Q + H_DIM, :]                       # fused [mu|sd]

    eps_all = eps_z_ref[...]                                        # (M, Z)
    z_prev = jnp.zeros((BP, Z_DIM), f32)                            # z_0 = 0
    z_list, qmu_list, qsd_list = [], [], []
    for t in range(T):
        h1 = _lrelu(q_pre[t] + _dot(z_prev, qW1z))
        h2 = _lrelu(_dot(h1, qW2) + q_b2)
        h3 = _lrelu(_dot(h2, qW3) + q_b3)
        hq = _dot(h3, qWh)                                          # (BP, 2G)
        qmu = hq[:, 0:Z_DIM] + q_bmu
        qsd = jax.nn.softplus(hq[:, G:G + Z_DIM] + q_bsd) + _SD_EPS
        z_prev = qmu + qsd * eps_all[t * BP:(t + 1) * BP]           # rsample_gaussian
        z_list.append(z_prev)
        qmu_list.append(qmu)
        qsd_list.append(qsd)

    z_flat = jnp.concatenate(z_list, axis=0)                        # (M, Z)
    qmu_flat = jnp.concatenate(qmu_list, axis=0)
    qsd_flat = jnp.concatenate(qsd_list, axis=0)
    zprev_flat = jnp.concatenate(
        [jnp.zeros((BP, Z_DIM), f32)] + z_list[:-1], axis=0)

    # ---- prior head, fully batched (needs only d_t and z_{t-1}) ------------------
    pW1d = mlpw_ref[MLP_P_W1D:MLP_P_W1D + R_DIM, :]
    pW1z = mlpw_ref[MLP_P_W1Z:MLP_P_W1Z + Z_DIM, :]
    pW2 = mlpw_ref[MLP_P_W2:MLP_P_W2 + H_DIM, :]
    pW3 = mlpw_ref[MLP_P_W3:MLP_P_W3 + H_DIM, :]
    pWh = headw_ref[HEAD_P:HEAD_P + H_DIM, :]

    hp = _lrelu(_dot(d_flat, pW1d) + _dot(zprev_flat, pW1z) + p_b1)
    hp = _lrelu(_dot(hp, pW2) + p_b2)
    hp = _lrelu(_dot(hp, pW3) + p_b3)
    ph = _dot(hp, pWh)                                              # (M, 2G)
    pmu = ph[:, 0:Z_DIM] + p_bmu
    psd = jax.nn.softplus(ph[:, G:G + Z_DIM] + p_bsd) + _SD_EPS

    # ---- decoder on cat([z, d]) + likelihood head, fully batched -----------------
    decW1z = mlpw_ref[MLP_DEC_W1Z:MLP_DEC_W1Z + Z_DIM, :]
    decW1d = mlpw_ref[MLP_DEC_W1D:MLP_DEC_W1D + R_DIM, :]
    decW2 = mlpw_ref[MLP_DEC_W2:MLP_DEC_W2 + H_DIM, :]
    likWh = headw_ref[HEAD_LIK:HEAD_LIK + H_DIM, :]

    hd = _lrelu(_dot(z_flat, decW1z) + _dot(d_flat, decW1d) + dec_b1)
    hd = _lrelu(_dot(hd, decW2) + dec_b2)                           # (M, H)
    lh = _dot(hd, likWh)                                            # (M, 2G) batched
    mu = lh[:, 0:1] + lik_bmu                                       # (M, 1)
    sd_raw = lh[:, G:G + 1] + lik_bsd
    sd = jax.nn.softplus(sd_raw) + _SD_EPS

    # ---- KL(q || p), Gaussian log-likelihood, ELBO / loss ------------------------
    kld_e = (jnp.log(psd) - jnp.log(qsd_flat)
             + (qsd_flat * qsd_flat + (qmu_flat - pmu) ** 2)
             / (2.0 * psd * psd) - 0.5)                             # (M, Z)
    kld_t = jnp.sum(kld_e, axis=1, keepdims=True)                   # (M, 1)
    kld_tm = kld_t * mask_f

    y = x_col
    logp_t = (-_HALF_LOG_2PI - jnp.log(sd)
              - 0.5 * ((y - mu) / sd) ** 2) * mask_f                # (M, 1)

    logp_b = jnp.zeros((BP, 1), f32)
    kld_b = jnp.zeros((BP, 1), f32)
    for t in range(T):
        logp_b = logp_b + logp_t[t * BP:(t + 1) * BP]
        kld_b = kld_b + kld_tm[t * BP:(t + 1) * BP]
    elbo_b = logp_b - kld_b                                         # padded rows = 0

    denom = lengths[0].astype(f32)
    for b in range(1, B):
        denom = denom + lengths[b].astype(f32)                      # x_sl.sum()
    # beta = 1, free_nats = 0  ->  kld_fn == kld  ->  loss = -sum(elbo)/sum(x_sl)
    loss11 = -jnp.sum(elbo_b, axis=(0, 1), keepdims=True) / denom   # (1, 1)

    recon = mu + sd * eps_rec_ref[...]                              # likelihood.sample
    recon_mode = mu                                                 # likelihood.mode

    # ---- consolidated outputs (3 stores instead of 13) ---------------------------
    seq_out[...] = jnp.concatenate(
        [z_flat, mu, sd_raw, mask_f, recon, recon_mode, kld_t,
         jnp.zeros((M, 2), f32)], axis=1)                           # (M, 16)
    state_out[...] = jnp.concatenate([d_n, a_n], axis=1)            # (BP, 2R)
    stats_out[...] = jnp.concatenate(
        [elbo_b, logp_b, kld_b, jnp.zeros((BP, 1), f32) + loss11,
         jnp.zeros((BP, 4), f32)], axis=1)                          # (BP, 8)


# --------------------------------- parameters --------------------------------
def init_params(key):
    keys = jax.random.split(key, 128)
    it = iter(keys)

    def nxt(shape):
        k = next(it)
        fan_in = shape[0] if len(shape) > 1 else shape[-1]
        return (1.0 / math.sqrt(max(fan_in, 1))) * \
            jax.random.normal(k, shape, dtype=jnp.float32)

    p = {'enc_w': nxt((1, X_DIM)), 'enc_b': nxt((1, X_DIM))}

    # forward GRU (input = x_dim), per-gate weights (in, R), gates r, z, n
    for g in ('r', 'z', 'n'):
        p[f'd_wih_{g}'] = nxt((X_DIM, R_DIM))
        p[f'd_whh_{g}'] = nxt((R_DIM, R_DIM))
    bih = {g: nxt((1, R_DIM)) for g in ('r', 'z', 'n')}
    bhh = {g: nxt((1, R_DIM)) for g in ('r', 'z', 'n')}
    p['d_b_r'] = bih['r'] + bhh['r']
    p['d_b_z'] = bih['z'] + bhh['z']
    p['d_bi_n'] = bih['n']
    p['d_bh_n'] = bhh['n']

    # backward GRU (input = x_dim + r_dim split into x / d parts)
    for g in ('r', 'z', 'n'):
        p[f'a_wihx_{g}'] = nxt((X_DIM, R_DIM))
        p[f'a_wihd_{g}'] = nxt((R_DIM, R_DIM))
        p[f'a_whh_{g}'] = nxt((R_DIM, R_DIM))
    bih = {g: nxt((1, R_DIM)) for g in ('r', 'z', 'n')}
    bhh = {g: nxt((1, R_DIM)) for g in ('r', 'z', 'n')}
    p['a_b_r'] = bih['r'] + bhh['r']
    p['a_b_z'] = bih['z'] + bhh['z']
    p['a_bi_n'] = bih['n']
    p['a_bh_n'] = bhh['n']

    # prior / posterior heads (Linear(r+z,h) split, 2x Linear(h,h), Gaussian head)
    for pre in ('p', 'q'):
        p[f'{pre}_w1d'] = nxt((R_DIM, H_DIM))
        p[f'{pre}_w1z'] = nxt((Z_DIM, H_DIM))
        p[f'{pre}_b1'] = nxt((1, H_DIM))
        p[f'{pre}_w2'] = nxt((H_DIM, H_DIM))
        p[f'{pre}_b2'] = nxt((1, H_DIM))
        p[f'{pre}_w3'] = nxt((H_DIM, H_DIM))
        p[f'{pre}_b3'] = nxt((1, H_DIM))
        p[f'{pre}_wmu'] = nxt((H_DIM, Z_DIM))
        p[f'{pre}_bmu'] = nxt((1, Z_DIM))
        p[f'{pre}_wsd'] = nxt((H_DIM, Z_DIM))
        p[f'{pre}_bsd'] = nxt((1, Z_DIM))

    # decoder + Gaussian likelihood head (mu / sd split)
    p['dec_w1z'] = nxt((Z_DIM, H_DIM))
    p['dec_w1d'] = nxt((R_DIM, H_DIM))
    p['dec_b1'] = nxt((1, H_DIM))
    p['dec_w2'] = nxt((H_DIM, H_DIM))
    p['dec_b2'] = nxt((1, H_DIM))
    p['lik_wmu'] = nxt((H_DIM, 1))
    p['lik_bmu'] = nxt((1, 1))
    p['lik_wsd'] = nxt((H_DIM, 1))
    p['lik_bsd'] = nxt((1, 1))
    return p


# ------------------ host-side packing into fused weight blobs -----------------
def pack_params(p):
    f32 = jnp.float32

    gru = jnp.zeros((GRU_ROWS, GATES_W), f32)

    def put3(blob, r0, wr, wz, wn):
        blob = blob.at[r0:r0 + wr.shape[0], 0:R_DIM].set(wr)
        blob = blob.at[r0:r0 + wz.shape[0], G:G + R_DIM].set(wz)
        blob = blob.at[r0:r0 + wn.shape[0], 2 * G:2 * G + R_DIM].set(wn)
        return blob

    gru = put3(gru, GRU_D_IH, p['d_wih_r'], p['d_wih_z'], p['d_wih_n'])
    gru = put3(gru, GRU_D_HH, p['d_whh_r'], p['d_whh_z'], p['d_whh_n'])
    gru = put3(gru, GRU_A_IHX, p['a_wihx_r'], p['a_wihx_z'], p['a_wihx_n'])
    gru = put3(gru, GRU_A_IHD, p['a_wihd_r'], p['a_wihd_z'], p['a_wihd_n'])
    gru = put3(gru, GRU_A_HH, p['a_whh_r'], p['a_whh_z'], p['a_whh_n'])

    mlp = jnp.zeros((MLP_ROWS, H_DIM), f32)
    for r0, name in ((MLP_Q_W1D, 'q_w1d'), (MLP_Q_W1Z, 'q_w1z'),
                     (MLP_Q_W2, 'q_w2'), (MLP_Q_W3, 'q_w3'),
                     (MLP_P_W1D, 'p_w1d'), (MLP_P_W1Z, 'p_w1z'),
                     (MLP_P_W2, 'p_w2'), (MLP_P_W3, 'p_w3'),
                     (MLP_DEC_W1Z, 'dec_w1z'), (MLP_DEC_W1D, 'dec_w1d'),
                     (MLP_DEC_W2, 'dec_w2')):
        mlp = mlp.at[r0:r0 + p[name].shape[0], :].set(p[name])

    head = jnp.zeros((HEAD_ROWS, HEAD_W), f32)
    head = head.at[HEAD_Q:HEAD_Q + H_DIM, 0:Z_DIM].set(p['q_wmu'])
    head = head.at[HEAD_Q:HEAD_Q + H_DIM, G:G + Z_DIM].set(p['q_wsd'])
    head = head.at[HEAD_P:HEAD_P + H_DIM, 0:Z_DIM].set(p['p_wmu'])
    head = head.at[HEAD_P:HEAD_P + H_DIM, G:G + Z_DIM].set(p['p_wsd'])
    head = head.at[HEAD_LIK:HEAD_LIK + H_DIM, 0:1].set(p['lik_wmu'])
    head = head.at[HEAD_LIK:HEAD_LIK + H_DIM, G:G + 1].set(p['lik_wsd'])

    bias = jnp.zeros((N_BIAS_GROUPS, GATES_W), f32)

    def put_row(blob, r, c, v):
        return blob.at[r:r + 1, c:c + v.shape[1]].set(v)

    bias = put_row(bias, 0, 0, p['d_b_r'])
    bias = put_row(bias, 0, G, p['d_b_z'])
    bias = put_row(bias, 0, 2 * G, p['d_bi_n'])
    bias = put_row(bias, 1, 0, p['a_b_r'])
    bias = put_row(bias, 1, G, p['a_b_z'])
    bias = put_row(bias, 1, 2 * G, p['a_bi_n'])
    bias = put_row(bias, 2, 0, p['d_bh_n'])
    bias = put_row(bias, 2, G, p['a_bh_n'])
    bias = put_row(bias, 2, 2 * G, p['dec_b1'])
    bias = put_row(bias, 3, 0, p['q_b1'])
    bias = put_row(bias, 3, G, p['q_b2'])
    bias = put_row(bias, 3, 2 * G, p['q_b3'])
    bias = put_row(bias, 4, 0, p['p_b1'])
    bias = put_row(bias, 4, G, p['p_b2'])
    bias = put_row(bias, 4, 2 * G, p['p_b3'])
    bias = put_row(bias, 5, 0, p['q_bmu'])
    bias = put_row(bias, 5, G, p['q_bsd'])
    bias = put_row(bias, 5, 2 * G, p['dec_b2'])
    bias = put_row(bias, 6, 0, p['p_bmu'])
    bias = put_row(bias, 6, G, p['p_bsd'])
    bias = put_row(bias, 6, 2 * G, p['enc_w'])
    bias = put_row(bias, 7, 0, p['enc_b'])
    bias = put_row(bias, 7, G, p['lik_bmu'])
    bias = put_row(bias, 7, 2 * G, p['lik_bsd'])

    bias = jnp.broadcast_to(bias[:, None, :], (N_BIAS_GROUPS, BP, GATES_W))
    return gru, mlp, head, bias


# ------------------------------- SRNN forward --------------------------------
def srnn_forward(x, x_sl, params, eps_z, eps_rec):
    f32 = jnp.float32
    gru_w, mlp_w, head_w, bias_blob = pack_params(params)

    # pack data into the (T, BP, .) tile-aligned flat layout (row = t*BP + b)
    x_flat = jnp.zeros((T, BP), f32).at[:, :B].set(
        x.astype(f32).T).reshape(M, 1)
    eps_rec_flat = jnp.zeros((T, BP), f32).at[:, :B].set(
        eps_rec.astype(f32).T).reshape(M, 1)
    eps_z_flat = jnp.zeros((T, BP, Z_DIM), f32).at[:, :B, :].set(
        eps_z.astype(f32)).reshape(M, Z_DIM)

    args = (x_sl.astype(jnp.int32), x_flat, eps_z_flat, eps_rec_flat,
            gru_w, mlp_w, head_w, bias_blob)

    out_shape = (
        jax.ShapeDtypeStruct((M, 16), f32),          # per-(t,b): z | mu | sd_raw | ...
        jax.ShapeDtypeStruct((BP, 2 * R_DIM), f32),  # [d_n | a_n]
        jax.ShapeDtypeStruct((BP, 8), f32),          # elbo | logp | kl | loss
    )

    smem = pl.BlockSpec(memory_space=pltpu.MemorySpace.SMEM)
    vmem = pl.BlockSpec(memory_space=pltpu.MemorySpace.VMEM)

    seq, state, stats = pl.pallas_call(
        _srnn_kernel,
        out_shape=out_shape,
        in_specs=[smem] + [vmem] * (len(args) - 1),
        out_specs=[vmem] * len(out_shape),
        scratch_shapes=[
            pltpu.VMEM((T, BP, GATES_W), jnp.float32),  # fwd-GRU projected inputs
            pltpu.VMEM((T, BP, GATES_W), jnp.float32),  # bwd-GRU projected inputs
            pltpu.VMEM((T, BP, H_DIM), jnp.float32),    # posterior layer-1 a-term
        ],
    )(*args)

    seq = seq.reshape(T, BP, 16)
    z = jnp.transpose(seq[:, :B, 0:Z_DIM], (1, 0, 2))       # (B, T, Z)
    mu_raw = seq[:, :B, 8].T
    sd_raw = seq[:, :B, 9].T
    seq_mask = seq[:, :B, 10].T
    recon = seq[:, :B, 11].T
    recon_mode = seq[:, :B, 12].T

    # TODO(synk): LossMetric/LLMetric/KLMetric/BitsPerDimMetric objects are
    # bookkeeping wrappers with no Pallas equivalent; raw values are returned.
    return {
        'loss': stats[0, 3],
        'elbo': stats[:B, 0],
        'log_prob': stats[:B, 1],
        'kl': stats[:B, 2],
        'z': z,
        'parameters': jnp.stack([mu_raw, sd_raw], axis=-1),
        'seq_mask': seq_mask,
        'd_n': state[:B, 0:R_DIM],
        'a_n': state[:B, R_DIM:2 * R_DIM],
        'z_n': z[:, -1, :],
        'reconstructions': recon,
        'reconstructions_mode': recon_mode,
    }


# ------------------------------------ main ------------------------------------
if __name__ == "__main__":
    key = jax.random.PRNGKey(0)
    kx, keps, krec, kp = jax.random.split(key, 4)

    x = jax.random.normal(kx, (B, T), dtype=jnp.float32)       # (B, T) waveform
    x_sl = jnp.array([T, T - 3], dtype=jnp.int32)              # max length == T
    eps_z = jax.random.normal(keps, (T, B, Z_DIM), dtype=jnp.float32)
    eps_rec = jax.random.normal(krec, (B, T), dtype=jnp.float32)
    params = init_params(kp)

    fwd = jax.jit(srnn_forward)
    outs = fwd(x, x_sl, params, eps_z, eps_rec)
    outs = jax.block_until_ready(outs)

    assert bool(jnp.isfinite(outs['loss'])), "loss is not finite"
    assert outs['z'].shape == (B, T, Z_DIM)
    assert outs['parameters'].shape == (B, T, 2)
    assert outs['seq_mask'].shape == (B, T)
    assert outs['d_n'].shape == (B, R_DIM) and outs['a_n'].shape == (B, R_DIM)
    assert outs['z_n'].shape == (B, Z_DIM)
    assert outs['reconstructions'].shape == (B, T)
    assert bool(jnp.all(jnp.isfinite(outs['elbo'])))
    print("KERNEL_OK")
</pallas_src>

<mosaic_0001>
module attributes {stable_mosaic.version = 11 : i64} {
  func.func @_srnn_kernel(%arg0: memref<2xi32, #tpu.memory_space<smem>>, %arg1: memref<64x1xf32, #tpu.memory_space<vmem>>, %arg2: memref<64x8xf32, #tpu.memory_space<vmem>>, %arg3: memref<64x1xf32, #tpu.memory_space<vmem>>, %arg4: memref<208x384xf32, #tpu.memory_space<vmem>>, %arg5: memref<376x32xf32, #tpu.memory_space<vmem>>, %arg6: memref<96x256xf32, #tpu.memory_space<vmem>>, %arg7: memref<8x8x384xf32, #tpu.memory_space<vmem>>, %arg8: memref<64x16xf32, #tpu.memory_space<vmem>>, %arg9: memref<8x128xf32, #tpu.memory_space<vmem>>, %arg10: memref<8x8xf32, #tpu.memory_space<vmem>>, %arg11: memref<8x8x384xf32, #tpu.memory_space<vmem>>, %arg12: memref<8x8x384xf32, #tpu.memory_space<vmem>>, %arg13: memref<8x8x32xf32, #tpu.memory_space<vmem>>) attributes {dimension_semantics = [], scalar_prefetch = 0 : i64, scratch_operands = 3 : i64, tpu.core_type = #tpu.core_type<tc>} {
    %c0 = arith.constant 0 : index
    %c0_0 = arith.constant 0 : index
    %c0_1 = arith.constant 0 : index
    %0 = vector.load %arg7[%c0, %c0_0, %c0_1] : memref<8x8x384xf32, #tpu.memory_space<vmem>>, vector<1x8x384xf32>
    %1 = vector.shape_cast %0 : vector<1x8x384xf32> to vector<8x384xf32>
    %c1 = arith.constant 1 : index
    %c0_2 = arith.constant 0 : index
    %c0_3 = arith.constant 0 : index
    %2 = vector.load %arg7[%c1, %c0_2, %c0_3] : memref<8x8x384xf32, #tpu.memory_space<vmem>>, vector<1x8x384xf32>
    %3 = vector.shape_cast %2 : vector<1x8x384xf32> to vector<8x384xf32>
    %c2 = arith.constant 2 : index
    %c0_4 = arith.constant 0 : index
    %c0_5 = arith.constant 0 : index
    %4 = vector.load %arg7[%c2, %c0_4, %c0_5] : memref<8x8x384xf32, #tpu.memory_space<vmem>>, vector<1x8x384xf32>
    %5 = vector.shape_cast %4 : vector<1x8x384xf32> to vector<8x384xf32>
    %c3 = arith.constant 3 : index
    %c0_6 = arith.constant 0 : index
    %c0_7 = arith.constant 0 : index
    %6 = vector.load %arg7[%c3, %c0_6, %c0_7] : memref<8x8x384xf32, #tpu.memory_space<vmem>>, vector<1x8x384xf32>
    %7 = vector.shape_cast %6 : vector<1x8x384xf32> to vector<8x384xf32>
    %c4 = arith.constant 4 : index
    %c0_8 = arith.constant 0 : index
    %c0_9 = arith.constant 0 : index
    %8 = vector.load %arg7[%c4, %c0_8, %c0_9] : memref<8x8x384xf32, #tpu.memory_space<vmem>>, vector<1x8x384xf32>
    %9 = vector.shape_cast %8 : vector<1x8x384xf32> to vector<8x384xf32>
    %c5 = arith.constant 5 : index
    %c0_10 = arith.constant 0 : index
    %c0_11 = arith.constant 0 : index
    %10 = vector.load %arg7[%c5, %c0_10, %c0_11] : memref<8x8x384xf32, #tpu.memory_space<vmem>>, vector<1x8x384xf32>
    %11 = vector.shape_cast %10 : vector<1x8x384xf32> to vector<8x384xf32>
    %c6 = arith.constant 6 : index
    %c0_12 = arith.constant 0 : index
    %c0_13 = arith.constant 0 : index
    %12 = vector.load %arg7[%c6, %c0_12, %c0_13] : memref<8x8x384xf32, #tpu.memory_space<vmem>>, vector<1x8x384xf32>
    %13 = vector.shape_cast %12 : vector<1x8x384xf32> to vector<8x384xf32>
    %c7 = arith.constant 7 : index
    %c0_14 = arith.constant 0 : index
    %c0_15 = arith.constant 0 : index
    %14 = vector.load %arg7[%c7, %c0_14, %c0_15] : memref<8x8x384xf32, #tpu.memory_space<vmem>>, vector<1x8x384xf32>
    %15 = vector.shape_cast %14 : vector<1x8x384xf32> to vector<8x384xf32>
    %16 = vector.extract_strided_slice %1 {offsets = [0, 0], sizes = [1, 384], strides = [1, 1]} : vector<8x384xf32> to vector<1x384xf32>
    %17 = vector.extract_strided_slice %3 {offsets = [0, 0], sizes = [1, 384], strides = [1, 1]} : vector<8x384xf32> to vector<1x384xf32>
    %18 = vector.extract_strided_slice %5 {offsets = [0, 0], sizes = [8, 64], strides = [1, 1]} : vector<8x384xf32> to vector<8x64xf32>
    %19 = vector.extract_strided_slice %5 {offsets = [0, 128], sizes = [8, 64], strides = [1, 1]} : vector<8x384xf32> to vector<8x64xf32>
    %20 = vector.extract_strided_slice %5 {offsets = [0, 256], sizes = [1, 32], strides = [1, 1]} : vector<8x384xf32> to vector<1x32xf32>
    %21 = vector.extract_strided_slice %7 {offsets = [0, 0], sizes = [1, 32], strides = [1, 1]} : vector<8x384xf32> to vector<1x32xf32>
    %22 = vector.extract_strided_slice %7 {offsets = [0, 128], sizes = [8, 32], strides = [1, 1]} : vector<8x384xf32> to vector<8x32xf32>
    %23 = vector.extract_strided_slice %7 {offsets = [0, 256], sizes = [8, 32], strides = [1, 1]} : vector<8x384xf32> to vector<8x32xf32>
    %24 = vector.extract_strided_slice %9 {offsets = [0, 0], sizes = [1, 32], strides = [1, 1]} : vector<8x384xf32> to vector<1x32xf32>
    %25 = vector.extract_strided_slice %9 {offsets = [0, 128], sizes = [1, 32], strides = [1, 1]} : vector<8x384xf32> to vector<1x32xf32>
    %26 = vector.extract_strided_slice %9 {offsets = [0, 256], sizes = [1, 32], strides = [1, 1]} : vector<8x384xf32> to vector<1x32xf32>
    %27 = vector.extract_strided_slice %11 {offsets = [0, 0], sizes = [8, 8], strides = [1, 1]} : vector<8x384xf32> to vector<8x8xf32>
    %28 = vector.extract_strided_slice %11 {offsets = [0, 128], sizes = [8, 8], strides = [1, 1]} : vector<8x384xf32> to vector<8x8xf32>
    %29 = vector.extract_strided_slice %11 {offsets = [0, 256], sizes = [1, 32], strides = [1, 1]} : vector<8x384xf32> to vector<1x32xf32>
    %30 = vector.extract_strided_slice %13 {offsets = [0, 0], sizes = [1, 8], strides = [1, 1]} : vector<8x384xf32> to vector<1x8xf32>
    %31 = vector.extract_strided_slice %13 {offsets = [0, 128], sizes = [1, 8], strides = [1, 1]} : vector<8x384xf32> to vector<1x8xf32>
    %32 = vector.extract_strided_slice %13 {offsets = [0, 256], sizes = [1, 4], strides = [1, 1]} : vector<8x384xf32> to vector<1x4xf32>
    %33 = vector.extract_strided_slice %15 {offsets = [0, 0], sizes = [1, 4], strides = [1, 1]} : vector<8x384xf32> to vector<1x4xf32>
    %34 = vector.extract_strided_slice %15 {offsets = [0, 128], sizes = [1, 1], strides = [1, 1]} : vector<8x384xf32> to vector<1x1xf32>
    %35 = vector.extract_strided_slice %15 {offsets = [0, 256], sizes = [1, 1], strides = [1, 1]} : vector<8x384xf32> to vector<1x1xf32>
    %c0_16 = arith.constant 0 : index
    %36 = memref.load %arg0[%c0_16] : memref<2xi32, #tpu.memory_space<smem>>
    %c1_17 = arith.constant 1 : index
    %37 = memref.load %arg0[%c1_17] : memref<2xi32, #tpu.memory_space<smem>>
    %c0_i32 = arith.constant 0 : i32
    %38 = arith.cmpi sgt, %36, %c0_i32 : i32
    %c1_i32 = arith.constant 1 : i32
    %39 = arith.subi %36, %c1_i32 : i32
    %c0_i32_18 = arith.constant 0 : i32
    %40 = arith.subi %39, %c0_i32_18 : i32
    %c0_i32_19 = arith.constant 0 : i32
    %41 = arith.select %38, %40, %c0_i32_19 : i32
    %c0_i32_20 = arith.constant 0 : i32
    %42 = arith.cmpi sgt, %37, %c0_i32_20 : i32
    %c1_i32_21 = arith.constant 1 : i32
    %43 = arith.subi %37, %c1_i32_21 : i32
    %c0_i32_22 = arith.constant 0 : i32
    %44 = arith.subi %43, %c0_i32_22 : i32
    %c0_i32_23 = arith.constant 0 : i32
    %45 = arith.select %42, %44, %c0_i32_23 : i32
    %c1_i32_24 = arith.constant 1 : i32
    %46 = arith.cmpi sgt, %36, %c1_i32_24 : i32
    %c1_i32_25 = arith.constant 1 : i32
    %47 = arith.subi %36, %c1_i32_25 : i32
    %c1_i32_26 = arith.constant 1 : i32
    %48 = arith.subi %47, %c1_i32_26 : i32
    %c1_i32_27 = arith.constant 1 : i32
    %49 = arith.select %46, %48, %c1_i32_27 : i32
    %c1_i32_28 = arith.constant 1 : i32
    %50 = arith.cmpi sgt, %37, %c1_i32_28 : i32
    %c1_i32_29 = arith.constant 1 : i32
    %51 = arith.subi %37, %c1_i32_29 : i32
    %c1_i32_30 = arith.constant 1 : i32
    %52 = arith.subi %51, %c1_i32_30 : i32
    %c1_i32_31 = arith.constant 1 : i32
    %53 = arith.select %50, %52, %c1_i32_31 : i32
    %c2_i32 = arith.constant 2 : i32
    %54 = arith.cmpi sgt, %36, %c2_i32 : i32
    %c1_i32_32 = arith.constant 1 : i32
    %55 = arith.subi %36, %c1_i32_32 : i32
    %c2_i32_33 = arith.constant 2 : i32
    %56 = arith.subi %55, %c2_i32_33 : i32
    %c2_i32_34 = arith.constant 2 : i32
    %57 = arith.select %54, %56, %c2_i32_34 : i32
    %c2_i32_35 = arith.constant 2 : i32
    %58 = arith.cmpi sgt, %37, %c2_i32_35 : i32
    %c1_i32_36 = arith.constant 1 : i32
    %59 = arith.subi %37, %c1_i32_36 : i32
    %c2_i32_37 = arith.constant 2 : i32
    %60 = arith.subi %59, %c2_i32_37 : i32
    %c2_i32_38 = arith.constant 2 : i32
    %61 = arith.select %58, %60, %c2_i32_38 : i32
    %c3_i32 = arith.constant 3 : i32
    %62 = arith.cmpi sgt, %36, %c3_i32 : i32
    %c1_i32_39 = arith.constant 1 : i32
    %63 = arith.subi %36, %c1_i32_39 : i32
    %c3_i32_40 = arith.constant 3 : i32
    %64 = arith.subi %63, %c3_i32_40 : i32
    %c3_i32_41 = arith.constant 3 : i32
    %65 = arith.select %62, %64, %c3_i32_41 : i32
    %c3_i32_42 = arith.constant 3 : i32
    %66 = arith.cmpi sgt, %37, %c3_i32_42 : i32
    %c1_i32_43 = arith.constant 1 : i32
    %67 = arith.subi %37, %c1_i32_43 : i32
    %c3_i32_44 = arith.constant 3 : i32
    %68 = arith.subi %67, %c3_i32_44 : i32
    %c3_i32_45 = arith.constant 3 : i32
    %69 = arith.select %66, %68, %c3_i32_45 : i32
    %c4_i32 = arith.constant 4 : i32
    %70 = arith.cmpi sgt, %36, %c4_i32 : i32
    %c1_i32_46 = arith.constant 1 : i32
    %71 = arith.subi %36, %c1_i32_46 : i32
    %c4_i32_47 = arith.constant 4 : i32
    %72 = arith.subi %71, %c4_i32_47 : i32
    %c4_i32_48 = arith.constant 4 : i32
    %73 = arith.select %70, %72, %c4_i32_48 : i32
    %c4_i32_49 = arith.constant 4 : i32
    %74 = arith.cmpi sgt, %37, %c4_i32_49 : i32
    %c1_i32_50 = arith.constant 1 : i32
    %75 = arith.subi %37, %c1_i32_50 : i32
    %c4_i32_51 = arith.constant 4 : i32
    %76 = arith.subi %75, %c4_i32_51 : i32
    %c4_i32_52 = arith.constant 4 : i32
    %77 = arith.select %74, %76, %c4_i32_52 : i32
    %c5_i32 = arith.constant 5 : i32
    %78 = arith.cmpi sgt, %36, %c5_i32 : i32
    %c1_i32_53 = arith.constant 1 : i32
    %79 = arith.subi %36, %c1_i32_53 : i32
    %c5_i32_54 = arith.constant 5 : i32
    %80 = arith.subi %79, %c5_i32_54 : i32
    %c5_i32_55 = arith.constant 5 : i32
    %81 = arith.select %78, %80, %c5_i32_55 : i32
    %c5_i32_56 = arith.constant 5 : i32
    %82 = arith.cmpi sgt, %37, %c5_i32_56 : i32
    %c1_i32_57 = arith.constant 1 : i32
    %83 = arith.subi %37, %c1_i32_57 : i32
    %c5_i32_58 = arith.constant 5 : i32
    %84 = arith.subi %83, %c5_i32_58 : i32
    %c5_i32_59 = arith.constant 5 : i32
    %85 = arith.select %82, %84, %c5_i32_59 : i32
    %c6_i32 = arith.constant 6 : i32
    %86 = arith.cmpi sgt, %36, %c6_i32 : i32
    %c1_i32_60 = arith.constant 1 : i32
    %87 = arith.subi %36, %c1_i32_60 : i32
    %c6_i32_61 = arith.constant 6 : i32
    %88 = arith.subi %87, %c6_i32_61 : i32
    %c6_i32_62 = arith.constant 6 : i32
    %89 = arith.select %86, %88, %c6_i32_62 : i32
    %c6_i32_63 = arith.constant 6 : i32
    %90 = arith.cmpi sgt, %37, %c6_i32_63 : i32
    %c1_i32_64 = arith.constant 1 : i32
    %91 = arith.subi %37, %c1_i32_64 : i32
    %c6_i32_65 = arith.constant 6 : i32
    %92 = arith.subi %91, %c6_i32_65 : i32
    %c6_i32_66 = arith.constant 6 : i32
    %93 = arith.select %90, %92, %c6_i32_66 : i32
    %c7_i32 = arith.constant 7 : i32
    %94 = arith.cmpi sgt, %36, %c7_i32 : i32
    %c1_i32_67 = arith.constant 1 : i32
    %95 = arith.subi %36, %c1_i32_67 : i32
    %c7_i32_68 = arith.constant 7 : i32
    %96 = arith.subi %95, %c7_i32_68 : i32
    %c7_i32_69 = arith.constant 7 : i32
    %97 = arith.select %94, %96, %c7_i32_69 : i32
    %c7_i32_70 = arith.constant 7 : i32
    %98 = arith.cmpi sgt, %37, %c7_i32_70 : i32
    %c1_i32_71 = arith.constant 1 : i32
    %99 = arith.subi %37, %c1_i32_71 : i32
    %c7_i32_72 = arith.constant 7 : i32
    %100 = arith.subi %99, %c7_i32_72 : i32
    %c7_i32_73 = arith.constant 7 : i32
    %101 = arith.select %98, %100, %c7_i32_73 : i32
    %102 = tpu.iota {dimensions = array<i32: 0>} : vector<8x1xi32>
    %c0_i32_74 = arith.constant 0 : i32
    %103 = vector.broadcast %c0_i32_74 : i32 to vector<8x1xi32>
    %c0_i32_75 = arith.constant 0 : i32
    %104 = vector.broadcast %c0_i32_75 : i32 to vector<8x1xi32>
    %105 = arith.cmpi eq, %102, %104 : vector<8x1xi32>
    %106 = vector.broadcast %36 : i32 to vector<8x1xi32>
    %107 = arith.select %105, %106, %103 : vector<8x1xi1>, vector<8x1xi32>
    %c1_i32_76 = arith.constant 1 : i32
    %108 = vector.broadcast %c1_i32_76 : i32 to vector<8x1xi32>
    %109 = arith.cmpi eq, %102, %108 : vector<8x1xi32>
    %110 = vector.broadcast %37 : i32 to vector<8x1xi32>
    %111 = arith.select %109, %110, %107 : vector<8x1xi1>, vector<8x1xi32>
    %c0_i32_77 = arith.constant 0 : i32
    %112 = vector.broadcast %c0_i32_77 : i32 to vector<8x1xi32>
    %113 = arith.cmpi sgt, %111, %112 : vector<8x1xi32>
    %114 = arith.extui %113 : vector<8x1xi1> to vector<8x1xi32>
    %115 = arith.sitofp %114 : vector<8x1xi32> to vector<8x1xf32>
    %c1_i32_78 = arith.constant 1 : i32
    %116 = vector.broadcast %c1_i32_78 : i32 to vector<8x1xi32>
    %117 = arith.cmpi sgt, %111, %116 : vector<8x1xi32>
    %118 = arith.extui %117 : vector<8x1xi1> to vector<8x1xi32>
    %119 = arith.sitofp %118 : vector<8x1xi32> to vector<8x1xf32>
    %c2_i32_79 = arith.constant 2 : i32
    %120 = vector.broadcast %c2_i32_79 : i32 to vector<8x1xi32>
    %121 = arith.cmpi sgt, %111, %120 : vector<8x1xi32>
    %122 = arith.extui %121 : vector<8x1xi1> to vector<8x1xi32>
    %123 = arith.sitofp %122 : vector<8x1xi32> to vector<8x1xf32>
    %c3_i32_80 = arith.constant 3 : i32
    %124 = vector.broadcast %c3_i32_80 : i32 to vector<8x1xi32>
    %125 = arith.cmpi sgt, %111, %124 : vector<8x1xi32>
    %126 = arith.extui %125 : vector<8x1xi1> to vector<8x1xi32>
    %127 = arith.sitofp %126 : vector<8x1xi32> to vector<8x1xf32>
    %c4_i32_81 = arith.constant 4 : i32
    %128 = vector.broadcast %c4_i32_81 : i32 to vector<8x1xi32>
    %129 = arith.cmpi sgt, %111, %128 : vector<8x1xi32>
    %130 = arith.extui %129 : vector<8x1xi1> to vector<8x1xi32>
    %131 = arith.sitofp %130 : vector<8x1xi32> to vector<8x1xf32>
    %c5_i32_82 = arith.constant 5 : i32
    %132 = vector.broadcast %c5_i32_82 : i32 to vector<8x1xi32>
    %133 = arith.cmpi sgt, %111, %132 : vector<8x1xi32>
    %134 = arith.extui %133 : vector<8x1xi1> to vector<8x1xi32>
    %135 = arith.sitofp %134 : vector<8x1xi32> to vector<8x1xf32>
    %c6_i32_83 = arith.constant 6 : i32
    %136 = vector.broadcast %c6_i32_83 : i32 to vector<8x1xi32>
    %137 = arith.cmpi sgt, %111, %136 : vector<8x1xi32>
    %138 = arith.extui %137 : vector<8x1xi1> to vector<8x1xi32>
    %139 = arith.sitofp %138 : vector<8x1xi32> to vector<8x1xf32>
    %c7_i32_84 = arith.constant 7 : i32
    %140 = vector.broadcast %c7_i32_84 : i32 to vector<8x1xi32>
    %141 = arith.cmpi sgt, %111, %140 : vector<8x1xi32>
    %142 = arith.extui %141 : vector<8x1xi1> to vector<8x1xi32>
    %143 = arith.sitofp %142 : vector<8x1xi32> to vector<8x1xf32>
    %144 = tpu.concatenate %115, %119, %123, %127, %131, %135, %139, %143 in 0 : vector<8x1xf32>, vector<8x1xf32>, vector<8x1xf32>, vector<8x1xf32>, vector<8x1xf32>, vector<8x1xf32>, vector<8x1xf32>, vector<8x1xf32> -> vector<64x1xf32>
    %c0_85 = arith.constant 0 : index
    %c0_86 = arith.constant 0 : index
    %145 = vector.load %arg1[%c0_85, %c0_86] : memref<64x1xf32, #tpu.memory_space<vmem>>, vector<64x1xf32>
    %146 = vector.broadcast %145 : vector<64x1xf32> to vector<64x4xf32>
    %147 = vector.broadcast %32 : vector<1x4xf32> to vector<64x4xf32>
    %148 = arith.mulf %146, %147 : vector<64x4xf32>
    %149 = vector.broadcast %33 : vector<1x4xf32> to vector<64x4xf32>
    %150 = arith.addf %148, %149 : vector<64x4xf32>
    %cst = arith.constant 0.000000e+00 : f32
    %151 = vector.broadcast %cst : f32 to vector<64x4xf32>
    %152 = arith.cmpf ogt, %150, %151 : vector<64x4xf32>
    %cst_87 = arith.constant 0.00999999977 : f32
    %153 = vector.broadcast %cst_87 : f32 to vector<64x4xf32>
    %154 = arith.mulf %153, %150 : vector<64x4xf32>
    %155 = arith.select %152, %150, %154 : vector<64x4xi1>, vector<64x4xf32>
    %c0_88 = arith.constant 0 : index
    %c0_89 = arith.constant 0 : index
    %156 = vector.load %arg4[%c0_88, %c0_89] : memref<208x384xf32, #tpu.memory_space<vmem>>, vector<4x384xf32>
    %c8 = arith.constant 8 : index
    %c0_90 = arith.constant 0 : index
    %157 = vector.load %arg4[%c8, %c0_90] : memref<208x384xf32, #tpu.memory_space<vmem>>, vector<64x384xf32>
    %cst_91 = arith.constant 0.000000e+00 : f32
    %158 = vector.broadcast %cst_91 : f32 to vector<8x4xf32>
    %159 = vector.extract_strided_slice %155 {offsets = [0, 0], sizes = [56, 4], strides = [1, 1]} : vector<64x4xf32> to vector<56x4xf32>
    %160 = tpu.concatenate %158, %159 in 0 : vector<8x4xf32>, vector<56x4xf32> -> vector<64x4xf32>
    %cst_92 = arith.constant dense<0.000000e+00> : vector<64x384xf32>
    %161 = tpu.matmul %160, %156, %cst_92 {dimension_numbers = #tpu.dot_dimension_numbers<[1], [0], [0], [1], [0, 0, 1, 1], [], []>} : vector<64x4xf32>, vector<4x384xf32>, vector<64x384xf32> -> vector<64x384xf32>
    %162 = vector.broadcast %16 : vector<1x384xf32> to vector<64x384xf32>
    %163 = arith.addf %161, %162 : vector<64x384xf32>
    %164 = vector.extract_strided_slice %163 {offsets = [0, 0], sizes = [8, 384], strides = [1, 1]} : vector<64x384xf32> to vector<8x384xf32>
    %c0_93 = arith.constant 0 : index
    %c0_94 = arith.constant 0 : index
    %c0_95 = arith.constant 0 : index
    %165 = vector.load %arg11[%c0_93, %c0_94, %c0_95] : memref<8x8x384xf32, #tpu.memory_space<vmem>>, vector<1x8x384xf32>
    %166 = vector.shape_cast %165 : vector<1x8x384xf32> to vector<8x384xf32>
    %167 = vector.shape_cast %164 : vector<8x384xf32> to vector<1x8x384xf32>
    tpu.vector_store %arg11[%c0_93, %c0_94, %c0_95], %167 {strides = array<i32>} : memref<8x8x384xf32, #tpu.memory_space<vmem>>, vector<1x8x384xf32>,
    %168 = vector.extract_strided_slice %163 {offsets = [8, 0], sizes = [8, 384], strides = [1, 1]} : vector<64x384xf32> to vector<8x384xf32>
    %c1_96 = arith.constant 1 : index
    %c0_97 = arith.constant 0 : index
    %c0_98 = arith.constant 0 : index
    %169 = vector.load %arg11[%c1_96, %c0_97, %c0_98] : memref<8x8x384xf32, #tpu.memory_space<vmem>>, vector<1x8x384xf32>
    %170 = vector.shape_cast %169 : vector<1x8x384xf32> to vector<8x384xf32>
    %171 = vector.shape_cast %168 : vector<8x384xf32> to vector<1x8x384xf32>
    tpu.vector_store %arg11[%c1_96, %c0_97, %c0_98], %171 {strides = array<i32>} : memref<8x8x384xf32, #tpu.memory_space<vmem>>, vector<1x8x384xf32>,
    %172 = vector.extract_strided_slice %163 {offsets = [16, 0], sizes = [8, 384], strides = [1, 1]} : vector<64x384xf32> to vector<8x384xf32>
    %c2_99 = arith.constant 2 : index
    %c0_100 = arith.constant 0 : index
    %c0_101 = arith.constant 0 : index
    %173 = vector.load %arg11[%c2_99, %c0_100, %c0_101] : memref<8x8x384xf32, #tpu.memory_space<vmem>>, vector<1x8x384xf32>
    %174 = vector.shape_cast %173 : vector<1x8x384xf32> to vector<8x384xf32>
    %175 = vector.shape_cast %172 : vector<8x384xf32> to vector<1x8x384xf32>
    tpu.vector_store %arg11[%c2_99, %c0_100, %c0_101], %175 {strides = array<i32>} : memref<8x8x384xf32, #tpu.memory_space<vmem>>, vector<1x8x384xf32>,
    %176 = vector.extract_strided_slice %163 {offsets = [24, 0], sizes = [8, 384], strides = [1, 1]} : vector<64x384xf32> to vector<8x384xf32>
    %c3_102 = arith.constant 3 : index
    %c0_103 = arith.constant 0 : index
    %c0_104 = arith.constant 0 : index
    %177 = vector.load %arg11[%c3_102, %c0_103, %c0_104] : memref<8x8x384xf32, #tpu.memory_space<vmem>>, vector<1x8x384xf32>
    %178 = vector.shape_cast %177 : vector<1x8x384xf32> to vector<8x384xf32>
    %179 = vector.shape_cast %176 : vector<8x384xf32> to vector<1x8x384xf32>
    tpu.vector_store %arg11[%c3_102, %c0_103, %c0_104], %179 {strides = array<i32>} : memref<8x8x384xf32, #tpu.memory_space<vmem>>, vector<1x8x384xf32>,
    %180 = vector.extract_strided_slice %163 {offsets = [32, 0], sizes = [8, 384], strides = [1, 1]} : vector<64x384xf32> to vector<8x384xf32>
    %c4_105 = arith.constant 4 : index
    %c0_106 = arith.constant 0 : index
    %c0_107 = arith.constant 0 : index
    %181 = vector.load %arg11[%c4_105, %c0_106, %c0_107] : memref<8x8x384xf32, #tpu.memory_space<vmem>>, vector<1x8x384xf32>
    %182 = vector.shape_cast %181 : vector<1x8x384xf32> to vector<8x384xf32>
    %183 = vector.shape_cast %180 : vector<8x384xf32> to vector<1x8x384xf32>
    tpu.vector_store %arg11[%c4_105, %c0_106, %c0_107], %183 {strides = array<i32>} : memref<8x8x384xf32, #tpu.memory_space<vmem>>, vector<1x8x384xf32>,
    %184 = vector.extract_strided_slice %163 {offsets = [40, 0], sizes = [8, 384], strides = [1, 1]} : vector<64x384xf32> to vector<8x384xf32>
    %c5_108 = arith.constant 5 : index
    %c0_109 = arith.constant 0 : index
    %c0_110 = arith.constant 0 : index
    %185 = vector.load %arg11[%c5_108, %c0_109, %c0_110] : memref<8x8x384xf32, #tpu.memory_space<vmem>>, vector<1x8x384xf32>
    %186 = vector.shape_cast %185 : vector<1x8x384xf32> to vector<8x384xf32>
    %187 = vector.shape_cast %184 : vector<8x384xf32> to vector<1x8x384xf32>
    tpu.vector_store %arg11[%c5_108, %c0_109, %c0_110], %187 {strides = array<i32>} : memref<8x8x384xf32, #tpu.memory_space<vmem>>, vector<1x8x384xf32>,
    %188 = vector.extract_strided_slice %163 {offsets = [48, 0], sizes = [8, 384], strides = [1, 1]} : vector<64x384xf32> to vector<8x384xf32>
    %c6_111 = arith.constant 6 : index
    %c0_112 = arith.constant 0 : index
    %c0_113 = arith.constant 0 : index
    %189 = vector.load %arg11[%c6_111, %c0_112, %c0_113] : memref<8x8x384xf32, #tpu.memory_space<vmem>>, vector<1x8x384xf32>
    %190 = vector.shape_cast %189 : vector<1x8x384xf32> to vector<8x384xf32>
    %191 = vector.shape_cast %188 : vector<8x384xf32> to vector<1x8x384xf32>
    tpu.vector_store %arg11[%c6_111, %c0_112, %c0_113], %191 {strides = array<i32>} : memref<8x8x384xf32, #tpu.memory_space<vmem>>, vector<1x8x384xf32>,
    %192 = vector.extract_strided_slice %163 {offsets = [56, 0], sizes = [8, 384], strides = [1, 1]} : vector<64x384xf32> to vector<8x384xf32>
    %c7_114 = arith.constant 7 : index
    %c0_115 = arith.constant 0 : index
    %c0_116 = arith.constant 0 : index
    %193 = vector.load %arg11[%c7_114, %c0_115, %c0_116] : memref<8x8x384xf32, #tpu.memory_space<vmem>>, vector<1x8x384xf32>
    %194 = vector.shape_cast %193 : vector<1x8x384xf32> to vector<8x384xf32>
    %195 = vector.shape_cast %192 : vector<8x384xf32> to vector<1x8x384xf32>
    tpu.vector_store %arg11[%c7_114, %c0_115, %c0_116], %195 {strides = array<i32>} : memref<8x8x384xf32, #tpu.memory_space<vmem>>, vector<1x8x384xf32>,
    %cst_117 = arith.constant 0.000000e+00 : f32
    %196 = vector.broadcast %cst_117 : f32 to vector<8x64xf32>
    %c0_118 = arith.constant 0 : index
    %c0_119 = arith.constant 0 : index
    %c0_120 = arith.constant 0 : index
    %197 = vector.load %arg11[%c0_118, %c0_119, %c0_120] : memref<8x8x384xf32, #tpu.memory_space<vmem>>, vector<1x8x384xf32>
    %198 = vector.shape_cast %197 : vector<1x8x384xf32> to vector<8x384xf32>
    %cst_121 = arith.constant dense<0.000000e+00> : vector<8x384xf32>
    %199 = tpu.matmul %196, %157, %cst_121 {dimension_numbers = #tpu.dot_dimension_numbers<[1], [0], [0], [1], [0, 0, 1, 1], [], []>} : vector<8x64xf32>, vector<64x384xf32>, vector<8x384xf32> -> vector<8x384xf32>
    %200 = vector.extract_strided_slice %198 {offsets = [0, 0], sizes = [8, 64], strides = [1, 1]} : vector<8x384xf32> to vector<8x64xf32>
    %201 = vector.extract_strided_slice %199 {offsets = [0, 0], sizes = [8, 64], strides = [1, 1]} : vector<8x384xf32> to vector<8x64xf32>
    %202 = arith.addf %200, %201 : vector<8x64xf32>
    %203 = arith.negf %202 : vector<8x64xf32>
    %204 = math.exp %203 : vector<8x64xf32>
    %cst_122 = arith.constant 1.000000e+00 : f32
    %205 = vector.broadcast %cst_122 : f32 to vector<8x64xf32>
    %206 = arith.addf %205, %204 : vector<8x64xf32>
    %207 = arith.divf %205, %206 : vector<8x64xf32>
    %208 = vector.extract_strided_slice %198 {offsets = [0, 128], sizes = [8, 64], strides = [1, 1]} : vector<8x384xf32> to vector<8x64xf32>
    %209 = vector.extract_strided_slice %199 {offsets = [0, 128], sizes = [8, 64], strides = [1, 1]} : vector<8x384xf32> to vector<8x64xf32>
    %210 = arith.addf %208, %209 : vector<8x64xf32>
    %211 = arith.negf %210 : vector<8x64xf32>
    %212 = math.exp %211 : vector<8x64xf32>
    %cst_123 = arith.constant 1.000000e+00 : f32
    %213 = vector.broadcast %cst_123 : f32 to vector<8x64xf32>
    %214 = arith.addf %213, %212 : vector<8x64xf32>
    %215 = arith.divf %213, %214 : vector<8x64xf32>
    %216 = vector.extract_strided_slice %198 {offsets = [0, 256], sizes = [8, 64], strides = [1, 1]} : vector<8x384xf32> to vector<8x64xf32>
    %217 = vector.extract_strided_slice %199 {offsets = [0, 256], sizes = [8, 64], strides = [1, 1]} : vector<8x384xf32> to vector<8x64xf32>
    %218 = arith.addf %217, %18 : vector<8x64xf32>
    %219 = arith.mulf %207, %218 : vector<8x64xf32>
    %220 = arith.addf %216, %219 : vector<8x64xf32>
    %221 = math.tanh %220 : vector<8x64xf32>
    %cst_124 = arith.constant 1.000000e+00 : f32
    %222 = vector.broadcast %cst_124 : f32 to vector<8x64xf32>
    %223 = arith.subf %222, %215 : vector<8x64xf32>
    %224 = arith.mulf %223, %221 : vector<8x64xf32>
    %225 = arith.mulf %215, %196 : vector<8x64xf32>
    %226 = arith.addf %224, %225 : vector<8x64xf32>
    %c1_125 = arith.constant 1 : index
    %c0_126 = arith.constant 0 : index
    %c0_127 = arith.constant 0 : index
    %227 = vector.load %arg11[%c1_125, %c0_126, %c0_127] : memref<8x8x384xf32, #tpu.memory_space<vmem>>, vector<1x8x384xf32>
    %228 = vector.shape_cast %227 : vector<1x8x384xf32> to vector<8x384xf32>
    %cst_128 = arith.constant dense<0.000000e+00> : vector<8x384xf32>
    %229 = tpu.matmul %226, %157, %cst_128 {dimension_numbers = #tpu.dot_dimension_numbers<[1], [0], [0], [1], [0, 0, 1, 1], [], []>} : vector<8x64xf32>, vector<64x384xf32>, vector<8x384xf32> -> vector<8x384xf32>
    %230 = vector.extract_strided_slice %228 {offsets = [0, 0], sizes = [8, 64], strides = [1, 1]} : vector<8x384xf32> to vector<8x64xf32>
    %231 = vector.extract_strided_slice %229 {offsets = [0, 0], sizes = [8, 64], strides = [1, 1]} : vector<8x384xf32> to vector<8x64xf32>
    %232 = arith.addf %230, %231 : vector<8x64xf32>
    %233 = arith.negf %232 : vector<8x64xf32>
    %234 = math.exp %233 : vector<8x64xf32>
    %cst_129 = arith.constant 1.000000e+00 : f32
    %235 = vector.broadcast %cst_129 : f32 to vector<8x64xf32>
    %236 = arith.addf %235, %234 : vector<8x64xf32>
    %237 = arith.divf %235, %236 : vector<8x64xf32>
    %238 = vector.extract_strided_slice %228 {offsets = [0, 128], sizes = [8, 64], strides = [1, 1]} : vector<8x384xf32> to vector<8x64xf32>
    %239 = vector.extract_strided_slice %229 {offsets = [0, 128], sizes = [8, 64], strides = [1, 1]} : vector<8x384xf32> to vector<8x64xf32>
    %240 = arith.addf %238, %239 : vector<8x64xf32>
    %241 = arith.negf %240 : vector<8x64xf32>
    %242 = math.exp %241 : vector<8x64xf32>
    %cst_130 = arith.constant 1.000000e+00 : f32
    %243 = vector.broadcast %cst_130 : f32 to vector<8x64xf32>
    %244 = arith.addf %243, %242 : vector<8x64xf32>
    %245 = arith.divf %243, %244 : vector<8x64xf32>
    %246 = vector.extract_strided_slice %228 {offsets = [0, 256], sizes = [8, 64], strides = [1, 1]} : vector<8x384xf32> to vector<8x64xf32>
    %247 = vector.extract_strided_slice %229 {offsets = [0, 256], sizes = [8, 64], strides = [1, 1]} : vector<8x384xf32> to vector<8x64xf32>
    %248 = arith.addf %247, %18 : vector<8x64xf32>
    %249 = arith.mulf %237, %248 : vector<8x64xf32>
    %250 = arith.addf %246, %249 : vector<8x64xf32>
    %251 = math.tanh %250 : vector<8x64xf32>
    %cst_131 = arith.constant 1.000000e+00 : f32
    %252 = vector.broadcast %cst_131 : f32 to vector<8x64xf32>
    %253 = arith.subf %252, %245 : vector<8x64xf32>
    %254 = arith.mulf %253, %251 : vector<8x64xf32>
    %255 = arith.mulf %245, %226 : vector<8x64xf32>
    %256 = arith.addf %254, %255 : vector<8x64xf32>
    %c2_132 = arith.constant 2 : index
    %c0_133 = arith.constant 0 : index
    %c0_134 = arith.constant 0 : index
    %257 = vector.load %arg11[%c2_132, %c0_133, %c0_134] : memref<8x8x384xf32, #tpu.memory_space<vmem>>, vector<1x8x384xf32>
    %258 = vector.shape_cast %257 : vector<1x8x384xf32> to vector<8x384xf32>
    %cst_135 = arith.constant dense<0.000000e+00> : vector<8x384xf32>
    %259 = tpu.matmul %256, %157, %cst_135 {dimension_numbers = #tpu.dot_dimension_numbers<[1], [0], [0], [1], [0, 0, 1, 1], [], []>} : vector<8x64xf32>, vector<64x384xf32>, vector<8x384xf32> -> vector<8x384xf32>
    %260 = vector.extract_strided_slice %258 {offsets = [0, 0], sizes = [8, 64], strides = [1, 1]} : vector<8x384xf32> to vector<8x64xf32>
    %261 = vector.extract_strided_slice %259 {offsets = [0, 0], sizes = [8, 64], strides = [1, 1]} : vector<8x384xf32> to vector<8x64xf32>
    %262 = arith.addf %260, %261 : vector<8x64xf32>
    %263 = arith.negf %262 : vector<8x64xf32>
    %264 = math.exp %263 : vector<8x64xf32>
    %cst_136 = arith.constant 1.000000e+00 : f32
    %265 = vector.broadcast %cst_136 : f32 to vector<8x64xf32>
    %266 = arith.addf %265, %264 : vector<8x64xf32>
    %267 = arith.divf %265, %266 : vector<8x64xf32>
    %268 = vector.extract_strided_slice %258 {offsets = [0, 128], sizes = [8, 64], strides = [1, 1]} : vector<8x384xf32> to vector<8x64xf32>
    %269 = vector.extract_strided_slice %259 {offsets = [0, 128], sizes = [8, 64], strides = [1, 1]} : vector<8x384xf32> to vector<8x64xf32>
    %270 = arith.addf %268, %269 : vector<8x64xf32>
    %271 = arith.negf %270 : vector<8x64xf32>
    %272 = math.exp %271 : vector<8x64xf32>
    %cst_137 = arith.constant 1.000000e+00 : f32
    %273 = vector.broadcast %cst_137 : f32 to vector<8x64xf32>
    %274 = arith.addf %273, %272 : vector<8x64xf32>
    %275 = arith.divf %273, %274 : vector<8x64xf32>
    %276 = vector.extract_strided_slice %258 {offsets = [0, 256], sizes = [8, 64], strides = [1, 1]} : vector<8x384xf32> to vector<8x64xf32>
    %277 = vector.extract_strided_slice %259 {offsets = [0, 256], sizes = [8, 64], strides = [1, 1]} : vector<8x384xf32> to vector<8x64xf32>
    %278 = arith.addf %277, %18 : vector<8x64xf32>
    %279 = arith.mulf %267, %278 : vector<8x64xf32>
    %280 = arith.addf %276, %279 : vector<8x64xf32>
    %281 = math.tanh %280 : vector<8x64xf32>
    %cst_138 = arith.constant 1.000000e+00 : f32
    %282 = vector.broadcast %cst_138 : f32 to vector<8x64xf32>
    %283 = arith.subf %282, %275 : vector<8x64xf32>
    %284 = arith.mulf %283, %281 : vector<8x64xf32>
    %285 = arith.mulf %275, %256 : vector<8x64xf32>
    %286 = arith.addf %284, %285 : vector<8x64xf32>
    %c3_139 = arith.constant 3 : index
    %c0_140 = arith.constant 0 : index
    %c0_141 = arith.constant 0 : index
    %287 = vector.load %arg11[%c3_139, %c0_140, %c0_141] : memref<8x8x384xf32, #tpu.memory_space<vmem>>, vector<1x8x384xf32>
    %288 = vector.shape_cast %287 : vector<1x8x384xf32> to vector<8x384xf32>
    %cst_142 = arith.constant dense<0.000000e+00> : vector<8x384xf32>
    %289 = tpu.matmul %286, %157, %cst_142 {dimension_numbers = #tpu.dot_dimension_numbers<[1], [0], [0], [1], [0, 0, 1, 1], [], []>} : vector<8x64xf32>, vector<64x384xf32>, vector<8x384xf32> -> vector<8x384xf32>
    %290 = vector.extract_strided_slice %288 {offsets = [0, 0], sizes = [8, 64], strides = [1, 1]} : vector<8x384xf32> to vector<8x64xf32>
    %291 = vector.extract_strided_slice %289 {offsets = [0, 0], sizes = [8, 64], strides = [1, 1]} : vector<8x384xf32> to vector<8x64xf32>
    %292 = arith.addf %290, %291 : vector<8x64xf32>
    %293 = arith.negf %292 : vector<8x64xf32>
    %294 = math.exp %293 : vector<8x64xf32>
    %cst_143 = arith.constant 1.000000e+00 : f32
    %295 = vector.broadcast %cst_143 : f32 to vector<8x64xf32>
    %296 = arith.addf %295, %294 : vector<8x64xf32>
    %297 = arith.divf %295, %296 : vector<8x64xf32>
    %298 = vector.extract_strided_slice %288 {offsets = [0, 128], sizes = [8, 64], strides = [1, 1]} : vector<8x384xf32> to vector<8x64xf32>
    %299 = vector.extract_strided_slice %289 {offsets = [0, 128], sizes = [8, 64], strides = [1, 1]} : vector<8x384xf32> to vector<8x64xf32>
    %300 = arith.addf %298, %299 : vector<8x64xf32>
    %301 = arith.negf %300 : vector<8x64xf32>
    %302 = math.exp %301 : vector<8x64xf32>
    %cst_144 = arith.constant 1.000000e+00 : f32
    %303 = vector.broadcast %cst_144 : f32 to vector<8x64xf32>
    %304 = arith.addf %303, %302 : vector<8x64xf32>
    %305 = arith.divf %303, %304 : vector<8x64xf32>
    %306 = vector.extract_strided_slice %288 {offsets = [0, 256], sizes = [8, 64], strides = [1, 1]} : vector<8x384xf32> to vector<8x64xf32>
    %307 = vector.extract_strided_slice %289 {offsets = [0, 256], sizes = [8, 64], strides = [1, 1]} : vector<8x384xf32> to vector<8x64xf32>
    %308 = arith.addf %307, %18 : vector<8x64xf32>
    %309 = arith.mulf %297, %308 : vector<8x64xf32>
    %310 = arith.addf %306, %309 : vector<8x64xf32>
    %311 = math.tanh %310 : vector<8x64xf32>
    %cst_145 = arith.constant 1.000000e+00 : f32
    %312 = vector.broadcast %cst_145 : f32 to vector<8x64xf32>
    %313 = arith.subf %312, %305 : vector<8x64xf32>
    %314 = arith.mulf %313, %311 : vector<8x64xf32>
    %315 = arith.mulf %305, %286 : vector<8x64xf32>
    %316 = arith.addf %314, %315 : vector<8x64xf32>
    %c4_146 = arith.constant 4 : index
    %c0_147 = arith.constant 0 : index
    %c0_148 = arith.constant 0 : index
    %317 = vector.load %arg11[%c4_146, %c0_147, %c0_148] : memref<8x8x384xf32, #tpu.memory_space<vmem>>, vector<1x8x384xf32>
    %318 = vector.shape_cast %317 : vector<1x8x384xf32> to vector<8x384xf32>
    %cst_149 = arith.constant dense<0.000000e+00> : vector<8x384xf32>
    %319 = tpu.matmul %316, %157, %cst_149 {dimension_numbers = #tpu.dot_dimension_numbers<[1], [0], [0], [1], [0, 0, 1, 1], [], []>} : vector<8x64xf32>, vector<64x384xf32>, vector<8x384xf32> -> vector<8x384xf32>
    %320 = vector.extract_strided_slice %318 {offsets = [0, 0], sizes = [8, 64], strides = [1, 1]} : vector<8x384xf32> to vector<8x64xf32>
    %321 = vector.extract_strided_slice %319 {offsets = [0, 0], sizes = [8, 64], strides = [1, 1]} : vector<8x384xf32> to vector<8x64xf32>
    %322 = arith.addf %320, %321 : vector<8x64xf32>
    %323 = arith.negf %322 : vector<8x64xf32>
    %324 = math.exp %323 : vector<8x64xf32>
    %cst_150 = arith.constant 1.000000e+00 : f32
    %325 = vector.broadcast %cst_150 : f32 to vector<8x64xf32>
    %326 = arith.addf %325, %324 : vector<8x64xf32>
    %327 = arith.divf %325, %326 : vector<8x64xf32>
    %328 = vector.extract_strided_slice %318 {offsets = [0, 128], sizes = [8, 64], strides = [1, 1]} : vector<8x384xf32> to vector<8x64xf32>
    %329 = vector.extract_strided_slice %319 {offsets = [0, 128], sizes = [8, 64], strides = [1, 1]} : vector<8x384xf32> to vector<8x64xf32>
    %330 = arith.addf %328, %329 : vector<8x64xf32>
    %331 = arith.negf %330 : vector<8x64xf32>
    %332 = math.exp %331 : vector<8x64xf32>
    %cst_151 = arith.constant 1.000000e+00 : f32
    %333 = vector.broadcast %cst_151 : f32 to vector<8x64xf32>
    %334 = arith.addf %333, %332 : vector<8x64xf32>
    %335 = arith.divf %333, %334 : vector<8x64xf32>
    %336 = vector.extract_strided_slice %318 {offsets = [0, 256], sizes = [8, 64], strides = [1, 1]} : vector<8x384xf32> to vector<8x64xf32>
    %337 = vector.extract_strided_slice %319 {offsets = [0, 256], sizes = [8, 64], strides = [1, 1]} : vector<8x384xf32> to vector<8x64xf32>
    %338 = arith.addf %337, %18 : vector<8x64xf32>
    %339 = arith.mulf %327, %338 : vector<8x64xf32>
    %340 = arith.addf %336, %339 : vector<8x64xf32>
    %341 = math.tanh %340 : vector<8x64xf32>
    %cst_152 = arith.constant 1.000000e+00 : f32
    %342 = vector.broadcast %cst_152 : f32 to vector<8x64xf32>
    %343 = arith.subf %342, %335 : vector<8x64xf32>
    %344 = arith.mulf %343, %341 : vector<8x64xf32>
    %345 = arith.mulf %335, %316 : vector<8x64xf32>
    %346 = arith.addf %344, %345 : vector<8x64xf32>
    %c5_153 = arith.constant 5 : index
    %c0_154 = arith.constant 0 : index
    %c0_155 = arith.constant 0 : index
    %347 = vector.load %arg11[%c5_153, %c0_154, %c0_155] : memref<8x8x384xf32, #tpu.memory_space<vmem>>, vector<1x8x384xf32>
    %348 = vector.shape_cast %347 : vector<1x8x384xf32> to vector<8x384xf32>
    %cst_156 = arith.constant dense<0.000000e+00> : vector<8x384xf32>
    %349 = tpu.matmul %346, %157, %cst_156 {dimension_numbers = #tpu.dot_dimension_numbers<[1], [0], [0], [1], [0, 0, 1, 1], [], []>} : vector<8x64xf32>, vector<64x384xf32>, vector<8x384xf32> -> vector<8x384xf32>
    %350 = vector.extract_strided_slice %348 {offsets = [0, 0], sizes = [8, 64], strides = [1, 1]} : vector<8x384xf32> to vector<8x64xf32>
    %351 = vector.extract_strided_slice %349 {offsets = [0, 0], sizes = [8, 64], strides = [1, 1]} : vector<8x384xf32> to vector<8x64xf32>
    %352 = arith.addf %350, %351 : vector<8x64xf32>
    %353 = arith.negf %352 : vector<8x64xf32>
    %354 = math.exp %353 : vector<8x64xf32>
    %cst_157 = arith.constant 1.000000e+00 : f32
    %355 = vector.broadcast %cst_157 : f32 to vector<8x64xf32>
    %356 = arith.addf %355, %354 : vector<8x64xf32>
    %357 = arith.divf %355, %356 : vector<8x64xf32>
    %358 = vector.extract_strided_slice %348 {offsets = [0, 128], sizes = [8, 64], strides = [1, 1]} : vector<8x384xf32> to vector<8x64xf32>
    %359 = vector.extract_strided_slice %349 {offsets = [0, 128], sizes = [8, 64], strides = [1, 1]} : vector<8x384xf32> to vector<8x64xf32>
    %360 = arith.addf %358, %359 : vector<8x64xf32>
    %361 = arith.negf %360 : vector<8x64xf32>
    %362 = math.exp %361 : vector<8x64xf32>
    %cst_158 = arith.constant 1.000000e+00 : f32
    %363 = vector.broadcast %cst_158 : f32 to vector<8x64xf32>
    %364 = arith.addf %363, %362 : vector<8x64xf32>
    %365 = arith.divf %363, %364 : vector<8x64xf32>
    %366 = vector.extract_strided_slice %348 {offsets = [0, 256], sizes = [8, 64], strides = [1, 1]} : vector<8x384xf32> to vector<8x64xf32>
    %367 = vector.extract_strided_slice %349 {offsets = [0, 256], sizes = [8, 64], strides = [1, 1]} : vector<8x384xf32> to vector<8x64xf32>
    %368 = arith.addf %367, %18 : vector<8x64xf32>
    %369 = arith.mulf %357, %368 : vector<8x64xf32>
    %370 = arith.addf %366, %369 : vector<8x64xf32>
    %371 = math.tanh %370 : vector<8x64xf32>
    %cst_159 = arith.constant 1.000000e+00 : f32
    %372 = vector.broadcast %cst_159 : f32 to vector<8x64xf32>
    %373 = arith.subf %372, %365 : vector<8x64xf32>
    %374 = arith.mulf %373, %371 : vector<8x64xf32>
    %375 = arith.mulf %365, %346 : vector<8x64xf32>
    %376 = arith.addf %374, %375 : vector<8x64xf32>
    %c6_160 = arith.constant 6 : index
    %c0_161 = arith.constant 0 : index
    %c0_162 = arith.constant 0 : index
    %377 = vector.load %arg11[%c6_160, %c0_161, %c0_162] : memref<8x8x384xf32, #tpu.memory_space<vmem>>, vector<1x8x384xf32>
    %378 = vector.shape_cast %377 : vector<1x8x384xf32> to vector<8x384xf32>
    %cst_163 = arith.constant dense<0.000000e+00> : vector<8x384xf32>
    %379 = tpu.matmul %376, %157, %cst_163 {dimension_numbers = #tpu.dot_dimension_numbers<[1], [0], [0], [1], [0, 0, 1, 1], [], []>} : vector<8x64xf32>, vector<64x384xf32>, vector<8x384xf32> -> vector<8x384xf32>
    %380 = vector.extract_strided_slice %378 {offsets = [0, 0], sizes = [8, 64], strides = [1, 1]} : vector<8x384xf32> to vector<8x64xf32>
    %381 = vector.extract_strided_slice %379 {offsets = [0, 0], sizes = [8, 64], strides = [1, 1]} : vector<8x384xf32> to vector<8x64xf32>
    %382 = arith.addf %380, %381 : vector<8x64xf32>
    %383 = arith.negf %382 : vector<8x64xf32>
    %384 = math.exp %383 : vector<8x64xf32>
    %cst_164 = arith.constant 1.000000e+00 : f32
    %385 = vector.broadcast %cst_164 : f32 to vector<8x64xf32>
    %386 = arith.addf %385, %384 : vector<8x64xf32>
    %387 = arith.divf %385, %386 : vector<8x64xf32>
    %388 = vector.extract_strided_slice %378 {offsets = [0, 128], sizes = [8, 64], strides = [1, 1]} : vector<8x384xf32> to vector<8x64xf32>
    %389 = vector.extract_strided_slice %379 {offsets = [0, 128], sizes = [8, 64], strides = [1, 1]} : vector<8x384xf32> to vector<8x64xf32>
    %390 = arith.addf %388, %389 : vector<8x64xf32>
    %391 = arith.negf %390 : vector<8x64xf32>
    %392 = math.exp %391 : vector<8x64xf32>
    %cst_165 = arith.constant 1.000000e+00 : f32
    %393 = vector.broadcast %cst_165 : f32 to vector<8x64xf32>
    %394 = arith.addf %393, %392 : vector<8x64xf32>
    %395 = arith.divf %393, %394 : vector<8x64xf32>
    %396 = vector.extract_strided_slice %378 {offsets = [0, 256], sizes = [8, 64], strides = [1, 1]} : vector<8x384xf32> to vector<8x64xf32>
    %397 = vector.extract_strided_slice %379 {offsets = [0, 256], sizes = [8, 64], strides = [1, 1]} : vector<8x384xf32> to vector<8x64xf32>
    %398 = arith.addf %397, %18 : vector<8x64xf32>
    %399 = arith.mulf %387, %398 : vector<8x64xf32>
    %400 = arith.addf %396, %399 : vector<8x64xf32>
    %401 = math.tanh %400 : vector<8x64xf32>
    %cst_166 = arith.constant 1.000000e+00 : f32
    %402 = vector.broadcast %cst_166 : f32 to vector<8x64xf32>
    %403 = arith.subf %402, %395 : vector<8x64xf32>
    %404 = arith.mulf %403, %401 : vector<8x64xf32>
    %405 = arith.mulf %395, %376 : vector<8x64xf32>
    %406 = arith.addf %404, %405 : vector<8x64xf32>
    %c7_167 = arith.constant 7 : index
    %c0_168 = arith.constant 0 : index
    %c0_169 = arith.constant 0 : index
    %407 = vector.load %arg11[%c7_167, %c0_168, %c0_169] : memref<8x8x384xf32, #tpu.memory_space<vmem>>, vector<1x8x384xf32>
    %408 = vector.shape_cast %407 : vector<1x8x384xf32> to vector<8x384xf32>
    %cst_170 = arith.constant dense<0.000000e+00> : vector<8x384xf32>
    %409 = tpu.matmul %406, %157, %cst_170 {dimension_numbers = #tpu.dot_dimension_numbers<[1], [0], [0], [1], [0, 0, 1, 1], [], []>} : vector<8x64xf32>, vector<64x384xf32>, vector<8x384xf32> -> vector<8x384xf32>
    %410 = vector.extract_strided_slice %408 {offsets = [0, 0], sizes = [8, 64], strides = [1, 1]} : vector<8x384xf32> to vector<8x64xf32>
    %411 = vector.extract_strided_slice %409 {offsets = [0, 0], sizes = [8, 64], strides = [1, 1]} : vector<8x384xf32> to vector<8x64xf32>
    %412 = arith.addf %410, %411 : vector<8x64xf32>
    %413 = arith.negf %412 : vector<8x64xf32>
    %414 = math.exp %413 : vector<8x64xf32>
    %cst_171 = arith.constant 1.000000e+00 : f32
    %415 = vector.broadcast %cst_171 : f32 to vector<8x64xf32>
    %416 = arith.addf %415, %414 : vector<8x64xf32>
    %417 = arith.divf %415, %416 : vector<8x64xf32>
    %418 = vector.extract_strided_slice %408 {offsets = [0, 128], sizes = [8, 64], strides = [1, 1]} : vector<8x384xf32> to vector<8x64xf32>
    %419 = vector.extract_strided_slice %409 {offsets = [0, 128], sizes = [8, 64], strides = [1, 1]} : vector<8x384xf32> to vector<8x64xf32>
    %420 = arith.addf %418, %419 : vector<8x64xf32>
    %421 = arith.negf %420 : vector<8x64xf32>
    %422 = math.exp %421 : vector<8x64xf32>
    %cst_172 = arith.constant 1.000000e+00 : f32
    %423 = vector.broadcast %cst_172 : f32 to vector<8x64xf32>
    %424 = arith.addf %423, %422 : vector<8x64xf32>
    %425 = arith.divf %423, %424 : vector<8x64xf32>
    %426 = vector.extract_strided_slice %408 {offsets = [0, 256], sizes = [8, 64], strides = [1, 1]} : vector<8x384xf32> to vector<8x64xf32>
    %427 = vector.extract_strided_slice %409 {offsets = [0, 256], sizes = [8, 64], strides = [1, 1]} : vector<8x384xf32> to vector<8x64xf32>
    %428 = arith.addf %427, %18 : vector<8x64xf32>
    %429 = arith.mulf %417, %428 : vector<8x64xf32>
    %430 = arith.addf %426, %429 : vector<8x64xf32>
    %431 = math.tanh %430 : vector<8x64xf32>
    %cst_173 = arith.constant 1.000000e+00 : f32
    %432 = vector.broadcast %cst_173 : f32 to vector<8x64xf32>
    %433 = arith.subf %432, %425 : vector<8x64xf32>
    %434 = arith.mulf %433, %431 : vector<8x64xf32>
    %435 = arith.mulf %425, %406 : vector<8x64xf32>
    %436 = arith.addf %434, %435 : vector<8x64xf32>
    %437 = tpu.concatenate %196, %226, %256, %286, %316, %346, %376, %406 in 0 : vector<8x64xf32>, vector<8x64xf32>, vector<8x64xf32>, vector<8x64xf32>, vector<8x64xf32>, vector<8x64xf32>, vector<8x64xf32>, vector<8x64xf32> -> vector<64x64xf32>
    %c72 = arith.constant 72 : index
    %c0_174 = arith.constant 0 : index
    %438 = vector.load %arg4[%c72, %c0_174] : memref<208x384xf32, #tpu.memory_space<vmem>>, vector<4x384xf32>
    %c80 = arith.constant 80 : index
    %c0_175 = arith.constant 0 : index
    %439 = vector.load %arg4[%c80, %c0_175] : memref<208x384xf32, #tpu.memory_space<vmem>>, vector<64x384xf32>
    %c144 = arith.constant 144 : index
    %c0_176 = arith.constant 0 : index
    %440 = vector.load %arg4[%c144, %c0_176] : memref<208x384xf32, #tpu.memory_space<vmem>>, vector<64x384xf32>
    %cst_177 = arith.constant dense<0.000000e+00> : vector<64x384xf32>
    %441 = tpu.matmul %155, %438, %cst_177 {dimension_numbers = #tpu.dot_dimension_numbers<[1], [0], [0], [1], [0, 0, 1, 1], [], []>} : vector<64x4xf32>, vector<4x384xf32>, vector<64x384xf32> -> vector<64x384xf32>
    %cst_178 = arith.constant dense<0.000000e+00> : vector<64x384xf32>
    %442 = tpu.matmul %437, %439, %cst_178 {dimension_numbers = #tpu.dot_dimension_numbers<[1], [0], [0], [1], [0, 0, 1, 1], [], []>} : vector<64x64xf32>, vector<64x384xf32>, vector<64x384xf32> -> vector<64x384xf32>
    %443 = arith.addf %441, %442 : vector<64x384xf32>
    %444 = vector.broadcast %17 : vector<1x384xf32> to vector<64x384xf32>
    %445 = arith.addf %443, %444 : vector<64x384xf32>
    %446 = vector.extract_strided_slice %445 {offsets = [0, 0], sizes = [8, 384], strides = [1, 1]} : vector<64x384xf32> to vector<8x384xf32>
    %c0_179 = arith.constant 0 : index
    %c0_180 = arith.constant 0 : index
    %c0_181 = arith.constant 0 : index
    %447 = vector.load %arg12[%c0_179, %c0_180, %c0_181] : memref<8x8x384xf32, #tpu.memory_space<vmem>>, vector<1x8x384xf32>
    %448 = vector.shape_cast %447 : vector<1x8x384xf32> to vector<8x384xf32>
    %449 = vector.shape_cast %446 : vector<8x384xf32> to vector<1x8x384xf32>
    tpu.vector_store %arg12[%c0_179, %c0_180, %c0_181], %449 {strides = array<i32>} : memref<8x8x384xf32, #tpu.memory_space<vmem>>, vector<1x8x384xf32>,
    %450 = vector.extract_strided_slice %445 {offsets = [8, 0], sizes = [8, 384], strides = [1, 1]} : vector<64x384xf32> to vector<8x384xf32>
    %c1_182 = arith.constant 1 : index
    %c0_183 = arith.constant 0 : index
    %c0_184 = arith.constant 0 : index
    %451 = vector.load %arg12[%c1_182, %c0_183, %c0_184] : memref<8x8x384xf32, #tpu.memory_space<vmem>>, vector<1x8x384xf32>
    %452 = vector.shape_cast %451 : vector<1x8x384xf32> to vector<8x384xf32>
    %453 = vector.shape_cast %450 : vector<8x384xf32> to vector<1x8x384xf32>
    tpu.vector_store %arg12[%c1_182, %c0_183, %c0_184], %453 {strides = array<i32>} : memref<8x8x384xf32, #tpu.memory_space<vmem>>, vector<1x8x384xf32>,
    %454 = vector.extract_strided_slice %445 {offsets = [16, 0], sizes = [8, 384], strides = [1, 1]} : vector<64x384xf32> to vector<8x384xf32>
    %c2_185 = arith.constant 2 : index
    %c0_186 = arith.constant 0 : index
    %c0_187 = arith.constant 0 : index
    %455 = vector.load %arg12[%c2_185, %c0_186, %c0_187] : memref<8x8x384xf32, #tpu.memory_space<vmem>>, vector<1x8x384xf32>
    %456 = vector.shape_cast %455 : vector<1x8x384xf32> to vector<8x384xf32>
    %457 = vector.shape_cast %454 : vector<8x384xf32> to vector<1x8x384xf32>
    tpu.vector_store %arg12[%c2_185, %c0_186, %c0_187], %457 {strides = array<i32>} : memref<8x8x384xf32, #tpu.memory_space<vmem>>, vector<1x8x384xf32>,
    %458 = vector.extract_strided_slice %445 {offsets = [24, 0], sizes = [8, 384], strides = [1, 1]} : vector<64x384xf32> to vector<8x384xf32>
    %c3_188 = arith.constant 3 : index
    %c0_189 = arith.constant 0 : index
    %c0_190 = arith.constant 0 : index
    %459 = vector.load %arg12[%c3_188, %c0_189, %c0_190] : memref<8x8x384xf32, #tpu.memory_space<vmem>>, vector<1x8x384xf32>
    %460 = vector.shape_cast %459 : vector<1x8x384xf32> to vector<8x384xf32>
    %461 = vector.shape_cast %458 : vector<8x384xf32> to vector<1x8x384xf32>
    tpu.vector_store %arg12[%c3_188, %c0_189, %c0_190], %461 {strides = array<i32>} : memref<8x8x384xf32, #tpu.memory_space<vmem>>, vector<1x8x384xf32>,
    %462 = vector.extract_strided_slice %445 {offsets = [32, 0], sizes = [8, 384], strides = [1, 1]} : vector<64x384xf32> to vector<8x384xf32>
    %c4_191 = arith.constant 4 : index
    %c0_192 = arith.constant 0 : index
    %c0_193 = arith.constant 0 : index
    %463 = vector.load %arg12[%c4_191, %c0_192, %c0_193] : memref<8x8x384xf32, #tpu.memory_space<vmem>>, vector<1x8x384xf32>
    %464 = vector.shape_cast %463 : vector<1x8x384xf32> to vector<8x384xf32>
    %465 = vector.shape_cast %462 : vector<8x384xf32> to vector<1x8x384xf32>
    tpu.vector_store %arg12[%c4_191, %c0_192, %c0_193], %465 {strides = array<i32>} : memref<8x8x384xf32, #tpu.memory_space<vmem>>, vector<1x8x384xf32>,
    %466 = vector.extract_strided_slice %445 {offsets = [40, 0], sizes = [8, 384], strides = [1, 1]} : vector<64x384xf32> to vector<8x384xf32>
    %c5_194 = arith.constant 5 : index
    %c0_195 = arith.constant 0 : index
    %c0_196 = arith.constant 0 : index
    %467 = vector.load %arg12[%c5_194, %c0_195, %c0_196] : memref<8x8x384xf32, #tpu.memory_space<vmem>>, vector<1x8x384xf32>
    %468 = vector.shape_cast %467 : vector<1x8x384xf32> to vector<8x384xf32>
    %469 = vector.shape_cast %466 : vector<8x384xf32> to vector<1x8x384xf32>
    tpu.vector_store %arg12[%c5_194, %c0_195, %c0_196], %469 {strides = array<i32>} : memref<8x8x384xf32, #tpu.memory_space<vmem>>, vector<1x8x384xf32>,
    %470 = vector.extract_strided_slice %445 {offsets = [48, 0], sizes = [8, 384], strides = [1, 1]} : vector<64x384xf32> to vector<8x384xf32>
    %c6_197 = arith.constant 6 : index
    %c0_198 = arith.constant 0 : index
    %c0_199 = arith.constant 0 : index
    %471 = vector.load %arg12[%c6_197, %c0_198, %c0_199] : memref<8x8x384xf32, #tpu.memory_space<vmem>>, vector<1x8x384xf32>
    %472 = vector.shape_cast %471 : vector<1x8x384xf32> to vector<8x384xf32>
    %473 = vector.shape_cast %470 : vector<8x384xf32> to vector<1x8x384xf32>
    tpu.vector_store %arg12[%c6_197, %c0_198, %c0_199], %473 {strides = array<i32>} : memref<8x8x384xf32, #tpu.memory_space<vmem>>, vector<1x8x384xf32>,
    %474 = vector.extract_strided_slice %445 {offsets = [56, 0], sizes = [8, 384], strides = [1, 1]} : vector<64x384xf32> to vector<8x384xf32>
    %c7_200 = arith.constant 7 : index
    %c0_201 = arith.constant 0 : index
    %c0_202 = arith.constant 0 : index
    %475 = vector.load %arg12[%c7_200, %c0_201, %c0_202] : memref<8x8x384xf32, #tpu.memory_space<vmem>>, vector<1x8x384xf32>
    %476 = vector.shape_cast %475 : vector<1x8x384xf32> to vector<8x384xf32>
    %477 = vector.shape_cast %474 : vector<8x384xf32> to vector<1x8x384xf32>
    tpu.vector_store %arg12[%c7_200, %c0_201, %c0_202], %477 {strides = array<i32>} : memref<8x8x384xf32, #tpu.memory_space<vmem>>, vector<1x8x384xf32>,
    %478 = tpu.iota {dimensions = array<i32: 0>} : vector<8x384xi32>
    %479 = tpu.iota {dimensions = array<i32: 0>} : vector<8x32xi32>
    %cst_203 = arith.constant 0.000000e+00 : f32
    %480 = vector.broadcast %cst_203 : f32 to vector<8x64xf32>
    %481 = arith.index_cast %41 : i32 to index
    %c0_204 = arith.constant 0 : index
    %c0_205 = arith.constant 0 : index
    %482 = vector.load %arg12[%481, %c0_204, %c0_205] : memref<8x8x384xf32, #tpu.memory_space<vmem>>, vector<1x8x384xf32>
    %483 = vector.shape_cast %482 : vector<1x8x384xf32> to vector<8x384xf32>
    %c1_i32_206 = arith.constant 1 : i32
    %484 = vector.broadcast %c1_i32_206 : i32 to vector<8x384xi32>
    %485 = arith.cmpi eq, %478, %484 : vector<8x384xi32>
    %486 = arith.index_cast %45 : i32 to index
    %c0_207 = arith.constant 0 : index
    %c0_208 = arith.constant 0 : index
    %487 = vector.load %arg12[%486, %c0_207, %c0_208] : memref<8x8x384xf32, #tpu.memory_space<vmem>>, vector<1x8x384xf32>
    %488 = vector.shape_cast %487 : vector<1x8x384xf32> to vector<8x384xf32>
    %489 = arith.select %485, %488, %483 : vector<8x384xi1>, vector<8x384xf32>
    %cst_209 = arith.constant dense<0.000000e+00> : vector<8x384xf32>
    %490 = tpu.matmul %480, %440, %cst_209 {dimension_numbers = #tpu.dot_dimension_numbers<[1], [0], [0], [1], [0, 0, 1, 1], [], []>} : vector<8x64xf32>, vector<64x384xf32>, vector<8x384xf32> -> vector<8x384xf32>
    %491 = vector.extract_strided_slice %489 {offsets = [0, 0], sizes = [8, 64], strides = [1, 1]} : vector<8x384xf32> to vector<8x64xf32>
    %492 = vector.extract_strided_slice %490 {offsets = [0, 0], sizes = [8, 64], strides = [1, 1]} : vector<8x384xf32> to vector<8x64xf32>
    %493 = arith.addf %491, %492 : vector<8x64xf32>
    %494 = arith.negf %493 : vector<8x64xf32>
    %495 = math.exp %494 : vector<8x64xf32>
    %cst_210 = arith.constant 1.000000e+00 : f32
    %496 = vector.broadcast %cst_210 : f32 to vector<8x64xf32>
    %497 = arith.addf %496, %495 : vector<8x64xf32>
    %498 = arith.divf %496, %497 : vector<8x64xf32>
    %499 = vector.extract_strided_slice %489 {offsets = [0, 128], sizes = [8, 64], strides = [1, 1]} : vector<8x384xf32> to vector<8x64xf32>
    %500 = vector.extract_strided_slice %490 {offsets = [0, 128], sizes = [8, 64], strides = [1, 1]} : vector<8x384xf32> to vector<8x64xf32>
    %501 = arith.addf %499, %500 : vector<8x64xf32>
    %502 = arith.negf %501 : vector<8x64xf32>
    %503 = math.exp %502 : vector<8x64xf32>
    %cst_211 = arith.constant 1.000000e+00 : f32
    %504 = vector.broadcast %cst_211 : f32 to vector<8x64xf32>
    %505 = arith.addf %504, %503 : vector<8x64xf32>
    %506 = arith.divf %504, %505 : vector<8x64xf32>
    %507 = vector.extract_strided_slice %489 {offsets = [0, 256], sizes = [8, 64], strides = [1, 1]} : vector<8x384xf32> to vector<8x64xf32>
    %508 = vector.extract_strided_slice %490 {offsets = [0, 256], sizes = [8, 64], strides = [1, 1]} : vector<8x384xf32> to vector<8x64xf32>
    %509 = arith.addf %508, %19 : vector<8x64xf32>
    %510 = arith.mulf %498, %509 : vector<8x64xf32>
    %511 = arith.addf %507, %510 : vector<8x64xf32>
    %512 = math.tanh %511 : vector<8x64xf32>
    %cst_212 = arith.constant 1.000000e+00 : f32
    %513 = vector.broadcast %cst_212 : f32 to vector<8x64xf32>
    %514 = arith.subf %513, %506 : vector<8x64xf32>
    %515 = arith.mulf %514, %512 : vector<8x64xf32>
    %516 = arith.mulf %506, %480 : vector<8x64xf32>
    %517 = arith.addf %515, %516 : vector<8x64xf32>
    %518 = arith.index_cast %49 : i32 to index
    %c0_213 = arith.constant 0 : index
    %c0_214 = arith.constant 0 : index
    %519 = vector.load %arg12[%518, %c0_213, %c0_214] : memref<8x8x384xf32, #tpu.memory_space<vmem>>, vector<1x8x384xf32>
    %520 = vector.shape_cast %519 : vector<1x8x384xf32> to vector<8x384xf32>
    %c1_i32_215 = arith.constant 1 : i32
    %521 = vector.broadcast %c1_i32_215 : i32 to vector<8x384xi32>
    %522 = arith.cmpi eq, %478, %521 : vector<8x384xi32>
    %523 = arith.index_cast %53 : i32 to index
    %c0_216 = arith.constant 0 : index
    %c0_217 = arith.constant 0 : index
    %524 = vector.load %arg12[%523, %c0_216, %c0_217] : memref<8x8x384xf32, #tpu.memory_space<vmem>>, vector<1x8x384xf32>
    %525 = vector.shape_cast %524 : vector<1x8x384xf32> to vector<8x384xf32>
    %526 = arith.select %522, %525, %520 : vector<8x384xi1>, vector<8x384xf32>
    %cst_218 = arith.constant dense<0.000000e+00> : vector<8x384xf32>
    %527 = tpu.matmul %517, %440, %cst_218 {dimension_numbers = #tpu.dot_dimension_numbers<[1], [0], [0], [1], [0, 0, 1, 1], [], []>} : vector<8x64xf32>, vector<64x384xf32>, vector<8x384xf32> -> vector<8x384xf32>
    %528 = vector.extract_strided_slice %526 {offsets = [0, 0], sizes = [8, 64], strides = [1, 1]} : vector<8x384xf32> to vector<8x64xf32>
    %529 = vector.extract_strided_slice %527 {offsets = [0, 0], sizes = [8, 64], strides = [1, 1]} : vector<8x384xf32> to vector<8x64xf32>
    %530 = arith.addf %528, %529 : vector<8x64xf32>
    %531 = arith.negf %530 : vector<8x64xf32>
    %532 = math.exp %531 : vector<8x64xf32>
    %cst_219 = arith.constant 1.000000e+00 : f32
    %533 = vector.broadcast %cst_219 : f32 to vector<8x64xf32>
    %534 = arith.addf %533, %532 : vector<8x64xf32>
    %535 = arith.divf %533, %534 : vector<8x64xf32>
    %536 = vector.extract_strided_slice %526 {offsets = [0, 128], sizes = [8, 64], strides = [1, 1]} : vector<8x384xf32> to vector<8x64xf32>
    %537 = vector.extract_strided_slice %527 {offsets = [0, 128], sizes = [8, 64], strides = [1, 1]} : vector<8x384xf32> to vector<8x64xf32>
    %538 = arith.addf %536, %537 : vector<8x64xf32>
    %539 = arith.negf %538 : vector<8x64xf32>
    %540 = math.exp %539 : vector<8x64xf32>
    %cst_220 = arith.constant 1.000000e+00 : f32
    %541 = vector.broadcast %cst_220 : f32 to vector<8x64xf32>
    %542 = arith.addf %541, %540 : vector<8x64xf32>
    %543 = arith.divf %541, %542 : vector<8x64xf32>
    %544 = vector.extract_strided_slice %526 {offsets = [0, 256], sizes = [8, 64], strides = [1, 1]} : vector<8x384xf32> to vector<8x64xf32>
    %545 = vector.extract_strided_slice %527 {offsets = [0, 256], sizes = [8, 64], strides = [1, 1]} : vector<8x384xf32> to vector<8x64xf32>
    %546 = arith.addf %545, %19 : vector<8x64xf32>
    %547 = arith.mulf %535, %546 : vector<8x64xf32>
    %548 = arith.addf %544, %547 : vector<8x64xf32>
    %549 = math.tanh %548 : vector<8x64xf32>
    %cst_221 = arith.constant 1.000000e+00 : f32
    %550 = vector.broadcast %cst_221 : f32 to vector<8x64xf32>
    %551 = arith.subf %550, %543 : vector<8x64xf32>
    %552 = arith.mulf %551, %549 : vector<8x64xf32>
    %553 = arith.mulf %543, %517 : vector<8x64xf32>
    %554 = arith.addf %552, %553 : vector<8x64xf32>
    %555 = arith.index_cast %57 : i32 to index
    %c0_222 = arith.constant 0 : index
    %c0_223 = arith.constant 0 : index
    %556 = vector.load %arg12[%555, %c0_222, %c0_223] : memref<8x8x384xf32, #tpu.memory_space<vmem>>, vector<1x8x384xf32>
    %557 = vector.shape_cast %556 : vector<1x8x384xf32> to vector<8x384xf32>
    %c1_i32_224 = arith.constant 1 : i32
    %558 = vector.broadcast %c1_i32_224 : i32 to vector<8x384xi32>
    %559 = arith.cmpi eq, %478, %558 : vector<8x384xi32>
    %560 = arith.index_cast %61 : i32 to index
    %c0_225 = arith.constant 0 : index
    %c0_226 = arith.constant 0 : index
    %561 = vector.load %arg12[%560, %c0_225, %c0_226] : memref<8x8x384xf32, #tpu.memory_space<vmem>>, vector<1x8x384xf32>
    %562 = vector.shape_cast %561 : vector<1x8x384xf32> to vector<8x384xf32>
    %563 = arith.select %559, %562, %557 : vector<8x384xi1>, vector<8x384xf32>
    %cst_227 = arith.constant dense<0.000000e+00> : vector<8x384xf32>
    %564 = tpu.matmul %554, %440, %cst_227 {dimension_numbers = #tpu.dot_dimension_numbers<[1], [0], [0], [1], [0, 0, 1, 1], [], []>} : vector<8x64xf32>, vector<64x384xf32>, vector<8x384xf32> -> vector<8x384xf32>
    %565 = vector.extract_strided_slice %563 {offsets = [0, 0], sizes = [8, 64], strides = [1, 1]} : vector<8x384xf32> to vector<8x64xf32>
    %566 = vector.extract_strided_slice %564 {offsets = [0, 0], sizes = [8, 64], strides = [1, 1]} : vector<8x384xf32> to vector<8x64xf32>
    %567 = arith.addf %565, %566 : vector<8x64xf32>
    %568 = arith.negf %567 : vector<8x64xf32>
    %569 = math.exp %568 : vector<8x64xf32>
    %cst_228 = arith.constant 1.000000e+00 : f32
    %570 = vector.broadcast %cst_228 : f32 to vector<8x64xf32>
    %571 = arith.addf %570, %569 : vector<8x64xf32>
    %572 = arith.divf %570, %571 : vector<8x64xf32>
    %573 = vector.extract_strided_slice %563 {offsets = [0, 128], sizes = [8, 64], strides = [1, 1]} : vector<8x384xf32> to vector<8x64xf32>
    %574 = vector.extract_strided_slice %564 {offsets = [0, 128], sizes = [8, 64], strides = [1, 1]} : vector<8x384xf32> to vector<8x64xf32>
    %575 = arith.addf %573, %574 : vector<8x64xf32>
    %576 = arith.negf %575 : vector<8x64xf32>
    %577 = math.exp %576 : vector<8x64xf32>
    %cst_229 = arith.constant 1.000000e+00 : f32
    %578 = vector.broadcast %cst_229 : f32 to vector<8x64xf32>
    %579 = arith.addf %578, %577 : vector<8x64xf32>
    %580 = arith.divf %578, %579 : vector<8x64xf32>
    %581 = vector.extract_strided_slice %563 {offsets = [0, 256], sizes = [8, 64], strides = [1, 1]} : vector<8x384xf32> to vector<8x64xf32>
    %582 = vector.extract_strided_slice %564 {offsets = [0, 256], sizes = [8, 64], strides = [1, 1]} : vector<8x384xf32> to vector<8x64xf32>
    %583 = arith.addf %582, %19 : vector<8x64xf32>
    %584 = arith.mulf %572, %583 : vector<8x64xf32>
    %585 = arith.addf %581, %584 : vector<8x64xf32>
    %586 = math.tanh %585 : vector<8x64xf32>
    %cst_230 = arith.constant 1.000000e+00 : f32
    %587 = vector.broadcast %cst_230 : f32 to vector<8x64xf32>
    %588 = arith.subf %587, %580 : vector<8x64xf32>
    %589 = arith.mulf %588, %586 : vector<8x64xf32>
    %590 = arith.mulf %580, %554 : vector<8x64xf32>
    %591 = arith.addf %589, %590 : vector<8x64xf32>
    %592 = arith.index_cast %65 : i32 to index
    %c0_231 = arith.constant 0 : index
    %c0_232 = arith.constant 0 : index
    %593 = vector.load %arg12[%592, %c0_231, %c0_232] : memref<8x8x384xf32, #tpu.memory_space<vmem>>, vector<1x8x384xf32>
    %594 = vector.shape_cast %593 : vector<1x8x384xf32> to vector<8x384xf32>
    %c1_i32_233 = arith.constant 1 : i32
    %595 = vector.broadcast %c1_i32_233 : i32 to vector<8x384xi32>
    %596 = arith.cmpi eq, %478, %595 : vector<8x384xi32>
    %597 = arith.index_cast %69 : i32 to index
    %c0_234 = arith.constant 0 : index
    %c0_235 = arith.constant 0 : index
    %598 = vector.load %arg12[%597, %c0_234, %c0_235] : memref<8x8x384xf32, #tpu.memory_space<vmem>>, vector<1x8x384xf32>
    %599 = vector.shape_cast %598 : vector<1x8x384xf32> to vector<8x384xf32>
    %600 = arith.select %596, %599, %594 : vector<8x384xi1>, vector<8x384xf32>
    %cst_236 = arith.constant dense<0.000000e+00> : vector<8x384xf32>
    %601 = tpu.matmul %591, %440, %cst_236 {dimension_numbers = #tpu.dot_dimension_numbers<[1], [0], [0], [1], [0, 0, 1, 1], [], []>} : vector<8x64xf32>, vector<64x384xf32>, vector<8x384xf32> -> vector<8x384xf32>
    %602 = vector.extract_strided_slice %600 {offsets = [0, 0], sizes = [8, 64], strides = [1, 1]} : vector<8x384xf32> to vector<8x64xf32>
    %603 = vector.extract_strided_slice %601 {offsets = [0, 0], sizes = [8, 64], strides = [1, 1]} : vector<8x384xf32> to vector<8x64xf32>
    %604 = arith.addf %602, %603 : vector<8x64xf32>
    %605 = arith.negf %604 : vector<8x64xf32>
    %606 = math.exp %605 : vector<8x64xf32>
    %cst_237 = arith.constant 1.000000e+00 : f32
    %607 = vector.broadcast %cst_237 : f32 to vector<8x64xf32>
    %608 = arith.addf %607, %606 : vector<8x64xf32>
    %609 = arith.divf %607, %608 : vector<8x64xf32>
    %610 = vector.extract_strided_slice %600 {offsets = [0, 128], sizes = [8, 64], strides = [1, 1]} : vector<8x384xf32> to vector<8x64xf32>
    %611 = vector.extract_strided_slice %601 {offsets = [0, 128], sizes = [8, 64], strides = [1, 1]} : vector<8x384xf32> to vector<8x64xf32>
    %612 = arith.addf %610, %611 : vector<8x64xf32>
    %613 = arith.negf %612 : vector<8x64xf32>
    %614 = math.exp %613 : vector<8x64xf32>
    %cst_238 = arith.constant 1.000000e+00 : f32
    %615 = vector.broadcast %cst_238 : f32 to vector<8x64xf32>
    %616 = arith.addf %615, %614 : vector<8x64xf32>
    %617 = arith.divf %615, %616 : vector<8x64xf32>
    %618 = vector.extract_strided_slice %600 {offsets = [0, 256], sizes = [8, 64], strides = [1, 1]} : vector<8x384xf32> to vector<8x64xf32>
    %619 = vector.extract_strided_slice %601 {offsets = [0, 256], sizes = [8, 64], strides = [1, 1]} : vector<8x384xf32> to vector<8x64xf32>
    %620 = arith.addf %619, %19 : vector<8x64xf32>
    %621 = arith.mulf %609, %620 : vector<8x64xf32>
    %622 = arith.addf %618, %621 : vector<8x64xf32>
    %623 = math.tanh %622 : vector<8x64xf32>
    %cst_239 = arith.constant 1.000000e+00 : f32
    %624 = vector.broadcast %cst_239 : f32 to vector<8x64xf32>
    %625 = arith.subf %624, %617 : vector<8x64xf32>
    %626 = arith.mulf %625, %623 : vector<8x64xf32>
    %627 = arith.mulf %617, %591 : vector<8x64xf32>
    %628 = arith.addf %626, %627 : vector<8x64xf32>
    %629 = arith.index_cast %73 : i32 to index
    %c0_240 = arith.constant 0 : index
    %c0_241 = arith.constant 0 : index
    %630 = vector.load %arg12[%629, %c0_240, %c0_241] : memref<8x8x384xf32, #tpu.memory_space<vmem>>, vector<1x8x384xf32>
    %631 = vector.shape_cast %630 : vector<1x8x384xf32> to vector<8x384xf32>
    %c1_i32_242 = arith.constant 1 : i32
    %632 = vector.broadcast %c1_i32_242 : i32 to vector<8x384xi32>
    %633 = arith.cmpi eq, %478, %632 : vector<8x384xi32>
    %634 = arith.index_cast %77 : i32 to index
    %c0_243 = arith.constant 0 : index
    %c0_244 = arith.constant 0 : index
    %635 = vector.load %arg12[%634, %c0_243, %c0_244] : memref<8x8x384xf32, #tpu.memory_space<vmem>>, vector<1x8x384xf32>
    %636 = vector.shape_cast %635 : vector<1x8x384xf32> to vector<8x384xf32>
    %637 = arith.select %633, %636, %631 : vector<8x384xi1>, vector<8x384xf32>
    %cst_245 = arith.constant dense<0.000000e+00> : vector<8x384xf32>
    %638 = tpu.matmul %628, %440, %cst_245 {dimension_numbers = #tpu.dot_dimension_numbers<[1], [0], [0], [1], [0, 0, 1, 1], [], []>} : vector<8x64xf32>, vector<64x384xf32>, vector<8x384xf32> -> vector<8x384xf32>
    %639 = vector.extract_strided_slice %637 {offsets = [0, 0], sizes = [8, 64], strides = [1, 1]} : vector<8x384xf32> to vector<8x64xf32>
    %640 = vector.extract_strided_slice %638 {offsets = [0, 0], sizes = [8, 64], strides = [1, 1]} : vector<8x384xf32> to vector<8x64xf32>
    %641 = arith.addf %639, %640 : vector<8x64xf32>
    %642 = arith.negf %641 : vector<8x64xf32>
    %643 = math.exp %642 : vector<8x64xf32>
    %cst_246 = arith.constant 1.000000e+00 : f32
    %644 = vector.broadcast %cst_246 : f32 to vector<8x64xf32>
    %645 = arith.addf %644, %643 : vector<8x64xf32>
    %646 = arith.divf %644, %645 : vector<8x64xf32>
    %647 = vector.extract_strided_slice %637 {offsets = [0, 128], sizes = [8, 64], strides = [1, 1]} : vector<8x384xf32> to vector<8x64xf32>
    %648 = vector.extract_strided_slice %638 {offsets = [0, 128], sizes = [8, 64], strides = [1, 1]} : vector<8x384xf32> to vector<8x64xf32>
    %649 = arith.addf %647, %648 : vector<8x64xf32>
    %650 = arith.negf %649 : vector<8x64xf32>
    %651 = math.exp %650 : vector<8x64xf32>
    %cst_247 = arith.constant 1.000000e+00 : f32
    %652 = vector.broadcast %cst_247 : f32 to vector<8x64xf32>
    %653 = arith.addf %652, %651 : vector<8x64xf32>
    %654 = arith.divf %652, %653 : vector<8x64xf32>
    %655 = vector.extract_strided_slice %637 {offsets = [0, 256], sizes = [8, 64], strides = [1, 1]} : vector<8x384xf32> to vector<8x64xf32>
    %656 = vector.extract_strided_slice %638 {offsets = [0, 256], sizes = [8, 64], strides = [1, 1]} : vector<8x384xf32> to vector<8x64xf32>
    %657 = arith.addf %656, %19 : vector<8x64xf32>
    %658 = arith.mulf %646, %657 : vector<8x64xf32>
    %659 = arith.addf %655, %658 : vector<8x64xf32>
    %660 = math.tanh %659 : vector<8x64xf32>
    %cst_248 = arith.constant 1.000000e+00 : f32
    %661 = vector.broadcast %cst_248 : f32 to vector<8x64xf32>
    %662 = arith.subf %661, %654 : vector<8x64xf32>
    %663 = arith.mulf %662, %660 : vector<8x64xf32>
    %664 = arith.mulf %654, %628 : vector<8x64xf32>
    %665 = arith.addf %663, %664 : vector<8x64xf32>
    %666 = arith.index_cast %81 : i32 to index
    %c0_249 = arith.constant 0 : index
    %c0_250 = arith.constant 0 : index
    %667 = vector.load %arg12[%666, %c0_249, %c0_250] : memref<8x8x384xf32, #tpu.memory_space<vmem>>, vector<1x8x384xf32>
    %668 = vector.shape_cast %667 : vector<1x8x384xf32> to vector<8x384xf32>
    %c1_i32_251 = arith.constant 1 : i32
    %669 = vector.broadcast %c1_i32_251 : i32 to vector<8x384xi32>
    %670 = arith.cmpi eq, %478, %669 : vector<8x384xi32>
    %671 = arith.index_cast %85 : i32 to index
    %c0_252 = arith.constant 0 : index
    %c0_253 = arith.constant 0 : index
    %672 = vector.load %arg12[%671, %c0_252, %c0_253] : memref<8x8x384xf32, #tpu.memory_space<vmem>>, vector<1x8x384xf32>
    %673 = vector.shape_cast %672 : vector<1x8x384xf32> to vector<8x384xf32>
    %674 = arith.select %670, %673, %668 : vector<8x384xi1>, vector<8x384xf32>
    %cst_254 = arith.constant dense<0.000000e+00> : vector<8x384xf32>
    %675 = tpu.matmul %665, %440, %cst_254 {dimension_numbers = #tpu.dot_dimension_numbers<[1], [0], [0], [1], [0, 0, 1, 1], [], []>} : vector<8x64xf32>, vector<64x384xf32>, vector<8x384xf32> -> vector<8x384xf32>
    %676 = vector.extract_strided_slice %674 {offsets = [0, 0], sizes = [8, 64], strides = [1, 1]} : vector<8x384xf32> to vector<8x64xf32>
    %677 = vector.extract_strided_slice %675 {offsets = [0, 0], sizes = [8, 64], strides = [1, 1]} : vector<8x384xf32> to vector<8x64xf32>
    %678 = arith.addf %676, %677 : vector<8x64xf32>
    %679 = arith.negf %678 : vector<8x64xf32>
    %680 = math.exp %679 : vector<8x64xf32>
    %cst_255 = arith.constant 1.000000e+00 : f32
    %681 = vector.broadcast %cst_255 : f32 to vector<8x64xf32>
    %682 = arith.addf %681, %680 : vector<8x64xf32>
    %683 = arith.divf %681, %682 : vector<8x64xf32>
    %684 = vector.extract_strided_slice %674 {offsets = [0, 128], sizes = [8, 64], strides = [1, 1]} : vector<8x384xf32> to vector<8x64xf32>
    %685 = vector.extract_strided_slice %675 {offsets = [0, 128], sizes = [8, 64], strides = [1, 1]} : vector<8x384xf32> to vector<8x64xf32>
    %686 = arith.addf %684, %685 : vector<8x64xf32>
    %687 = arith.negf %686 : vector<8x64xf32>
    %688 = math.exp %687 : vector<8x64xf32>
    %cst_256 = arith.constant 1.000000e+00 : f32
    %689 = vector.broadcast %cst_256 : f32 to vector<8x64xf32>
    %690 = arith.addf %689, %688 : vector<8x64xf32>
    %691 = arith.divf %689, %690 : vector<8x64xf32>
    %692 = vector.extract_strided_slice %674 {offsets = [0, 256], sizes = [8, 64], strides = [1, 1]} : vector<8x384xf32> to vector<8x64xf32>
    %693 = vector.extract_strided_slice %675 {offsets = [0, 256], sizes = [8, 64], strides = [1, 1]} : vector<8x384xf32> to vector<8x64xf32>
    %694 = arith.addf %693, %19 : vector<8x64xf32>
    %695 = arith.mulf %683, %694 : vector<8x64xf32>
    %696 = arith.addf %692, %695 : vector<8x64xf32>
    %697 = math.tanh %696 : vector<8x64xf32>
    %cst_257 = arith.constant 1.000000e+00 : f32
    %698 = vector.broadcast %cst_257 : f32 to vector<8x64xf32>
    %699 = arith.subf %698, %691 : vector<8x64xf32>
    %700 = arith.mulf %699, %697 : vector<8x64xf32>
    %701 = arith.mulf %691, %665 : vector<8x64xf32>
    %702 = arith.addf %700, %701 : vector<8x64xf32>
    %703 = arith.index_cast %89 : i32 to index
    %c0_258 = arith.constant 0 : index
    %c0_259 = arith.constant 0 : index
    %704 = vector.load %arg12[%703, %c0_258, %c0_259] : memref<8x8x384xf32, #tpu.memory_space<vmem>>, vector<1x8x384xf32>
    %705 = vector.shape_cast %704 : vector<1x8x384xf32> to vector<8x384xf32>
    %c1_i32_260 = arith.constant 1 : i32
    %706 = vector.broadcast %c1_i32_260 : i32 to vector<8x384xi32>
    %707 = arith.cmpi eq, %478, %706 : vector<8x384xi32>
    %708 = arith.index_cast %93 : i32 to index
    %c0_261 = arith.constant 0 : index
    %c0_262 = arith.constant 0 : index
    %709 = vector.load %arg12[%708, %c0_261, %c0_262] : memref<8x8x384xf32, #tpu.memory_space<vmem>>, vector<1x8x384xf32>
    %710 = vector.shape_cast %709 : vector<1x8x384xf32> to vector<8x384xf32>
    %711 = arith.select %707, %710, %705 : vector<8x384xi1>, vector<8x384xf32>
    %cst_263 = arith.constant dense<0.000000e+00> : vector<8x384xf32>
    %712 = tpu.matmul %702, %440, %cst_263 {dimension_numbers = #tpu.dot_dimension_numbers<[1], [0], [0], [1], [0, 0, 1, 1], [], []>} : vector<8x64xf32>, vector<64x384xf32>, vector<8x384xf32> -> vector<8x384xf32>
    %713 = vector.extract_strided_slice %711 {offsets = [0, 0], sizes = [8, 64], strides = [1, 1]} : vector<8x384xf32> to vector<8x64xf32>
    %714 = vector.extract_strided_slice %712 {offsets = [0, 0], sizes = [8, 64], strides = [1, 1]} : vector<8x384xf32> to vector<8x64xf32>
    %715 = arith.addf %713, %714 : vector<8x64xf32>
    %716 = arith.negf %715 : vector<8x64xf32>
    %717 = math.exp %716 : vector<8x64xf32>
    %cst_264 = arith.constant 1.000000e+00 : f32
    %718 = vector.broadcast %cst_264 : f32 to vector<8x64xf32>
    %719 = arith.addf %718, %717 : vector<8x64xf32>
    %720 = arith.divf %718, %719 : vector<8x64xf32>
    %721 = vector.extract_strided_slice %711 {offsets = [0, 128], sizes = [8, 64], strides = [1, 1]} : vector<8x384xf32> to vector<8x64xf32>
    %722 = vector.extract_strided_slice %712 {offsets = [0, 128], sizes = [8, 64], strides = [1, 1]} : vector<8x384xf32> to vector<8x64xf32>
    %723 = arith.addf %721, %722 : vector<8x64xf32>
    %724 = arith.negf %723 : vector<8x64xf32>
    %725 = math.exp %724 : vector<8x64xf32>
    %cst_265 = arith.constant 1.000000e+00 : f32
    %726 = vector.broadcast %cst_265 : f32 to vector<8x64xf32>
    %727 = arith.addf %726, %725 : vector<8x64xf32>
    %728 = arith.divf %726, %727 : vector<8x64xf32>
    %729 = vector.extract_strided_slice %711 {offsets = [0, 256], sizes = [8, 64], strides = [1, 1]} : vector<8x384xf32> to vector<8x64xf32>
    %730 = vector.extract_strided_slice %712 {offsets = [0, 256], sizes = [8, 64], strides = [1, 1]} : vector<8x384xf32> to vector<8x64xf32>
    %731 = arith.addf %730, %19 : vector<8x64xf32>
    %732 = arith.mulf %720, %731 : vector<8x64xf32>
    %733 = arith.addf %729, %732 : vector<8x64xf32>
    %734 = math.tanh %733 : vector<8x64xf32>
    %cst_266 = arith.constant 1.000000e+00 : f32
    %735 = vector.broadcast %cst_266 : f32 to vector<8x64xf32>
    %736 = arith.subf %735, %728 : vector<8x64xf32>
    %737 = arith.mulf %736, %734 : vector<8x64xf32>
    %738 = arith.mulf %728, %702 : vector<8x64xf32>
    %739 = arith.addf %737, %738 : vector<8x64xf32>
    %740 = arith.index_cast %97 : i32 to index
    %c0_267 = arith.constant 0 : index
    %c0_268 = arith.constant 0 : index
    %741 = vector.load %arg12[%740, %c0_267, %c0_268] : memref<8x8x384xf32, #tpu.memory_space<vmem>>, vector<1x8x384xf32>
    %742 = vector.shape_cast %741 : vector<1x8x384xf32> to vector<8x384xf32>
    %c1_i32_269 = arith.constant 1 : i32
    %743 = vector.broadcast %c1_i32_269 : i32 to vector<8x384xi32>
    %744 = arith.cmpi eq, %478, %743 : vector<8x384xi32>
    %745 = arith.index_cast %101 : i32 to index
    %c0_270 = arith.constant 0 : index
    %c0_271 = arith.constant 0 : index
    %746 = vector.load %arg12[%745, %c0_270, %c0_271] : memref<8x8x384xf32, #tpu.memory_space<vmem>>, vector<1x8x384xf32>
    %747 = vector.shape_cast %746 : vector<1x8x384xf32> to vector<8x384xf32>
    %748 = arith.select %744, %747, %742 : vector<8x384xi1>, vector<8x384xf32>
    %cst_272 = arith.constant dense<0.000000e+00> : vector<8x384xf32>
    %749 = tpu.matmul %739, %440, %cst_272 {dimension_numbers = #tpu.dot_dimension_numbers<[1], [0], [0], [1], [0, 0, 1, 1], [], []>} : vector<8x64xf32>, vector<64x384xf32>, vector<8x384xf32> -> vector<8x384xf32>
    %750 = vector.extract_strided_slice %748 {offsets = [0, 0], sizes = [8, 64], strides = [1, 1]} : vector<8x384xf32> to vector<8x64xf32>
    %751 = vector.extract_strided_slice %749 {offsets = [0, 0], sizes = [8, 64], strides = [1, 1]} : vector<8x384xf32> to vector<8x64xf32>
    %752 = arith.addf %750, %751 : vector<8x64xf32>
    %753 = arith.negf %752 : vector<8x64xf32>
    %754 = math.exp %753 : vector<8x64xf32>
    %cst_273 = arith.constant 1.000000e+00 : f32
    %755 = vector.broadcast %cst_273 : f32 to vector<8x64xf32>
    %756 = arith.addf %755, %754 : vector<8x64xf32>
    %757 = arith.divf %755, %756 : vector<8x64xf32>
    %758 = vector.extract_strided_slice %748 {offsets = [0, 128], sizes = [8, 64], strides = [1, 1]} : vector<8x384xf32> to vector<8x64xf32>
    %759 = vector.extract_strided_slice %749 {offsets = [0, 128], sizes = [8, 64], strides = [1, 1]} : vector<8x384xf32> to vector<8x64xf32>
    %760 = arith.addf %758, %759 : vector<8x64xf32>
    %761 = arith.negf %760 : vector<8x64xf32>
    %762 = math.exp %761 : vector<8x64xf32>
    %cst_274 = arith.constant 1.000000e+00 : f32
    %763 = vector.broadcast %cst_274 : f32 to vector<8x64xf32>
    %764 = arith.addf %763, %762 : vector<8x64xf32>
    %765 = arith.divf %763, %764 : vector<8x64xf32>
    %766 = vector.extract_strided_slice %748 {offsets = [0, 256], sizes = [8, 64], strides = [1, 1]} : vector<8x384xf32> to vector<8x64xf32>
    %767 = vector.extract_strided_slice %749 {offsets = [0, 256], sizes = [8, 64], strides = [1, 1]} : vector<8x384xf32> to vector<8x64xf32>
    %768 = arith.addf %767, %19 : vector<8x64xf32>
    %769 = arith.mulf %757, %768 : vector<8x64xf32>
    %770 = arith.addf %766, %769 : vector<8x64xf32>
    %771 = math.tanh %770 : vector<8x64xf32>
    %cst_275 = arith.constant 1.000000e+00 : f32
    %772 = vector.broadcast %cst_275 : f32 to vector<8x64xf32>
    %773 = arith.subf %772, %765 : vector<8x64xf32>
    %774 = arith.mulf %773, %771 : vector<8x64xf32>
    %775 = arith.mulf %765, %739 : vector<8x64xf32>
    %776 = arith.addf %774, %775 : vector<8x64xf32>
    %777 = tpu.concatenate %517, %554, %591, %628, %665, %702, %739, %776 in 0 : vector<8x64xf32>, vector<8x64xf32>, vector<8x64xf32>, vector<8x64xf32>, vector<8x64xf32>, vector<8x64xf32>, vector<8x64xf32>, vector<8x64xf32> -> vector<64x64xf32>
    %c0_276 = arith.constant 0 : index
    %c0_277 = arith.constant 0 : index
    %778 = vector.load %arg5[%c0_276, %c0_277] : memref<376x32xf32, #tpu.memory_space<vmem>>, vector<64x32xf32>
    %cst_278 = arith.constant dense<0.000000e+00> : vector<64x32xf32>
    %779 = tpu.matmul %777, %778, %cst_278 {dimension_numbers = #tpu.dot_dimension_numbers<[1], [0], [0], [1], [0, 0, 1, 1], [], []>} : vector<64x64xf32>, vector<64x32xf32>, vector<64x32xf32> -> vector<64x32xf32>
    %780 = vector.broadcast %21 : vector<1x32xf32> to vector<64x32xf32>
    %781 = arith.addf %779, %780 : vector<64x32xf32>
    %782 = vector.extract_strided_slice %781 {offsets = [0, 0], sizes = [8, 32], strides = [1, 1]} : vector<64x32xf32> to vector<8x32xf32>
    %c0_279 = arith.constant 0 : index
    %c0_280 = arith.constant 0 : index
    %c0_281 = arith.constant 0 : index
    %783 = vector.load %arg13[%c0_279, %c0_280, %c0_281] : memref<8x8x32xf32, #tpu.memory_space<vmem>>, vector<1x8x32xf32>
    %784 = vector.shape_cast %783 : vector<1x8x32xf32> to vector<8x32xf32>
    %785 = vector.shape_cast %782 : vector<8x32xf32> to vector<1x8x32xf32>
    tpu.vector_store %arg13[%c0_279, %c0_280, %c0_281], %785 {strides = array<i32>} : memref<8x8x32xf32, #tpu.memory_space<vmem>>, vector<1x8x32xf32>,
    %786 = vector.extract_strided_slice %781 {offsets = [8, 0], sizes = [8, 32], strides = [1, 1]} : vector<64x32xf32> to vector<8x32xf32>
    %c1_282 = arith.constant 1 : index
    %c0_283 = arith.constant 0 : index
    %c0_284 = arith.constant 0 : index
    %787 = vector.load %arg13[%c1_282, %c0_283, %c0_284] : memref<8x8x32xf32, #tpu.memory_space<vmem>>, vector<1x8x32xf32>
    %788 = vector.shape_cast %787 : vector<1x8x32xf32> to vector<8x32xf32>
    %789 = vector.shape_cast %786 : vector<8x32xf32> to vector<1x8x32xf32>
    tpu.vector_store %arg13[%c1_282, %c0_283, %c0_284], %789 {strides = array<i32>} : memref<8x8x32xf32, #tpu.memory_space<vmem>>, vector<1x8x32xf32>,
    %790 = vector.extract_strided_slice %781 {offsets = [16, 0], sizes = [8, 32], strides = [1, 1]} : vector<64x32xf32> to vector<8x32xf32>
    %c2_285 = arith.constant 2 : index
    %c0_286 = arith.constant 0 : index
    %c0_287 = arith.constant 0 : index
    %791 = vector.load %arg13[%c2_285, %c0_286, %c0_287] : memref<8x8x32xf32, #tpu.memory_space<vmem>>, vector<1x8x32xf32>
    %792 = vector.shape_cast %791 : vector<1x8x32xf32> to vector<8x32xf32>
    %793 = vector.shape_cast %790 : vector<8x32xf32> to vector<1x8x32xf32>
    tpu.vector_store %arg13[%c2_285, %c0_286, %c0_287], %793 {strides = array<i32>} : memref<8x8x32xf32, #tpu.memory_space<vmem>>, vector<1x8x32xf32>,
    %794 = vector.extract_strided_slice %781 {offsets = [24, 0], sizes = [8, 32], strides = [1, 1]} : vector<64x32xf32> to vector<8x32xf32>
    %c3_288 = arith.constant 3 : index
    %c0_289 = arith.constant 0 : index
    %c0_290 = arith.constant 0 : index
    %795 = vector.load %arg13[%c3_288, %c0_289, %c0_290] : memref<8x8x32xf32, #tpu.memory_space<vmem>>, vector<1x8x32xf32>
    %796 = vector.shape_cast %795 : vector<1x8x32xf32> to vector<8x32xf32>
    %797 = vector.shape_cast %794 : vector<8x32xf32> to vector<1x8x32xf32>
    tpu.vector_store %arg13[%c3_288, %c0_289, %c0_290], %797 {strides = array<i32>} : memref<8x8x32xf32, #tpu.memory_space<vmem>>, vector<1x8x32xf32>,
    %798 = vector.extract_strided_slice %781 {offsets = [32, 0], sizes = [8, 32], strides = [1, 1]} : vector<64x32xf32> to vector<8x32xf32>
    %c4_291 = arith.constant 4 : index
    %c0_292 = arith.constant 0 : index
    %c0_293 = arith.constant 0 : index
    %799 = vector.load %arg13[%c4_291, %c0_292, %c0_293] : memref<8x8x32xf32, #tpu.memory_space<vmem>>, vector<1x8x32xf32>
    %800 = vector.shape_cast %799 : vector<1x8x32xf32> to vector<8x32xf32>
    %801 = vector.shape_cast %798 : vector<8x32xf32> to vector<1x8x32xf32>
    tpu.vector_store %arg13[%c4_291, %c0_292, %c0_293], %801 {strides = array<i32>} : memref<8x8x32xf32, #tpu.memory_space<vmem>>, vector<1x8x32xf32>,
    %802 = vector.extract_strided_slice %781 {offsets = [40, 0], sizes = [8, 32], strides = [1, 1]} : vector<64x32xf32> to vector<8x32xf32>
    %c5_294 = arith.constant 5 : index
    %c0_295 = arith.constant 0 : index
    %c0_296 = arith.constant 0 : index
    %803 = vector.load %arg13[%c5_294, %c0_295, %c0_296] : memref<8x8x32xf32, #tpu.memory_space<vmem>>, vector<1x8x32xf32>
    %804 = vector.shape_cast %803 : vector<1x8x32xf32> to vector<8x32xf32>
    %805 = vector.shape_cast %802 : vector<8x32xf32> to vector<1x8x32xf32>
    tpu.vector_store %arg13[%c5_294, %c0_295, %c0_296], %805 {strides = array<i32>} : memref<8x8x32xf32, #tpu.memory_space<vmem>>, vector<1x8x32xf32>,
    %806 = vector.extract_strided_slice %781 {offsets = [48, 0], sizes = [8, 32], strides = [1, 1]} : vector<64x32xf32> to vector<8x32xf32>
    %c6_297 = arith.constant 6 : index
    %c0_298 = arith.constant 0 : index
    %c0_299 = arith.constant 0 : index
    %807 = vector.load %arg13[%c6_297, %c0_298, %c0_299] : memref<8x8x32xf32, #tpu.memory_space<vmem>>, vector<1x8x32xf32>
    %808 = vector.shape_cast %807 : vector<1x8x32xf32> to vector<8x32xf32>
    %809 = vector.shape_cast %806 : vector<8x32xf32> to vector<1x8x32xf32>
    tpu.vector_store %arg13[%c6_297, %c0_298, %c0_299], %809 {strides = array<i32>} : memref<8x8x32xf32, #tpu.memory_space<vmem>>, vector<1x8x32xf32>,
    %810 = vector.extract_strided_slice %781 {offsets = [56, 0], sizes = [8, 32], strides = [1, 1]} : vector<64x32xf32> to vector<8x32xf32>
    %c7_300 = arith.constant 7 : index
    %c0_301 = arith.constant 0 : index
    %c0_302 = arith.constant 0 : index
    %811 = vector.load %arg13[%c7_300, %c0_301, %c0_302] : memref<8x8x32xf32, #tpu.memory_space<vmem>>, vector<1x8x32xf32>
    %812 = vector.shape_cast %811 : vector<1x8x32xf32> to vector<8x32xf32>
    %813 = vector.shape_cast %810 : vector<8x32xf32> to vector<1x8x32xf32>
    tpu.vector_store %arg13[%c7_300, %c0_301, %c0_302], %813 {strides = array<i32>} : memref<8x8x32xf32, #tpu.memory_space<vmem>>, vector<1x8x32xf32>,
    %814 = arith.index_cast %41 : i32 to index
    %c0_303 = arith.constant 0 : index
    %c0_304 = arith.constant 0 : index
    %815 = vector.load %arg13[%814, %c0_303, %c0_304] : memref<8x8x32xf32, #tpu.memory_space<vmem>>, vector<1x8x32xf32>
    %816 = vector.shape_cast %815 : vector<1x8x32xf32> to vector<8x32xf32>
    %c1_i32_305 = arith.constant 1 : i32
    %817 = vector.broadcast %c1_i32_305 : i32 to vector<8x32xi32>
    %818 = arith.cmpi eq, %479, %817 : vector<8x32xi32>
    %819 = arith.index_cast %45 : i32 to index
    %c0_306 = arith.constant 0 : index
    %c0_307 = arith.constant 0 : index
    %820 = vector.load %arg13[%819, %c0_306, %c0_307] : memref<8x8x32xf32, #tpu.memory_space<vmem>>, vector<1x8x32xf32>
    %821 = vector.shape_cast %820 : vector<1x8x32xf32> to vector<8x32xf32>
    %822 = arith.select %818, %821, %816 : vector<8x32xi1>, vector<8x32xf32>
    %823 = arith.index_cast %49 : i32 to index
    %c0_308 = arith.constant 0 : index
    %c0_309 = arith.constant 0 : index
    %824 = vector.load %arg13[%823, %c0_308, %c0_309] : memref<8x8x32xf32, #tpu.memory_space<vmem>>, vector<1x8x32xf32>
    %825 = vector.shape_cast %824 : vector<1x8x32xf32> to vector<8x32xf32>
    %c1_i32_310 = arith.constant 1 : i32
    %826 = vector.broadcast %c1_i32_310 : i32 to vector<8x32xi32>
    %827 = arith.cmpi eq, %479, %826 : vector<8x32xi32>
    %828 = arith.index_cast %53 : i32 to index
    %c0_311 = arith.constant 0 : index
    %c0_312 = arith.constant 0 : index
    %829 = vector.load %arg13[%828, %c0_311, %c0_312] : memref<8x8x32xf32, #tpu.memory_space<vmem>>, vector<1x8x32xf32>
    %830 = vector.shape_cast %829 : vector<1x8x32xf32> to vector<8x32xf32>
    %831 = arith.select %827, %830, %825 : vector<8x32xi1>, vector<8x32xf32>
    %832 = arith.index_cast %57 : i32 to index
    %c0_313 = arith.constant 0 : index
    %c0_314 = arith.constant 0 : index
    %833 = vector.load %arg13[%832, %c0_313, %c0_314] : memref<8x8x32xf32, #tpu.memory_space<vmem>>, vector<1x8x32xf32>
    %834 = vector.shape_cast %833 : vector<1x8x32xf32> to vector<8x32xf32>
    %c1_i32_315 = arith.constant 1 : i32
    %835 = vector.broadcast %c1_i32_315 : i32 to vector<8x32xi32>
    %836 = arith.cmpi eq, %479, %835 : vector<8x32xi32>
    %837 = arith.index_cast %61 : i32 to index
    %c0_316 = arith.constant 0 : index
    %c0_317 = arith.constant 0 : index
    %838 = vector.load %arg13[%837, %c0_316, %c0_317] : memref<8x8x32xf32, #tpu.memory_space<vmem>>, vector<1x8x32xf32>
    %839 = vector.shape_cast %838 : vector<1x8x32xf32> to vector<8x32xf32>
    %840 = arith.select %836, %839, %834 : vector<8x32xi1>, vector<8x32xf32>
    %841 = arith.index_cast %65 : i32 to index
    %c0_318 = arith.constant 0 : index
    %c0_319 = arith.constant 0 : index
    %842 = vector.load %arg13[%841, %c0_318, %c0_319] : memref<8x8x32xf32, #tpu.memory_space<vmem>>, vector<1x8x32xf32>
    %843 = vector.shape_cast %842 : vector<1x8x32xf32> to vector<8x32xf32>
    %c1_i32_320 = arith.constant 1 : i32
    %844 = vector.broadcast %c1_i32_320 : i32 to vector<8x32xi32>
    %845 = arith.cmpi eq, %479, %844 : vector<8x32xi32>
    %846 = arith.index_cast %69 : i32 to index
    %c0_321 = arith.constant 0 : index
    %c0_322 = arith.constant 0 : index
    %847 = vector.load %arg13[%846, %c0_321, %c0_322] : memref<8x8x32xf32, #tpu.memory_space<vmem>>, vector<1x8x32xf32>
    %848 = vector.shape_cast %847 : vector<1x8x32xf32> to vector<8x32xf32>
    %849 = arith.select %845, %848, %843 : vector<8x32xi1>, vector<8x32xf32>
    %850 = arith.index_cast %73 : i32 to index
    %c0_323 = arith.constant 0 : index
    %c0_324 = arith.constant 0 : index
    %851 = vector.load %arg13[%850, %c0_323, %c0_324] : memref<8x8x32xf32, #tpu.memory_space<vmem>>, vector<1x8x32xf32>
    %852 = vector.shape_cast %851 : vector<1x8x32xf32> to vector<8x32xf32>
    %c1_i32_325 = arith.constant 1 : i32
    %853 = vector.broadcast %c1_i32_325 : i32 to vector<8x32xi32>
    %854 = arith.cmpi eq, %479, %853 : vector<8x32xi32>
    %855 = arith.index_cast %77 : i32 to index
    %c0_326 = arith.constant 0 : index
    %c0_327 = arith.constant 0 : index
    %856 = vector.load %arg13[%855, %c0_326, %c0_327] : memref<8x8x32xf32, #tpu.memory_space<vmem>>, vector<1x8x32xf32>
    %857 = vector.shape_cast %856 : vector<1x8x32xf32> to vector<8x32xf32>
    %858 = arith.select %854, %857, %852 : vector<8x32xi1>, vector<8x32xf32>
    %859 = arith.index_cast %81 : i32 to index
    %c0_328 = arith.constant 0 : index
    %c0_329 = arith.constant 0 : index
    %860 = vector.load %arg13[%859, %c0_328, %c0_329] : memref<8x8x32xf32, #tpu.memory_space<vmem>>, vector<1x8x32xf32>
    %861 = vector.shape_cast %860 : vector<1x8x32xf32> to vector<8x32xf32>
    %c1_i32_330 = arith.constant 1 : i32
    %862 = vector.broadcast %c1_i32_330 : i32 to vector<8x32xi32>
    %863 = arith.cmpi eq, %479, %862 : vector<8x32xi32>
    %864 = arith.index_cast %85 : i32 to index
    %c0_331 = arith.constant 0 : index
    %c0_332 = arith.constant 0 : index
    %865 = vector.load %arg13[%864, %c0_331, %c0_332] : memref<8x8x32xf32, #tpu.memory_space<vmem>>, vector<1x8x32xf32>
    %866 = vector.shape_cast %865 : vector<1x8x32xf32> to vector<8x32xf32>
    %867 = arith.select %863, %866, %861 : vector<8x32xi1>, vector<8x32xf32>
    %868 = arith.index_cast %89 : i32 to index
    %c0_333 = arith.constant 0 : index
    %c0_334 = arith.constant 0 : index
    %869 = vector.load %arg13[%868, %c0_333, %c0_334] : memref<8x8x32xf32, #tpu.memory_space<vmem>>, vector<1x8x32xf32>
    %870 = vector.shape_cast %869 : vector<1x8x32xf32> to vector<8x32xf32>
    %c1_i32_335 = arith.constant 1 : i32
    %871 = vector.broadcast %c1_i32_335 : i32 to vector<8x32xi32>
    %872 = arith.cmpi eq, %479, %871 : vector<8x32xi32>
    %873 = arith.index_cast %93 : i32 to index
    %c0_336 = arith.constant 0 : index
    %c0_337 = arith.constant 0 : index
    %874 = vector.load %arg13[%873, %c0_336, %c0_337] : memref<8x8x32xf32, #tpu.memory_space<vmem>>, vector<1x8x32xf32>
    %875 = vector.shape_cast %874 : vector<1x8x32xf32> to vector<8x32xf32>
    %876 = arith.select %872, %875, %870 : vector<8x32xi1>, vector<8x32xf32>
    %877 = arith.index_cast %97 : i32 to index
    %c0_338 = arith.constant 0 : index
    %c0_339 = arith.constant 0 : index
    %878 = vector.load %arg13[%877, %c0_338, %c0_339] : memref<8x8x32xf32, #tpu.memory_space<vmem>>, vector<1x8x32xf32>
    %879 = vector.shape_cast %878 : vector<1x8x32xf32> to vector<8x32xf32>
    %c1_i32_340 = arith.constant 1 : i32
    %880 = vector.broadcast %c1_i32_340 : i32 to vector<8x32xi32>
    %881 = arith.cmpi eq, %479, %880 : vector<8x32xi32>
    %882 = arith.index_cast %101 : i32 to index
    %c0_341 = arith.constant 0 : index
    %c0_342 = arith.constant 0 : index
    %883 = vector.load %arg13[%882, %c0_341, %c0_342] : memref<8x8x32xf32, #tpu.memory_space<vmem>>, vector<1x8x32xf32>
    %884 = vector.shape_cast %883 : vector<1x8x32xf32> to vector<8x32xf32>
    %885 = arith.select %881, %884, %879 : vector<8x32xi1>, vector<8x32xf32>
    %c64 = arith.constant 64 : index
    %c0_343 = arith.constant 0 : index
    %886 = vector.load %arg5[%c64, %c0_343] : memref<376x32xf32, #tpu.memory_space<vmem>>, vector<8x32xf32>
    %c72_344 = arith.constant 72 : index
    %c0_345 = arith.constant 0 : index
    %887 = vector.load %arg5[%c72_344, %c0_345] : memref<376x32xf32, #tpu.memory_space<vmem>>, vector<32x32xf32>
    %c104 = arith.constant 104 : index
    %c0_346 = arith.constant 0 : index
    %888 = vector.load %arg5[%c104, %c0_346] : memref<376x32xf32, #tpu.memory_space<vmem>>, vector<32x32xf32>
    %c0_347 = arith.constant 0 : index
    %c0_348 = arith.constant 0 : index
    %889 = vector.load %arg6[%c0_347, %c0_348] : memref<96x256xf32, #tpu.memory_space<vmem>>, vector<32x256xf32>
    %c0_349 = arith.constant 0 : index
    %c0_350 = arith.constant 0 : index
    %890 = vector.load %arg2[%c0_349, %c0_350] : memref<64x8xf32, #tpu.memory_space<vmem>>, vector<64x8xf32>
    %cst_351 = arith.constant 0.000000e+00 : f32
    %891 = vector.broadcast %cst_351 : f32 to vector<8x8xf32>
    %cst_352 = arith.constant dense<0.000000e+00> : vector<8x32xf32>
    %892 = tpu.matmul %891, %886, %cst_352 {dimension_numbers = #tpu.dot_dimension_numbers<[1], [0], [0], [1], [0, 0, 1, 1], [], []>} : vector<8x8xf32>, vector<8x32xf32>, vector<8x32xf32> -> vector<8x32xf32>
    %893 = arith.addf %822, %892 : vector<8x32xf32>
    %cst_353 = arith.constant 0.000000e+00 : f32
    %894 = vector.broadcast %cst_353 : f32 to vector<8x32xf32>
    %895 = arith.cmpf ogt, %893, %894 : vector<8x32xf32>
    %cst_354 = arith.constant 0.00999999977 : f32
    %896 = vector.broadcast %cst_354 : f32 to vector<8x32xf32>
    %897 = arith.mulf %896, %893 : vector<8x32xf32>
    %898 = arith.select %895, %893, %897 : vector<8x32xi1>, vector<8x32xf32>
    %cst_355 = arith.constant dense<0.000000e+00> : vector<8x32xf32>
    %899 = tpu.matmul %898, %887, %cst_355 {dimension_numbers = #tpu.dot_dimension_numbers<[1], [0], [0], [1], [0, 0, 1, 1], [], []>} : vector<8x32xf32>, vector<32x32xf32>, vector<8x32xf32> -> vector<8x32xf32>
    %900 = arith.addf %899, %22 : vector<8x32xf32>
    %cst_356 = arith.constant 0.000000e+00 : f32
    %901 = vector.broadcast %cst_356 : f32 to vector<8x32xf32>
    %902 = arith.cmpf ogt, %900, %901 : vector<8x32xf32>
    %cst_357 = arith.constant 0.00999999977 : f32
    %903 = vector.broadcast %cst_357 : f32 to vector<8x32xf32>
    %904 = arith.mulf %903, %900 : vector<8x32xf32>
    %905 = arith.select %902, %900, %904 : vector<8x32xi1>, vector<8x32xf32>
    %cst_358 = arith.constant dense<0.000000e+00> : vector<8x32xf32>
    %906 = tpu.matmul %905, %888, %cst_358 {dimension_numbers = #tpu.dot_dimension_numbers<[1], [0], [0], [1], [0, 0, 1, 1], [], []>} : vector<8x32xf32>, vector<32x32xf32>, vector<8x32xf32> -> vector<8x32xf32>
    %907 = arith.addf %906, %23 : vector<8x32xf32>
    %cst_359 = arith.constant 0.000000e+00 : f32
    %908 = vector.broadcast %cst_359 : f32 to vector<8x32xf32>
    %909 = arith.cmpf ogt, %907, %908 : vector<8x32xf32>
    %cst_360 = arith.constant 0.00999999977 : f32
    %910 = vector.broadcast %cst_360 : f32 to vector<8x32xf32>
    %911 = arith.mulf %910, %907 : vector<8x32xf32>
    %912 = arith.select %909, %907, %911 : vector<8x32xi1>, vector<8x32xf32>
    %cst_361 = arith.constant dense<0.000000e+00> : vector<8x256xf32>
    %913 = tpu.matmul %912, %889, %cst_361 {dimension_numbers = #tpu.dot_dimension_numbers<[1], [0], [0], [1], [0, 0, 1, 1], [], []>} : vector<8x32xf32>, vector<32x256xf32>, vector<8x256xf32> -> vector<8x256xf32>
    %914 = vector.extract_strided_slice %913 {offsets = [0, 0], sizes = [8, 8], strides = [1, 1]} : vector<8x256xf32> to vector<8x8xf32>
    %915 = arith.addf %914, %27 : vector<8x8xf32>
    %916 = vector.extract_strided_slice %913 {offsets = [0, 128], sizes = [8, 8], strides = [1, 1]} : vector<8x256xf32> to vector<8x8xf32>
    %917 = arith.addf %916, %28 : vector<8x8xf32>
    %cst_362 = arith.constant 0.000000e+00 : f32
    %918 = vector.broadcast %cst_362 : f32 to vector<8x8xf32>
    %919 = arith.maximumf %917, %918 : vector<8x8xf32>
    %920 = vector.broadcast %cst_362 : f32 to vector<8x8xf32>
    %921 = arith.subf %917, %920 : vector<8x8xf32>
    %922 = arith.cmpf one, %921, %921 : vector<8x8xf32>
    %923 = vector.broadcast %cst_362 : f32 to vector<8x8xf32>
    %924 = arith.addf %917, %923 : vector<8x8xf32>
    %925 = math.absf %921 : vector<8x8xf32>
    %cst_363 = arith.constant 0.000000e+00 : f32
    %926 = vector.broadcast %cst_363 : f32 to vector<8x8xf32>
    %927 = arith.subf %926, %925 : vector<8x8xf32>
    %928 = math.exp %927 : vector<8x8xf32>
    %929 = math.log1p %928 : vector<8x8xf32>
    %930 = arith.addf %919, %929 : vector<8x8xf32>
    %931 = arith.select %922, %924, %930 : vector<8x8xi1>, vector<8x8xf32>
    %cst_364 = arith.constant 9.99999997E-7 : f32
    %932 = vector.broadcast %cst_364 : f32 to vector<8x8xf32>
    %933 = arith.addf %931, %932 : vector<8x8xf32>
    %934 = vector.extract_strided_slice %890 {offsets = [0, 0], sizes = [8, 8], strides = [1, 1]} : vector<64x8xf32> to vector<8x8xf32>
    %935 = arith.mulf %933, %934 : vector<8x8xf32>
    %936 = arith.addf %915, %935 : vector<8x8xf32>
    %cst_365 = arith.constant dense<0.000000e+00> : vector<8x32xf32>
    %937 = tpu.matmul %936, %886, %cst_365 {dimension_numbers = #tpu.dot_dimension_numbers<[1], [0], [0], [1], [0, 0, 1, 1], [], []>} : vector<8x8xf32>, vector<8x32xf32>, vector<8x32xf32> -> vector<8x32xf32>
    %938 = arith.addf %831, %937 : vector<8x32xf32>
    %cst_366 = arith.constant 0.000000e+00 : f32
    %939 = vector.broadcast %cst_366 : f32 to vector<8x32xf32>
    %940 = arith.cmpf ogt, %938, %939 : vector<8x32xf32>
    %cst_367 = arith.constant 0.00999999977 : f32
    %941 = vector.broadcast %cst_367 : f32 to vector<8x32xf32>
    %942 = arith.mulf %941, %938 : vector<8x32xf32>
    %943 = arith.select %940, %938, %942 : vector<8x32xi1>, vector<8x32xf32>
    %cst_368 = arith.constant dense<0.000000e+00> : vector<8x32xf32>
    %944 = tpu.matmul %943, %887, %cst_368 {dimension_numbers = #tpu.dot_dimension_numbers<[1], [0], [0], [1], [0, 0, 1, 1], [], []>} : vector<8x32xf32>, vector<32x32xf32>, vector<8x32xf32> -> vector<8x32xf32>
    %945 = arith.addf %944, %22 : vector<8x32xf32>
    %cst_369 = arith.constant 0.000000e+00 : f32
    %946 = vector.broadcast %cst_369 : f32 to vector<8x32xf32>
    %947 = arith.cmpf ogt, %945, %946 : vector<8x32xf32>
    %cst_370 = arith.constant 0.00999999977 : f32
    %948 = vector.broadcast %cst_370 : f32 to vector<8x32xf32>
    %949 = arith.mulf %948, %945 : vector<8x32xf32>
    %950 = arith.select %947, %945, %949 : vector<8x32xi1>, vector<8x32xf32>
    %cst_371 = arith.constant dense<0.000000e+00> : vector<8x32xf32>
    %951 = tpu.matmul %950, %888, %cst_371 {dimension_numbers = #tpu.dot_dimension_numbers<[1], [0], [0], [1], [0, 0, 1, 1], [], []>} : vector<8x32xf32>, vector<32x32xf32>, vector<8x32xf32> -> vector<8x32xf32>
    %952 = arith.addf %951, %23 : vector<8x32xf32>
    %cst_372 = arith.constant 0.000000e+00 : f32
    %953 = vector.broadcast %cst_372 : f32 to vector<8x32xf32>
    %954 = arith.cmpf ogt, %952, %953 : vector<8x32xf32>
    %cst_373 = arith.constant 0.00999999977 : f32
    %955 = vector.broadcast %cst_373 : f32 to vector<8x32xf32>
    %956 = arith.mulf %955, %952 : vector<8x32xf32>
    %957 = arith.select %954, %952, %956 : vector<8x32xi1>, vector<8x32xf32>
    %cst_374 = arith.constant dense<0.000000e+00> : vector<8x256xf32>
    %958 = tpu.matmul %957, %889, %cst_374 {dimension_numbers = #tpu.dot_dimension_numbers<[1], [0], [0], [1], [0, 0, 1, 1], [], []>} : vector<8x32xf32>, vector<32x256xf32>, vector<8x256xf32> -> vector<8x256xf32>
    %959 = vector.extract_strided_slice %958 {offsets = [0, 0], sizes = [8, 8], strides = [1, 1]} : vector<8x256xf32> to vector<8x8xf32>
    %960 = arith.addf %959, %27 : vector<8x8xf32>
    %961 = vector.extract_strided_slice %958 {offsets = [0, 128], sizes = [8, 8], strides = [1, 1]} : vector<8x256xf32> to vector<8x8xf32>
    %962 = arith.addf %961, %28 : vector<8x8xf32>
    %cst_375 = arith.constant 0.000000e+00 : f32
    %963 = vector.broadcast %cst_375 : f32 to vector<8x8xf32>
    %964 = arith.maximumf %962, %963 : vector<8x8xf32>
    %965 = vector.broadcast %cst_375 : f32 to vector<8x8xf32>
    %966 = arith.subf %962, %965 : vector<8x8xf32>
    %967 = arith.cmpf one, %966, %966 : vector<8x8xf32>
    %968 = vector.broadcast %cst_375 : f32 to vector<8x8xf32>
    %969 = arith.addf %962, %968 : vector<8x8xf32>
    %970 = math.absf %966 : vector<8x8xf32>
    %cst_376 = arith.constant 0.000000e+00 : f32
    %971 = vector.broadcast %cst_376 : f32 to vector<8x8xf32>
    %972 = arith.subf %971, %970 : vector<8x8xf32>
    %973 = math.exp %972 : vector<8x8xf32>
    %974 = math.log1p %973 : vector<8x8xf32>
    %975 = arith.addf %964, %974 : vector<8x8xf32>
    %976 = arith.select %967, %969, %975 : vector<8x8xi1>, vector<8x8xf32>
    %cst_377 = arith.constant 9.99999997E-7 : f32
    %977 = vector.broadcast %cst_377 : f32 to vector<8x8xf32>
    %978 = arith.addf %976, %977 : vector<8x8xf32>
    %979 = vector.extract_strided_slice %890 {offsets = [8, 0], sizes = [8, 8], strides = [1, 1]} : vector<64x8xf32> to vector<8x8xf32>
    %980 = arith.mulf %978, %979 : vector<8x8xf32>
    %981 = arith.addf %960, %980 : vector<8x8xf32>
    %cst_378 = arith.constant dense<0.000000e+00> : vector<8x32xf32>
    %982 = tpu.matmul %981, %886, %cst_378 {dimension_numbers = #tpu.dot_dimension_numbers<[1], [0], [0], [1], [0, 0, 1, 1], [], []>} : vector<8x8xf32>, vector<8x32xf32>, vector<8x32xf32> -> vector<8x32xf32>
    %983 = arith.addf %840, %982 : vector<8x32xf32>
    %cst_379 = arith.constant 0.000000e+00 : f32
    %984 = vector.broadcast %cst_379 : f32 to vector<8x32xf32>
    %985 = arith.cmpf ogt, %983, %984 : vector<8x32xf32>
    %cst_380 = arith.constant 0.00999999977 : f32
    %986 = vector.broadcast %cst_380 : f32 to vector<8x32xf32>
    %987 = arith.mulf %986, %983 : vector<8x32xf32>
    %988 = arith.select %985, %983, %987 : vector<8x32xi1>, vector<8x32xf32>
    %cst_381 = arith.constant dense<0.000000e+00> : vector<8x32xf32>
    %989 = tpu.matmul %988, %887, %cst_381 {dimension_numbers = #tpu.dot_dimension_numbers<[1], [0], [0], [1], [0, 0, 1, 1], [], []>} : vector<8x32xf32>, vector<32x32xf32>, vector<8x32xf32> -> vector<8x32xf32>
    %990 = arith.addf %989, %22 : vector<8x32xf32>
    %cst_382 = arith.constant 0.000000e+00 : f32
    %991 = vector.broadcast %cst_382 : f32 to vector<8x32xf32>
    %992 = arith.cmpf ogt, %990, %991 : vector<8x32xf32>
    %cst_383 = arith.constant 0.00999999977 : f32
    %993 = vector.broadcast %cst_383 : f32 to vector<8x32xf32>
    %994 = arith.mulf %993, %990 : vector<8x32xf32>
    %995 = arith.select %992, %990, %994 : vector<8x32xi1>, vector<8x32xf32>
    %cst_384 = arith.constant dense<0.000000e+00> : vector<8x32xf32>
    %996 = tpu.matmul %995, %888, %cst_384 {dimension_numbers = #tpu.dot_dimension_numbers<[1], [0], [0], [1], [0, 0, 1, 1], [], []>} : vector<8x32xf32>, vector<32x32xf32>, vector<8x32xf32> -> vector<8x32xf32>
    %997 = arith.addf %996, %23 : vector<8x32xf32>
    %cst_385 = arith.constant 0.000000e+00 : f32
    %998 = vector.broadcast %cst_385 : f32 to vector<8x32xf32>
    %999 = arith.cmpf ogt, %997, %998 : vector<8x32xf32>
    %cst_386 = arith.constant 0.00999999977 : f32
    %1000 = vector.broadcast %cst_386 : f32 to vector<8x32xf32>
    %1001 = arith.mulf %1000, %997 : vector<8x32xf32>
    %1002 = arith.select %999, %997, %1001 : vector<8x32xi1>, vector<8x32xf32>
    %cst_387 = arith.constant dense<0.000000e+00> : vector<8x256xf32>
    %1003 = tpu.matmul %1002, %889, %cst_387 {dimension_numbers = #tpu.dot_dimension_numbers<[1], [0], [0], [1], [0, 0, 1, 1], [], []>} : vector<8x32xf32>, vector<32x256xf32>, vector<8x256xf32> -> vector<8x256xf32>
    %1004 = vector.extract_strided_slice %1003 {offsets = [0, 0], sizes = [8, 8], strides = [1, 1]} : vector<8x256xf32> to vector<8x8xf32>
    %1005 = arith.addf %1004, %27 : vector<8x8xf32>
    %1006 = vector.extract_strided_slice %1003 {offsets = [0, 128], sizes = [8, 8], strides = [1, 1]} : vector<8x256xf32> to vector<8x8xf32>
    %1007 = arith.addf %1006, %28 : vector<8x8xf32>
    %cst_388 = arith.constant 0.000000e+00 : f32
    %1008 = vector.broadcast %cst_388 : f32 to vector<8x8xf32>
    %1009 = arith.maximumf %1007, %1008 : vector<8x8xf32>
    %1010 = vector.broadcast %cst_388 : f32 to vector<8x8xf32>
    %1011 = arith.subf %1007, %1010 : vector<8x8xf32>
    %1012 = arith.cmpf one, %1011, %1011 : vector<8x8xf32>
    %1013 = vector.broadcast %cst_388 : f32 to vector<8x8xf32>
    %1014 = arith.addf %1007, %1013 : vector<8x8xf32>
    %1015 = math.absf %1011 : vector<8x8xf32>
    %cst_389 = arith.constant 0.000000e+00 : f32
    %1016 = vector.broadcast %cst_389 : f32 to vector<8x8xf32>
    %1017 = arith.subf %1016, %1015 : vector<8x8xf32>
    %1018 = math.exp %1017 : vector<8x8xf32>
    %1019 = math.log1p %1018 : vector<8x8xf32>
    %1020 = arith.addf %1009, %1019 : vector<8x8xf32>
    %1021 = arith.select %1012, %1014, %1020 : vector<8x8xi1>, vector<8x8xf32>
    %cst_390 = arith.constant 9.99999997E-7 : f32
    %1022 = vector.broadcast %cst_390 : f32 to vector<8x8xf32>
    %1023 = arith.addf %1021, %1022 : vector<8x8xf32>
    %1024 = vector.extract_strided_slice %890 {offsets = [16, 0], sizes = [8, 8], strides = [1, 1]} : vector<64x8xf32> to vector<8x8xf32>
    %1025 = arith.mulf %1023, %1024 : vector<8x8xf32>
    %1026 = arith.addf %1005, %1025 : vector<8x8xf32>
    %cst_391 = arith.constant dense<0.000000e+00> : vector<8x32xf32>
    %1027 = tpu.matmul %1026, %886, %cst_391 {dimension_numbers = #tpu.dot_dimension_numbers<[1], [0], [0], [1], [0, 0, 1, 1], [], []>} : vector<8x8xf32>, vector<8x32xf32>, vector<8x32xf32> -> vector<8x32xf32>
    %1028 = arith.addf %849, %1027 : vector<8x32xf32>
    %cst_392 = arith.constant 0.000000e+00 : f32
    %1029 = vector.broadcast %cst_392 : f32 to vector<8x32xf32>
    %1030 = arith.cmpf ogt, %1028, %1029 : vector<8x32xf32>
    %cst_393 = arith.constant 0.00999999977 : f32
    %1031 = vector.broadcast %cst_393 : f32 to vector<8x32xf32>
    %1032 = arith.mulf %1031, %1028 : vector<8x32xf32>
    %1033 = arith.select %1030, %1028, %1032 : vector<8x32xi1>, vector<8x32xf32>
    %cst_394 = arith.constant dense<0.000000e+00> : vector<8x32xf32>
    %1034 = tpu.matmul %1033, %887, %cst_394 {dimension_numbers = #tpu.dot_dimension_numbers<[1], [0], [0], [1], [0, 0, 1, 1], [], []>} : vector<8x32xf32>, vector<32x32xf32>, vector<8x32xf32> -> vector<8x32xf32>
    %1035 = arith.addf %1034, %22 : vector<8x32xf32>
    %cst_395 = arith.constant 0.000000e+00 : f32
    %1036 = vector.broadcast %cst_395 : f32 to vector<8x32xf32>
    %1037 = arith.cmpf ogt, %1035, %1036 : vector<8x32xf32>
    %cst_396 = arith.constant 0.00999999977 : f32
    %1038 = vector.broadcast %cst_396 : f32 to vector<8x32xf32>
    %1039 = arith.mulf %1038, %1035 : vector<8x32xf32>
    %1040 = arith.select %1037, %1035, %1039 : vector<8x32xi1>, vector<8x32xf32>
    %cst_397 = arith.constant dense<0.000000e+00> : vector<8x32xf32>
    %1041 = tpu.matmul %1040, %888, %cst_397 {dimension_numbers = #tpu.dot_dimension_numbers<[1], [0], [0], [1], [0, 0, 1, 1], [], []>} : vector<8x32xf32>, vector<32x32xf32>, vector<8x32xf32> -> vector<8x32xf32>
    %1042 = arith.addf %1041, %23 : vector<8x32xf32>
    %cst_398 = arith.constant 0.000000e+00 : f32
    %1043 = vector.broadcast %cst_398 : f32 to vector<8x32xf32>
    %1044 = arith.cmpf ogt, %1042, %1043 : vector<8x32xf32>
    %cst_399 = arith.constant 0.00999999977 : f32
    %1045 = vector.broadcast %cst_399 : f32 to vector<8x32xf32>
    %1046 = arith.mulf %1045, %1042 : vector<8x32xf32>
    %1047 = arith.select %1044, %1042, %1046 : vector<8x32xi1>, vector<8x32xf32>
    %cst_400 = arith.constant dense<0.000000e+00> : vector<8x256xf32>
    %1048 = tpu.matmul %1047, %889, %cst_400 {dimension_numbers = #tpu.dot_dimension_numbers<[1], [0], [0], [1], [0, 0, 1, 1], [], []>} : vector<8x32xf32>, vector<32x256xf32>, vector<8x256xf32> -> vector<8x256xf32>
    %1049 = vector.extract_strided_slice %1048 {offsets = [0, 0], sizes = [8, 8], strides = [1, 1]} : vector<8x256xf32> to vector<8x8xf32>
    %1050 = arith.addf %1049, %27 : vector<8x8xf32>
    %1051 = vector.extract_strided_slice %1048 {offsets = [0, 128], sizes = [8, 8], strides = [1, 1]} : vector<8x256xf32> to vector<8x8xf32>
    %1052 = arith.addf %1051, %28 : vector<8x8xf32>
    %cst_401 = arith.constant 0.000000e+00 : f32
    %1053 = vector.broadcast %cst_401 : f32 to vector<8x8xf32>
    %1054 = arith.maximumf %1052, %1053 : vector<8x8xf32>
    %1055 = vector.broadcast %cst_401 : f32 to vector<8x8xf32>
    %1056 = arith.subf %1052, %1055 : vector<8x8xf32>
    %1057 = arith.cmpf one, %1056, %1056 : vector<8x8xf32>
    %1058 = vector.broadcast %cst_401 : f32 to vector<8x8xf32>
    %1059 = arith.addf %1052, %1058 : vector<8x8xf32>
    %1060 = math.absf %1056 : vector<8x8xf32>
    %cst_402 = arith.constant 0.000000e+00 : f32
    %1061 = vector.broadcast %cst_402 : f32 to vector<8x8xf32>
    %1062 = arith.subf %1061, %1060 : vector<8x8xf32>
    %1063 = math.exp %1062 : vector<8x8xf32>
    %1064 = math.log1p %1063 : vector<8x8xf32>
    %1065 = arith.addf %1054, %1064 : vector<8x8xf32>
    %1066 = arith.select %1057, %1059, %1065 : vector<8x8xi1>, vector<8x8xf32>
    %cst_403 = arith.constant 9.99999997E-7 : f32
    %1067 = vector.broadcast %cst_403 : f32 to vector<8x8xf32>
    %1068 = arith.addf %1066, %1067 : vector<8x8xf32>
    %1069 = vector.extract_strided_slice %890 {offsets = [24, 0], sizes = [8, 8], strides = [1, 1]} : vector<64x8xf32> to vector<8x8xf32>
    %1070 = arith.mulf %1068, %1069 : vector<8x8xf32>
    %1071 = arith.addf %1050, %1070 : vector<8x8xf32>
    %cst_404 = arith.constant dense<0.000000e+00> : vector<8x32xf32>
    %1072 = tpu.matmul %1071, %886, %cst_404 {dimension_numbers = #tpu.dot_dimension_numbers<[1], [0], [0], [1], [0, 0, 1, 1], [], []>} : vector<8x8xf32>, vector<8x32xf32>, vector<8x32xf32> -> vector<8x32xf32>
    %1073 = arith.addf %858, %1072 : vector<8x32xf32>
    %cst_405 = arith.constant 0.000000e+00 : f32
    %1074 = vector.broadcast %cst_405 : f32 to vector<8x32xf32>
    %1075 = arith.cmpf ogt, %1073, %1074 : vector<8x32xf32>
    %cst_406 = arith.constant 0.00999999977 : f32
    %1076 = vector.broadcast %cst_406 : f32 to vector<8x32xf32>
    %1077 = arith.mulf %1076, %1073 : vector<8x32xf32>
    %1078 = arith.select %1075, %1073, %1077 : vector<8x32xi1>, vector<8x32xf32>
    %cst_407 = arith.constant dense<0.000000e+00> : vector<8x32xf32>
    %1079 = tpu.matmul %1078, %887, %cst_407 {dimension_numbers = #tpu.dot_dimension_numbers<[1], [0], [0], [1], [0, 0, 1, 1], [], []>} : vector<8x32xf32>, vector<32x32xf32>, vector<8x32xf32> -> vector<8x32xf32>
    %1080 = arith.addf %1079, %22 : vector<8x32xf32>
    %cst_408 = arith.constant 0.000000e+00 : f32
    %1081 = vector.broadcast %cst_408 : f32 to vector<8x32xf32>
    %1082 = arith.cmpf ogt, %1080, %1081 : vector<8x32xf32>
    %cst_409 = arith.constant 0.00999999977 : f32
    %1083 = vector.broadcast %cst_409 : f32 to vector<8x32xf32>
    %1084 = arith.mulf %1083, %1080 : vector<8x32xf32>
    %1085 = arith.select %1082, %1080, %1084 : vector<8x32xi1>, vector<8x32xf32>
    %cst_410 = arith.constant dense<0.000000e+00> : vector<8x32xf32>
    %1086 = tpu.matmul %1085, %888, %cst_410 {dimension_numbers = #tpu.dot_dimension_numbers<[1], [0], [0], [1], [0, 0, 1, 1], [], []>} : vector<8x32xf32>, vector<32x32xf32>, vector<8x32xf32> -> vector<8x32xf32>
    %1087 = arith.addf %1086, %23 : vector<8x32xf32>
    %cst_411 = arith.constant 0.000000e+00 : f32
    %1088 = vector.broadcast %cst_411 : f32 to vector<8x32xf32>
    %1089 = arith.cmpf ogt, %1087, %1088 : vector<8x32xf32>
    %cst_412 = arith.constant 0.00999999977 : f32
    %1090 = vector.broadcast %cst_412 : f32 to vector<8x32xf32>
    %1091 = arith.mulf %1090, %1087 : vector<8x32xf32>
    %1092 = arith.select %1089, %1087, %1091 : vector<8x32xi1>, vector<8x32xf32>
    %cst_413 = arith.constant dense<0.000000e+00> : vector<8x256xf32>
    %1093 = tpu.matmul %1092, %889, %cst_413 {dimension_numbers = #tpu.dot_dimension_numbers<[1], [0], [0], [1], [0, 0, 1, 1], [], []>} : vector<8x32xf32>, vector<32x256xf32>, vector<8x256xf32> -> vector<8x256xf32>
    %1094 = vector.extract_strided_slice %1093 {offsets = [0, 0], sizes = [8, 8], strides = [1, 1]} : vector<8x256xf32> to vector<8x8xf32>
    %1095 = arith.addf %1094, %27 : vector<8x8xf32>
    %1096 = vector.extract_strided_slice %1093 {offsets = [0, 128], sizes = [8, 8], strides = [1, 1]} : vector<8x256xf32> to vector<8x8xf32>
    %1097 = arith.addf %1096, %28 : vector<8x8xf32>
    %cst_414 = arith.constant 0.000000e+00 : f32
    %1098 = vector.broadcast %cst_414 : f32 to vector<8x8xf32>
    %1099 = arith.maximumf %1097, %1098 : vector<8x8xf32>
    %1100 = vector.broadcast %cst_414 : f32 to vector<8x8xf32>
    %1101 = arith.subf %1097, %1100 : vector<8x8xf32>
    %1102 = arith.cmpf one, %1101, %1101 : vector<8x8xf32>
    %1103 = vector.broadcast %cst_414 : f32 to vector<8x8xf32>
    %1104 = arith.addf %1097, %1103 : vector<8x8xf32>
    %1105 = math.absf %1101 : vector<8x8xf32>
    %cst_415 = arith.constant 0.000000e+00 : f32
    %1106 = vector.broadcast %cst_415 : f32 to vector<8x8xf32>
    %1107 = arith.subf %1106, %1105 : vector<8x8xf32>
    %1108 = math.exp %1107 : vector<8x8xf32>
    %1109 = math.log1p %1108 : vector<8x8xf32>
    %1110 = arith.addf %1099, %1109 : vector<8x8xf32>
    %1111 = arith.select %1102, %1104, %1110 : vector<8x8xi1>, vector<8x8xf32>
    %cst_416 = arith.constant 9.99999997E-7 : f32
    %1112 = vector.broadcast %cst_416 : f32 to vector<8x8xf32>
    %1113 = arith.addf %1111, %1112 : vector<8x8xf32>
    %1114 = vector.extract_strided_slice %890 {offsets = [32, 0], sizes = [8, 8], strides = [1, 1]} : vector<64x8xf32> to vector<8x8xf32>
    %1115 = arith.mulf %1113, %1114 : vector<8x8xf32>
    %1116 = arith.addf %1095, %1115 : vector<8x8xf32>
    %cst_417 = arith.constant dense<0.000000e+00> : vector<8x32xf32>
    %1117 = tpu.matmul %1116, %886, %cst_417 {dimension_numbers = #tpu.dot_dimension_numbers<[1], [0], [0], [1], [0, 0, 1, 1], [], []>} : vector<8x8xf32>, vector<8x32xf32>, vector<8x32xf32> -> vector<8x32xf32>
    %1118 = arith.addf %867, %1117 : vector<8x32xf32>
    %cst_418 = arith.constant 0.000000e+00 : f32
    %1119 = vector.broadcast %cst_418 : f32 to vector<8x32xf32>
    %1120 = arith.cmpf ogt, %1118, %1119 : vector<8x32xf32>
    %cst_419 = arith.constant 0.00999999977 : f32
    %1121 = vector.broadcast %cst_419 : f32 to vector<8x32xf32>
    %1122 = arith.mulf %1121, %1118 : vector<8x32xf32>
    %1123 = arith.select %1120, %1118, %1122 : vector<8x32xi1>, vector<8x32xf32>
    %cst_420 = arith.constant dense<0.000000e+00> : vector<8x32xf32>
    %1124 = tpu.matmul %1123, %887, %cst_420 {dimension_numbers = #tpu.dot_dimension_numbers<[1], [0], [0], [1], [0, 0, 1, 1], [], []>} : vector<8x32xf32>, vector<32x32xf32>, vector<8x32xf32> -> vector<8x32xf32>
    %1125 = arith.addf %1124, %22 : vector<8x32xf32>
    %cst_421 = arith.constant 0.000000e+00 : f32
    %1126 = vector.broadcast %cst_421 : f32 to vector<8x32xf32>
    %1127 = arith.cmpf ogt, %1125, %1126 : vector<8x32xf32>
    %cst_422 = arith.constant 0.00999999977 : f32
    %1128 = vector.broadcast %cst_422 : f32 to vector<8x32xf32>
    %1129 = arith.mulf %1128, %1125 : vector<8x32xf32>
    %1130 = arith.select %1127, %1125, %1129 : vector<8x32xi1>, vector<8x32xf32>
    %cst_423 = arith.constant dense<0.000000e+00> : vector<8x32xf32>
    %1131 = tpu.matmul %1130, %888, %cst_423 {dimension_numbers = #tpu.dot_dimension_numbers<[1], [0], [0], [1], [0, 0, 1, 1], [], []>} : vector<8x32xf32>, vector<32x32xf32>, vector<8x32xf32> -> vector<8x32xf32>
    %1132 = arith.addf %1131, %23 : vector<8x32xf32>
    %cst_424 = arith.constant 0.000000e+00 : f32
    %1133 = vector.broadcast %cst_424 : f32 to vector<8x32xf32>
    %1134 = arith.cmpf ogt, %1132, %1133 : vector<8x32xf32>
    %cst_425 = arith.constant 0.00999999977 : f32
    %1135 = vector.broadcast %cst_425 : f32 to vector<8x32xf32>
    %1136 = arith.mulf %1135, %1132 : vector<8x32xf32>
    %1137 = arith.select %1134, %1132, %1136 : vector<8x32xi1>, vector<8x32xf32>
    %cst_426 = arith.constant dense<0.000000e+00> : vector<8x256xf32>
    %1138 = tpu.matmul %1137, %889, %cst_426 {dimension_numbers = #tpu.dot_dimension_numbers<[1], [0], [0], [1], [0, 0, 1, 1], [], []>} : vector<8x32xf32>, vector<32x256xf32>, vector<8x256xf32> -> vector<8x256xf32>
    %1139 = vector.extract_strided_slice %1138 {offsets = [0, 0], sizes = [8, 8], strides = [1, 1]} : vector<8x256xf32> to vector<8x8xf32>
    %1140 = arith.addf %1139, %27 : vector<8x8xf32>
    %1141 = vector.extract_strided_slice %1138 {offsets = [0, 128], sizes = [8, 8], strides = [1, 1]} : vector<8x256xf32> to vector<8x8xf32>
    %1142 = arith.addf %1141, %28 : vector<8x8xf32>
    %cst_427 = arith.constant 0.000000e+00 : f32
    %1143 = vector.broadcast %cst_427 : f32 to vector<8x8xf32>
    %1144 = arith.maximumf %1142, %1143 : vector<8x8xf32>
    %1145 = vector.broadcast %cst_427 : f32 to vector<8x8xf32>
    %1146 = arith.subf %1142, %1145 : vector<8x8xf32>
    %1147 = arith.cmpf one, %1146, %1146 : vector<8x8xf32>
    %1148 = vector.broadcast %cst_427 : f32 to vector<8x8xf32>
    %1149 = arith.addf %1142, %1148 : vector<8x8xf32>
    %1150 = math.absf %1146 : vector<8x8xf32>
    %cst_428 = arith.constant 0.000000e+00 : f32
    %1151 = vector.broadcast %cst_428 : f32 to vector<8x8xf32>
    %1152 = arith.subf %1151, %1150 : vector<8x8xf32>
    %1153 = math.exp %1152 : vector<8x8xf32>
    %1154 = math.log1p %1153 : vector<8x8xf32>
    %1155 = arith.addf %1144, %1154 : vector<8x8xf32>
    %1156 = arith.select %1147, %1149, %1155 : vector<8x8xi1>, vector<8x8xf32>
    %cst_429 = arith.constant 9.99999997E-7 : f32
    %1157 = vector.broadcast %cst_429 : f32 to vector<8x8xf32>
    %1158 = arith.addf %1156, %1157 : vector<8x8xf32>
    %1159 = vector.extract_strided_slice %890 {offsets = [40, 0], sizes = [8, 8], strides = [1, 1]} : vector<64x8xf32> to vector<8x8xf32>
    %1160 = arith.mulf %1158, %1159 : vector<8x8xf32>
    %1161 = arith.addf %1140, %1160 : vector<8x8xf32>
    %cst_430 = arith.constant dense<0.000000e+00> : vector<8x32xf32>
    %1162 = tpu.matmul %1161, %886, %cst_430 {dimension_numbers = #tpu.dot_dimension_numbers<[1], [0], [0], [1], [0, 0, 1, 1], [], []>} : vector<8x8xf32>, vector<8x32xf32>, vector<8x32xf32> -> vector<8x32xf32>
    %1163 = arith.addf %876, %1162 : vector<8x32xf32>
    %cst_431 = arith.constant 0.000000e+00 : f32
    %1164 = vector.broadcast %cst_431 : f32 to vector<8x32xf32>
    %1165 = arith.cmpf ogt, %1163, %1164 : vector<8x32xf32>
    %cst_432 = arith.constant 0.00999999977 : f32
    %1166 = vector.broadcast %cst_432 : f32 to vector<8x32xf32>
    %1167 = arith.mulf %1166, %1163 : vector<8x32xf32>
    %1168 = arith.select %1165, %1163, %1167 : vector<8x32xi1>, vector<8x32xf32>
    %cst_433 = arith.constant dense<0.000000e+00> : vector<8x32xf32>
    %1169 = tpu.matmul %1168, %887, %cst_433 {dimension_numbers = #tpu.dot_dimension_numbers<[1], [0], [0], [1], [0, 0, 1, 1], [], []>} : vector<8x32xf32>, vector<32x32xf32>, vector<8x32xf32> -> vector<8x32xf32>
    %1170 = arith.addf %1169, %22 : vector<8x32xf32>
    %cst_434 = arith.constant 0.000000e+00 : f32
    %1171 = vector.broadcast %cst_434 : f32 to vector<8x32xf32>
    %1172 = arith.cmpf ogt, %1170, %1171 : vector<8x32xf32>
    %cst_435 = arith.constant 0.00999999977 : f32
    %1173 = vector.broadcast %cst_435 : f32 to vector<8x32xf32>
    %1174 = arith.mulf %1173, %1170 : vector<8x32xf32>
    %1175 = arith.select %1172, %1170, %1174 : vector<8x32xi1>, vector<8x32xf32>
    %cst_436 = arith.constant dense<0.000000e+00> : vector<8x32xf32>
    %1176 = tpu.matmul %1175, %888, %cst_436 {dimension_numbers = #tpu.dot_dimension_numbers<[1], [0], [0], [1], [0, 0, 1, 1], [], []>} : vector<8x32xf32>, vector<32x32xf32>, vector<8x32xf32> -> vector<8x32xf32>
    %1177 = arith.addf %1176, %23 : vector<8x32xf32>
    %cst_437 = arith.constant 0.000000e+00 : f32
    %1178 = vector.broadcast %cst_437 : f32 to vector<8x32xf32>
    %1179 = arith.cmpf ogt, %1177, %1178 : vector<8x32xf32>
    %cst_438 = arith.constant 0.00999999977 : f32
    %1180 = vector.broadcast %cst_438 : f32 to vector<8x32xf32>
    %1181 = arith.mulf %1180, %1177 : vector<8x32xf32>
    %1182 = arith.select %1179, %1177, %1181 : vector<8x32xi1>, vector<8x32xf32>
    %cst_439 = arith.constant dense<0.000000e+00> : vector<8x256xf32>
    %1183 = tpu.matmul %1182, %889, %cst_439 {dimension_numbers = #tpu.dot_dimension_numbers<[1], [0], [0], [1], [0, 0, 1, 1], [], []>} : vector<8x32xf32>, vector<32x256xf32>, vector<8x256xf32> -> vector<8x256xf32>
    %1184 = vector.extract_strided_slice %1183 {offsets = [0, 0], sizes = [8, 8], strides = [1, 1]} : vector<8x256xf32> to vector<8x8xf32>
    %1185 = arith.addf %1184, %27 : vector<8x8xf32>
    %1186 = vector.extract_strided_slice %1183 {offsets = [0, 128], sizes = [8, 8], strides = [1, 1]} : vector<8x256xf32> to vector<8x8xf32>
    %1187 = arith.addf %1186, %28 : vector<8x8xf32>
    %cst_440 = arith.constant 0.000000e+00 : f32
    %1188 = vector.broadcast %cst_440 : f32 to vector<8x8xf32>
    %1189 = arith.maximumf %1187, %1188 : vector<8x8xf32>
    %1190 = vector.broadcast %cst_440 : f32 to vector<8x8xf32>
    %1191 = arith.subf %1187, %1190 : vector<8x8xf32>
    %1192 = arith.cmpf one, %1191, %1191 : vector<8x8xf32>
    %1193 = vector.broadcast %cst_440 : f32 to vector<8x8xf32>
    %1194 = arith.addf %1187, %1193 : vector<8x8xf32>
    %1195 = math.absf %1191 : vector<8x8xf32>
    %cst_441 = arith.constant 0.000000e+00 : f32
    %1196 = vector.broadcast %cst_441 : f32 to vector<8x8xf32>
    %1197 = arith.subf %1196, %1195 : vector<8x8xf32>
    %1198 = math.exp %1197 : vector<8x8xf32>
    %1199 = math.log1p %1198 : vector<8x8xf32>
    %1200 = arith.addf %1189, %1199 : vector<8x8xf32>
    %1201 = arith.select %1192, %1194, %1200 : vector<8x8xi1>, vector<8x8xf32>
    %cst_442 = arith.constant 9.99999997E-7 : f32
    %1202 = vector.broadcast %cst_442 : f32 to vector<8x8xf32>
    %1203 = arith.addf %1201, %1202 : vector<8x8xf32>
    %1204 = vector.extract_strided_slice %890 {offsets = [48, 0], sizes = [8, 8], strides = [1, 1]} : vector<64x8xf32> to vector<8x8xf32>
    %1205 = arith.mulf %1203, %1204 : vector<8x8xf32>
    %1206 = arith.addf %1185, %1205 : vector<8x8xf32>
    %cst_443 = arith.constant dense<0.000000e+00> : vector<8x32xf32>
    %1207 = tpu.matmul %1206, %886, %cst_443 {dimension_numbers = #tpu.dot_dimension_numbers<[1], [0], [0], [1], [0, 0, 1, 1], [], []>} : vector<8x8xf32>, vector<8x32xf32>, vector<8x32xf32> -> vector<8x32xf32>
    %1208 = arith.addf %885, %1207 : vector<8x32xf32>
    %cst_444 = arith.constant 0.000000e+00 : f32
    %1209 = vector.broadcast %cst_444 : f32 to vector<8x32xf32>
    %1210 = arith.cmpf ogt, %1208, %1209 : vector<8x32xf32>
    %cst_445 = arith.constant 0.00999999977 : f32
    %1211 = vector.broadcast %cst_445 : f32 to vector<8x32xf32>
    %1212 = arith.mulf %1211, %1208 : vector<8x32xf32>
    %1213 = arith.select %1210, %1208, %1212 : vector<8x32xi1>, vector<8x32xf32>
    %cst_446 = arith.constant dense<0.000000e+00> : vector<8x32xf32>
    %1214 = tpu.matmul %1213, %887, %cst_446 {dimension_numbers = #tpu.dot_dimension_numbers<[1], [0], [0], [1], [0, 0, 1, 1], [], []>} : vector<8x32xf32>, vector<32x32xf32>, vector<8x32xf32> -> vector<8x32xf32>
    %1215 = arith.addf %1214, %22 : vector<8x32xf32>
    %cst_447 = arith.constant 0.000000e+00 : f32
    %1216 = vector.broadcast %cst_447 : f32 to vector<8x32xf32>
    %1217 = arith.cmpf ogt, %1215, %1216 : vector<8x32xf32>
    %cst_448 = arith.constant 0.00999999977 : f32
    %1218 = vector.broadcast %cst_448 : f32 to vector<8x32xf32>
    %1219 = arith.mulf %1218, %1215 : vector<8x32xf32>
    %1220 = arith.select %1217, %1215, %1219 : vector<8x32xi1>, vector<8x32xf32>
    %cst_449 = arith.constant dense<0.000000e+00> : vector<8x32xf32>
    %1221 = tpu.matmul %1220, %888, %cst_449 {dimension_numbers = #tpu.dot_dimension_numbers<[1], [0], [0], [1], [0, 0, 1, 1], [], []>} : vector<8x32xf32>, vector<32x32xf32>, vector<8x32xf32> -> vector<8x32xf32>
    %1222 = arith.addf %1221, %23 : vector<8x32xf32>
    %cst_450 = arith.constant 0.000000e+00 : f32
    %1223 = vector.broadcast %cst_450 : f32 to vector<8x32xf32>
    %1224 = arith.cmpf ogt, %1222, %1223 : vector<8x32xf32>
    %cst_451 = arith.constant 0.00999999977 : f32
    %1225 = vector.broadcast %cst_451 : f32 to vector<8x32xf32>
    %1226 = arith.mulf %1225, %1222 : vector<8x32xf32>
    %1227 = arith.select %1224, %1222, %1226 : vector<8x32xi1>, vector<8x32xf32>
    %cst_452 = arith.constant dense<0.000000e+00> : vector<8x256xf32>
    %1228 = tpu.matmul %1227, %889, %cst_452 {dimension_numbers = #tpu.dot_dimension_numbers<[1], [0], [0], [1], [0, 0, 1, 1], [], []>} : vector<8x32xf32>, vector<32x256xf32>, vector<8x256xf32> -> vector<8x256xf32>
    %1229 = vector.extract_strided_slice %1228 {offsets = [0, 0], sizes = [8, 8], strides = [1, 1]} : vector<8x256xf32> to vector<8x8xf32>
    %1230 = arith.addf %1229, %27 : vector<8x8xf32>
    %1231 = vector.extract_strided_slice %1228 {offsets = [0, 128], sizes = [8, 8], strides = [1, 1]} : vector<8x256xf32> to vector<8x8xf32>
    %1232 = arith.addf %1231, %28 : vector<8x8xf32>
    %cst_453 = arith.constant 0.000000e+00 : f32
    %1233 = vector.broadcast %cst_453 : f32 to vector<8x8xf32>
    %1234 = arith.maximumf %1232, %1233 : vector<8x8xf32>
    %1235 = vector.broadcast %cst_453 : f32 to vector<8x8xf32>
    %1236 = arith.subf %1232, %1235 : vector<8x8xf32>
    %1237 = arith.cmpf one, %1236, %1236 : vector<8x8xf32>
    %1238 = vector.broadcast %cst_453 : f32 to vector<8x8xf32>
    %1239 = arith.addf %1232, %1238 : vector<8x8xf32>
    %1240 = math.absf %1236 : vector<8x8xf32>
    %cst_454 = arith.constant 0.000000e+00 : f32
    %1241 = vector.broadcast %cst_454 : f32 to vector<8x8xf32>
    %1242 = arith.subf %1241, %1240 : vector<8x8xf32>
    %1243 = math.exp %1242 : vector<8x8xf32>
    %1244 = math.log1p %1243 : vector<8x8xf32>
    %1245 = arith.addf %1234, %1244 : vector<8x8xf32>
    %1246 = arith.select %1237, %1239, %1245 : vector<8x8xi1>, vector<8x8xf32>
    %cst_455 = arith.constant 9.99999997E-7 : f32
    %1247 = vector.broadcast %cst_455 : f32 to vector<8x8xf32>
    %1248 = arith.addf %1246, %1247 : vector<8x8xf32>
    %1249 = vector.extract_strided_slice %890 {offsets = [56, 0], sizes = [8, 8], strides = [1, 1]} : vector<64x8xf32> to vector<8x8xf32>
    %1250 = arith.mulf %1248, %1249 : vector<8x8xf32>
    %1251 = arith.addf %1230, %1250 : vector<8x8xf32>
    %1252 = tpu.concatenate %936, %981, %1026, %1071, %1116, %1161, %1206, %1251 in 0 : vector<8x8xf32>, vector<8x8xf32>, vector<8x8xf32>, vector<8x8xf32>, vector<8x8xf32>, vector<8x8xf32>, vector<8x8xf32>, vector<8x8xf32> -> vector<64x8xf32>
    %1253 = tpu.concatenate %915, %960, %1005, %1050, %1095, %1140, %1185, %1230 in 0 : vector<8x8xf32>, vector<8x8xf32>, vector<8x8xf32>, vector<8x8xf32>, vector<8x8xf32>, vector<8x8xf32>, vector<8x8xf32>, vector<8x8xf32> -> vector<64x8xf32>
    %1254 = tpu.concatenate %933, %978, %1023, %1068, %1113, %1158, %1203, %1248 in 0 : vector<8x8xf32>, vector<8x8xf32>, vector<8x8xf32>, vector<8x8xf32>, vector<8x8xf32>, vector<8x8xf32>, vector<8x8xf32>, vector<8x8xf32> -> vector<64x8xf32>
    %cst_456 = arith.constant 0.000000e+00 : f32
    %1255 = vector.broadcast %cst_456 : f32 to vector<8x8xf32>
    %1256 = tpu.concatenate %1255, %936, %981, %1026, %1071, %1116, %1161, %1206 in 0 : vector<8x8xf32>, vector<8x8xf32>, vector<8x8xf32>, vector<8x8xf32>, vector<8x8xf32>, vector<8x8xf32>, vector<8x8xf32>, vector<8x8xf32> -> vector<64x8xf32>
    %c136 = arith.constant 136 : index
    %c0_457 = arith.constant 0 : index
    %1257 = vector.load %arg5[%c136, %c0_457] : memref<376x32xf32, #tpu.memory_space<vmem>>, vector<64x32xf32>
    %c200 = arith.constant 200 : index
    %c0_458 = arith.constant 0 : index
    %1258 = vector.load %arg5[%c200, %c0_458] : memref<376x32xf32, #tpu.memory_space<vmem>>, vector<8x32xf32>
    %c208 = arith.constant 208 : index
    %c0_459 = arith.constant 0 : index
    %1259 = vector.load %arg5[%c208, %c0_459] : memref<376x32xf32, #tpu.memory_space<vmem>>, vector<32x32xf32>
    %c240 = arith.constant 240 : index
    %c0_460 = arith.constant 0 : index
    %1260 = vector.load %arg5[%c240, %c0_460] : memref<376x32xf32, #tpu.memory_space<vmem>>, vector<32x32xf32>
    %c32 = arith.constant 32 : index
    %c0_461 = arith.constant 0 : index
    %1261 = vector.load %arg6[%c32, %c0_461] : memref<96x256xf32, #tpu.memory_space<vmem>>, vector<32x256xf32>
    %cst_462 = arith.constant dense<0.000000e+00> : vector<64x32xf32>
    %1262 = tpu.matmul %437, %1257, %cst_462 {dimension_numbers = #tpu.dot_dimension_numbers<[1], [0], [0], [1], [0, 0, 1, 1], [], []>} : vector<64x64xf32>, vector<64x32xf32>, vector<64x32xf32> -> vector<64x32xf32>
    %cst_463 = arith.constant dense<0.000000e+00> : vector<64x32xf32>
    %1263 = tpu.matmul %1256, %1258, %cst_463 {dimension_numbers = #tpu.dot_dimension_numbers<[1], [0], [0], [1], [0, 0, 1, 1], [], []>} : vector<64x8xf32>, vector<8x32xf32>, vector<64x32xf32> -> vector<64x32xf32>
    %1264 = arith.addf %1262, %1263 : vector<64x32xf32>
    %1265 = vector.broadcast %24 : vector<1x32xf32> to vector<64x32xf32>
    %1266 = arith.addf %1264, %1265 : vector<64x32xf32>
    %cst_464 = arith.constant 0.000000e+00 : f32
    %1267 = vector.broadcast %cst_464 : f32 to vector<64x32xf32>
    %1268 = arith.cmpf ogt, %1266, %1267 : vector<64x32xf32>
    %cst_465 = arith.constant 0.00999999977 : f32
    %1269 = vector.broadcast %cst_465 : f32 to vector<64x32xf32>
    %1270 = arith.mulf %1269, %1266 : vector<64x32xf32>
    %1271 = arith.select %1268, %1266, %1270 : vector<64x32xi1>, vector<64x32xf32>
    %cst_466 = arith.constant dense<0.000000e+00> : vector<64x32xf32>
    %1272 = tpu.matmul %1271, %1259, %cst_466 {dimension_numbers = #tpu.dot_dimension_numbers<[1], [0], [0], [1], [0, 0, 1, 1], [], []>} : vector<64x32xf32>, vector<32x32xf32>, vector<64x32xf32> -> vector<64x32xf32>
    %1273 = vector.broadcast %25 : vector<1x32xf32> to vector<64x32xf32>
    %1274 = arith.addf %1272, %1273 : vector<64x32xf32>
    %cst_467 = arith.constant 0.000000e+00 : f32
    %1275 = vector.broadcast %cst_467 : f32 to vector<64x32xf32>
    %1276 = arith.cmpf ogt, %1274, %1275 : vector<64x32xf32>
    %cst_468 = arith.constant 0.00999999977 : f32
    %1277 = vector.broadcast %cst_468 : f32 to vector<64x32xf32>
    %1278 = arith.mulf %1277, %1274 : vector<64x32xf32>
    %1279 = arith.select %1276, %1274, %1278 : vector<64x32xi1>, vector<64x32xf32>
    %cst_469 = arith.constant dense<0.000000e+00> : vector<64x32xf32>
    %1280 = tpu.matmul %1279, %1260, %cst_469 {dimension_numbers = #tpu.dot_dimension_numbers<[1], [0], [0], [1], [0, 0, 1, 1], [], []>} : vector<64x32xf32>, vector<32x32xf32>, vector<64x32xf32> -> vector<64x32xf32>
    %1281 = vector.broadcast %26 : vector<1x32xf32> to vector<64x32xf32>
    %1282 = arith.addf %1280, %1281 : vector<64x32xf32>
    %cst_470 = arith.constant 0.000000e+00 : f32
    %1283 = vector.broadcast %cst_470 : f32 to vector<64x32xf32>
    %1284 = arith.cmpf ogt, %1282, %1283 : vector<64x32xf32>
    %cst_471 = arith.constant 0.00999999977 : f32
    %1285 = vector.broadcast %cst_471 : f32 to vector<64x32xf32>
    %1286 = arith.mulf %1285, %1282 : vector<64x32xf32>
    %1287 = arith.select %1284, %1282, %1286 : vector<64x32xi1>, vector<64x32xf32>
    %cst_472 = arith.constant dense<0.000000e+00> : vector<64x256xf32>
    %1288 = tpu.matmul %1287, %1261, %cst_472 {dimension_numbers = #tpu.dot_dimension_numbers<[1], [0], [0], [1], [0, 0, 1, 1], [], []>} : vector<64x32xf32>, vector<32x256xf32>, vector<64x256xf32> -> vector<64x256xf32>
    %1289 = vector.extract_strided_slice %1288 {offsets = [0, 0], sizes = [64, 8], strides = [1, 1]} : vector<64x256xf32> to vector<64x8xf32>
    %1290 = vector.broadcast %30 : vector<1x8xf32> to vector<64x8xf32>
    %1291 = arith.addf %1289, %1290 : vector<64x8xf32>
    %1292 = vector.extract_strided_slice %1288 {offsets = [0, 128], sizes = [64, 8], strides = [1, 1]} : vector<64x256xf32> to vector<64x8xf32>
    %1293 = vector.broadcast %31 : vector<1x8xf32> to vector<64x8xf32>
    %1294 = arith.addf %1292, %1293 : vector<64x8xf32>
    %cst_473 = arith.constant 0.000000e+00 : f32
    %1295 = vector.broadcast %cst_473 : f32 to vector<64x8xf32>
    %1296 = arith.maximumf %1294, %1295 : vector<64x8xf32>
    %1297 = vector.broadcast %cst_473 : f32 to vector<64x8xf32>
    %1298 = arith.subf %1294, %1297 : vector<64x8xf32>
    %1299 = arith.cmpf one, %1298, %1298 : vector<64x8xf32>
    %1300 = vector.broadcast %cst_473 : f32 to vector<64x8xf32>
    %1301 = arith.addf %1294, %1300 : vector<64x8xf32>
    %1302 = math.absf %1298 : vector<64x8xf32>
    %cst_474 = arith.constant 0.000000e+00 : f32
    %1303 = vector.broadcast %cst_474 : f32 to vector<64x8xf32>
    %1304 = arith.subf %1303, %1302 : vector<64x8xf32>
    %1305 = math.exp %1304 : vector<64x8xf32>
    %1306 = math.log1p %1305 : vector<64x8xf32>
    %1307 = arith.addf %1296, %1306 : vector<64x8xf32>
    %1308 = arith.select %1299, %1301, %1307 : vector<64x8xi1>, vector<64x8xf32>
    %cst_475 = arith.constant 9.99999997E-7 : f32
    %1309 = vector.broadcast %cst_475 : f32 to vector<64x8xf32>
    %1310 = arith.addf %1308, %1309 : vector<64x8xf32>
    %c272 = arith.constant 272 : index
    %c0_476 = arith.constant 0 : index
    %1311 = vector.load %arg5[%c272, %c0_476] : memref<376x32xf32, #tpu.memory_space<vmem>>, vector<8x32xf32>
    %c280 = arith.constant 280 : index
    %c0_477 = arith.constant 0 : index
    %1312 = vector.load %arg5[%c280, %c0_477] : memref<376x32xf32, #tpu.memory_space<vmem>>, vector<64x32xf32>
    %c344 = arith.constant 344 : index
    %c0_478 = arith.constant 0 : index
    %1313 = vector.load %arg5[%c344, %c0_478] : memref<376x32xf32, #tpu.memory_space<vmem>>, vector<32x32xf32>
    %c64_479 = arith.constant 64 : index
    %c0_480 = arith.constant 0 : index
    %1314 = vector.load %arg6[%c64_479, %c0_480] : memref<96x256xf32, #tpu.memory_space<vmem>>, vector<32x256xf32>
    %cst_481 = arith.constant dense<0.000000e+00> : vector<64x32xf32>
    %1315 = tpu.matmul %1252, %1311, %cst_481 {dimension_numbers = #tpu.dot_dimension_numbers<[1], [0], [0], [1], [0, 0, 1, 1], [], []>} : vector<64x8xf32>, vector<8x32xf32>, vector<64x32xf32> -> vector<64x32xf32>
    %cst_482 = arith.constant dense<0.000000e+00> : vector<64x32xf32>
    %1316 = tpu.matmul %437, %1312, %cst_482 {dimension_numbers = #tpu.dot_dimension_numbers<[1], [0], [0], [1], [0, 0, 1, 1], [], []>} : vector<64x64xf32>, vector<64x32xf32>, vector<64x32xf32> -> vector<64x32xf32>
    %1317 = arith.addf %1315, %1316 : vector<64x32xf32>
    %1318 = vector.broadcast %20 : vector<1x32xf32> to vector<64x32xf32>
    %1319 = arith.addf %1317, %1318 : vector<64x32xf32>
    %cst_483 = arith.constant 0.000000e+00 : f32
    %1320 = vector.broadcast %cst_483 : f32 to vector<64x32xf32>
    %1321 = arith.cmpf ogt, %1319, %1320 : vector<64x32xf32>
    %cst_484 = arith.constant 0.00999999977 : f32
    %1322 = vector.broadcast %cst_484 : f32 to vector<64x32xf32>
    %1323 = arith.mulf %1322, %1319 : vector<64x32xf32>
    %1324 = arith.select %1321, %1319, %1323 : vector<64x32xi1>, vector<64x32xf32>
    %cst_485 = arith.constant dense<0.000000e+00> : vector<64x32xf32>
    %1325 = tpu.matmul %1324, %1313, %cst_485 {dimension_numbers = #tpu.dot_dimension_numbers<[1], [0], [0], [1], [0, 0, 1, 1], [], []>} : vector<64x32xf32>, vector<32x32xf32>, vector<64x32xf32> -> vector<64x32xf32>
    %1326 = vector.broadcast %29 : vector<1x32xf32> to vector<64x32xf32>
    %1327 = arith.addf %1325, %1326 : vector<64x32xf32>
    %cst_486 = arith.constant 0.000000e+00 : f32
    %1328 = vector.broadcast %cst_486 : f32 to vector<64x32xf32>
    %1329 = arith.cmpf ogt, %1327, %1328 : vector<64x32xf32>
    %cst_487 = arith.constant 0.00999999977 : f32
    %1330 = vector.broadcast %cst_487 : f32 to vector<64x32xf32>
    %1331 = arith.mulf %1330, %1327 : vector<64x32xf32>
    %1332 = arith.select %1329, %1327, %1331 : vector<64x32xi1>, vector<64x32xf32>
    %cst_488 = arith.constant dense<0.000000e+00> : vector<64x256xf32>
    %1333 = tpu.matmul %1332, %1314, %cst_488 {dimension_numbers = #tpu.dot_dimension_numbers<[1], [0], [0], [1], [0, 0, 1, 1], [], []>} : vector<64x32xf32>, vector<32x256xf32>, vector<64x256xf32> -> vector<64x256xf32>
    %1334 = vector.extract_strided_slice %1333 {offsets = [0, 0], sizes = [64, 1], strides = [1, 1]} : vector<64x256xf32> to vector<64x1xf32>
    %1335 = vector.broadcast %34 : vector<1x1xf32> to vector<64x1xf32>
    %1336 = arith.addf %1334, %1335 : vector<64x1xf32>
    %1337 = vector.extract_strided_slice %1333 {offsets = [0, 128], sizes = [64, 1], strides = [1, 1]} : vector<64x256xf32> to vector<64x1xf32>
    %1338 = vector.broadcast %35 : vector<1x1xf32> to vector<64x1xf32>
    %1339 = arith.addf %1337, %1338 : vector<64x1xf32>
    %cst_489 = arith.constant 0.000000e+00 : f32
    %1340 = vector.broadcast %cst_489 : f32 to vector<64x1xf32>
    %1341 = arith.maximumf %1339, %1340 : vector<64x1xf32>
    %1342 = vector.broadcast %cst_489 : f32 to vector<64x1xf32>
    %1343 = arith.subf %1339, %1342 : vector<64x1xf32>
    %1344 = arith.cmpf one, %1343, %1343 : vector<64x1xf32>
    %1345 = vector.broadcast %cst_489 : f32 to vector<64x1xf32>
    %1346 = arith.addf %1339, %1345 : vector<64x1xf32>
    %1347 = math.absf %1343 : vector<64x1xf32>
    %cst_490 = arith.constant 0.000000e+00 : f32
    %1348 = vector.broadcast %cst_490 : f32 to vector<64x1xf32>
    %1349 = arith.subf %1348, %1347 : vector<64x1xf32>
    %1350 = math.exp %1349 : vector<64x1xf32>
    %1351 = math.log1p %1350 : vector<64x1xf32>
    %1352 = arith.addf %1341, %1351 : vector<64x1xf32>
    %1353 = arith.select %1344, %1346, %1352 : vector<64x1xi1>, vector<64x1xf32>
    %cst_491 = arith.constant 9.99999997E-7 : f32
    %1354 = vector.broadcast %cst_491 : f32 to vector<64x1xf32>
    %1355 = arith.addf %1353, %1354 : vector<64x1xf32>
    %1356 = math.log %1310 : vector<64x8xf32>
    %1357 = math.log %1254 : vector<64x8xf32>
    %1358 = arith.subf %1356, %1357 : vector<64x8xf32>
    %1359 = arith.mulf %1254, %1254 : vector<64x8xf32>
    %1360 = arith.subf %1253, %1291 : vector<64x8xf32>
    %1361 = arith.mulf %1360, %1360 : vector<64x8xf32>
    %1362 = arith.addf %1359, %1361 : vector<64x8xf32>
    %cst_492 = arith.constant 2.000000e+00 : f32
    %1363 = vector.broadcast %cst_492 : f32 to vector<64x8xf32>
    %1364 = arith.mulf %1363, %1310 : vector<64x8xf32>
    %1365 = arith.mulf %1364, %1310 : vector<64x8xf32>
    %1366 = arith.divf %1362, %1365 : vector<64x8xf32>
    %1367 = arith.addf %1358, %1366 : vector<64x8xf32>
    %cst_493 = arith.constant 5.000000e-01 : f32
    %1368 = vector.broadcast %cst_493 : f32 to vector<64x8xf32>
    %1369 = arith.subf %1367, %1368 : vector<64x8xf32>
    %cst_494 = arith.constant dense<0.000000e+00> : vector<64xf32>
    %1370 = vector.multi_reduction <add>, %1369, %cst_494 [1] : vector<64x8xf32> to vector<64xf32>
    %1371 = vector.shape_cast %1370 : vector<64xf32> to vector<64x1xf32>
    %1372 = arith.mulf %1371, %144 : vector<64x1xf32>
    %1373 = math.log %1355 : vector<64x1xf32>
    %cst_495 = arith.constant -0.918938517 : f32
    %1374 = vector.broadcast %cst_495 : f32 to vector<64x1xf32>
    %1375 = arith.subf %1374, %1373 : vector<64x1xf32>
    %1376 = arith.subf %145, %1336 : vector<64x1xf32>
    %1377 = arith.divf %1376, %1355 : vector<64x1xf32>
    %1378 = arith.mulf %1377, %1377 : vector<64x1xf32>
    %cst_496 = arith.constant 5.000000e-01 : f32
    %1379 = vector.broadcast %cst_496 : f32 to vector<64x1xf32>
    %1380 = arith.mulf %1379, %1378 : vector<64x1xf32>
    %1381 = arith.subf %1375, %1380 : vector<64x1xf32>
    %1382 = arith.mulf %1381, %144 : vector<64x1xf32>
    %cst_497 = arith.constant 0.000000e+00 : f32
    %1383 = vector.broadcast %cst_497 : f32 to vector<8x1xf32>
    %cst_498 = arith.constant 0.000000e+00 : f32
    %1384 = vector.broadcast %cst_498 : f32 to vector<8x1xf32>
    %1385 = vector.extract_strided_slice %1382 {offsets = [0, 0], sizes = [8, 1], strides = [1, 1]} : vector<64x1xf32> to vector<8x1xf32>
    %1386 = arith.addf %1383, %1385 : vector<8x1xf32>
    %1387 = vector.extract_strided_slice %1372 {offsets = [0, 0], sizes = [8, 1], strides = [1, 1]} : vector<64x1xf32> to vector<8x1xf32>
    %1388 = arith.addf %1384, %1387 : vector<8x1xf32>
    %1389 = vector.extract_strided_slice %1382 {offsets = [8, 0], sizes = [8, 1], strides = [1, 1]} : vector<64x1xf32> to vector<8x1xf32>
    %1390 = arith.addf %1386, %1389 : vector<8x1xf32>
    %1391 = vector.extract_strided_slice %1372 {offsets = [8, 0], sizes = [8, 1], strides = [1, 1]} : vector<64x1xf32> to vector<8x1xf32>
    %1392 = arith.addf %1388, %1391 : vector<8x1xf32>
    %1393 = vector.extract_strided_slice %1382 {offsets = [16, 0], sizes = [8, 1], strides = [1, 1]} : vector<64x1xf32> to vector<8x1xf32>
    %1394 = arith.addf %1390, %1393 : vector<8x1xf32>
    %1395 = vector.extract_strided_slice %1372 {offsets = [16, 0], sizes = [8, 1], strides = [1, 1]} : vector<64x1xf32> to vector<8x1xf32>
    %1396 = arith.addf %1392, %1395 : vector<8x1xf32>
    %1397 = vector.extract_strided_slice %1382 {offsets = [24, 0], sizes = [8, 1], strides = [1, 1]} : vector<64x1xf32> to vector<8x1xf32>
    %1398 = arith.addf %1394, %1397 : vector<8x1xf32>
    %1399 = vector.extract_strided_slice %1372 {offsets = [24, 0], sizes = [8, 1], strides = [1, 1]} : vector<64x1xf32> to vector<8x1xf32>
    %1400 = arith.addf %1396, %1399 : vector<8x1xf32>
    %1401 = vector.extract_strided_slice %1382 {offsets = [32, 0], sizes = [8, 1], strides = [1, 1]} : vector<64x1xf32> to vector<8x1xf32>
    %1402 = arith.addf %1398, %1401 : vector<8x1xf32>
    %1403 = vector.extract_strided_slice %1372 {offsets = [32, 0], sizes = [8, 1], strides = [1, 1]} : vector<64x1xf32> to vector<8x1xf32>
    %1404 = arith.addf %1400, %1403 : vector<8x1xf32>
    %1405 = vector.extract_strided_slice %1382 {offsets = [40, 0], sizes = [8, 1], strides = [1, 1]} : vector<64x1xf32> to vector<8x1xf32>
    %1406 = arith.addf %1402, %1405 : vector<8x1xf32>
    %1407 = vector.extract_strided_slice %1372 {offsets = [40, 0], sizes = [8, 1], strides = [1, 1]} : vector<64x1xf32> to vector<8x1xf32>
    %1408 = arith.addf %1404, %1407 : vector<8x1xf32>
    %1409 = vector.extract_strided_slice %1382 {offsets = [48, 0], sizes = [8, 1], strides = [1, 1]} : vector<64x1xf32> to vector<8x1xf32>
    %1410 = arith.addf %1406, %1409 : vector<8x1xf32>
    %1411 = vector.extract_strided_slice %1372 {offsets = [48, 0], sizes = [8, 1], strides = [1, 1]} : vector<64x1xf32> to vector<8x1xf32>
    %1412 = arith.addf %1408, %1411 : vector<8x1xf32>
    %1413 = vector.extract_strided_slice %1382 {offsets = [56, 0], sizes = [8, 1], strides = [1, 1]} : vector<64x1xf32> to vector<8x1xf32>
    %1414 = arith.addf %1410, %1413 : vector<8x1xf32>
    %1415 = vector.extract_strided_slice %1372 {offsets = [56, 0], sizes = [8, 1], strides = [1, 1]} : vector<64x1xf32> to vector<8x1xf32>
    %1416 = arith.addf %1412, %1415 : vector<8x1xf32>
    %1417 = arith.subf %1414, %1416 : vector<8x1xf32>
    %1418 = arith.sitofp %36 : i32 to f32
    %1419 = arith.sitofp %37 : i32 to f32
    %1420 = arith.addf %1418, %1419 : f32
    %1421 = vector.shape_cast %1417 : vector<8x1xf32> to vector<1x8x1xf32>
    %cst_499 = arith.constant dense<0.000000e+00> : vector<1xf32>
    %1422 = vector.multi_reduction <add>, %1421, %cst_499 [1, 2] : vector<1x8x1xf32> to vector<1xf32>
    %1423 = vector.shape_cast %1422 : vector<1xf32> to vector<1x1x1xf32>
    %1424 = vector.extract %1423[0, 0, 0] : f32 from vector<1x1x1xf32>
    %1425 = vector.broadcast %1424 : f32 to vector<1x1xf32>
    %cst_500 = arith.constant 0.000000e+00 : f32
    %1426 = vector.broadcast %cst_500 : f32 to vector<1x1xf32>
    %1427 = arith.subf %1426, %1425 : vector<1x1xf32>
    %1428 = vector.broadcast %1420 : f32 to vector<1x1xf32>
    %1429 = arith.divf %1427, %1428 : vector<1x1xf32>
    %c0_501 = arith.constant 0 : index
    %c0_502 = arith.constant 0 : index
    %1430 = vector.load %arg3[%c0_501, %c0_502] : memref<64x1xf32, #tpu.memory_space<vmem>>, vector<64x1xf32>
    %1431 = arith.mulf %1355, %1430 : vector<64x1xf32>
    %1432 = arith.addf %1336, %1431 : vector<64x1xf32>
    %cst_503 = arith.constant 0.000000e+00 : f32
    %1433 = vector.broadcast %cst_503 : f32 to vector<64x2xf32>
    %1434 = tpu.concatenate %1252, %1336, %1339, %144, %1432, %1336, %1371, %1433 in 1 : vector<64x8xf32>, vector<64x1xf32>, vector<64x1xf32>, vector<64x1xf32>, vector<64x1xf32>, vector<64x1xf32>, vector<64x1xf32>, vector<64x2xf32> -> vector<64x16xf32>
    %c0_504 = arith.constant 0 : index
    %c0_505 = arith.constant 0 : index
    %1435 = vector.load %arg8[%c0_504, %c0_505] : memref<64x16xf32, #tpu.memory_space<vmem>>, vector<64x16xf32>
    tpu.vector_store %arg8[%c0_504, %c0_505], %1434 {strides = array<i32>} : memref<64x16xf32, #tpu.memory_space<vmem>>, vector<64x16xf32>,
    %1436 = tpu.concatenate %436, %776 in 1 : vector<8x64xf32>, vector<8x64xf32> -> vector<8x128xf32>
    %c0_506 = arith.constant 0 : index
    %c0_507 = arith.constant 0 : index
    %1437 = vector.load %arg9[%c0_506, %c0_507] : memref<8x128xf32, #tpu.memory_space<vmem>>, vector<8x128xf32>
    tpu.vector_store %arg9[%c0_506, %c0_507], %1436 {strides = array<i32>} : memref<8x128xf32, #tpu.memory_space<vmem>>, vector<8x128xf32>,
    %cst_508 = arith.constant 0.000000e+00 : f32
    %1438 = vector.broadcast %cst_508 : f32 to vector<8x1xf32>
    %1439 = vector.broadcast %1429 : vector<1x1xf32> to vector<8x1xf32>
    %1440 = arith.addf %1438, %1439 : vector<8x1xf32>
    %cst_509 = arith.constant 0.000000e+00 : f32
    %1441 = vector.broadcast %cst_509 : f32 to vector<8x4xf32>
    %1442 = tpu.concatenate %1417, %1414, %1416, %1440, %1441 in 1 : vector<8x1xf32>, vector<8x1xf32>, vector<8x1xf32>, vector<8x1xf32>, vector<8x4xf32> -> vector<8x8xf32>
    %c0_510 = arith.constant 0 : index
    %c0_511 = arith.constant 0 : index
    %1443 = vector.load %arg10[%c0_510, %c0_511] : memref<8x8xf32, #tpu.memory_space<vmem>>, vector<8x8xf32>
    tpu.vector_store %arg10[%c0_510, %c0_511], %1442 {strides = array<i32>} : memref<8x8xf32, #tpu.memory_space<vmem>>, vector<8x8xf32>,
    return
  }
}

</mosaic_0001>

<llo_original>
// kernel: srnn_forward.1
$region0: #{srnn_forward.1}
  #allocation0 [shape = 'u32[]', space=smem, size = 0x4, offset = 0x4, fixed_abs, tag = 'smem constant byte address 0x4 - core index']
  #allocation1 [shape = 'u32[72,128]{1,0:T(1,128)}', space=vmem, size = 0x9000, scoped, tag = 'internal scratch']
  #allocation2 [shape = 'f32[8,8,384]{2,1,0:T(8,128)}', space=vmem, size = 0x18000, scoped, tag = 'scratch operand']
  #allocation3 [shape = 'f32[8,8,384]{2,1,0:T(8,128)}', space=vmem, size = 0x18000, scoped, tag = 'scratch operand']
  #allocation4 [shape = 'f32[8,8,32]{2,1,0:T(8,128)}', space=vmem, size = 0x8000, scoped, tag = 'scratch operand']
  %s0 = inlined_call_operand.vmem [shape: s32[2], index: 0, kind: input, shape index: {}]
  %s1 = inlined_call_operand.vmem [shape: f32[64,1], index: 1, kind: input, shape index: {}]
  %s2 = inlined_call_operand.vmem [shape: f32[64,8], index: 2, kind: input, shape index: {}]
  %s3 = inlined_call_operand.vmem [shape: f32[64,1], index: 3, kind: input, shape index: {}]
  %s4 = inlined_call_operand.vmem [shape: f32[208,384], index: 4, kind: input, shape index: {}]
  %s5 = inlined_call_operand.vmem [shape: f32[376,32], index: 5, kind: input, shape index: {}]
  %s6 = inlined_call_operand.vmem [shape: f32[96,256], index: 6, kind: input, shape index: {}]
  %s7 = inlined_call_operand.vmem [shape: f32[8,8,384], index: 7, kind: input, shape index: {}]
  %s8 = inlined_call_operand.vmem [shape: f32[64,16], index: 8, kind: output, shape index: {0}]
  %s9 = inlined_call_operand.vmem [shape: f32[8,128], index: 9, kind: output, shape index: {1}]
  %s10 = inlined_call_operand.vmem [shape: f32[8,8], index: 10, kind: output, shape index: {2}]
  %11 = xla_tuple %s8, %s9, %s10
  %s12 = sld [smem:[#allocation0]]
  $region62: #{srnn_forward.1} parent=0
    _
  %s14 = ssub.s32 1, %s12
  %s15 = scalar_select 0, %s14, %s12
  $region1: #{srnn_forward.1} parent=0
    #allocation5 [shape = 'u8[512]{0}', space=smem, size = 0x200, scoped, tag = 'input window, operand 0, single buffered']
    #allocation6 [shape = 's32[1]{0}', space=sflag, size = 0x4, scoped, tag = 'scoped memory for srnn_forward.1']
    %16 = vsyncpa [#allocation6], 0
    // Predicated region
    $region2: #{srnn_forward.1} parent=1 // pred_check
      _
    $region3: #{srnn_forward.1} parent=1 // pred_check_branch
      %18 = sbr.rel (0) target = $region5
    $region4: #{srnn_forward.1} parent=1 // pred_region
      %20 = vsyncadd [#allocation6], 0
      %s22 = sshll.u32 %s0, 4
      %s23 = int_to_ptr.vmem [resolvable:$true] %s22
      %25 = dma.vmem_to_smem %s23, 16, [#allocation5], [#allocation6]
    $region5: #{srnn_forward.1} parent=1 // pred_fallthru
      _
    // Predicated region
    $region6: #{srnn_forward.1} parent=1 // pred_check
      _
    $region7: #{srnn_forward.1} parent=1 // pred_check_branch
      %27 = sbr.rel (0) target = $region9
    $region8: #{srnn_forward.1} parent=1 // pred_region
      _
    $region9: #{srnn_forward.1} parent=1 // pred_fallthru
      _
    // Predicated region
    $region10: #{srnn_forward.1} parent=1 // pred_check
      _
    $region11: #{srnn_forward.1} parent=1 // pred_check_branch
      %29 = sbr.rel (0) target = $region13
    $region12: #{srnn_forward.1} parent=1 // pred_region
      _
    $region13: #{srnn_forward.1} parent=1 // pred_fallthru
      _
    // Predicated region
    $region14: #{srnn_forward.1} parent=1 // pred_check
      _
    $region15: #{srnn_forward.1} parent=1 // pred_check_branch
      %31 = sbr.rel (0) target = $region17
    $region16: #{srnn_forward.1} parent=1 // pred_region
      _
    $region17: #{srnn_forward.1} parent=1 // pred_fallthru
      _
    // Predicated region
    $region18: #{srnn_forward.1} parent=1 // pred_check
      _
    $region19: #{srnn_forward.1} parent=1 // pred_check_branch
      %33 = sbr.rel (0) target = $region21
    $region20: #{srnn_forward.1} parent=1 // pred_region
      _
    $region21: #{srnn_forward.1} parent=1 // pred_fallthru
      _
    // Predicated region
    $region22: #{srnn_forward.1} parent=1 // pred_check
      _
    $region23: #{srnn_forward.1} parent=1 // pred_check_branch
      %35 = sbr.rel (0) target = $region25
    $region24: #{srnn_forward.1} parent=1 // pred_region
      _
    $region25: #{srnn_forward.1} parent=1 // pred_fallthru
      _
    // Predicated region
    $region26: #{srnn_forward.1} parent=1 // pred_check
      _
    $region27: #{srnn_forward.1} parent=1 // pred_check_branch
      %37 = sbr.rel (0) target = $region29
    $region28: #{srnn_forward.1} parent=1 // pred_region
      _
    $region29: #{srnn_forward.1} parent=1 // pred_fallthru
      _
    // Predicated region
    $region30: #{srnn_forward.1} parent=1 // pred_check
      _
    $region31: #{srnn_forward.1} parent=1 // pred_check_branch
      %39 = sbr.rel (0) target = $region33
    $region32: #{srnn_forward.1} parent=1 // pred_region
      _
    $region33: #{srnn_forward.1} parent=1 // pred_fallthru
      _
    // Predicated region
    $region34: #{srnn_forward.1} parent=1 // pred_check
      _
    $region35: #{srnn_forward.1} parent=1 // pred_check_branch
      %41 = sbr.rel (0) target = $region37
    $region36: #{srnn_forward.1} parent=1 // pred_region
      %43 = dma.done [#allocation6], 16
    $region37: #{srnn_forward.1} parent=1 // pred_fallthru
      _
    %44 = sfence
    %v45 = vld [vmem:[%s7] sm:$0xff]
    %v46 = vld [vmem:[%s7 + $0x8] sm:$0xff]
    %v47 = vld [vmem:[%s7 + $0x10] sm:$0xff]
    %s48 = scalar_lea.vmem %s7, 24
    %v49 = vld [vmem:[%s48] sm:$0xff]
    %v50 = vld [vmem:[%s48 + $0x8] sm:$0xff]
    %v51 = vld [vmem:[%s48 + $0x10] sm:$0xff]
    %s52 = scalar_lea.vmem %s7, 48
    %v53 = vld [vmem:[%s52] sm:$0xff]
    %v54 = vld [vmem:[%s52 + $0x8] sm:$0xff]
    %v55 = vld [vmem:[%s52 + $0x10] sm:$0xff]
    %s56 = scalar_lea.vmem %s7, 72
    %v57 = vld [vmem:[%s56] sm:$0xff]
    %v58 = vld [vmem:[%s56 + $0x8] sm:$0xff]
    %v59 = vld [vmem:[%s56 + $0x10] sm:$0xff]
    %s60 = scalar_lea.vmem %s7, 96
    %v61 = vld [vmem:[%s60] sm:$0xff]
    %v62 = vld [vmem:[%s60 + $0x8] sm:$0xff]
    %v63 = vld [vmem:[%s60 + $0x10] sm:$0xff]
    %s64 = scalar_lea.vmem %s7, 120
    %v65 = vld [vmem:[%s64] sm:$0xff]
    %v66 = vld [vmem:[%s64 + $0x8] sm:$0xff]
    %v67 = vld [vmem:[%s64 + $0x10] sm:$0xff]
    %s68 = scalar_lea.vmem %s7, 144
    %v69 = vld [vmem:[%s68] sm:$0xff]
    %v70 = vld [vmem:[%s68 + $0x8] sm:$0xff]
    %v71 = vld [vmem:[%s68 + $0x10] sm:$0xff]
    %s72 = scalar_lea.vmem %s7, 168
    %v73 = vld [vmem:[%s72] sm:$0xff]
    %v74 = vld [vmem:[%s72 + $0x8] sm:$0xff]
    %v75 = vld [vmem:[%s72 + $0x10] sm:$0xff]
    %s76 = sld [smem:[#allocation5]]
    %s77 = sld [smem:[#allocation5 + $0x1]]
    %p78 = scmp.gt.s32.totalorder %s76, 0
    %s79 = ssub.s32 %s76, 1
    %s80 = scalar_select %p78, %s79, 0
    %p81 = scmp.gt.s32.totalorder %s77, 0
    %s82 = ssub.s32 %s77, 1
    %s83 = scalar_select %p81, %s82, 0
    %p84 = scmp.gt.s32.totalorder %s76, 1
    %s85 = ssub.s32 %s76, 2
    %s86 = scalar_select %p84, %s85, 1
    %p87 = scmp.gt.s32.totalorder %s77, 1
    %s88 = ssub.s32 %s77, 2
    %s89 = scalar_select %p87, %s88, 1
    %p90 = scmp.gt.s32.totalorder %s76, 2
    %s91 = ssub.s32 %s76, 3
    %s92 = scalar_select %p90, %s91, 2
    %p93 = scmp.gt.s32.totalorder %s77, 2
    %s94 = ssub.s32 %s77, 3
    %s95 = scalar_select %p93, %s94, 2
    %p96 = scmp.gt.s32.totalorder %s76, 3
    %s97 = ssub.s32 %s76, 4
    %s98 = scalar_select %p96, %s97, 3
    %p99 = scmp.gt.s32.totalorder %s77, 3
    %s100 = ssub.s32 %s77, 4
    %s101 = scalar_select %p99, %s100, 3
    %p102 = scmp.gt.s32.totalorder %s76, 4
    %s103 = ssub.s32 %s76, 5
    %s104 = scalar_select %p102, %s103, 4
    %p105 = scmp.gt.s32.totalorder %s77, 4
    %s106 = ssub.s32 %s77, 5
    %s107 = scalar_select %p105, %s106, 4
    %p108 = scmp.gt.s32.totalorder %s76, 5
    %s109 = ssub.s32 %s76, 6
    %s110 = scalar_select %p108, %s109, 5
    %p111 = scmp.gt.s32.totalorder %s77, 5
    %s112 = ssub.s32 %s77, 6
    %s113 = scalar_select %p111, %s112, 5
    %p114 = scmp.gt.s32.totalorder %s76, 6
    %s115 = ssub.s32 %s76, 7
    %s116 = scalar_select %p114, %s115, 6
    %p117 = scmp.gt.s32.totalorder %s77, 6
    %s118 = ssub.s32 %s77, 7
    %s119 = scalar_select %p117, %s118, 6
    %p120 = scmp.gt.s32.totalorder %s76, 7
    %s121 = ssub.s32 %s76, 8
    %s122 = scalar_select %p120, %s121, 7
    %p123 = scmp.gt.s32.totalorder %s77, 7
    %s124 = ssub.s32 %s77, 8
    %s125 = scalar_select %p123, %s124, 7
    %v126 = vlaneseq
    %v127 = vshrl.u32 %v126, 7
    %vm128 = vcmp.eq.s32.totalorder %v127, 0
    %v129 = vstv %s76
    %v130 = vsel %vm128, %v129, 0
    %vm131 = vcmp.eq.s32.totalorder %v127, 1
    %v132 = vstv %s77
    %v133 = vsel %vm131, %v132, %v130
    %vm134 = vcmp.gt.s32.totalorder %v133, 0
    %v135 = vsel %vm134, 1, 0
    %v136 = vcvt.s32.f32 %v135
    %vm137 = vcmp.gt.s32.totalorder %v133, 1
    %v138 = vsel %vm137, 1, 0
    %v139 = vcvt.s32.f32 %v138
    %vm140 = vcmp.gt.s32.totalorder %v133, 2
    %v141 = vsel %vm140, 1, 0
    %v142 = vcvt.s32.f32 %v141
    %vm143 = vcmp.gt.s32.totalorder %v133, 3
    %v144 = vsel %vm143, 1, 0
    %v145 = vcvt.s32.f32 %v144
    %vm146 = vcmp.gt.s32.totalorder %v133, 4
    %v147 = vsel %vm146, 1, 0
    %v148 = vcvt.s32.f32 %v147
    %vm149 = vcmp.gt.s32.totalorder %v133, 5
    %v150 = vsel %vm149, 1, 0
    %v151 = vcvt.s32.f32 %v150
    %vm152 = vcmp.gt.s32.totalorder %v133, 6
    %v153 = vsel %vm152, 1, 0
    %v154 = vcvt.s32.f32 %v153
    %vm155 = vcmp.gt.s32.totalorder %v133, 7
    %v156 = vsel %vm155, 1, 0
    %v157 = vcvt.s32.f32 %v156
    %v158 = vld [vmem:[%s1] sm:$0xff]
    %v159 = vld [vmem:[%s1 + $0x8] sm:$0xff]
    %v160 = vld [vmem:[%s1 + $0x10] sm:$0xff]
    %v161 = vld [vmem:[%s1 + $0x18] sm:$0xff]
    %v162 = vld [vmem:[%s1 + $0x20] sm:$0xff]
    %v163 = vld [vmem:[%s1 + $0x28] sm:$0xff]
    %v164 = vld [vmem:[%s1 + $0x30] sm:$0xff]
    %v165 = vld [vmem:[%s1 + $0x38] sm:$0xff]
    %167 = vset.pattern.permute.xlu0 0
    %168 = vperm.xlu0 %167, %v158
    %v169 = vpop.permute.xlu0 %168
    %172 = vset.pattern.permute.xlu0 0
    %173 = vperm.xlu0 %172, %v159
    %v174 = vpop.permute.xlu0 %173
    %177 = vset.pattern.permute.xlu0 0
    %178 = vperm.xlu0 %177, %v160
    %v179 = vpop.permute.xlu0 %178
    %182 = vset.pattern.permute.xlu0 0
    %183 = vperm.xlu0 %182, %v161
    %v184 = vpop.permute.xlu0 %183
    %187 = vset.pattern.permute.xlu0 0
    %188 = vperm.xlu0 %187, %v162
    %v189 = vpop.permute.xlu0 %188
    %192 = vset.pattern.permute.xlu0 0
    %193 = vperm.xlu0 %192, %v163
    %v194 = vpop.permute.xlu0 %193
    %197 = vset.pattern.permute.xlu0 0
    %198 = vperm.xlu0 %197, %v164
    %v199 = vpop.permute.xlu0 %198
    %202 = vset.pattern.permute.xlu0 0
    %203 = vperm.xlu0 %202, %v165
    %v204 = vpop.permute.xlu0 %203
    %v206 = vperm.slane %v71, 0
    %v207 = vmul.f32 %v169, %v206
    %v208 = vmul.f32 %v174, %v206
    %v209 = vmul.f32 %v179, %v206
    %v210 = vmul.f32 %v184, %v206
    %v211 = vmul.f32 %v189, %v206
    %v212 = vmul.f32 %v194, %v206
    %v213 = vmul.f32 %v199, %v206
    %v214 = vmul.f32 %v204, %v206
    %v215 = vperm.slane %v73, 0
    %v216 = vadd.f32 %v207, %v215
    %v217 = vadd.f32 %v208, %v215
    %v218 = vadd.f32 %v209, %v215
    %v219 = vadd.f32 %v210, %v215
    %v220 = vadd.f32 %v211, %v215
    %v221 = vadd.f32 %v212, %v215
    %v222 = vadd.f32 %v213, %v215
    %v223 = vadd.f32 %v214, %v215
    %vm224 = vcmp.gt.f32.partialorder %v216, 0.0
    %vm225 = vcmp.gt.f32.partialorder %v217, 0.0
    %vm226 = vcmp.gt.f32.partialorder %v218, 0.0
    %vm227 = vcmp.gt.f32.partialorder %v219, 0.0
    %vm228 = vcmp.gt.f32.partialorder %v220, 0.0
    %vm229 = vcmp.gt.f32.partialorder %v221, 0.0
    %vm230 = vcmp.gt.f32.partialorder %v222, 0.0
    %vm231 = vcmp.gt.f32.partialorder %v223, 0.0
    %v232 = vmul.f32 %v216, 0.01
    %v233 = vmul.f32 %v217, 0.01
    %v234 = vmul.f32 %v218, 0.01
    %v235 = vmul.f32 %v219, 0.01
    %v236 = vmul.f32 %v220, 0.01
    %v237 = vmul.f32 %v221, 0.01
    %v238 = vmul.f32 %v222, 0.01
    %v239 = vmul.f32 %v223, 0.01
    %v240 = vsel %vm224, %v216, %v232
    %v241 = vsel %vm225, %v217, %v233
    %v242 = vsel %vm226, %v218, %v234
    %v243 = vsel %vm227, %v219, %v235
    %v244 = vsel %vm228, %v220, %v236
    %v245 = vsel %vm229, %v221, %v237
    %v246 = vsel %vm230, %v222, %v238
    %v247 = vsel %vm231, %v223, %v239
    %v248 = vld [vmem:[%s4] sm:$0xf]
    %v249 = vld [vmem:[%s4 + $0x8] sm:$0xf]
    %v250 = vld [vmem:[%s4 + $0x10] sm:$0xf]
    %v251 = vld [vmem:[%s4 + $0x18] sm:$0xff]
    %v252 = vld [vmem:[%s4 + $0x20] sm:$0xff]
    %v253 = vld [vmem:[%s4 + $0x28] sm:$0xff]
    %v254 = vld [vmem:[%s4 + $0x30] sm:$0xff]
    %v255 = vld [vmem:[%s4 + $0x38] sm:$0xff]
    %v256 = vld [vmem:[%s4 + $0x40] sm:$0xff]
    %v257 = vld [vmem:[%s4 + $0x48] sm:$0xff]
    %v258 = vld [vmem:[%s4 + $0x50] sm:$0xff]
    %v259 = vld [vmem:[%s4 + $0x58] sm:$0xff]
    %v260 = vld [vmem:[%s4 + $0x60] sm:$0xff]
    %v261 = vld [vmem:[%s4 + $0x68] sm:$0xff]
    %v262 = vld [vmem:[%s4 + $0x70] sm:$0xff]
    %v263 = vld [vmem:[%s4 + $0x78] sm:$0xff]
    %v264 = vld [vmem:[%s4 + $0x80] sm:$0xff]
    %v265 = vld [vmem:[%s4 + $0x88] sm:$0xff]
    %v266 = vld [vmem:[%s4 + $0x90] sm:$0xff]
    %v267 = vld [vmem:[%s4 + $0x98] sm:$0xff]
    %v268 = vld [vmem:[%s4 + $0xa0] sm:$0xff]
    %v269 = vld [vmem:[%s4 + $0xa8] sm:$0xff]
    %v270 = vld [vmem:[%s4 + $0xb0] sm:$0xff]
    %v271 = vld [vmem:[%s4 + $0xb8] sm:$0xff]
    %v272 = vld [vmem:[%s4 + $0xc0] sm:$0xff]
    %v273 = vld [vmem:[%s4 + $0xc8] sm:$0xff]
    %v274 = vld [vmem:[%s4 + $0xd0] sm:$0xff]
    %v275 = vperm.slane %v45, 0
    %v276 = vperm.slane %v46, 0
    %v277 = vperm.slane %v47, 0
    %vm278 = vcmask 31744
    %v280 = vsel %vm278, 0.0, 0
    %v283 = vsel %vm278, %v240, 0
    %v286 = vsel %vm278, %v241, 0
    %v289 = vsel %vm278, %v242, 0
    %v292 = vsel %vm278, %v243, 0
    %v295 = vsel %vm278, %v244, 0
    %v298 = vsel %vm278, %v245, 0
    %v301 = vsel %vm278, %v246, 0
    %vm303 = vcmask 1043456
    %v305 = vsel %vm303, %v248, 0
    %v308 = vsel %vm303, %v249, 0
    %v311 = vsel %vm303, %v250, 0
    %313 = vmatpush.msra.mxu0 0.0
    %314 = vmatpush.msra.mxu0 0.0
    %315 = vmatpush.msra.mxu0 0.0
    %316 = vmatpush.msra.mxu0 0.0
    %317 = vmatpush.msra.mxu0 0.0
    %318 = vmatpush.msra.mxu0 0.0
    %319 = vmatpush.msra.mxu0 0.0
    %320 = vmatpush.msra.mxu0 0.0
    %321 = vmatpush.msra.mxu0 0.0
    %322 = vmatpush.msra.mxu0 0.0
    %323 = vmatpush.msra.mxu0 0.0
    %324 = vmatpush.msra.mxu0 0.0
    %325 = vmatpush.msra.mxu0 0.0
    %326 = vmatpush.msra.mxu0 0.0
    %327 = vmatpush.msra.mxu0 0.0
    %328 = vmatpush.msra.mxu0 %v305
    %329 = vmatmul.f32.gmra.mxu0 %v280
    %v330 = vpop.f32.mrf.mxu0
    %v331 = vadd.f32 %v275, %v330
    %332 = vmatmul.f32.gmra.mxu0 %v283
    %v333 = vpop.f32.mrf.mxu0
    %v334 = vadd.f32 %v275, %v333
    %335 = vmatmul.f32.gmra.mxu0 %v286
    %v336 = vpop.f32.mrf.mxu0
    %v337 = vadd.f32 %v275, %v336
    %338 = vmatmul.f32.gmra.mxu0 %v289
    %v339 = vpop.f32.mrf.mxu0
    %v340 = vadd.f32 %v275, %v339
    %341 = vmatmul.f32.gmra.mxu0 %v292
    %v342 = vpop.f32.mrf.mxu0
    %v343 = vadd.f32 %v275, %v342
    %344 = vmatmul.f32.gmra.mxu0 %v295
    %v345 = vpop.f32.mrf.mxu0
    %v346 = vadd.f32 %v275, %v345
    %347 = vmatmul.f32.gmra.mxu0 %v298
    %v348 = vpop.f32.mrf.mxu0
    %v349 = vadd.f32 %v275, %v348
    %350 = vmatmul.f32.gmra.mxu0 %v301
    %v351 = vpop.f32.mrf.mxu0
    %v352 = vadd.f32 %v275, %v351
    %353 = vdwg.mxu0
    %354 = vmatpush.msra.mxu0 0.0
    %355 = vmatpush.msra.mxu0 0.0
    %356 = vmatpush.msra.mxu0 0.0
    %357 = vmatpush.msra.mxu0 0.0
    %358 = vmatpush.msra.mxu0 0.0
    %359 = vmatpush.msra.mxu0 0.0
    %360 = vmatpush.msra.mxu0 0.0
    %361 = vmatpush.msra.mxu0 0.0
    %362 = vmatpush.msra.mxu0 0.0
    %363 = vmatpush.msra.mxu0 0.0
    %364 = vmatpush.msra.mxu0 0.0
    %365 = vmatpush.msra.mxu0 0.0
    %366 = vmatpush.msra.mxu0 0.0
    %367 = vmatpush.msra.mxu0 0.0
    %368 = vmatpush.msra.mxu0 0.0
    %369 = vmatpush.msra.mxu0 %v308
    %370 = vmatmul.f32.gmra.mxu0 %v280
    %v371 = vpop.f32.mrf.mxu0
    %v372 = vadd.f32 %v276, %v371
    %373 = vmatmul.f32.gmra.mxu0 %v283
    %v374 = vpop.f32.mrf.mxu0
    %v375 = vadd.f32 %v276, %v374
    %376 = vmatmul.f32.gmra.mxu0 %v286
    %v377 = vpop.f32.mrf.mxu0
    %v378 = vadd.f32 %v276, %v377
    %379 = vmatmul.f32.gmra.mxu0 %v289
    %v380 = vpop.f32.mrf.mxu0
    %v381 = vadd.f32 %v276, %v380
    %382 = vmatmul.f32.gmra.mxu0 %v292
    %v383 = vpop.f32.mrf.mxu0
    %v384 = vadd.f32 %v276, %v383
    %385 = vmatmul.f32.gmra.mxu0 %v295
    %v386 = vpop.f32.mrf.mxu0
    %v387 = vadd.f32 %v276, %v386
    %388 = vmatmul.f32.gmra.mxu0 %v298
    %v389 = vpop.f32.mrf.mxu0
    %v390 = vadd.f32 %v276, %v389
    %391 = vmatmul.f32.gmra.mxu0 %v301
    %v392 = vpop.f32.mrf.mxu0
    %v393 = vadd.f32 %v276, %v392
    %394 = vdwg.mxu0
    %395 = vmatpush.msra.mxu0 0.0
    %396 = vmatpush.msra.mxu0 0.0
    %397 = vmatpush.msra.mxu0 0.0
    %398 = vmatpush.msra.mxu0 0.0
    %399 = vmatpush.msra.mxu0 0.0
    %400 = vmatpush.msra.mxu0 0.0
    %401 = vmatpush.msra.mxu0 0.0
    %402 = vmatpush.msra.mxu0 0.0
    %403 = vmatpush.msra.mxu0 0.0
    %404 = vmatpush.msra.mxu0 0.0
    %405 = vmatpush.msra.mxu0 0.0
    %406 = vmatpush.msra.mxu0 0.0
    %407 = vmatpush.msra.mxu0 0.0
    %408 = vmatpush.msra.mxu0 0.0
    %409 = vmatpush.msra.mxu0 0.0
    %410 = vmatpush.msra.mxu0 %v311
    %411 = vmatmul.f32.gmra.mxu0 %v280
    %v412 = vpop.f32.mrf.mxu0
    %v413 = vadd.f32 %v277, %v412
    %414 = vmatmul.f32.gmra.mxu0 %v283
    %v415 = vpop.f32.mrf.mxu0
    %v416 = vadd.f32 %v277, %v415
    %417 = vmatmul.f32.gmra.mxu0 %v286
    %v418 = vpop.f32.mrf.mxu0
    %v419 = vadd.f32 %v277, %v418
    %420 = vmatmul.f32.gmra.mxu0 %v289
    %v421 = vpop.f32.mrf.mxu0
    %v422 = vadd.f32 %v277, %v421
    %423 = vmatmul.f32.gmra.mxu0 %v292
    %v424 = vpop.f32.mrf.mxu0
    %v425 = vadd.f32 %v277, %v424
    %426 = vmatmul.f32.gmra.mxu0 %v295
    %v427 = vpop.f32.mrf.mxu0
    %v428 = vadd.f32 %v277, %v427
    %429 = vmatmul.f32.gmra.mxu0 %v298
    %v430 = vpop.f32.mrf.mxu0
    %v431 = vadd.f32 %v277, %v430
    %432 = vmatmul.f32.gmra.mxu0 %v301
    %v433 = vpop.f32.mrf.mxu0
    %v434 = vadd.f32 %v277, %v433
    %435 = vdwg.mxu0
    %436 = vst [vmem:[#allocation2] sm:$0xff] %v331
    %437 = vst [vmem:[#allocation2 + $0x8] sm:$0xff] %v372
    %438 = vst [vmem:[#allocation2 + $0x10] sm:$0xff] %v413
    %s439 = scalar_lea.vmem [#allocation2], 24
    %440 = vst [vmem:[%s439] sm:$0xff] %v334
    %441 = vst [vmem:[%s439 + $0x8] sm:$0xff] %v375
    %442 = vst [vmem:[%s439 + $0x10] sm:$0xff] %v416
    %s443 = scalar_lea.vmem [#allocation2], 48
    %444 = vst [vmem:[%s443] sm:$0xff] %v337
    %445 = vst [vmem:[%s443 + $0x8] sm:$0xff] %v378
    %446 = vst [vmem:[%s443 + $0x10] sm:$0xff] %v419
    %s447 = scalar_lea.vmem [#allocation2], 72
    %448 = vst [vmem:[%s447] sm:$0xff] %v340
    %449 = vst [vmem:[%s447 + $0x8] sm:$0xff] %v381
    %450 = vst [vmem:[%s447 + $0x10] sm:$0xff] %v422
    %s451 = scalar_lea.vmem [#allocation2], 96
    %452 = vst [vmem:[%s451] sm:$0xff] %v343
    %453 = vst [vmem:[%s451 + $0x8] sm:$0xff] %v384
    %454 = vst [vmem:[%s451 + $0x10] sm:$0xff] %v425
    %s455 = scalar_lea.vmem [#allocation2], 120
    %456 = vst [vmem:[%s455] sm:$0xff] %v346
    %457 = vst [vmem:[%s455 + $0x8] sm:$0xff] %v387
    %458 = vst [vmem:[%s455 + $0x10] sm:$0xff] %v428
    %s459 = scalar_lea.vmem [#allocation2], 144
    %460 = vst [vmem:[%s459] sm:$0xff] %v349
    %461 = vst [vmem:[%s459 + $0x8] sm:$0xff] %v390
    %462 = vst [vmem:[%s459 + $0x10] sm:$0xff] %v431
    %s463 = scalar_lea.vmem [#allocation2], 168
    %464 = vst [vmem:[%s463] sm:$0xff] %v352
    %465 = vst [vmem:[%s463 + $0x8] sm:$0xff] %v393
    %466 = vst [vmem:[%s463 + $0x10] sm:$0xff] %v434
    %v467 = vld [vmem:[#allocation2] sm:$0xff]
    %v468 = vld [vmem:[#allocation2 + $0x8] sm:$0xff]
    %v469 = vld [vmem:[#allocation2 + $0x10] sm:$0xff]
    %vm470 = vcmask 523264
    %v471 = vsel %vm470, 0.0, 0
    %473 = vmatpush.msra.mxu0 0.0
    %474 = vmatpush.msra.mxu0 0.0
    %475 = vmatpush.msra.mxu0 0.0
    %476 = vmatpush.msra.mxu0 0.0
    %477 = vmatpush.msra.mxu0 0.0
    %478 = vmatpush.msra.mxu0 0.0
    %479 = vmatpush.msra.mxu0 0.0
    %480 = vmatpush.msra.mxu0 0.0
    %481 = vmatpush.msra.mxu0 %v272
    %482 = vmatpush.msra.mxu0 %v269
    %483 = vmatpush.msra.mxu0 %v266
    %484 = vmatpush.msra.mxu0 %v263
    %485 = vmatpush.msra.mxu0 %v260
    %486 = vmatpush.msra.mxu0 %v257
    %487 = vmatpush.msra.mxu0 %v254
    %488 = vmatpush.msra.mxu0 %v251
    %489 = vmatmul.f32.gmra.mxu0 %v471
    %v490 = vpop.f32.mrf.mxu0
    %v491 = vadd.f32 0.0, %v490
    %492 = vdwg.mxu0
    %493 = vmatpush.msra.mxu0 0.0
    %494 = vmatpush.msra.mxu0 0.0
    %495 = vmatpush.msra.mxu0 0.0
    %496 = vmatpush.msra.mxu0 0.0
    %497 = vmatpush.msra.mxu0 0.0
    %498 = vmatpush.msra.mxu0 0.0
    %499 = vmatpush.msra.mxu0 0.0
    %500 = vmatpush.msra.mxu0 0.0
    %501 = vmatpush.msra.mxu0 %v273
    %502 = vmatpush.msra.mxu0 %v270
    %503 = vmatpush.msra.mxu0 %v267
    %504 = vmatpush.msra.mxu0 %v264
    %505 = vmatpush.msra.mxu0 %v261
    %506 = vmatpush.msra.mxu0 %v258
    %507 = vmatpush.msra.mxu0 %v255
    %508 = vmatpush.msra.mxu0 %v252
    %509 = vmatmul.f32.gmra.mxu0 %v471
    %v510 = vpop.f32.mrf.mxu0
    %v511 = vadd.f32 0.0, %v510
    %512 = vdwg.mxu0
    %513 = vmatpush.msra.mxu0 0.0
    %514 = vmatpush.msra.mxu0 0.0
    %515 = vmatpush.msra.mxu0 0.0
    %516 = vmatpush.msra.mxu0 0.0
    %517 = vmatpush.msra.mxu0 0.0
    %518 = vmatpush.msra.mxu0 0.0
    %519 = vmatpush.msra.mxu0 0.0
    %520 = vmatpush.msra.mxu0 0.0
    %521 = vmatpush.msra.mxu0 %v274
    %522 = vmatpush.msra.mxu0 %v271
    %523 = vmatpush.msra.mxu0 %v268
    %524 = vmatpush.msra.mxu0 %v265
    %525 = vmatpush.msra.mxu0 %v262
    %526 = vmatpush.msra.mxu0 %v259
    %527 = vmatpush.msra.mxu0 %v256
    %528 = vmatpush.msra.mxu0 %v253
    %529 = vmatmul.f32.gmra.mxu0 %v471
    %v530 = vpop.f32.mrf.mxu0
    %v531 = vadd.f32 0.0, %v530
    %532 = vdwg.mxu0
    %v533 = vadd.f32 %v467, %v491
    %v534 = vxor.u32 %v533, 2147483648
    %v535 = vmul.f32 %v534, 1.442695
    %v536 = vpow.pop %v535
    %v537 = vadd.f32 %v536, 1.0
    %v538 = vrcp.pop %v537
    %v539 = vmul.f32 %v537, %v538
    %v540 = vsub.f32 1.0, %v539
    %v541 = vmul.f32 %v538, %v540
    %v542 = vadd.f32 %v538, %v541
    %vm543 = vweird.f32 %v537
    %vm544 = vweird.f32 %v538
    %vm545 = vmor %vm543, %vm544
    %v546 = vsel %vm545, %v538, %v542
    %v547 = vand.u32 2147483647, %v537
    %vm548 = vcmp.eq.f32.partialorder %v547, 8.507059e+37
    %v549 = vand.u32 %v537, 2147483648
    %v550 = vor.u32 1.1754944e-38, %v549
    %v551 = vsel %vm548, %v550, %v546
    %v552 = vmul.f32 1.0, %v551
    %v553 = vadd.f32 %v468, %v511
    %v554 = vxor.u32 %v553, 2147483648
    %v555 = vmul.f32 %v554, 1.442695
    %v556 = vpow.pop %v555
    %v557 = vadd.f32 %v556, 1.0
    %v558 = vrcp.pop %v557
    %v559 = vmul.f32 %v557, %v558
    %v560 = vsub.f32 1.0, %v559
    %v561 = vmul.f32 %v558, %v560
    %v562 = vadd.f32 %v558, %v561
    %vm563 = vweird.f32 %v557
    %vm564 = vweird.f32 %v558
    %vm565 = vmor %vm563, %vm564
    %v566 = vsel %vm565, %v558, %v562
    %v567 = vand.u32 2147483647, %v557
    %vm568 = vcmp.eq.f32.partialorder %v567, 8.507059e+37
    %v569 = vand.u32 %v557, 2147483648
    %v570 = vor.u32 1.1754944e-38, %v569
    %v571 = vsel %vm568, %v570, %v566
    %v572 = vmul.f32 1.0, %v571
    %v573 = vadd.f32 %v531, %v53
    %v574 = vmul.f32 %v552, %v573
    %v575 = vadd.f32 %v469, %v574
    %v576 = vtanh.pop %v575
    %v577 = vsub.f32 1.0, %v572
    %v578 = vmul.f32 %v577, %v576
    %v579 = vmul.f32 %v572, 0.0
    %v580 = vadd.f32 %v578, %v579
    %v581 = vld [vmem:[%s439] sm:$0xff]
    %v582 = vld [vmem:[%s439 + $0x8] sm:$0xff]
    %v583 = vld [vmem:[%s439 + $0x10] sm:$0xff]
    %v585 = vsel %vm470, %v580, 0
    %587 = vmatpush.msra.mxu0 0.0
    %588 = vmatpush.msra.mxu0 0.0
    %589 = vmatpush.msra.mxu0 0.0
    %590 = vmatpush.msra.mxu0 0.0
    %591 = vmatpush.msra.mxu0 0.0
    %592 = vmatpush.msra.mxu0 0.0
    %593 = vmatpush.msra.mxu0 0.0
    %594 = vmatpush.msra.mxu0 0.0
    %595 = vmatpush.msra.mxu0 %v272
    %596 = vmatpush.msra.mxu0 %v269
    %597 = vmatpush.msra.mxu0 %v266
    %598 = vmatpush.msra.mxu0 %v263
    %599 = vmatpush.msra.mxu0 %v260
    %600 = vmatpush.msra.mxu0 %v257
    %601 = vmatpush.msra.mxu0 %v254
    %602 = vmatpush.msra.mxu0 %v251
    %603 = vmatmul.f32.gmra.mxu0 %v585
    %v604 = vpop.f32.mrf.mxu0
    %v605 = vadd.f32 0.0, %v604
    %606 = vdwg.mxu0
    %607 = vmatpush.msra.mxu0 0.0
    %608 = vmatpush.msra.mxu0 0.0
    %609 = vmatpush.msra.mxu0 0.0
    %610 = vmatpush.msra.mxu0 0.0
    %611 = vmatpush.msra.mxu0 0.0
    %612 = vmatpush.msra.mxu0 0.0
    %613 = vmatpush.msra.mxu0 0.0
    %614 = vmatpush.msra.mxu0 0.0
    %615 = vmatpush.msra.mxu0 %v273
    %616 = vmatpush.msra.mxu0 %v270
    %617 = vmatpush.msra.mxu0 %v267
    %618 = vmatpush.msra.mxu0 %v264
    %619 = vmatpush.msra.mxu0 %v261
    %620 = vmatpush.msra.mxu0 %v258
    %621 = vmatpush.msra.mxu0 %v255
    %622 = vmatpush.msra.mxu0 %v252
    %623 = vmatmul.f32.gmra.mxu0 %v585
    %v624 = vpop.f32.mrf.mxu0
    %v625 = vadd.f32 0.0, %v624
    %626 = vdwg.mxu0
    %627 = vmatpush.msra.mxu0 0.0
    %628 = vmatpush.msra.mxu0 0.0
    %629 = vmatpush.msra.mxu0 0.0
    %630 = vmatpush.msra.mxu0 0.0
    %631 = vmatpush.msra.mxu0 0.0
    %632 = vmatpush.msra.mxu0 0.0
    %633 = vmatpush.msra.mxu0 0.0
    %634 = vmatpush.msra.mxu0 0.0
    %635 = vmatpush.msra.mxu0 %v274
    %636 = vmatpush.msra.mxu0 %v271
    %637 = vmatpush.msra.mxu0 %v268
    %638 = vmatpush.msra.mxu0 %v265
    %639 = vmatpush.msra.mxu0 %v262
    %640 = vmatpush.msra.mxu0 %v259
    %641 = vmatpush.msra.mxu0 %v256
    %642 = vmatpush.msra.mxu0 %v253
    %643 = vmatmul.f32.gmra.mxu0 %v585
    %v644 = vpop.f32.mrf.mxu0
    %v645 = vadd.f32 0.0, %v644
    %646 = vdwg.mxu0
    %v647 = vadd.f32 %v581, %v605
    %v648 = vxor.u32 %v647, 2147483648
    %v649 = vmul.f32 %v648, 1.442695
    %v650 = vpow.pop %v649
    %v651 = vadd.f32 %v650, 1.0
    %v652 = vrcp.pop %v651
    %v653 = vmul.f32 %v651, %v652
    %v654 = vsub.f32 1.0, %v653
    %v655 = vmul.f32 %v652, %v654
    %v656 = vadd.f32 %v652, %v655
    %vm657 = vweird.f32 %v651
    %vm658 = vweird.f32 %v652
    %vm659 = vmor %vm657, %vm658
    %v660 = vsel %vm659, %v652, %v656
    %v661 = vand.u32 2147483647, %v651
    %vm662 = vcmp.eq.f32.partialorder %v661, 8.507059e+37
    %v663 = vand.u32 %v651, 2147483648
    %v664 = vor.u32 1.1754944e-38, %v663
    %v665 = vsel %vm662, %v664, %v660
    %v666 = vmul.f32 1.0, %v665
    %v667 = vadd.f32 %v582, %v625
    %v668 = vxor.u32 %v667, 2147483648
    %v669 = vmul.f32 %v668, 1.442695
    %v670 = vpow.pop %v669
    %v671 = vadd.f32 %v670, 1.0
    %v672 = vrcp.pop %v671
    %v673 = vmul.f32 %v671, %v672
    %v674 = vsub.f32 1.0, %v673
    %v675 = vmul.f32 %v672, %v674
    %v676 = vadd.f32 %v672, %v675
    %vm677 = vweird.f32 %v671
    %vm678 = vweird.f32 %v672
    %vm679 = vmor %vm677, %vm678
    %v680 = vsel %vm679, %v672, %v676
    %v681 = vand.u32 2147483647, %v671
    %vm682 = vcmp.eq.f32.partialorder %v681, 8.507059e+37
    %v683 = vand.u32 %v671, 2147483648
    %v684 = vor.u32 1.1754944e-38, %v683
    %v685 = vsel %vm682, %v684, %v680
    %v686 = vmul.f32 1.0, %v685
    %v687 = vadd.f32 %v645, %v53
    %v688 = vmul.f32 %v666, %v687
    %v689 = vadd.f32 %v583, %v688
    %v690 = vtanh.pop %v689
    %v691 = vsub.f32 1.0, %v686
    %v692 = vmul.f32 %v691, %v690
    %v693 = vmul.f32 %v686, %v580
    %v694 = vadd.f32 %v692, %v693
    %v695 = vld [vmem:[%s443] sm:$0xff]
    %v696 = vld [vmem:[%s443 + $0x8] sm:$0xff]
    %v697 = vld [vmem:[%s443 + $0x10] sm:$0xff]
    %v699 = vsel %vm470, %v694, 0
    %701 = vmatpush.msra.mxu0 0.0
    %702 = vmatpush.msra.mxu0 0.0
    %703 = vmatpush.msra.mxu0 0.0
    %704 = vmatpush.msra.mxu0 0.0
    %705 = vmatpush.msra.mxu0 0.0
    %706 = vmatpush.msra.mxu0 0.0
    %707 = vmatpush.msra.mxu0 0.0
    %708 = vmatpush.msra.mxu0 0.0
    %709 = vmatpush.msra.mxu0 %v272
    %710 = vmatpush.msra.mxu0 %v269
    %711 = vmatpush.msra.mxu0 %v266
    %712 = vmatpush.msra.mxu0 %v263
    %713 = vmatpush.msra.mxu0 %v260
    %714 = vmatpush.msra.mxu0 %v257
    %715 = vmatpush.msra.mxu0 %v254
    %716 = vmatpush.msra.mxu0 %v251
    %717 = vmatmul.f32.gmra.mxu0 %v699
    %v718 = vpop.f32.mrf.mxu0
    %v719 = vadd.f32 0.0, %v718
    %720 = vdwg.mxu0
    %721 = vmatpush.msra.mxu0 0.0
    %722 = vmatpush.msra.mxu0 0.0
    %723 = vmatpush.msra.mxu0 0.0
    %724 = vmatpush.msra.mxu0 0.0
    %725 = vmatpush.msra.mxu0 0.0
    %726 = vmatpush.msra.mxu0 0.0
    %727 = vmatpush.msra.mxu0 0.0
    %728 = vmatpush.msra.mxu0 0.0
    %729 = vmatpush.msra.mxu0 %v273
    %730 = vmatpush.msra.mxu0 %v270
    %731 = vmatpush.msra.mxu0 %v267
    %732 = vmatpush.msra.mxu0 %v264
    %733 = vmatpush.msra.mxu0 %v261
    %734 = vmatpush.msra.mxu0 %v258
    %735 = vmatpush.msra.mxu0 %v255
    %736 = vmatpush.msra.mxu0 %v252
    %737 = vmatmul.f32.gmra.mxu0 %v699
    %v738 = vpop.f32.mrf.mxu0
    %v739 = vadd.f32 0.0, %v738
    %740 = vdwg.mxu0
    %741 = vmatpush.msra.mxu0 0.0
    %742 = vmatpush.msra.mxu0 0.0
    %743 = vmatpush.msra.mxu0 0.0
    %744 = vmatpush.msra.mxu0 0.0
    %745 = vmatpush.msra.mxu0 0.0
    %746 = vmatpush.msra.mxu0 0.0
    %747 = vmatpush.msra.mxu0 0.0
    %748 = vmatpush.msra.mxu0 0.0
    %749 = vmatpush.msra.mxu0 %v274
    %750 = vmatpush.msra.mxu0 %v271
    %751 = vmatpush.msra.mxu0 %v268
    %752 = vmatpush.msra.mxu0 %v265
    %753 = vmatpush.msra.mxu0 %v262
    %754 = vmatpush.msra.mxu0 %v259
    %755 = vmatpush.msra.mxu0 %v256
    %756 = vmatpush.msra.mxu0 %v253
    %757 = vmatmul.f32.gmra.mxu0 %v699
    %v758 = vpop.f32.mrf.mxu0
    %v759 = vadd.f32 0.0, %v758
    %760 = vdwg.mxu0
    %v761 = vadd.f32 %v695, %v719
    %v762 = vxor.u32 %v761, 2147483648
    %v763 = vmul.f32 %v762, 1.442695
    %v764 = vpow.pop %v763
    %v765 = vadd.f32 %v764, 1.0
    %v766 = vrcp.pop %v765
    %v767 = vmul.f32 %v765, %v766
    %v768 = vsub.f32 1.0, %v767
    %v769 = vmul.f32 %v766, %v768
    %v770 = vadd.f32 %v766, %v769
    %vm771 = vweird.f32 %v765
    %vm772 = vweird.f32 %v766
    %vm773 = vmor %vm771, %vm772
    %v774 = vsel %vm773, %v766, %v770
    %v775 = vand.u32 2147483647, %v765
    %vm776 = vcmp.eq.f32.partialorder %v775, 8.507059e+37
    %v777 = vand.u32 %v765, 2147483648
    %v778 = vor.u32 1.1754944e-38, %v777
    %v779 = vsel %vm776, %v778, %v774
    %v780 = vmul.f32 1.0, %v779
    %v781 = vadd.f32 %v696, %v739
    %v782 = vxor.u32 %v781, 2147483648
    %v783 = vmul.f32 %v782, 1.442695
    %v784 = vpow.pop %v783
    %v785 = vadd.f32 %v784, 1.0
    %v786 = vrcp.pop %v785
    %v787 = vmul.f32 %v785, %v786
    %v788 = vsub.f32 1.0, %v787
    %v789 = vmul.f32 %v786, %v788
    %v790 = vadd.f32 %v786, %v789
    %vm791 = vweird.f32 %v785
    %vm792 = vweird.f32 %v786
    %vm793 = vmor %vm791, %vm792
    %v794 = vsel %vm793, %v786, %v790
    %v795 = vand.u32 2147483647, %v785
    %vm796 = vcmp.eq.f32.partialorder %v795, 8.507059e+37
    %v797 = vand.u32 %v785, 2147483648
    %v798 = vor.u32 1.1754944e-38, %v797
    %v799 = vsel %vm796, %v798, %v794
    %v800 = vmul.f32 1.0, %v799
    %v801 = vadd.f32 %v759, %v53
    %v802 = vmul.f32 %v780, %v801
    %v803 = vadd.f32 %v697, %v802
    %v804 = vtanh.pop %v803
    %v805 = vsub.f32 1.0, %v800
    %v806 = vmul.f32 %v805, %v804
    %v807 = vmul.f32 %v800, %v694
    %v808 = vadd.f32 %v806, %v807
    %v809 = vld [vmem:[%s447] sm:$0xff]
    %v810 = vld [vmem:[%s447 + $0x8] sm:$0xff]
    %v811 = vld [vmem:[%s447 + $0x10] sm:$0xff]
    %v813 = vsel %vm470, %v808, 0
    %815 = vmatpush.msra.mxu0 0.0
    %816 = vmatpush.msra.mxu0 0.0
    %817 = vmatpush.msra.mxu0 0.0
    %818 = vmatpush.msra.mxu0 0.0
    %819 = vmatpush.msra.mxu0 0.0
    %820 = vmatpush.msra.mxu0 0.0
    %821 = vmatpush.msra.mxu0 0.0
    %822 = vmatpush.msra.mxu0 0.0
    %823 = vmatpush.msra.mxu0 %v272
    %824 = vmatpush.msra.mxu0 %v269
    %825 = vmatpush.msra.mxu0 %v266
    %826 = vmatpush.msra.mxu0 %v263
    %827 = vmatpush.msra.mxu0 %v260
    %828 = vmatpush.msra.mxu0 %v257
    %829 = vmatpush.msra.mxu0 %v254
    %830 = vmatpush.msra.mxu0 %v251
    %831 = vmatmul.f32.gmra.mxu0 %v813
    %v832 = vpop.f32.mrf.mxu0
    %v833 = vadd.f32 0.0, %v832
    %834 = vdwg.mxu0
    %835 = vmatpush.msra.mxu0 0.0
    %836 = vmatpush.msra.mxu0 0.0
    %837 = vmatpush.msra.mxu0 0.0
    %838 = vmatpush.msra.mxu0 0.0
    %839 = vmatpush.msra.mxu0 0.0
    %840 = vmatpush.msra.mxu0 0.0
    %841 = vmatpush.msra.mxu0 0.0
    %842 = vmatpush.msra.mxu0 0.0
    %843 = vmatpush.msra.mxu0 %v273
    %844 = vmatpush.msra.mxu0 %v270
    %845 = vmatpush.msra.mxu0 %v267
    %846 = vmatpush.msra.mxu0 %v264
    %847 = vmatpush.msra.mxu0 %v261
    %848 = vmatpush.msra.mxu0 %v258
    %849 = vmatpush.msra.mxu0 %v255
    %850 = vmatpush.msra.mxu0 %v252
    %851 = vmatmul.f32.gmra.mxu0 %v813
    %v852 = vpop.f32.mrf.mxu0
    %v853 = vadd.f32 0.0, %v852
    %854 = vdwg.mxu0
    %855 = vmatpush.msra.mxu0 0.0
    %856 = vmatpush.msra.mxu0 0.0
    %857 = vmatpush.msra.mxu0 0.0
    %858 = vmatpush.msra.mxu0 0.0
    %859 = vmatpush.msra.mxu0 0.0
    %860 = vmatpush.msra.mxu0 0.0
    %861 = vmatpush.msra.mxu0 0.0
    %862 = vmatpush.msra.mxu0 0.0
    %863 = vmatpush.msra.mxu0 %v274
    %864 = vmatpush.msra.mxu0 %v271
    %865 = vmatpush.msra.mxu0 %v268
    %866 = vmatpush.msra.mxu0 %v265
    %867 = vmatpush.msra.mxu0 %v262
    %868 = vmatpush.msra.mxu0 %v259
    %869 = vmatpush.msra.mxu0 %v256
    %870 = vmatpush.msra.mxu0 %v253
    %871 = vmatmul.f32.gmra.mxu0 %v813
    %v872 = vpop.f32.mrf.mxu0
    %v873 = vadd.f32 0.0, %v872
    %874 = vdwg.mxu0
    %v875 = vadd.f32 %v809, %v833
    %v876 = vxor.u32 %v875, 2147483648
    %v877 = vmul.f32 %v876, 1.442695
    %v878 = vpow.pop %v877
    %v879 = vadd.f32 %v878, 1.0
    %v880 = vrcp.pop %v879
    %v881 = vmul.f32 %v879, %v880
    %v882 = vsub.f32 1.0, %v881
    %v883 = vmul.f32 %v880, %v882
    %v884 = vadd.f32 %v880, %v883
    %vm885 = vweird.f32 %v879
    %vm886 = vweird.f32 %v880
    %vm887 = vmor %vm885, %vm886
    %v888 = vsel %vm887, %v880, %v884
    %v889 = vand.u32 2147483647, %v879
    %vm890 = vcmp.eq.f32.partialorder %v889, 8.507059e+37
    %v891 = vand.u32 %v879, 2147483648
    %v892 = vor.u32 1.1754944e-38, %v891
    %v893 = vsel %vm890, %v892, %v888
    %v894 = vmul.f32 1.0, %v893
    %v895 = vadd.f32 %v810, %v853
    %v896 = vxor.u32 %v895, 2147483648
    %v897 = vmul.f32 %v896, 1.442695
    %v898 = vpow.pop %v897
    %v899 = vadd.f32 %v898, 1.0
    %v900 = vrcp.pop %v899
    %v901 = vmul.f32 %v899, %v900
    %v902 = vsub.f32 1.0, %v901
    %v903 = vmul.f32 %v900, %v902
    %v904 = vadd.f32 %v900, %v903
    %vm905 = vweird.f32 %v899
    %vm906 = vweird.f32 %v900
    %vm907 = vmor %vm905, %vm906
    %v908 = vsel %vm907, %v900, %v904
    %v909 = vand.u32 2147483647, %v899
    %vm910 = vcmp.eq.f32.partialorder %v909, 8.507059e+37
    %v911 = vand.u32 %v899, 2147483648
    %v912 = vor.u32 1.1754944e-38, %v911
    %v913 = vsel %vm910, %v912, %v908
    %v914 = vmul.f32 1.0, %v913
    %v915 = vadd.f32 %v873, %v53
    %v916 = vmul.f32 %v894, %v915
    %v917 = vadd.f32 %v811, %v916
    %v918 = vtanh.pop %v917
    %v919 = vsub.f32 1.0, %v914
    %v920 = vmul.f32 %v919, %v918
    %v921 = vmul.f32 %v914, %v808
    %v922 = vadd.f32 %v920, %v921
    %v923 = vld [vmem:[%s451] sm:$0xff]
    %v924 = vld [vmem:[%s451 + $0x8] sm:$0xff]
    %v925 = vld [vmem:[%s451 + $0x10] sm:$0xff]
    %v927 = vsel %vm470, %v922, 0
    %929 = vmatpush.msra.mxu0 0.0
    %930 = vmatpush.msra.mxu0 0.0
    %931 = vmatpush.msra.mxu0 0.0
    %932 = vmatpush.msra.mxu0 0.0
    %933 = vmatpush.msra.mxu0 0.0
    %934 = vmatpush.msra.mxu0 0.0
    %935 = vmatpush.msra.mxu0 0.0
    %936 = vmatpush.msra.mxu0 0.0
    %937 = vmatpush.msra.mxu0 %v272
    %938 = vmatpush.msra.mxu0 %v269
    %939 = vmatpush.msra.mxu0 %v266
    %940 = vmatpush.msra.mxu0 %v263
    %941 = vmatpush.msra.mxu0 %v260
    %942 = vmatpush.msra.mxu0 %v257
    %943 = vmatpush.msra.mxu0 %v254
    %944 = vmatpush.msra.mxu0 %v251
    %945 = vmatmul.f32.gmra.mxu0 %v927
    %v946 = vpop.f32.mrf.mxu0
    %v947 = vadd.f32 0.0, %v946
    %948 = vdwg.mxu0
    %949 = vmatpush.msra.mxu0 0.0
    %950 = vmatpush.msra.mxu0 0.0
    %951 = vmatpush.msra.mxu0 0.0
    %952 = vmatpush.msra.mxu0 0.0
    %953 = vmatpush.msra.mxu0 0.0
    %954 = vmatpush.msra.mxu0 0.0
    %955 = vmatpush.msra.mxu0 0.0
    %956 = vmatpush.msra.mxu0 0.0
    %957 = vmatpush.msra.mxu0 %v273
    %958 = vmatpush.msra.mxu0 %v270
    %959 = vmatpush.msra.mxu0 %v267
    %960 = vmatpush.msra.mxu0 %v264
    %961 = vmatpush.msra.mxu0 %v261
    %962 = vmatpush.msra.mxu0 %v258
    %963 = vmatpush.msra.mxu0 %v255
    %964 = vmatpush.msra.mxu0 %v252
    %965 = vmatmul.f32.gmra.mxu0 %v927
    %v966 = vpop.f32.mrf.mxu0
    %v967 = vadd.f32 0.0, %v966
    %968 = vdwg.mxu0
    %969 = vmatpush.msra.mxu0 0.0
    %970 = vmatpush.msra.mxu0 0.0
    %971 = vmatpush.msra.mxu0 0.0
    %972 = vmatpush.msra.mxu0 0.0
    %973 = vmatpush.msra.mxu0 0.0
    %974 = vmatpush.msra.mxu0 0.0
    %975 = vmatpush.msra.mxu0 0.0
    %976 = vmatpush.msra.mxu0 0.0
    %977 = vmatpush.msra.mxu0 %v274
    %978 = vmatpush.msra.mxu0 %v271
    %979 = vmatpush.msra.mxu0 %v268
    %980 = vmatpush.msra.mxu0 %v265
    %981 = vmatpush.msra.mxu0 %v262
    %982 = vmatpush.msra.mxu0 %v259
    %983 = vmatpush.msra.mxu0 %v256
    %984 = vmatpush.msra.mxu0 %v253
    %985 = vmatmul.f32.gmra.mxu0 %v927
    %v986 = vpop.f32.mrf.mxu0
    %v987 = vadd.f32 0.0, %v986
    %988 = vdwg.mxu0
    %v989 = vadd.f32 %v923, %v947
    %v990 = vxor.u32 %v989, 2147483648
    %v991 = vmul.f32 %v990, 1.442695
    %v992 = vpow.pop %v991
    %v993 = vadd.f32 %v992, 1.0
    %v994 = vrcp.pop %v993
    %v995 = vmul.f32 %v993, %v994
    %v996 = vsub.f32 1.0, %v995
    %v997 = vmul.f32 %v994, %v996
    %v998 = vadd.f32 %v994, %v997
    %vm999 = vweird.f32 %v993
    %vm1000 = vweird.f32 %v994
    %vm1001 = vmor %vm999, %vm1000
    %v1002 = vsel %vm1001, %v994, %v998
    %v1003 = vand.u32 2147483647, %v993
    %vm1004 = vcmp.eq.f32.partialorder %v1003, 8.507059e+37
    %v1005 = vand.u32 %v993, 2147483648
    %v1006 = vor.u32 1.1754944e-38, %v1005
    %v1007 = vsel %vm1004, %v1006, %v1002
    %v1008 = vmul.f32 1.0, %v1007
    %v1009 = vadd.f32 %v924, %v967
    %v1010 = vxor.u32 %v1009, 2147483648
    %v1011 = vmul.f32 %v1010, 1.442695
    %v1012 = vpow.pop %v1011
    %v1013 = vadd.f32 %v1012, 1.0
    %v1014 = vrcp.pop %v1013
    %v1015 = vmul.f32 %v1013, %v1014
    %v1016 = vsub.f32 1.0, %v1015
    %v1017 = vmul.f32 %v1014, %v1016
    %v1018 = vadd.f32 %v1014, %v1017
    %vm1019 = vweird.f32 %v1013
    %vm1020 = vweird.f32 %v1014
    %vm1021 = vmor %vm1019, %vm1020
    %v1022 = vsel %vm1021, %v1014, %v1018
    %v1023 = vand.u32 2147483647, %v1013
    %vm1024 = vcmp.eq.f32.partialorder %v1023, 8.507059e+37
    %v1025 = vand.u32 %v1013, 2147483648
    %v1026 = vor.u32 1.1754944e-38, %v1025
    %v1027 = vsel %vm1024, %v1026, %v1022
    %v1028 = vmul.f32 1.0, %v1027
    %v1029 = vadd.f32 %v987, %v53
    %v1030 = vmul.f32 %v1008, %v1029
    %v1031 = vadd.f32 %v925, %v1030
    %v1032 = vtanh.pop %v1031
    %v1033 = vsub.f32 1.0, %v1028
    %v1034 = vmul.f32 %v1033, %v1032
    %v1035 = vmul.f32 %v1028, %v922
    %v1036 = vadd.f32 %v1034, %v1035
    %v1037 = vld [vmem:[%s455] sm:$0xff]
    %v1038 = vld [vmem:[%s455 + $0x8] sm:$0xff]
    %v1039 = vld [vmem:[%s455 + $0x10] sm:$0xff]
    %v1041 = vsel %vm470, %v1036, 0
    %1043 = vmatpush.msra.mxu0 0.0
    %1044 = vmatpush.msra.mxu0 0.0
    %1045 = vmatpush.msra.mxu0 0.0
    %1046 = vmatpush.msra.mxu0 0.0
    %1047 = vmatpush.msra.mxu0 0.0
    %1048 = vmatpush.msra.mxu0 0.0
    %1049 = vmatpush.msra.mxu0 0.0
    %1050 = vmatpush.msra.mxu0 0.0
    %1051 = vmatpush.msra.mxu0 %v272
    %1052 = vmatpush.msra.mxu0 %v269
    %1053 = vmatpush.msra.mxu0 %v266
    %1054 = vmatpush.msra.mxu0 %v263
    %1055 = vmatpush.msra.mxu0 %v260
    %1056 = vmatpush.msra.mxu0 %v257
    %1057 = vmatpush.msra.mxu0 %v254
    %1058 = vmatpush.msra.mxu0 %v251
    %1059 = vmatmul.f32.gmra.mxu0 %v1041
    %v1060 = vpop.f32.mrf.mxu0
    %v1061 = vadd.f32 0.0, %v1060
    %1062 = vdwg.mxu0
    %1063 = vmatpush.msra.mxu0 0.0
    %1064 = vmatpush.msra.mxu0 0.0
    %1065 = vmatpush.msra.mxu0 0.0
    %1066 = vmatpush.msra.mxu0 0.0
    %1067 = vmatpush.msra.mxu0 0.0
    %1068 = vmatpush.msra.mxu0 0.0
    %1069 = vmatpush.msra.mxu0 0.0
    %1070 = vmatpush.msra.mxu0 0.0
    %1071 = vmatpush.msra.mxu0 %v273
    %1072 = vmatpush.msra.mxu0 %v270
    %1073 = vmatpush.msra.mxu0 %v267
    %1074 = vmatpush.msra.mxu0 %v264
    %1075 = vmatpush.msra.mxu0 %v261
    %1076 = vmatpush.msra.mxu0 %v258
    %1077 = vmatpush.msra.mxu0 %v255
    %1078 = vmatpush.msra.mxu0 %v252
    %1079 = vmatmul.f32.gmra.mxu0 %v1041
    %v1080 = vpop.f32.mrf.mxu0
    %v1081 = vadd.f32 0.0, %v1080
    %1082 = vdwg.mxu0
    %1083 = vmatpush.msra.mxu0 0.0
    %1084 = vmatpush.msra.mxu0 0.0
    %1085 = vmatpush.msra.mxu0 0.0
    %1086 = vmatpush.msra.mxu0 0.0
    %1087 = vmatpush.msra.mxu0 0.0
    %1088 = vmatpush.msra.mxu0 0.0
    %1089 = vmatpush.msra.mxu0 0.0
    %1090 = vmatpush.msra.mxu0 0.0
    %1091 = vmatpush.msra.mxu0 %v274
    %1092 = vmatpush.msra.mxu0 %v271
    %1093 = vmatpush.msra.mxu0 %v268
    %1094 = vmatpush.msra.mxu0 %v265
    %1095 = vmatpush.msra.mxu0 %v262
    %1096 = vmatpush.msra.mxu0 %v259
    %1097 = vmatpush.msra.mxu0 %v256
    %1098 = vmatpush.msra.mxu0 %v253
    %1099 = vmatmul.f32.gmra.mxu0 %v1041
    %v1100 = vpop.f32.mrf.mxu0
    %v1101 = vadd.f32 0.0, %v1100
    %1102 = vdwg.mxu0
    %v1103 = vadd.f32 %v1037, %v1061
    %v1104 = vxor.u32 %v1103, 2147483648
    %v1105 = vmul.f32 %v1104, 1.442695
    %v1106 = vpow.pop %v1105
    %v1107 = vadd.f32 %v1106, 1.0
    %v1108 = vrcp.pop %v1107
    %v1109 = vmul.f32 %v1107, %v1108
    %v1110 = vsub.f32 1.0, %v1109
    %v1111 = vmul.f32 %v1108, %v1110
    %v1112 = vadd.f32 %v1108, %v1111
    %vm1113 = vweird.f32 %v1107
    %vm1114 = vweird.f32 %v1108
    %vm1115 = vmor %vm1113, %vm1114
    %v1116 = vsel %vm1115, %v1108, %v1112
    %v1117 = vand.u32 2147483647, %v1107
    %vm1118 = vcmp.eq.f32.partialorder %v1117, 8.507059e+37
    %v1119 = vand.u32 %v1107, 2147483648
    %v1120 = vor.u32 1.1754944e-38, %v1119
    %v1121 = vsel %vm1118, %v1120, %v1116
    %v1122 = vmul.f32 1.0, %v1121
    %v1123 = vadd.f32 %v1038, %v1081
    %v1124 = vxor.u32 %v1123, 2147483648
    %v1125 = vmul.f32 %v1124, 1.442695
    %v1126 = vpow.pop %v1125
    %v1127 = vadd.f32 %v1126, 1.0
    %v1128 = vrcp.pop %v1127
    %v1129 = vmul.f32 %v1127, %v1128
    %v1130 = vsub.f32 1.0, %v1129
    %v1131 = vmul.f32 %v1128, %v1130
    %v1132 = vadd.f32 %v1128, %v1131
    %vm1133 = vweird.f32 %v1127
    %vm1134 = vweird.f32 %v1128
    %vm1135 = vmor %vm1133, %vm1134
    %v1136 = vsel %vm1135, %v1128, %v1132
    %v1137 = vand.u32 2147483647, %v1127
    %vm1138 = vcmp.eq.f32.partialorder %v1137, 8.507059e+37
    %v1139 = vand.u32 %v1127, 2147483648
    %v1140 = vor.u32 1.1754944e-38, %v1139
    %v1141 = vsel %vm1138, %v1140, %v1136
    %v1142 = vmul.f32 1.0, %v1141
    %v1143 = vadd.f32 %v1101, %v53
    %v1144 = vmul.f32 %v1122, %v1143
    %v1145 = vadd.f32 %v1039, %v1144
    %v1146 = vtanh.pop %v1145
    %v1147 = vsub.f32 1.0, %v1142
    %v1148 = vmul.f32 %v1147, %v1146
    %v1149 = vmul.f32 %v1142, %v1036
    %v1150 = vadd.f32 %v1148, %v1149
    %v1151 = vld [vmem:[%s459] sm:$0xff]
    %v1152 = vld [vmem:[%s459 + $0x8] sm:$0xff]
    %v1153 = vld [vmem:[%s459 + $0x10] sm:$0xff]
    %v1155 = vsel %vm470, %v1150, 0
    %1157 = vmatpush.msra.mxu0 0.0
    %1158 = vmatpush.msra.mxu0 0.0
    %1159 = vmatpush.msra.mxu0 0.0
    %1160 = vmatpush.msra.mxu0 0.0
    %1161 = vmatpush.msra.mxu0 0.0
    %1162 = vmatpush.msra.mxu0 0.0
    %1163 = vmatpush.msra.mxu0 0.0
    %1164 = vmatpush.msra.mxu0 0.0
    %1165 = vmatpush.msra.mxu0 %v272
    %1166 = vmatpush.msra.mxu0 %v269
    %1167 = vmatpush.msra.mxu0 %v266
    %1168 = vmatpush.msra.mxu0 %v263
    %1169 = vmatpush.msra.mxu0 %v260
    %1170 = vmatpush.msra.mxu0 %v257
    %1171 = vmatpush.msra.mxu0 %v254
    %1172 = vmatpush.msra.mxu0 %v251
    %1173 = vmatmul.f32.gmra.mxu0 %v1155
    %v1174 = vpop.f32.mrf.mxu0
    %v1175 = vadd.f32 0.0, %v1174
    %1176 = vdwg.mxu0
    %1177 = vmatpush.msra.mxu0 0.0
    %1178 = vmatpush.msra.mxu0 0.0
    %1179 = vmatpush.msra.mxu0 0.0
    %1180 = vmatpush.msra.mxu0 0.0
    %1181 = vmatpush.msra.mxu0 0.0
    %1182 = vmatpush.msra.mxu0 0.0
    %1183 = vmatpush.msra.mxu0 0.0
    %1184 = vmatpush.msra.mxu0 0.0
    %1185 = vmatpush.msra.mxu0 %v273
    %1186 = vmatpush.msra.mxu0 %v270
    %1187 = vmatpush.msra.mxu0 %v267
    %1188 = vmatpush.msra.mxu0 %v264
    %1189 = vmatpush.msra.mxu0 %v261
    %1190 = vmatpush.msra.mxu0 %v258
    %1191 = vmatpush.msra.mxu0 %v255
    %1192 = vmatpush.msra.mxu0 %v252
    %1193 = vmatmul.f32.gmra.mxu0 %v1155
    %v1194 = vpop.f32.mrf.mxu0
    %v1195 = vadd.f32 0.0, %v1194
    %1196 = vdwg.mxu0
    %1197 = vmatpush.msra.mxu0 0.0
    %1198 = vmatpush.msra.mxu0 0.0
    %1199 = vmatpush.msra.mxu0 0.0
    %1200 = vmatpush.msra.mxu0 0.0
    %1201 = vmatpush.msra.mxu0 0.0
    %1202 = vmatpush.msra.mxu0 0.0
    %1203 = vmatpush.msra.mxu0 0.0
    %1204 = vmatpush.msra.mxu0 0.0
    %1205 = vmatpush.msra.mxu0 %v274
    %1206 = vmatpush.msra.mxu0 %v271
    %1207 = vmatpush.msra.mxu0 %v268
    %1208 = vmatpush.msra.mxu0 %v265
    %1209 = vmatpush.msra.mxu0 %v262
    %1210 = vmatpush.msra.mxu0 %v259
    %1211 = vmatpush.msra.mxu0 %v256
    %1212 = vmatpush.msra.mxu0 %v253
    %1213 = vmatmul.f32.gmra.mxu0 %v1155
    %v1214 = vpop.f32.mrf.mxu0
    %v1215 = vadd.f32 0.0, %v1214
    %1216 = vdwg.mxu0
    %v1217 = vadd.f32 %v1151, %v1175
    %v1218 = vxor.u32 %v1217, 2147483648
    %v1219 = vmul.f32 %v1218, 1.442695
    %v1220 = vpow.pop %v1219
    %v1221 = vadd.f32 %v1220, 1.0
    %v1222 = vrcp.pop %v1221
    %v1223 = vmul.f32 %v1221, %v1222
    %v1224 = vsub.f32 1.0, %v1223
    %v1225 = vmul.f32 %v1222, %v1224
    %v1226 = vadd.f32 %v1222, %v1225
    %vm1227 = vweird.f32 %v1221
    %vm1228 = vweird.f32 %v1222
    %vm1229 = vmor %vm1227, %vm1228
    %v1230 = vsel %vm1229, %v1222, %v1226
    %v1231 = vand.u32 2147483647, %v1221
    %vm1232 = vcmp.eq.f32.partialorder %v1231, 8.507059e+37
    %v1233 = vand.u32 %v1221, 2147483648
    %v1234 = vor.u32 1.1754944e-38, %v1233
    %v1235 = vsel %vm1232, %v1234, %v1230
    %v1236 = vmul.f32 1.0, %v1235
    %v1237 = vadd.f32 %v1152, %v1195
    %v1238 = vxor.u32 %v1237, 2147483648
    %v1239 = vmul.f32 %v1238, 1.442695
    %v1240 = vpow.pop %v1239
    %v1241 = vadd.f32 %v1240, 1.0
    %v1242 = vrcp.pop %v1241
    %v1243 = vmul.f32 %v1241, %v1242
    %v1244 = vsub.f32 1.0, %v1243
    %v1245 = vmul.f32 %v1242, %v1244
    %v1246 = vadd.f32 %v1242, %v1245
    %vm1247 = vweird.f32 %v1241
    %vm1248 = vweird.f32 %v1242
    %vm1249 = vmor %vm1247, %vm1248
    %v1250 = vsel %vm1249, %v1242, %v1246
    %v1251 = vand.u32 2147483647, %v1241
    %vm1252 = vcmp.eq.f32.partialorder %v1251, 8.507059e+37
    %v1253 = vand.u32 %v1241, 2147483648
    %v1254 = vor.u32 1.1754944e-38, %v1253
    %v1255 = vsel %vm1252, %v1254, %v1250
    %v1256 = vmul.f32 1.0, %v1255
    %v1257 = vadd.f32 %v1215, %v53
    %v1258 = vmul.f32 %v1236, %v1257
    %v1259 = vadd.f32 %v1153, %v1258
    %v1260 = vtanh.pop %v1259
    %v1261 = vsub.f32 1.0, %v1256
    %v1262 = vmul.f32 %v1261, %v1260
    %v1263 = vmul.f32 %v1256, %v1150
    %v1264 = vadd.f32 %v1262, %v1263
    %v1265 = vld [vmem:[%s463] sm:$0xff]
    %v1266 = vld [vmem:[%s463 + $0x8] sm:$0xff]
    %v1267 = vld [vmem:[%s463 + $0x10] sm:$0xff]
    %v1269 = vsel %vm470, %v1264, 0
    %1271 = vmatpush.msra.mxu0 0.0
    %1272 = vmatpush.msra.mxu0 0.0
    %1273 = vmatpush.msra.mxu0 0.0
    %1274 = vmatpush.msra.mxu0 0.0
    %1275 = vmatpush.msra.mxu0 0.0
    %1276 = vmatpush.msra.mxu0 0.0
    %1277 = vmatpush.msra.mxu0 0.0
    %1278 = vmatpush.msra.mxu0 0.0
    %1279 = vmatpush.msra.mxu0 %v272
    %1280 = vmatpush.msra.mxu0 %v269
    %1281 = vmatpush.msra.mxu0 %v266
    %1282 = vmatpush.msra.mxu0 %v263
    %1283 = vmatpush.msra.mxu0 %v260
    %1284 = vmatpush.msra.mxu0 %v257
    %1285 = vmatpush.msra.mxu0 %v254
    %1286 = vmatpush.msra.mxu0 %v251
    %1287 = vmatmul.f32.gmra.mxu0 %v1269
    %v1288 = vpop.f32.mrf.mxu0
    %v1289 = vadd.f32 0.0, %v1288
    %1290 = vdwg.mxu0
    %1291 = vmatpush.msra.mxu0 0.0
    %1292 = vmatpush.msra.mxu0 0.0
    %1293 = vmatpush.msra.mxu0 0.0
    %1294 = vmatpush.msra.mxu0 0.0
    %1295 = vmatpush.msra.mxu0 0.0
    %1296 = vmatpush.msra.mxu0 0.0
    %1297 = vmatpush.msra.mxu0 0.0
    %1298 = vmatpush.msra.mxu0 0.0
    %1299 = vmatpush.msra.mxu0 %v273
    %1300 = vmatpush.msra.mxu0 %v270
    %1301 = vmatpush.msra.mxu0 %v267
    %1302 = vmatpush.msra.mxu0 %v264
    %1303 = vmatpush.msra.mxu0 %v261
    %1304 = vmatpush.msra.mxu0 %v258
    %1305 = vmatpush.msra.mxu0 %v255
    %1306 = vmatpush.msra.mxu0 %v252
    %1307 = vmatmul.f32.gmra.mxu0 %v1269
    %v1308 = vpop.f32.mrf.mxu0
    %v1309 = vadd.f32 0.0, %v1308
    %1310 = vdwg.mxu0
    %1311 = vmatpush.msra.mxu0 0.0
    %1312 = vmatpush.msra.mxu0 0.0
    %1313 = vmatpush.msra.mxu0 0.0
    %1314 = vmatpush.msra.mxu0 0.0
    %1315 = vmatpush.msra.mxu0 0.0
    %1316 = vmatpush.msra.mxu0 0.0
    %1317 = vmatpush.msra.mxu0 0.0
    %1318 = vmatpush.msra.mxu0 0.0
    %1319 = vmatpush.msra.mxu0 %v274
    %1320 = vmatpush.msra.mxu0 %v271
    %1321 = vmatpush.msra.mxu0 %v268
    %1322 = vmatpush.msra.mxu0 %v265
    %1323 = vmatpush.msra.mxu0 %v262
    %1324 = vmatpush.msra.mxu0 %v259
    %1325 = vmatpush.msra.mxu0 %v256
    %1326 = vmatpush.msra.mxu0 %v253
    %1327 = vmatmul.f32.gmra.mxu0 %v1269
    %v1328 = vpop.f32.mrf.mxu0
    %v1329 = vadd.f32 0.0, %v1328
    %1330 = vdwg.mxu0
    %v1331 = vadd.f32 %v1265, %v1289
    %v1332 = vxor.u32 %v1331, 2147483648
    %v1333 = vmul.f32 %v1332, 1.442695
    %v1334 = vpow.pop %v1333
    %v1335 = vadd.f32 %v1334, 1.0
    %v1336 = vrcp.pop %v1335
    %v1337 = vmul.f32 %v1335, %v1336
    %v1338 = vsub.f32 1.0, %v1337
    %v1339 = vmul.f32 %v1336, %v1338
    %v1340 = vadd.f32 %v1336, %v1339
    %vm1341 = vweird.f32 %v1335
    %vm1342 = vweird.f32 %v1336
    %vm1343 = vmor %vm1341, %vm1342
    %v1344 = vsel %vm1343, %v1336, %v1340
    %v1345 = vand.u32 2147483647, %v1335
    %vm1346 = vcmp.eq.f32.partialorder %v1345, 8.507059e+37
    %v1347 = vand.u32 %v1335, 2147483648
    %v1348 = vor.u32 1.1754944e-38, %v1347
    %v1349 = vsel %vm1346, %v1348, %v1344
    %v1350 = vmul.f32 1.0, %v1349
    %v1351 = vadd.f32 %v1266, %v1309
    %v1352 = vxor.u32 %v1351, 2147483648
    %v1353 = vmul.f32 %v1352, 1.442695
    %v1354 = vpow.pop %v1353
    %v1355 = vadd.f32 %v1354, 1.0
    %v1356 = vrcp.pop %v1355
    %v1357 = vmul.f32 %v1355, %v1356
    %v1358 = vsub.f32 1.0, %v1357
    %v1359 = vmul.f32 %v1356, %v1358
    %v1360 = vadd.f32 %v1356, %v1359
    %vm1361 = vweird.f32 %v1355
    %vm1362 = vweird.f32 %v1356
    %vm1363 = vmor %vm1361, %vm1362
    %v1364 = vsel %vm1363, %v1356, %v1360
    %v1365 = vand.u32 2147483647, %v1355
    %vm1366 = vcmp.eq.f32.partialorder %v1365, 8.507059e+37
    %v1367 = vand.u32 %v1355, 2147483648
    %v1368 = vor.u32 1.1754944e-38, %v1367
    %v1369 = vsel %vm1366, %v1368, %v1364
    %v1370 = vmul.f32 1.0, %v1369
    %v1371 = vadd.f32 %v1329, %v53
    %v1372 = vmul.f32 %v1350, %v1371
    %v1373 = vadd.f32 %v1267, %v1372
    %v1374 = vtanh.pop %v1373
    %v1375 = vsub.f32 1.0, %v1370
    %v1376 = vmul.f32 %v1375, %v1374
    %v1377 = vmul.f32 %v1370, %v1264
    %v1378 = vadd.f32 %v1376, %v1377
    %v1379 = vld [vmem:[%s4 + $0xd8] sm:$0xf]
    %v1380 = vld [vmem:[%s4 + $0xe0] sm:$0xf]
    %v1381 = vld [vmem:[%s4 + $0xe8] sm:$0xf]
    %v1382 = vld [vmem:[%s4 + $0xf0] sm:$0xff]
    %v1383 = vld [vmem:[%s4 + $0xf8] sm:$0xff]
    %v1384 = vld [vmem:[%s4 + $0x100] sm:$0xff]
    %v1385 = vld [vmem:[%s4 + $0x108] sm:$0xff]
    %v1386 = vld [vmem:[%s4 + $0x110] sm:$0xff]
    %v1387 = vld [vmem:[%s4 + $0x118] sm:$0xff]
    %v1388 = vld [vmem:[%s4 + $0x120] sm:$0xff]
    %v1389 = vld [vmem:[%s4 + $0x128] sm:$0xff]
    %v1390 = vld [vmem:[%s4 + $0x130] sm:$0xff]
    %v1391 = vld [vmem:[%s4 + $0x138] sm:$0xff]
    %v1392 = vld [vmem:[%s4 + $0x140] sm:$0xff]
    %v1393 = vld [vmem:[%s4 + $0x148] sm:$0xff]
    %v1394 = vld [vmem:[%s4 + $0x150] sm:$0xff]
    %v1395 = vld [vmem:[%s4 + $0x158] sm:$0xff]
    %v1396 = vld [vmem:[%s4 + $0x160] sm:$0xff]
    %v1397 = vld [vmem:[%s4 + $0x168] sm:$0xff]
    %v1398 = vld [vmem:[%s4 + $0x170] sm:$0xff]
    %v1399 = vld [vmem:[%s4 + $0x178] sm:$0xff]
    %v1400 = vld [vmem:[%s4 + $0x180] sm:$0xff]
    %v1401 = vld [vmem:[%s4 + $0x188] sm:$0xff]
    %v1402 = vld [vmem:[%s4 + $0x190] sm:$0xff]
    %v1403 = vld [vmem:[%s4 + $0x198] sm:$0xff]
    %v1404 = vld [vmem:[%s4 + $0x1a0] sm:$0xff]
    %v1405 = vld [vmem:[%s4 + $0x1a8] sm:$0xff]
    %v1406 = vld [vmem:[%s4 + $0x1b0] sm:$0xff]
    %v1407 = vld [vmem:[%s4 + $0x1b8] sm:$0xff]
    %v1408 = vld [vmem:[%s4 + $0x1c0] sm:$0xff]
    %v1409 = vld [vmem:[%s4 + $0x1c8] sm:$0xff]
    %v1410 = vld [vmem:[%s4 + $0x1d0] sm:$0xff]
    %v1411 = vld [vmem:[%s4 + $0x1d8] sm:$0xff]
    %v1412 = vld [vmem:[%s4 + $0x1e0] sm:$0xff]
    %v1413 = vld [vmem:[%s4 + $0x1e8] sm:$0xff]
    %v1414 = vld [vmem:[%s4 + $0x1f0] sm:$0xff]
    %v1415 = vld [vmem:[%s4 + $0x1f8] sm:$0xff]
    %v1416 = vld [vmem:[%s4 + $0x200] sm:$0xff]
    %v1417 = vld [vmem:[%s4 + $0x208] sm:$0xff]
    %v1418 = vld [vmem:[%s4 + $0x210] sm:$0xff]
    %v1419 = vld [vmem:[%s4 + $0x218] sm:$0xff]
    %v1420 = vld [vmem:[%s4 + $0x220] sm:$0xff]
    %v1421 = vld [vmem:[%s4 + $0x228] sm:$0xff]
    %v1422 = vld [vmem:[%s4 + $0x230] sm:$0xff]
    %v1423 = vld [vmem:[%s4 + $0x238] sm:$0xff]
    %v1424 = vld [vmem:[%s4 + $0x240] sm:$0xff]
    %v1425 = vld [vmem:[%s4 + $0x248] sm:$0xff]
    %v1426 = vld [vmem:[%s4 + $0x250] sm:$0xff]
    %v1427 = vld [vmem:[%s4 + $0x258] sm:$0xff]
    %v1428 = vld [vmem:[%s4 + $0x260] sm:$0xff]
    %v1429 = vld [vmem:[%s4 + $0x268] sm:$0xff]
    %1430 = vmatpush.msra.mxu0 0.0
    %1431 = vmatpush.msra.mxu0 0.0
    %1432 = vmatpush.msra.mxu0 0.0
    %1433 = vmatpush.msra.mxu0 0.0
    %1434 = vmatpush.msra.mxu0 0.0
    %1435 = vmatpush.msra.mxu0 0.0
    %1436 = vmatpush.msra.mxu0 0.0
    %1437 = vmatpush.msra.mxu0 0.0
    %1438 = vmatpush.msra.mxu0 %v1403
    %1439 = vmatpush.msra.mxu0 %v1400
    %1440 = vmatpush.msra.mxu0 %v1397
    %1441 = vmatpush.msra.mxu0 %v1394
    %1442 = vmatpush.msra.mxu0 %v1391
    %1443 = vmatpush.msra.mxu0 %v1388
    %1444 = vmatpush.msra.mxu0 %v1385
    %1445 = vmatpush.msra.mxu0 %v1382
    %1446 = vmatmul.f32.gmra.mxu0 %v471
    %v1447 = vpop.f32.mrf.mxu0
    %v1448 = vadd.f32 0.0, %v1447
    %1449 = vmatmul.f32.gmra.mxu0 %v585
    %v1450 = vpop.f32.mrf.mxu0
    %v1451 = vadd.f32 0.0, %v1450
    %1452 = vmatmul.f32.gmra.mxu0 %v699
    %v1453 = vpop.f32.mrf.mxu0
    %v1454 = vadd.f32 0.0, %v1453
    %1455 = vmatmul.f32.gmra.mxu0 %v813
    %v1456 = vpop.f32.mrf.mxu0
    %v1457 = vadd.f32 0.0, %v1456
    %1458 = vmatmul.f32.gmra.mxu0 %v927
    %v1459 = vpop.f32.mrf.mxu0
    %v1460 = vadd.f32 0.0, %v1459
    %1461 = vmatmul.f32.gmra.mxu0 %v1041
    %v1462 = vpop.f32.mrf.mxu0
    %v1463 = vadd.f32 0.0, %v1462
    %1464 = vmatmul.f32.gmra.mxu0 %v1155
    %v1465 = vpop.f32.mrf.mxu0
    %v1466 = vadd.f32 0.0, %v1465
    %1467 = vmatmul.f32.gmra.mxu0 %v1269
    %v1468 = vpop.f32.mrf.mxu0
    %v1469 = vadd.f32 0.0, %v1468
    %1470 = vdwg.mxu0
    %1471 = vmatpush.msra.mxu0 0.0
    %1472 = vmatpush.msra.mxu0 0.0
    %1473 = vmatpush.msra.mxu0 0.0
    %1474 = vmatpush.msra.mxu0 0.0
    %1475 = vmatpush.msra.mxu0 0.0
    %1476 = vmatpush.msra.mxu0 0.0
    %1477 = vmatpush.msra.mxu0 0.0
    %1478 = vmatpush.msra.mxu0 0.0
    %1479 = vmatpush.msra.mxu0 %v1404
    %1480 = vmatpush.msra.mxu0 %v1401
    %1481 = vmatpush.msra.mxu0 %v1398
    %1482 = vmatpush.msra.mxu0 %v1395
    %1483 = vmatpush.msra.mxu0 %v1392
    %1484 = vmatpush.msra.mxu0 %v1389
    %1485 = vmatpush.msra.mxu0 %v1386
    %1486 = vmatpush.msra.mxu0 %v1383
    %1487 = vmatmul.f32.gmra.mxu0 %v471
    %v1488 = vpop.f32.mrf.mxu0
    %v1489 = vadd.f32 0.0, %v1488
    %1490 = vmatmul.f32.gmra.mxu0 %v585
    %v1491 = vpop.f32.mrf.mxu0
    %v1492 = vadd.f32 0.0, %v1491
    %1493 = vmatmul.f32.gmra.mxu0 %v699
    %v1494 = vpop.f32.mrf.mxu0
    %v1495 = vadd.f32 0.0, %v1494
    %1496 = vmatmul.f32.gmra.mxu0 %v813
    %v1497 = vpop.f32.mrf.mxu0
    %v1498 = vadd.f32 0.0, %v1497
    %1499 = vmatmul.f32.gmra.mxu0 %v927
    %v1500 = vpop.f32.mrf.mxu0
    %v1501 = vadd.f32 0.0, %v1500
    %1502 = vmatmul.f32.gmra.mxu0 %v1041
    %v1503 = vpop.f32.mrf.mxu0
    %v1504 = vadd.f32 0.0, %v1503
    %1505 = vmatmul.f32.gmra.mxu0 %v1155
    %v1506 = vpop.f32.mrf.mxu0
    %v1507 = vadd.f32 0.0, %v1506
    %1508 = vmatmul.f32.gmra.mxu0 %v1269
    %v1509 = vpop.f32.mrf.mxu0
    %v1510 = vadd.f32 0.0, %v1509
    %1511 = vdwg.mxu0
    %1512 = vmatpush.msra.mxu0 0.0
    %1513 = vmatpush.msra.mxu0 0.0
    %1514 = vmatpush.msra.mxu0 0.0
    %1515 = vmatpush.msra.mxu0 0.0
    %1516 = vmatpush.msra.mxu0 0.0
    %1517 = vmatpush.msra.mxu0 0.0
    %1518 = vmatpush.msra.mxu0 0.0
    %1519 = vmatpush.msra.mxu0 0.0
    %1520 = vmatpush.msra.mxu0 %v1405
    %1521 = vmatpush.msra.mxu0 %v1402
    %1522 = vmatpush.msra.mxu0 %v1399
    %1523 = vmatpush.msra.mxu0 %v1396
    %1524 = vmatpush.msra.mxu0 %v1393
    %1525 = vmatpush.msra.mxu0 %v1390
    %1526 = vmatpush.msra.mxu0 %v1387
    %1527 = vmatpush.msra.mxu0 %v1384
    %1528 = vmatmul.f32.gmra.mxu0 %v471
    %v1529 = vpop.f32.mrf.mxu0
    %v1530 = vadd.f32 0.0, %v1529
    %1531 = vmatmul.f32.gmra.mxu0 %v585
    %v1532 = vpop.f32.mrf.mxu0
    %v1533 = vadd.f32 0.0, %v1532
    %1534 = vmatmul.f32.gmra.mxu0 %v699
    %v1535 = vpop.f32.mrf.mxu0
    %v1536 = vadd.f32 0.0, %v1535
    %1537 = vmatmul.f32.gmra.mxu0 %v813
    %v1538 = vpop.f32.mrf.mxu0
    %v1539 = vadd.f32 0.0, %v1538
    %1540 = vmatmul.f32.gmra.mxu0 %v927
    %v1541 = vpop.f32.mrf.mxu0
    %v1542 = vadd.f32 0.0, %v1541
    %1543 = vmatmul.f32.gmra.mxu0 %v1041
    %v1544 = vpop.f32.mrf.mxu0
    %v1545 = vadd.f32 0.0, %v1544
    %1546 = vmatmul.f32.gmra.mxu0 %v1155
    %v1547 = vpop.f32.mrf.mxu0
    %v1548 = vadd.f32 0.0, %v1547
    %1549 = vmatmul.f32.gmra.mxu0 %v1269
    %v1550 = vpop.f32.mrf.mxu0
    %v1551 = vadd.f32 0.0, %v1550
    %1552 = vdwg.mxu0
    %v1554 = vsel %vm278, %v247, 0
    %v1557 = vsel %vm303, %v1379, 0
    %v1560 = vsel %vm303, %v1380, 0
    %v1563 = vsel %vm303, %v1381, 0
    %1565 = vmatpush.msra.mxu0 0.0
    %1566 = vmatpush.msra.mxu0 0.0
    %1567 = vmatpush.msra.mxu0 0.0
    %1568 = vmatpush.msra.mxu0 0.0
    %1569 = vmatpush.msra.mxu0 0.0
    %1570 = vmatpush.msra.mxu0 0.0
    %1571 = vmatpush.msra.mxu0 0.0
    %1572 = vmatpush.msra.mxu0 0.0
    %1573 = vmatpush.msra.mxu0 0.0
    %1574 = vmatpush.msra.mxu0 0.0
    %1575 = vmatpush.msra.mxu0 0.0
    %1576 = vmatpush.msra.mxu0 0.0
    %1577 = vmatpush.msra.mxu0 0.0
    %1578 = vmatpush.msra.mxu0 0.0
    %1579 = vmatpush.msra.mxu0 0.0
    %1580 = vmatpush.msra.mxu0 %v1557
    %1581 = vmatmul.f32.gmra.mxu0 %v283
    %v1582 = vpop.f32.mrf.mxu0
    %v1583 = vadd.f32 %v1448, %v1582
    %1584 = vmatmul.f32.gmra.mxu0 %v286
    %v1585 = vpop.f32.mrf.mxu0
    %v1586 = vadd.f32 %v1451, %v1585
    %1587 = vmatmul.f32.gmra.mxu0 %v289
    %v1588 = vpop.f32.mrf.mxu0
    %v1589 = vadd.f32 %v1454, %v1588
    %1590 = vmatmul.f32.gmra.mxu0 %v292
    %v1591 = vpop.f32.mrf.mxu0
    %v1592 = vadd.f32 %v1457, %v1591
    %1593 = vmatmul.f32.gmra.mxu0 %v295
    %v1594 = vpop.f32.mrf.mxu0
    %v1595 = vadd.f32 %v1460, %v1594
    %1596 = vmatmul.f32.gmra.mxu0 %v298
    %v1597 = vpop.f32.mrf.mxu0
    %v1598 = vadd.f32 %v1463, %v1597
    %1599 = vmatmul.f32.gmra.mxu0 %v301
    %v1600 = vpop.f32.mrf.mxu0
    %v1601 = vadd.f32 %v1466, %v1600
    %1602 = vmatmul.f32.gmra.mxu0 %v1554
    %v1603 = vpop.f32.mrf.mxu0
    %v1604 = vadd.f32 %v1469, %v1603
    %1605 = vdwg.mxu0
    %1606 = vmatpush.msra.mxu0 0.0
    %1607 = vmatpush.msra.mxu0 0.0
    %1608 = vmatpush.msra.mxu0 0.0
    %1609 = vmatpush.msra.mxu0 0.0
    %1610 = vmatpush.msra.mxu0 0.0
    %1611 = vmatpush.msra.mxu0 0.0
    %1612 = vmatpush.msra.mxu0 0.0
    %1613 = vmatpush.msra.mxu0 0.0
    %1614 = vmatpush.msra.mxu0 0.0
    %1615 = vmatpush.msra.mxu0 0.0
    %1616 = vmatpush.msra.mxu0 0.0
    %1617 = vmatpush.msra.mxu0 0.0
    %1618 = vmatpush.msra.mxu0 0.0
    %1619 = vmatpush.msra.mxu0 0.0
    %1620 = vmatpush.msra.mxu0 0.0
    %1621 = vmatpush.msra.mxu0 %v1560
    %1622 = vmatmul.f32.gmra.mxu0 %v283
    %v1623 = vpop.f32.mrf.mxu0
    %v1624 = vadd.f32 %v1489, %v1623
    %1625 = vmatmul.f32.gmra.mxu0 %v286
    %v1626 = vpop.f32.mrf.mxu0
    %v1627 = vadd.f32 %v1492, %v1626
    %1628 = vmatmul.f32.gmra.mxu0 %v289
    %v1629 = vpop.f32.mrf.mxu0
    %v1630 = vadd.f32 %v1495, %v1629
    %1631 = vmatmul.f32.gmra.mxu0 %v292
    %v1632 = vpop.f32.mrf.mxu0
    %v1633 = vadd.f32 %v1498, %v1632
    %1634 = vmatmul.f32.gmra.mxu0 %v295
    %v1635 = vpop.f32.mrf.mxu0
    %v1636 = vadd.f32 %v1501, %v1635
    %1637 = vmatmul.f32.gmra.mxu0 %v298
    %v1638 = vpop.f32.mrf.mxu0
    %v1639 = vadd.f32 %v1504, %v1638
    %1640 = vmatmul.f32.gmra.mxu0 %v301
    %v1641 = vpop.f32.mrf.mxu0
    %v1642 = vadd.f32 %v1507, %v1641
    %1643 = vmatmul.f32.gmra.mxu0 %v1554
    %v1644 = vpop.f32.mrf.mxu0
    %v1645 = vadd.f32 %v1510, %v1644
    %1646 = vdwg.mxu0
    %1647 = vmatpush.msra.mxu0 0.0
    %1648 = vmatpush.msra.mxu0 0.0
    %1649 = vmatpush.msra.mxu0 0.0
    %1650 = vmatpush.msra.mxu0 0.0
    %1651 = vmatpush.msra.mxu0 0.0
    %1652 = vmatpush.msra.mxu0 0.0
    %1653 = vmatpush.msra.mxu0 0.0
    %1654 = vmatpush.msra.mxu0 0.0
    %1655 = vmatpush.msra.mxu0 0.0
    %1656 = vmatpush.msra.mxu0 0.0
    %1657 = vmatpush.msra.mxu0 0.0
    %1658 = vmatpush.msra.mxu0 0.0
    %1659 = vmatpush.msra.mxu0 0.0
    %1660 = vmatpush.msra.mxu0 0.0
    %1661 = vmatpush.msra.mxu0 0.0
    %1662 = vmatpush.msra.mxu0 %v1563
    %1663 = vmatmul.f32.gmra.mxu0 %v283
    %v1664 = vpop.f32.mrf.mxu0
    %v1665 = vadd.f32 %v1530, %v1664
    %1666 = vmatmul.f32.gmra.mxu0 %v286
    %v1667 = vpop.f32.mrf.mxu0
    %v1668 = vadd.f32 %v1533, %v1667
    %1669 = vmatmul.f32.gmra.mxu0 %v289
    %v1670 = vpop.f32.mrf.mxu0
    %v1671 = vadd.f32 %v1536, %v1670
    %1672 = vmatmul.f32.gmra.mxu0 %v292
    %v1673 = vpop.f32.mrf.mxu0
    %v1674 = vadd.f32 %v1539, %v1673
    %1675 = vmatmul.f32.gmra.mxu0 %v295
    %v1676 = vpop.f32.mrf.mxu0
    %v1677 = vadd.f32 %v1542, %v1676
    %1678 = vmatmul.f32.gmra.mxu0 %v298
    %v1679 = vpop.f32.mrf.mxu0
    %v1680 = vadd.f32 %v1545, %v1679
    %1681 = vmatmul.f32.gmra.mxu0 %v301
    %v1682 = vpop.f32.mrf.mxu0
    %v1683 = vadd.f32 %v1548, %v1682
    %1684 = vmatmul.f32.gmra.mxu0 %v1554
    %v1685 = vpop.f32.mrf.mxu0
    %v1686 = vadd.f32 %v1551, %v1685
    %1687 = vdwg.mxu0
    %v1688 = vperm.slane %v49, 0
    %v1689 = vperm.slane %v50, 0
    %v1690 = vperm.slane %v51, 0
    %v1691 = vadd.f32 %v1583, %v1688
    %v1692 = vadd.f32 %v1624, %v1689
    %v1693 = vadd.f32 %v1665, %v1690
    %v1694 = vadd.f32 %v1586, %v1688
    %v1695 = vadd.f32 %v1627, %v1689
    %v1696 = vadd.f32 %v1668, %v1690
    %v1697 = vadd.f32 %v1589, %v1688
    %v1698 = vadd.f32 %v1630, %v1689
    %v1699 = vadd.f32 %v1671, %v1690
    %v1700 = vadd.f32 %v1592, %v1688
    %v1701 = vadd.f32 %v1633, %v1689
    %v1702 = vadd.f32 %v1674, %v1690
    %v1703 = vadd.f32 %v1595, %v1688
    %v1704 = vadd.f32 %v1636, %v1689
    %v1705 = vadd.f32 %v1677, %v1690
    %v1706 = vadd.f32 %v1598, %v1688
    %v1707 = vadd.f32 %v1639, %v1689
    %v1708 = vadd.f32 %v1680, %v1690
    %v1709 = vadd.f32 %v1601, %v1688
    %v1710 = vadd.f32 %v1642, %v1689
    %v1711 = vadd.f32 %v1683, %v1690
    %v1712 = vadd.f32 %v1604, %v1688
    %v1713 = vadd.f32 %v1645, %v1689
    %v1714 = vadd.f32 %v1686, %v1690
    %1715 = vst [vmem:[#allocation3] sm:$0xff] %v1691
    %1716 = vst [vmem:[#allocation3 + $0x8] sm:$0xff] %v1692
    %1717 = vst [vmem:[#allocation3 + $0x10] sm:$0xff] %v1693
    %s1718 = scalar_lea.vmem [#allocation3], 24
    %1719 = vst [vmem:[%s1718] sm:$0xff] %v1694
    %1720 = vst [vmem:[%s1718 + $0x8] sm:$0xff] %v1695
    %1721 = vst [vmem:[%s1718 + $0x10] sm:$0xff] %v1696
    %s1722 = scalar_lea.vmem [#allocation3], 48
    %1723 = vst [vmem:[%s1722] sm:$0xff] %v1697
    %1724 = vst [vmem:[%s1722 + $0x8] sm:$0xff] %v1698
    %1725 = vst [vmem:[%s1722 + $0x10] sm:$0xff] %v1699
    %s1726 = scalar_lea.vmem [#allocation3], 72
    %1727 = vst [vmem:[%s1726] sm:$0xff] %v1700
    %1728 = vst [vmem:[%s1726 + $0x8] sm:$0xff] %v1701
    %1729 = vst [vmem:[%s1726 + $0x10] sm:$0xff] %v1702
    %s1730 = scalar_lea.vmem [#allocation3], 96
    %1731 = vst [vmem:[%s1730] sm:$0xff] %v1703
    %1732 = vst [vmem:[%s1730 + $0x8] sm:$0xff] %v1704
    %1733 = vst [vmem:[%s1730 + $0x10] sm:$0xff] %v1705
    %s1734 = scalar_lea.vmem [#allocation3], 120
    %1735 = vst [vmem:[%s1734] sm:$0xff] %v1706
    %1736 = vst [vmem:[%s1734 + $0x8] sm:$0xff] %v1707
    %1737 = vst [vmem:[%s1734 + $0x10] sm:$0xff] %v1708
    %s1738 = scalar_lea.vmem [#allocation3], 144
    %1739 = vst [vmem:[%s1738] sm:$0xff] %v1709
    %1740 = vst [vmem:[%s1738 + $0x8] sm:$0xff] %v1710
    %1741 = vst [vmem:[%s1738 + $0x10] sm:$0xff] %v1711
    %s1742 = scalar_lea.vmem [#allocation3], 168
    %1743 = vst [vmem:[%s1742] sm:$0xff] %v1712
    %1744 = vst [vmem:[%s1742 + $0x8] sm:$0xff] %v1713
    %1745 = vst [vmem:[%s1742 + $0x10] sm:$0xff] %v1714
    %s1746 = smul.u32 %s80, 3
    %s1747 = smul.addr %s1746, 8
    %s1748 = scalar_lea.vmem [#allocation3], %s1747
    %v1749 = vld [vmem:[%s1748] sm:$0xff]
    %v1750 = vld [vmem:[%s1748 + $0x8] sm:$0xff]
    %v1751 = vld [vmem:[%s1748 + $0x10] sm:$0xff]
    %s1752 = smul.u32 %s83, 3
    %s1753 = smul.addr %s1752, 8
    %s1754 = scalar_lea.vmem [#allocation3], %s1753
    %v1755 = vld [vmem:[%s1754] sm:$0xff]
    %v1756 = vld [vmem:[%s1754 + $0x8] sm:$0xff]
    %v1757 = vld [vmem:[%s1754 + $0x10] sm:$0xff]
    %v1758 = vsel %vm131, %v1755, %v1749
    %v1759 = vsel %vm131, %v1756, %v1750
    %v1760 = vsel %vm131, %v1757, %v1751
    %1761 = vmatpush.msra.mxu0 0.0
    %1762 = vmatpush.msra.mxu0 0.0
    %1763 = vmatpush.msra.mxu0 0.0
    %1764 = vmatpush.msra.mxu0 0.0
    %1765 = vmatpush.msra.mxu0 0.0
    %1766 = vmatpush.msra.mxu0 0.0
    %1767 = vmatpush.msra.mxu0 0.0
    %1768 = vmatpush.msra.mxu0 0.0
    %1769 = vmatpush.msra.mxu0 %v1427
    %1770 = vmatpush.msra.mxu0 %v1424
    %1771 = vmatpush.msra.mxu0 %v1421
    %1772 = vmatpush.msra.mxu0 %v1418
    %1773 = vmatpush.msra.mxu0 %v1415
    %1774 = vmatpush.msra.mxu0 %v1412
    %1775 = vmatpush.msra.mxu0 %v1409
    %1776 = vmatpush.msra.mxu0 %v1406
    %1777 = vmatmul.f32.gmra.mxu0 %v471
    %v1778 = vpop.f32.mrf.mxu0
    %v1779 = vadd.f32 0.0, %v1778
    %1780 = vdwg.mxu0
    %1781 = vmatpush.msra.mxu0 0.0
    %1782 = vmatpush.msra.mxu0 0.0
    %1783 = vmatpush.msra.mxu0 0.0
    %1784 = vmatpush.msra.mxu0 0.0
    %1785 = vmatpush.msra.mxu0 0.0
    %1786 = vmatpush.msra.mxu0 0.0
    %1787 = vmatpush.msra.mxu0 0.0
    %1788 = vmatpush.msra.mxu0 0.0
    %1789 = vmatpush.msra.mxu0 %v1428
    %1790 = vmatpush.msra.mxu0 %v1425
    %1791 = vmatpush.msra.mxu0 %v1422
    %1792 = vmatpush.msra.mxu0 %v1419
    %1793 = vmatpush.msra.mxu0 %v1416
    %1794 = vmatpush.msra.mxu0 %v1413
    %1795 = vmatpush.msra.mxu0 %v1410
    %1796 = vmatpush.msra.mxu0 %v1407
    %1797 = vmatmul.f32.gmra.mxu0 %v471
    %v1798 = vpop.f32.mrf.mxu0
    %v1799 = vadd.f32 0.0, %v1798
    %1800 = vdwg.mxu0
    %1801 = vmatpush.msra.mxu0 0.0
    %1802 = vmatpush.msra.mxu0 0.0
    %1803 = vmatpush.msra.mxu0 0.0
    %1804 = vmatpush.msra.mxu0 0.0
    %1805 = vmatpush.msra.mxu0 0.0
    %1806 = vmatpush.msra.mxu0 0.0
    %1807 = vmatpush.msra.mxu0 0.0
    %1808 = vmatpush.msra.mxu0 0.0
    %1809 = vmatpush.msra.mxu0 %v1429
    %1810 = vmatpush.msra.mxu0 %v1426
    %1811 = vmatpush.msra.mxu0 %v1423
    %1812 = vmatpush.msra.mxu0 %v1420
    %1813 = vmatpush.msra.mxu0 %v1417
    %1814 = vmatpush.msra.mxu0 %v1414
    %1815 = vmatpush.msra.mxu0 %v1411
    %1816 = vmatpush.msra.mxu0 %v1408
    %1817 = vmatmul.f32.gmra.mxu0 %v471
    %v1818 = vpop.f32.mrf.mxu0
    %v1819 = vadd.f32 0.0, %v1818
    %1820 = vdwg.mxu0
    %v1821 = vadd.f32 %v1758, %v1779
    %v1822 = vxor.u32 %v1821, 2147483648
    %v1823 = vmul.f32 %v1822, 1.442695
    %v1824 = vpow.pop %v1823
    %v1825 = vadd.f32 %v1824, 1.0
    %v1826 = vrcp.pop %v1825
    %v1827 = vmul.f32 %v1825, %v1826
    %v1828 = vsub.f32 1.0, %v1827
    %v1829 = vmul.f32 %v1826, %v1828
    %v1830 = vadd.f32 %v1826, %v1829
    %vm1831 = vweird.f32 %v1825
    %vm1832 = vweird.f32 %v1826
    %vm1833 = vmor %vm1831, %vm1832
    %v1834 = vsel %vm1833, %v1826, %v1830
    %v1835 = vand.u32 2147483647, %v1825
    %vm1836 = vcmp.eq.f32.partialorder %v1835, 8.507059e+37
    %v1837 = vand.u32 %v1825, 2147483648
    %v1838 = vor.u32 1.1754944e-38, %v1837
    %v1839 = vsel %vm1836, %v1838, %v1834
    %v1840 = vmul.f32 1.0, %v1839
    %v1841 = vadd.f32 %v1759, %v1799
    %v1842 = vxor.u32 %v1841, 2147483648
    %v1843 = vmul.f32 %v1842, 1.442695
    %v1844 = vpow.pop %v1843
    %v1845 = vadd.f32 %v1844, 1.0
    %v1846 = vrcp.pop %v1845
    %v1847 = vmul.f32 %v1845, %v1846
    %v1848 = vsub.f32 1.0, %v1847
    %v1849 = vmul.f32 %v1846, %v1848
    %v1850 = vadd.f32 %v1846, %v1849
    %vm1851 = vweird.f32 %v1845
    %vm1852 = vweird.f32 %v1846
    %vm1853 = vmor %vm1851, %vm1852
    %v1854 = vsel %vm1853, %v1846, %v1850
    %v1855 = vand.u32 2147483647, %v1845
    %vm1856 = vcmp.eq.f32.partialorder %v1855, 8.507059e+37
    %v1857 = vand.u32 %v1845, 2147483648
    %v1858 = vor.u32 1.1754944e-38, %v1857
    %v1859 = vsel %vm1856, %v1858, %v1854
    %v1860 = vmul.f32 1.0, %v1859
    %v1861 = vadd.f32 %v1819, %v54
    %v1862 = vmul.f32 %v1840, %v1861
    %v1863 = vadd.f32 %v1760, %v1862
    %v1864 = vtanh.pop %v1863
    %v1865 = vsub.f32 1.0, %v1860
    %v1866 = vmul.f32 %v1865, %v1864
    %v1867 = vmul.f32 %v1860, 0.0
    %v1868 = vadd.f32 %v1866, %v1867
    %s1869 = smul.u32 %s86, 3
    %s1870 = smul.addr %s1869, 8
    %s1871 = scalar_lea.vmem [#allocation3], %s1870
    %v1872 = vld [vmem:[%s1871] sm:$0xff]
    %v1873 = vld [vmem:[%s1871 + $0x8] sm:$0xff]
    %v1874 = vld [vmem:[%s1871 + $0x10] sm:$0xff]
    %s1875 = smul.u32 %s89, 3
    %s1876 = smul.addr %s1875, 8
    %s1877 = scalar_lea.vmem [#allocation3], %s1876
    %v1878 = vld [vmem:[%s1877] sm:$0xff]
    %v1879 = vld [vmem:[%s1877 + $0x8] sm:$0xff]
    %v1880 = vld [vmem:[%s1877 + $0x10] sm:$0xff]
    %v1881 = vsel %vm131, %v1878, %v1872
    %v1882 = vsel %vm131, %v1879, %v1873
    %v1883 = vsel %vm131, %v1880, %v1874
    %v1885 = vsel %vm470, %v1868, 0
    %1887 = vmatpush.msra.mxu0 0.0
    %1888 = vmatpush.msra.mxu0 0.0
    %1889 = vmatpush.msra.mxu0 0.0
    %1890 = vmatpush.msra.mxu0 0.0
    %1891 = vmatpush.msra.mxu0 0.0
    %1892 = vmatpush.msra.mxu0 0.0
    %1893 = vmatpush.msra.mxu0 0.0
    %1894 = vmatpush.msra.mxu0 0.0
    %1895 = vmatpush.msra.mxu0 %v1427
    %1896 = vmatpush.msra.mxu0 %v1424
    %1897 = vmatpush.msra.mxu0 %v1421
    %1898 = vmatpush.msra.mxu0 %v1418
    %1899 = vmatpush.msra.mxu0 %v1415
    %1900 = vmatpush.msra.mxu0 %v1412
    %1901 = vmatpush.msra.mxu0 %v1409
    %1902 = vmatpush.msra.mxu0 %v1406
    %1903 = vmatmul.f32.gmra.mxu0 %v1885
    %v1904 = vpop.f32.mrf.mxu0
    %v1905 = vadd.f32 0.0, %v1904
    %1906 = vdwg.mxu0
    %1907 = vmatpush.msra.mxu0 0.0
    %1908 = vmatpush.msra.mxu0 0.0
    %1909 = vmatpush.msra.mxu0 0.0
    %1910 = vmatpush.msra.mxu0 0.0
    %1911 = vmatpush.msra.mxu0 0.0
    %1912 = vmatpush.msra.mxu0 0.0
    %1913 = vmatpush.msra.mxu0 0.0
    %1914 = vmatpush.msra.mxu0 0.0
    %1915 = vmatpush.msra.mxu0 %v1428
    %1916 = vmatpush.msra.mxu0 %v1425
    %1917 = vmatpush.msra.mxu0 %v1422
    %1918 = vmatpush.msra.mxu0 %v1419
    %1919 = vmatpush.msra.mxu0 %v1416
    %1920 = vmatpush.msra.mxu0 %v1413
    %1921 = vmatpush.msra.mxu0 %v1410
    %1922 = vmatpush.msra.mxu0 %v1407
    %1923 = vmatmul.f32.gmra.mxu0 %v1885
    %v1924 = vpop.f32.mrf.mxu0
    %v1925 = vadd.f32 0.0, %v1924
    %1926 = vdwg.mxu0
    %1927 = vmatpush.msra.mxu0 0.0
    %1928 = vmatpush.msra.mxu0 0.0
    %1929 = vmatpush.msra.mxu0 0.0
    %1930 = vmatpush.msra.mxu0 0.0
    %1931 = vmatpush.msra.mxu0 0.0
    %1932 = vmatpush.msra.mxu0 0.0
    %1933 = vmatpush.msra.mxu0 0.0
    %1934 = vmatpush.msra.mxu0 0.0
    %1935 = vmatpush.msra.mxu0 %v1429
    %1936 = vmatpush.msra.mxu0 %v1426
    %1937 = vmatpush.msra.mxu0 %v1423
    %1938 = vmatpush.msra.mxu0 %v1420
    %1939 = vmatpush.msra.mxu0 %v1417
    %1940 = vmatpush.msra.mxu0 %v1414
    %1941 = vmatpush.msra.mxu0 %v1411
    %1942 = vmatpush.msra.mxu0 %v1408
    %1943 = vmatmul.f32.gmra.mxu0 %v1885
    %v1944 = vpop.f32.mrf.mxu0
    %v1945 = vadd.f32 0.0, %v1944
    %1946 = vdwg.mxu0
    %v1947 = vadd.f32 %v1881, %v1905
    %v1948 = vxor.u32 %v1947, 2147483648
    %v1949 = vmul.f32 %v1948, 1.442695
    %v1950 = vpow.pop %v1949
    %v1951 = vadd.f32 %v1950, 1.0
    %v1952 = vrcp.pop %v1951
    %v1953 = vmul.f32 %v1951, %v1952
    %v1954 = vsub.f32 1.0, %v1953
    %v1955 = vmul.f32 %v1952, %v1954
    %v1956 = vadd.f32 %v1952, %v1955
    %vm1957 = vweird.f32 %v1951
    %vm1958 = vweird.f32 %v1952
    %vm1959 = vmor %vm1957, %vm1958
    %v1960 = vsel %vm1959, %v1952, %v1956
    %v1961 = vand.u32 2147483647, %v1951
    %vm1962 = vcmp.eq.f32.partialorder %v1961, 8.507059e+37
    %v1963 = vand.u32 %v1951, 2147483648
    %v1964 = vor.u32 1.1754944e-38, %v1963
    %v1965 = vsel %vm1962, %v1964, %v1960
    %v1966 = vmul.f32 1.0, %v1965
    %v1967 = vadd.f32 %v1882, %v1925
    %v1968 = vxor.u32 %v1967, 2147483648
    %v1969 = vmul.f32 %v1968, 1.442695
    %v1970 = vpow.pop %v1969
    %v1971 = vadd.f32 %v1970, 1.0
    %v1972 = vrcp.pop %v1971
    %v1973 = vmul.f32 %v1971, %v1972
    %v1974 = vsub.f32 1.0, %v1973
    %v1975 = vmul.f32 %v1972, %v1974
    %v1976 = vadd.f32 %v1972, %v1975
    %vm1977 = vweird.f32 %v1971
    %vm1978 = vweird.f32 %v1972
    %vm1979 = vmor %vm1977, %vm1978
    %v1980 = vsel %vm1979, %v1972, %v1976
    %v1981 = vand.u32 2147483647, %v1971
    %vm1982 = vcmp.eq.f32.partialorder %v1981, 8.507059e+37
    %v1983 = vand.u32 %v1971, 2147483648
    %v1984 = vor.u32 1.1754944e-38, %v1983
    %v1985 = vsel %vm1982, %v1984, %v1980
    %v1986 = vmul.f32 1.0, %v1985
    %v1987 = vadd.f32 %v1945, %v54
    %v1988 = vmul.f32 %v1966, %v1987
    %v1989 = vadd.f32 %v1883, %v1988
    %v1990 = vtanh.pop %v1989
    %v1991 = vsub.f32 1.0, %v1986
    %v1992 = vmul.f32 %v1991, %v1990
    %v1993 = vmul.f32 %v1986, %v1868
    %v1994 = vadd.f32 %v1992, %v1993
    %s1995 = smul.u32 %s92, 3
    %s1996 = smul.addr %s1995, 8
    %s1997 = scalar_lea.vmem [#allocation3], %s1996
    %v1998 = vld [vmem:[%s1997] sm:$0xff]
    %v1999 = vld [vmem:[%s1997 + $0x8] sm:$0xff]
    %v2000 = vld [vmem:[%s1997 + $0x10] sm:$0xff]
    %s2001 = smul.u32 %s95, 3
    %s2002 = smul.addr %s2001, 8
    %s2003 = scalar_lea.vmem [#allocation3], %s2002
    %v2004 = vld [vmem:[%s2003] sm:$0xff]
    %v2005 = vld [vmem:[%s2003 + $0x8] sm:$0xff]
    %v2006 = vld [vmem:[%s2003 + $0x10] sm:$0xff]
    %v2007 = vsel %vm131, %v2004, %v1998
    %v2008 = vsel %vm131, %v2005, %v1999
    %v2009 = vsel %vm131, %v2006, %v2000
    %v2011 = vsel %vm470, %v1994, 0
    %2013 = vmatpush.msra.mxu0 0.0
    %2014 = vmatpush.msra.mxu0 0.0
    %2015 = vmatpush.msra.mxu0 0.0
    %2016 = vmatpush.msra.mxu0 0.0
    %2017 = vmatpush.msra.mxu0 0.0
    %2018 = vmatpush.msra.mxu0 0.0
    %2019 = vmatpush.msra.mxu0 0.0
    %2020 = vmatpush.msra.mxu0 0.0
    %2021 = vmatpush.msra.mxu0 %v1427
    %2022 = vmatpush.msra.mxu0 %v1424
    %2023 = vmatpush.msra.mxu0 %v1421
    %2024 = vmatpush.msra.mxu0 %v1418
    %2025 = vmatpush.msra.mxu0 %v1415
    %2026 = vmatpush.msra.mxu0 %v1412
    %2027 = vmatpush.msra.mxu0 %v1409
    %2028 = vmatpush.msra.mxu0 %v1406
    %2029 = vmatmul.f32.gmra.mxu0 %v2011
    %v2030 = vpop.f32.mrf.mxu0
    %v2031 = vadd.f32 0.0, %v2030
    %2032 = vdwg.mxu0
    %2033 = vmatpush.msra.mxu0 0.0
    %2034 = vmatpush.msra.mxu0 0.0
    %2035 = vmatpush.msra.mxu0 0.0
    %2036 = vmatpush.msra.mxu0 0.0
    %2037 = vmatpush.msra.mxu0 0.0
    %2038 = vmatpush.msra.mxu0 0.0
    %2039 = vmatpush.msra.mxu0 0.0
    %2040 = vmatpush.msra.mxu0 0.0
    %2041 = vmatpush.msra.mxu0 %v1428
    %2042 = vmatpush.msra.mxu0 %v1425
    %2043 = vmatpush.msra.mxu0 %v1422
    %2044 = vmatpush.msra.mxu0 %v1419
    %2045 = vmatpush.msra.mxu0 %v1416
    %2046 = vmatpush.msra.mxu0 %v1413
    %2047 = vmatpush.msra.mxu0 %v1410
    %2048 = vmatpush.msra.mxu0 %v1407
    %2049 = vmatmul.f32.gmra.mxu0 %v2011
    %v2050 = vpop.f32.mrf.mxu0
    %v2051 = vadd.f32 0.0, %v2050
    %2052 = vdwg.mxu0
    %2053 = vmatpush.msra.mxu0 0.0
    %2054 = vmatpush.msra.mxu0 0.0
    %2055 = vmatpush.msra.mxu0 0.0
    %2056 = vmatpush.msra.mxu0 0.0
    %2057 = vmatpush.msra.mxu0 0.0
    %2058 = vmatpush.msra.mxu0 0.0
    %2059 = vmatpush.msra.mxu0 0.0
    %2060 = vmatpush.msra.mxu0 0.0
    %2061 = vmatpush.msra.mxu0 %v1429
    %2062 = vmatpush.msra.mxu0 %v1426
    %2063 = vmatpush.msra.mxu0 %v1423
    %2064 = vmatpush.msra.mxu0 %v1420
    %2065 = vmatpush.msra.mxu0 %v1417
    %2066 = vmatpush.msra.mxu0 %v1414
    %2067 = vmatpush.msra.mxu0 %v1411
    %2068 = vmatpush.msra.mxu0 %v1408
    %2069 = vmatmul.f32.gmra.mxu0 %v2011
    %v2070 = vpop.f32.mrf.mxu0
    %v2071 = vadd.f32 0.0, %v2070
    %2072 = vdwg.mxu0
    %v2073 = vadd.f32 %v2007, %v2031
    %v2074 = vxor.u32 %v2073, 2147483648
    %v2075 = vmul.f32 %v2074, 1.442695
    %v2076 = vpow.pop %v2075
    %v2077 = vadd.f32 %v2076, 1.0
    %v2078 = vrcp.pop %v2077
    %v2079 = vmul.f32 %v2077, %v2078
    %v2080 = vsub.f32 1.0, %v2079
    %v2081 = vmul.f32 %v2078, %v2080
    %v2082 = vadd.f32 %v2078, %v2081
    %vm2083 = vweird.f32 %v2077
    %vm2084 = vweird.f32 %v2078
    %vm2085 = vmor %vm2083, %vm2084
    %v2086 = vsel %vm2085, %v2078, %v2082
    %v2087 = vand.u32 2147483647, %v2077
    %vm2088 = vcmp.eq.f32.partialorder %v2087, 8.507059e+37
    %v2089 = vand.u32 %v2077, 2147483648
    %v2090 = vor.u32 1.1754944e-38, %v2089
    %v2091 = vsel %vm2088, %v2090, %v2086
    %v2092 = vmul.f32 1.0, %v2091
    %v2093 = vadd.f32 %v2008, %v2051
    %v2094 = vxor.u32 %v2093, 2147483648
    %v2095 = vmul.f32 %v2094, 1.442695
    %v2096 = vpow.pop %v2095
    %v2097 = vadd.f32 %v2096, 1.0
    %v2098 = vrcp.pop %v2097
    %v2099 = vmul.f32 %v2097, %v2098
    %v2100 = vsub.f32 1.0, %v2099
    %v2101 = vmul.f32 %v2098, %v2100
    %v2102 = vadd.f32 %v2098, %v2101
    %vm2103 = vweird.f32 %v2097
    %vm2104 = vweird.f32 %v2098
    %vm2105 = vmor %vm2103, %vm2104
    %v2106 = vsel %vm2105, %v2098, %v2102
    %v2107 = vand.u32 2147483647, %v2097
    %vm2108 = vcmp.eq.f32.partialorder %v2107, 8.507059e+37
    %v2109 = vand.u32 %v2097, 2147483648
    %v2110 = vor.u32 1.1754944e-38, %v2109
    %v2111 = vsel %vm2108, %v2110, %v2106
    %v2112 = vmul.f32 1.0, %v2111
    %v2113 = vadd.f32 %v2071, %v54
    %v2114 = vmul.f32 %v2092, %v2113
    %v2115 = vadd.f32 %v2009, %v2114
    %v2116 = vtanh.pop %v2115
    %v2117 = vsub.f32 1.0, %v2112
    %v2118 = vmul.f32 %v2117, %v2116
    %v2119 = vmul.f32 %v2112, %v1994
    %v2120 = vadd.f32 %v2118, %v2119
    %s2121 = smul.u32 %s98, 3
    %s2122 = smul.addr %s2121, 8
    %s2123 = scalar_lea.vmem [#allocation3], %s2122
    %v2124 = vld [vmem:[%s2123] sm:$0xff]
    %v2125 = vld [vmem:[%s2123 + $0x8] sm:$0xff]
    %v2126 = vld [vmem:[%s2123 + $0x10] sm:$0xff]
    %s2127 = smul.u32 %s101, 3
    %s2128 = smul.addr %s2127, 8
    %s2129 = scalar_lea.vmem [#allocation3], %s2128
    %v2130 = vld [vmem:[%s2129] sm:$0xff]
    %v2131 = vld [vmem:[%s2129 + $0x8] sm:$0xff]
    %v2132 = vld [vmem:[%s2129 + $0x10] sm:$0xff]
    %v2133 = vsel %vm131, %v2130, %v2124
    %v2134 = vsel %vm131, %v2131, %v2125
    %v2135 = vsel %vm131, %v2132, %v2126
    %v2137 = vsel %vm470, %v2120, 0
    %2139 = vmatpush.msra.mxu0 0.0
    %2140 = vmatpush.msra.mxu0 0.0
    %2141 = vmatpush.msra.mxu0 0.0
    %2142 = vmatpush.msra.mxu0 0.0
    %2143 = vmatpush.msra.mxu0 0.0
    %2144 = vmatpush.msra.mxu0 0.0
    %2145 = vmatpush.msra.mxu0 0.0
    %2146 = vmatpush.msra.mxu0 0.0
    %2147 = vmatpush.msra.mxu0 %v1427
    %2148 = vmatpush.msra.mxu0 %v1424
    %2149 = vmatpush.msra.mxu0 %v1421
    %2150 = vmatpush.msra.mxu0 %v1418
    %2151 = vmatpush.msra.mxu0 %v1415
    %2152 = vmatpush.msra.mxu0 %v1412
    %2153 = vmatpush.msra.mxu0 %v1409
    %2154 = vmatpush.msra.mxu0 %v1406
    %2155 = vmatmul.f32.gmra.mxu0 %v2137
    %v2156 = vpop.f32.mrf.mxu0
    %v2157 = vadd.f32 0.0, %v2156
    %2158 = vdwg.mxu0
    %2159 = vmatpush.msra.mxu0 0.0
    %2160 = vmatpush.msra.mxu0 0.0
    %2161 = vmatpush.msra.mxu0 0.0
    %2162 = vmatpush.msra.mxu0 0.0
    %2163 = vmatpush.msra.mxu0 0.0
    %2164 = vmatpush.msra.mxu0 0.0
    %2165 = vmatpush.msra.mxu0 0.0
    %2166 = vmatpush.msra.mxu0 0.0
    %2167 = vmatpush.msra.mxu0 %v1428
    %2168 = vmatpush.msra.mxu0 %v1425
    %2169 = vmatpush.msra.mxu0 %v1422
    %2170 = vmatpush.msra.mxu0 %v1419
    %2171 = vmatpush.msra.mxu0 %v1416
    %2172 = vmatpush.msra.mxu0 %v1413
    %2173 = vmatpush.msra.mxu0 %v1410
    %2174 = vmatpush.msra.mxu0 %v1407
    %2175 = vmatmul.f32.gmra.mxu0 %v2137
    %v2176 = vpop.f32.mrf.mxu0
    %v2177 = vadd.f32 0.0, %v2176
    %2178 = vdwg.mxu0
    %2179 = vmatpush.msra.mxu0 0.0
    %2180 = vmatpush.msra.mxu0 0.0
    %2181 = vmatpush.msra.mxu0 0.0
    %2182 = vmatpush.msra.mxu0 0.0
    %2183 = vmatpush.msra.mxu0 0.0
    %2184 = vmatpush.msra.mxu0 0.0
    %2185 = vmatpush.msra.mxu0 0.0
    %2186 = vmatpush.msra.mxu0 0.0
    %2187 = vmatpush.msra.mxu0 %v1429
    %2188 = vmatpush.msra.mxu0 %v1426
    %2189 = vmatpush.msra.mxu0 %v1423
    %2190 = vmatpush.msra.mxu0 %v1420
    %2191 = vmatpush.msra.mxu0 %v1417
    %2192 = vmatpush.msra.mxu0 %v1414
    %2193 = vmatpush.msra.mxu0 %v1411
    %2194 = vmatpush.msra.mxu0 %v1408
    %2195 = vmatmul.f32.gmra.mxu0 %v2137
    %v2196 = vpop.f32.mrf.mxu0
    %v2197 = vadd.f32 0.0, %v2196
    %2198 = vdwg.mxu0
    %v2199 = vadd.f32 %v2133, %v2157
    %v2200 = vxor.u32 %v2199, 2147483648
    %v2201 = vmul.f32 %v2200, 1.442695
    %v2202 = vpow.pop %v2201
    %v2203 = vadd.f32 %v2202, 1.0
    %v2204 = vrcp.pop %v2203
    %v2205 = vmul.f32 %v2203, %v2204
    %v2206 = vsub.f32 1.0, %v2205
    %v2207 = vmul.f32 %v2204, %v2206
    %v2208 = vadd.f32 %v2204, %v2207
    %vm2209 = vweird.f32 %v2203
    %vm2210 = vweird.f32 %v2204
    %vm2211 = vmor %vm2209, %vm2210
    %v2212 = vsel %vm2211, %v2204, %v2208
    %v2213 = vand.u32 2147483647, %v2203
    %vm2214 = vcmp.eq.f32.partialorder %v2213, 8.507059e+37
    %v2215 = vand.u32 %v2203, 2147483648
    %v2216 = vor.u32 1.1754944e-38, %v2215
    %v2217 = vsel %vm2214, %v2216, %v2212
    %v2218 = vmul.f32 1.0, %v2217
    %v2219 = vadd.f32 %v2134, %v2177
    %v2220 = vxor.u32 %v2219, 2147483648
    %v2221 = vmul.f32 %v2220, 1.442695
    %v2222 = vpow.pop %v2221
    %v2223 = vadd.f32 %v2222, 1.0
    %v2224 = vrcp.pop %v2223
    %v2225 = vmul.f32 %v2223, %v2224
    %v2226 = vsub.f32 1.0, %v2225
    %v2227 = vmul.f32 %v2224, %v2226
    %v2228 = vadd.f32 %v2224, %v2227
    %vm2229 = vweird.f32 %v2223
    %vm2230 = vweird.f32 %v2224
    %vm2231 = vmor %vm2229, %vm2230
    %v2232 = vsel %vm2231, %v2224, %v2228
    %v2233 = vand.u32 2147483647, %v2223
    %vm2234 = vcmp.eq.f32.partialorder %v2233, 8.507059e+37
    %v2235 = vand.u32 %v2223, 2147483648
    %v2236 = vor.u32 1.1754944e-38, %v2235
    %v2237 = vsel %vm2234, %v2236, %v2232
    %v2238 = vmul.f32 1.0, %v2237
    %v2239 = vadd.f32 %v2197, %v54
    %v2240 = vmul.f32 %v2218, %v2239
    %v2241 = vadd.f32 %v2135, %v2240
    %v2242 = vtanh.pop %v2241
    %v2243 = vsub.f32 1.0, %v2238
    %v2244 = vmul.f32 %v2243, %v2242
    %v2245 = vmul.f32 %v2238, %v2120
    %v2246 = vadd.f32 %v2244, %v2245
    %s2247 = smul.u32 %s104, 3
    %s2248 = smul.addr %s2247, 8
    %s2249 = scalar_lea.vmem [#allocation3], %s2248
    %v2250 = vld [vmem:[%s2249] sm:$0xff]
    %v2251 = vld [vmem:[%s2249 + $0x8] sm:$0xff]
    %v2252 = vld [vmem:[%s2249 + $0x10] sm:$0xff]
    %s2253 = smul.u32 %s107, 3
    %s2254 = smul.addr %s2253, 8
    %s2255 = scalar_lea.vmem [#allocation3], %s2254
    %v2256 = vld [vmem:[%s2255] sm:$0xff]
    %v2257 = vld [vmem:[%s2255 + $0x8] sm:$0xff]
    %v2258 = vld [vmem:[%s2255 + $0x10] sm:$0xff]
    %v2259 = vsel %vm131, %v2256, %v2250
    %v2260 = vsel %vm131, %v2257, %v2251
    %v2261 = vsel %vm131, %v2258, %v2252
    %v2263 = vsel %vm470, %v2246, 0
    %2265 = vmatpush.msra.mxu0 0.0
    %2266 = vmatpush.msra.mxu0 0.0
    %2267 = vmatpush.msra.mxu0 0.0
    %2268 = vmatpush.msra.mxu0 0.0
    %2269 = vmatpush.msra.mxu0 0.0
    %2270 = vmatpush.msra.mxu0 0.0
    %2271 = vmatpush.msra.mxu0 0.0
    %2272 = vmatpush.msra.mxu0 0.0
    %2273 = vmatpush.msra.mxu0 %v1427
    %2274 = vmatpush.msra.mxu0 %v1424
    %2275 = vmatpush.msra.mxu0 %v1421
    %2276 = vmatpush.msra.mxu0 %v1418
    %2277 = vmatpush.msra.mxu0 %v1415
    %2278 = vmatpush.msra.mxu0 %v1412
    %2279 = vmatpush.msra.mxu0 %v1409
    %2280 = vmatpush.msra.mxu0 %v1406
    %2281 = vmatmul.f32.gmra.mxu0 %v2263
    %v2282 = vpop.f32.mrf.mxu0
    %v2283 = vadd.f32 0.0, %v2282
    %2284 = vdwg.mxu0
    %2285 = vmatpush.msra.mxu0 0.0
    %2286 = vmatpush.msra.mxu0 0.0
    %2287 = vmatpush.msra.mxu0 0.0
    %2288 = vmatpush.msra.mxu0 0.0
    %2289 = vmatpush.msra.mxu0 0.0
    %2290 = vmatpush.msra.mxu0 0.0
    %2291 = vmatpush.msra.mxu0 0.0
    %2292 = vmatpush.msra.mxu0 0.0
    %2293 = vmatpush.msra.mxu0 %v1428
    %2294 = vmatpush.msra.mxu0 %v1425
    %2295 = vmatpush.msra.mxu0 %v1422
    %2296 = vmatpush.msra.mxu0 %v1419
    %2297 = vmatpush.msra.mxu0 %v1416
    %2298 = vmatpush.msra.mxu0 %v1413
    %2299 = vmatpush.msra.mxu0 %v1410
    %2300 = vmatpush.msra.mxu0 %v1407
    %2301 = vmatmul.f32.gmra.mxu0 %v2263
    %v2302 = vpop.f32.mrf.mxu0
    %v2303 = vadd.f32 0.0, %v2302
    %2304 = vdwg.mxu0
    %2305 = vmatpush.msra.mxu0 0.0
    %2306 = vmatpush.msra.mxu0 0.0
    %2307 = vmatpush.msra.mxu0 0.0
    %2308 = vmatpush.msra.mxu0 0.0
    %2309 = vmatpush.msra.mxu0 0.0
    %2310 = vmatpush.msra.mxu0 0.0
    %2311 = vmatpush.msra.mxu0 0.0
    %2312 = vmatpush.msra.mxu0 0.0
    %2313 = vmatpush.msra.mxu0 %v1429
    %2314 = vmatpush.msra.mxu0 %v1426
    %2315 = vmatpush.msra.mxu0 %v1423
    %2316 = vmatpush.msra.mxu0 %v1420
    %2317 = vmatpush.msra.mxu0 %v1417
    %2318 = vmatpush.msra.mxu0 %v1414
    %2319 = vmatpush.msra.mxu0 %v1411
    %2320 = vmatpush.msra.mxu0 %v1408
    %2321 = vmatmul.f32.gmra.mxu0 %v2263
    %v2322 = vpop.f32.mrf.mxu0
    %v2323 = vadd.f32 0.0, %v2322
    %2324 = vdwg.mxu0
    %v2325 = vadd.f32 %v2259, %v2283
    %v2326 = vxor.u32 %v2325, 2147483648
    %v2327 = vmul.f32 %v2326, 1.442695
    %v2328 = vpow.pop %v2327
    %v2329 = vadd.f32 %v2328, 1.0
    %v2330 = vrcp.pop %v2329
    %v2331 = vmul.f32 %v2329, %v2330
    %v2332 = vsub.f32 1.0, %v2331
    %v2333 = vmul.f32 %v2330, %v2332
    %v2334 = vadd.f32 %v2330, %v2333
    %vm2335 = vweird.f32 %v2329
    %vm2336 = vweird.f32 %v2330
    %vm2337 = vmor %vm2335, %vm2336
    %v2338 = vsel %vm2337, %v2330, %v2334
    %v2339 = vand.u32 2147483647, %v2329
    %vm2340 = vcmp.eq.f32.partialorder %v2339, 8.507059e+37
    %v2341 = vand.u32 %v2329, 2147483648
    %v2342 = vor.u32 1.1754944e-38, %v2341
    %v2343 = vsel %vm2340, %v2342, %v2338
    %v2344 = vmul.f32 1.0, %v2343
    %v2345 = vadd.f32 %v2260, %v2303
    %v2346 = vxor.u32 %v2345, 2147483648
    %v2347 = vmul.f32 %v2346, 1.442695
    %v2348 = vpow.pop %v2347
    %v2349 = vadd.f32 %v2348, 1.0
    %v2350 = vrcp.pop %v2349
    %v2351 = vmul.f32 %v2349, %v2350
    %v2352 = vsub.f32 1.0, %v2351
    %v2353 = vmul.f32 %v2350, %v2352
    %v2354 = vadd.f32 %v2350, %v2353
    %vm2355 = vweird.f32 %v2349
    %vm2356 = vweird.f32 %v2350
    %vm2357 = vmor %vm2355, %vm2356
    %v2358 = vsel %vm2357, %v2350, %v2354
    %v2359 = vand.u32 2147483647, %v2349
    %vm2360 = vcmp.eq.f32.partialorder %v2359, 8.507059e+37
    %v2361 = vand.u32 %v2349, 2147483648
    %v2362 = vor.u32 1.1754944e-38, %v2361
    %v2363 = vsel %vm2360, %v2362, %v2358
    %v2364 = vmul.f32 1.0, %v2363
    %v2365 = vadd.f32 %v2323, %v54
    %v2366 = vmul.f32 %v2344, %v2365
    %v2367 = vadd.f32 %v2261, %v2366
    %v2368 = vtanh.pop %v2367
    %v2369 = vsub.f32 1.0, %v2364
    %v2370 = vmul.f32 %v2369, %v2368
    %v2371 = vmul.f32 %v2364, %v2246
    %v2372 = vadd.f32 %v2370, %v2371
    %s2373 = smul.u32 %s110, 3
    %s2374 = smul.addr %s2373, 8
    %s2375 = scalar_lea.vmem [#allocation3], %s2374
    %v2376 = vld [vmem:[%s2375] sm:$0xff]
    %v2377 = vld [vmem:[%s2375 + $0x8] sm:$0xff]
    %v2378 = vld [vmem:[%s2375 + $0x10] sm:$0xff]
    %s2379 = smul.u32 %s113, 3
    %s2380 = smul.addr %s2379, 8
    %s2381 = scalar_lea.vmem [#allocation3], %s2380
    %v2382 = vld [vmem:[%s2381] sm:$0xff]
    %v2383 = vld [vmem:[%s2381 + $0x8] sm:$0xff]
    %v2384 = vld [vmem:[%s2381 + $0x10] sm:$0xff]
    %v2385 = vsel %vm131, %v2382, %v2376
    %v2386 = vsel %vm131, %v2383, %v2377
    %v2387 = vsel %vm131, %v2384, %v2378
    %v2389 = vsel %vm470, %v2372, 0
    %2391 = vmatpush.msra.mxu0 0.0
    %2392 = vmatpush.msra.mxu0 0.0
    %2393 = vmatpush.msra.mxu0 0.0
    %2394 = vmatpush.msra.mxu0 0.0
    %2395 = vmatpush.msra.mxu0 0.0
    %2396 = vmatpush.msra.mxu0 0.0
    %2397 = vmatpush.msra.mxu0 0.0
    %2398 = vmatpush.msra.mxu0 0.0
    %2399 = vmatpush.msra.mxu0 %v1427
    %2400 = vmatpush.msra.mxu0 %v1424
    %2401 = vmatpush.msra.mxu0 %v1421
    %2402 = vmatpush.msra.mxu0 %v1418
    %2403 = vmatpush.msra.mxu0 %v1415
    %2404 = vmatpush.msra.mxu0 %v1412
    %2405 = vmatpush.msra.mxu0 %v1409
    %2406 = vmatpush.msra.mxu0 %v1406
    %2407 = vmatmul.f32.gmra.mxu0 %v2389
    %v2408 = vpop.f32.mrf.mxu0
    %v2409 = vadd.f32 0.0, %v2408
    %2410 = vdwg.mxu0
    %2411 = vmatpush.msra.mxu0 0.0
    %2412 = vmatpush.msra.mxu0 0.0
    %2413 = vmatpush.msra.mxu0 0.0
    %2414 = vmatpush.msra.mxu0 0.0
    %2415 = vmatpush.msra.mxu0 0.0
    %2416 = vmatpush.msra.mxu0 0.0
    %2417 = vmatpush.msra.mxu0 0.0
    %2418 = vmatpush.msra.mxu0 0.0
    %2419 = vmatpush.msra.mxu0 %v1428
    %2420 = vmatpush.msra.mxu0 %v1425
    %2421 = vmatpush.msra.mxu0 %v1422
    %2422 = vmatpush.msra.mxu0 %v1419
    %2423 = vmatpush.msra.mxu0 %v1416
    %2424 = vmatpush.msra.mxu0 %v1413
    %2425 = vmatpush.msra.mxu0 %v1410
    %2426 = vmatpush.msra.mxu0 %v1407
    %2427 = vmatmul.f32.gmra.mxu0 %v2389
    %v2428 = vpop.f32.mrf.mxu0
    %v2429 = vadd.f32 0.0, %v2428
    %2430 = vdwg.mxu0
    %2431 = vmatpush.msra.mxu0 0.0
    %2432 = vmatpush.msra.mxu0 0.0
    %2433 = vmatpush.msra.mxu0 0.0
    %2434 = vmatpush.msra.mxu0 0.0
    %2435 = vmatpush.msra.mxu0 0.0
    %2436 = vmatpush.msra.mxu0 0.0
    %2437 = vmatpush.msra.mxu0 0.0
    %2438 = vmatpush.msra.mxu0 0.0
    %2439 = vmatpush.msra.mxu0 %v1429
    %2440 = vmatpush.msra.mxu0 %v1426
    %2441 = vmatpush.msra.mxu0 %v1423
    %2442 = vmatpush.msra.mxu0 %v1420
    %2443 = vmatpush.msra.mxu0 %v1417
    %2444 = vmatpush.msra.mxu0 %v1414
    %2445 = vmatpush.msra.mxu0 %v1411
    %2446 = vmatpush.msra.mxu0 %v1408
    %2447 = vmatmul.f32.gmra.mxu0 %v2389
    %v2448 = vpop.f32.mrf.mxu0
    %v2449 = vadd.f32 0.0, %v2448
    %2450 = vdwg.mxu0
    %v2451 = vadd.f32 %v2385, %v2409
    %v2452 = vxor.u32 %v2451, 2147483648
    %v2453 = vmul.f32 %v2452, 1.442695
    %v2454 = vpow.pop %v2453
    %v2455 = vadd.f32 %v2454, 1.0
    %v2456 = vrcp.pop %v2455
    %v2457 = vmul.f32 %v2455, %v2456
    %v2458 = vsub.f32 1.0, %v2457
    %v2459 = vmul.f32 %v2456, %v2458
    %v2460 = vadd.f32 %v2456, %v2459
    %vm2461 = vweird.f32 %v2455
    %vm2462 = vweird.f32 %v2456
    %vm2463 = vmor %vm2461, %vm2462
    %v2464 = vsel %vm2463, %v2456, %v2460
    %v2465 = vand.u32 2147483647, %v2455
    %vm2466 = vcmp.eq.f32.partialorder %v2465, 8.507059e+37
    %v2467 = vand.u32 %v2455, 2147483648
    %v2468 = vor.u32 1.1754944e-38, %v2467
    %v2469 = vsel %vm2466, %v2468, %v2464
    %v2470 = vmul.f32 1.0, %v2469
    %v2471 = vadd.f32 %v2386, %v2429
    %v2472 = vxor.u32 %v2471, 2147483648
    %v2473 = vmul.f32 %v2472, 1.442695
    %v2474 = vpow.pop %v2473
    %v2475 = vadd.f32 %v2474, 1.0
    %v2476 = vrcp.pop %v2475
    %v2477 = vmul.f32 %v2475, %v2476
    %v2478 = vsub.f32 1.0, %v2477
    %v2479 = vmul.f32 %v2476, %v2478
    %v2480 = vadd.f32 %v2476, %v2479
    %vm2481 = vweird.f32 %v2475
    %vm2482 = vweird.f32 %v2476
    %vm2483 = vmor %vm2481, %vm2482
    %v2484 = vsel %vm2483, %v2476, %v2480
    %v2485 = vand.u32 2147483647, %v2475
    %vm2486 = vcmp.eq.f32.partialorder %v2485, 8.507059e+37
    %v2487 = vand.u32 %v2475, 2147483648
    %v2488 = vor.u32 1.1754944e-38, %v2487
    %v2489 = vsel %vm2486, %v2488, %v2484
    %v2490 = vmul.f32 1.0, %v2489
    %v2491 = vadd.f32 %v2449, %v54
    %v2492 = vmul.f32 %v2470, %v2491
    %v2493 = vadd.f32 %v2387, %v2492
    %v2494 = vtanh.pop %v2493
    %v2495 = vsub.f32 1.0, %v2490
    %v2496 = vmul.f32 %v2495, %v2494
    %v2497 = vmul.f32 %v2490, %v2372
    %v2498 = vadd.f32 %v2496, %v2497
    %s2499 = smul.u32 %s116, 3
    %s2500 = smul.addr %s2499, 8
    %s2501 = scalar_lea.vmem [#allocation3], %s2500
    %v2502 = vld [vmem:[%s2501] sm:$0xff]
    %v2503 = vld [vmem:[%s2501 + $0x8] sm:$0xff]
    %v2504 = vld [vmem:[%s2501 + $0x10] sm:$0xff]
    %s2505 = smul.u32 %s119, 3
    %s2506 = smul.addr %s2505, 8
    %s2507 = scalar_lea.vmem [#allocation3], %s2506
    %v2508 = vld [vmem:[%s2507] sm:$0xff]
    %v2509 = vld [vmem:[%s2507 + $0x8] sm:$0xff]
    %v2510 = vld [vmem:[%s2507 + $0x10] sm:$0xff]
    %v2511 = vsel %vm131, %v2508, %v2502
    %v2512 = vsel %vm131, %v2509, %v2503
    %v2513 = vsel %vm131, %v2510, %v2504
    %v2515 = vsel %vm470, %v2498, 0
    %2517 = vmatpush.msra.mxu0 0.0
    %2518 = vmatpush.msra.mxu0 0.0
    %2519 = vmatpush.msra.mxu0 0.0
    %2520 = vmatpush.msra.mxu0 0.0
    %2521 = vmatpush.msra.mxu0 0.0
    %2522 = vmatpush.msra.mxu0 0.0
    %2523 = vmatpush.msra.mxu0 0.0
    %2524 = vmatpush.msra.mxu0 0.0
    %2525 = vmatpush.msra.mxu0 %v1427
    %2526 = vmatpush.msra.mxu0 %v1424
    %2527 = vmatpush.msra.mxu0 %v1421
    %2528 = vmatpush.msra.mxu0 %v1418
    %2529 = vmatpush.msra.mxu0 %v1415
    %2530 = vmatpush.msra.mxu0 %v1412
    %2531 = vmatpush.msra.mxu0 %v1409
    %2532 = vmatpush.msra.mxu0 %v1406
    %2533 = vmatmul.f32.gmra.mxu0 %v2515
    %v2534 = vpop.f32.mrf.mxu0
    %v2535 = vadd.f32 0.0, %v2534
    %2536 = vdwg.mxu0
    %2537 = vmatpush.msra.mxu0 0.0
    %2538 = vmatpush.msra.mxu0 0.0
    %2539 = vmatpush.msra.mxu0 0.0
    %2540 = vmatpush.msra.mxu0 0.0
    %2541 = vmatpush.msra.mxu0 0.0
    %2542 = vmatpush.msra.mxu0 0.0
    %2543 = vmatpush.msra.mxu0 0.0
    %2544 = vmatpush.msra.mxu0 0.0
    %2545 = vmatpush.msra.mxu0 %v1428
    %2546 = vmatpush.msra.mxu0 %v1425
    %2547 = vmatpush.msra.mxu0 %v1422
    %2548 = vmatpush.msra.mxu0 %v1419
    %2549 = vmatpush.msra.mxu0 %v1416
    %2550 = vmatpush.msra.mxu0 %v1413
    %2551 = vmatpush.msra.mxu0 %v1410
    %2552 = vmatpush.msra.mxu0 %v1407
    %2553 = vmatmul.f32.gmra.mxu0 %v2515
    %v2554 = vpop.f32.mrf.mxu0
    %v2555 = vadd.f32 0.0, %v2554
    %2556 = vdwg.mxu0
    %2557 = vmatpush.msra.mxu0 0.0
    %2558 = vmatpush.msra.mxu0 0.0
    %2559 = vmatpush.msra.mxu0 0.0
    %2560 = vmatpush.msra.mxu0 0.0
    %2561 = vmatpush.msra.mxu0 0.0
    %2562 = vmatpush.msra.mxu0 0.0
    %2563 = vmatpush.msra.mxu0 0.0
    %2564 = vmatpush.msra.mxu0 0.0
    %2565 = vmatpush.msra.mxu0 %v1429
    %2566 = vmatpush.msra.mxu0 %v1426
    %2567 = vmatpush.msra.mxu0 %v1423
    %2568 = vmatpush.msra.mxu0 %v1420
    %2569 = vmatpush.msra.mxu0 %v1417
    %2570 = vmatpush.msra.mxu0 %v1414
    %2571 = vmatpush.msra.mxu0 %v1411
    %2572 = vmatpush.msra.mxu0 %v1408
    %2573 = vmatmul.f32.gmra.mxu0 %v2515
    %v2574 = vpop.f32.mrf.mxu0
    %v2575 = vadd.f32 0.0, %v2574
    %2576 = vdwg.mxu0
    %v2577 = vadd.f32 %v2511, %v2535
    %v2578 = vxor.u32 %v2577, 2147483648
    %v2579 = vmul.f32 %v2578, 1.442695
    %v2580 = vpow.pop %v2579
    %v2581 = vadd.f32 %v2580, 1.0
    %v2582 = vrcp.pop %v2581
    %v2583 = vmul.f32 %v2581, %v2582
    %v2584 = vsub.f32 1.0, %v2583
    %v2585 = vmul.f32 %v2582, %v2584
    %v2586 = vadd.f32 %v2582, %v2585
    %vm2587 = vweird.f32 %v2581
    %vm2588 = vweird.f32 %v2582
    %vm2589 = vmor %vm2587, %vm2588
    %v2590 = vsel %vm2589, %v2582, %v2586
    %v2591 = vand.u32 2147483647, %v2581
    %vm2592 = vcmp.eq.f32.partialorder %v2591, 8.507059e+37
    %v2593 = vand.u32 %v2581, 2147483648
    %v2594 = vor.u32 1.1754944e-38, %v2593
    %v2595 = vsel %vm2592, %v2594, %v2590
    %v2596 = vmul.f32 1.0, %v2595
    %v2597 = vadd.f32 %v2512, %v2555
    %v2598 = vxor.u32 %v2597, 2147483648
    %v2599 = vmul.f32 %v2598, 1.442695
    %v2600 = vpow.pop %v2599
    %v2601 = vadd.f32 %v2600, 1.0
    %v2602 = vrcp.pop %v2601
    %v2603 = vmul.f32 %v2601, %v2602
    %v2604 = vsub.f32 1.0, %v2603
    %v2605 = vmul.f32 %v2602, %v2604
    %v2606 = vadd.f32 %v2602, %v2605
    %vm2607 = vweird.f32 %v2601
    %vm2608 = vweird.f32 %v2602
    %vm2609 = vmor %vm2607, %vm2608
    %v2610 = vsel %vm2609, %v2602, %v2606
    %v2611 = vand.u32 2147483647, %v2601
    %vm2612 = vcmp.eq.f32.partialorder %v2611, 8.507059e+37
    %v2613 = vand.u32 %v2601, 2147483648
    %v2614 = vor.u32 1.1754944e-38, %v2613
    %v2615 = vsel %vm2612, %v2614, %v2610
    %v2616 = vmul.f32 1.0, %v2615
    %v2617 = vadd.f32 %v2575, %v54
    %v2618 = vmul.f32 %v2596, %v2617
    %v2619 = vadd.f32 %v2513, %v2618
    %v2620 = vtanh.pop %v2619
    %v2621 = vsub.f32 1.0, %v2616
    %v2622 = vmul.f32 %v2621, %v2620
    %v2623 = vmul.f32 %v2616, %v2498
    %v2624 = vadd.f32 %v2622, %v2623
    %s2625 = smul.u32 %s122, 3
    %s2626 = smul.addr %s2625, 8
    %s2627 = scalar_lea.vmem [#allocation3], %s2626
    %v2628 = vld [vmem:[%s2627] sm:$0xff]
    %v2629 = vld [vmem:[%s2627 + $0x8] sm:$0xff]
    %v2630 = vld [vmem:[%s2627 + $0x10] sm:$0xff]
    %s2631 = smul.u32 %s125, 3
    %s2632 = smul.addr %s2631, 8
    %s2633 = scalar_lea.vmem [#allocation3], %s2632
    %v2634 = vld [vmem:[%s2633] sm:$0xff]
    %v2635 = vld [vmem:[%s2633 + $0x8] sm:$0xff]
    %v2636 = vld [vmem:[%s2633 + $0x10] sm:$0xff]
    %v2637 = vsel %vm131, %v2634, %v2628
    %v2638 = vsel %vm131, %v2635, %v2629
    %v2639 = vsel %vm131, %v2636, %v2630
    %v2641 = vsel %vm470, %v2624, 0
    %2643 = vmatpush.msra.mxu0 0.0
    %2644 = vmatpush.msra.mxu0 0.0
    %2645 = vmatpush.msra.mxu0 0.0
    %2646 = vmatpush.msra.mxu0 0.0
    %2647 = vmatpush.msra.mxu0 0.0
    %2648 = vmatpush.msra.mxu0 0.0
    %2649 = vmatpush.msra.mxu0 0.0
    %2650 = vmatpush.msra.mxu0 0.0
    %2651 = vmatpush.msra.mxu0 %v1427
    %2652 = vmatpush.msra.mxu0 %v1424
    %2653 = vmatpush.msra.mxu0 %v1421
    %2654 = vmatpush.msra.mxu0 %v1418
    %2655 = vmatpush.msra.mxu0 %v1415
    %2656 = vmatpush.msra.mxu0 %v1412
    %2657 = vmatpush.msra.mxu0 %v1409
    %2658 = vmatpush.msra.mxu0 %v1406
    %2659 = vmatmul.f32.gmra.mxu0 %v2641
    %v2660 = vpop.f32.mrf.mxu0
    %v2661 = vadd.f32 0.0, %v2660
    %2662 = vdwg.mxu0
    %2663 = vmatpush.msra.mxu0 0.0
    %2664 = vmatpush.msra.mxu0 0.0
    %2665 = vmatpush.msra.mxu0 0.0
    %2666 = vmatpush.msra.mxu0 0.0
    %2667 = vmatpush.msra.mxu0 0.0
    %2668 = vmatpush.msra.mxu0 0.0
    %2669 = vmatpush.msra.mxu0 0.0
    %2670 = vmatpush.msra.mxu0 0.0
    %2671 = vmatpush.msra.mxu0 %v1428
    %2672 = vmatpush.msra.mxu0 %v1425
    %2673 = vmatpush.msra.mxu0 %v1422
    %2674 = vmatpush.msra.mxu0 %v1419
    %2675 = vmatpush.msra.mxu0 %v1416
    %2676 = vmatpush.msra.mxu0 %v1413
    %2677 = vmatpush.msra.mxu0 %v1410
    %2678 = vmatpush.msra.mxu0 %v1407
    %2679 = vmatmul.f32.gmra.mxu0 %v2641
    %v2680 = vpop.f32.mrf.mxu0
    %v2681 = vadd.f32 0.0, %v2680
    %2682 = vdwg.mxu0
    %2683 = vmatpush.msra.mxu0 0.0
    %2684 = vmatpush.msra.mxu0 0.0
    %2685 = vmatpush.msra.mxu0 0.0
    %2686 = vmatpush.msra.mxu0 0.0
    %2687 = vmatpush.msra.mxu0 0.0
    %2688 = vmatpush.msra.mxu0 0.0
    %2689 = vmatpush.msra.mxu0 0.0
    %2690 = vmatpush.msra.mxu0 0.0
    %2691 = vmatpush.msra.mxu0 %v1429
    %2692 = vmatpush.msra.mxu0 %v1426
    %2693 = vmatpush.msra.mxu0 %v1423
    %2694 = vmatpush.msra.mxu0 %v1420
    %2695 = vmatpush.msra.mxu0 %v1417
    %2696 = vmatpush.msra.mxu0 %v1414
    %2697 = vmatpush.msra.mxu0 %v1411
    %2698 = vmatpush.msra.mxu0 %v1408
    %2699 = vmatmul.f32.gmra.mxu0 %v2641
    %v2700 = vpop.f32.mrf.mxu0
    %v2701 = vadd.f32 0.0, %v2700
    %2702 = vdwg.mxu0
    %v2703 = vadd.f32 %v2637, %v2661
    %v2704 = vxor.u32 %v2703, 2147483648
    %v2705 = vmul.f32 %v2704, 1.442695
    %v2706 = vpow.pop %v2705
    %v2707 = vadd.f32 %v2706, 1.0
    %v2708 = vrcp.pop %v2707
    %v2709 = vmul.f32 %v2707, %v2708
    %v2710 = vsub.f32 1.0, %v2709
    %v2711 = vmul.f32 %v2708, %v2710
    %v2712 = vadd.f32 %v2708, %v2711
    %vm2713 = vweird.f32 %v2707
    %vm2714 = vweird.f32 %v2708
    %vm2715 = vmor %vm2713, %vm2714
    %v2716 = vsel %vm2715, %v2708, %v2712
    %v2717 = vand.u32 2147483647, %v2707
    %vm2718 = vcmp.eq.f32.partialorder %v2717, 8.507059e+37
    %v2719 = vand.u32 %v2707, 2147483648
    %v2720 = vor.u32 1.1754944e-38, %v2719
    %v2721 = vsel %vm2718, %v2720, %v2716
    %v2722 = vmul.f32 1.0, %v2721
    %v2723 = vadd.f32 %v2638, %v2681
    %v2724 = vxor.u32 %v2723, 2147483648
    %v2725 = vmul.f32 %v2724, 1.442695
    %v2726 = vpow.pop %v2725
    %v2727 = vadd.f32 %v2726, 1.0
    %v2728 = vrcp.pop %v2727
    %v2729 = vmul.f32 %v2727, %v2728
    %v2730 = vsub.f32 1.0, %v2729
    %v2731 = vmul.f32 %v2728, %v2730
    %v2732 = vadd.f32 %v2728, %v2731
    %vm2733 = vweird.f32 %v2727
    %vm2734 = vweird.f32 %v2728
    %vm2735 = vmor %vm2733, %vm2734
    %v2736 = vsel %vm2735, %v2728, %v2732
    %v2737 = vand.u32 2147483647, %v2727
    %vm2738 = vcmp.eq.f32.partialorder %v2737, 8.507059e+37
    %v2739 = vand.u32 %v2727, 2147483648
    %v2740 = vor.u32 1.1754944e-38, %v2739
    %v2741 = vsel %vm2738, %v2740, %v2736
    %v2742 = vmul.f32 1.0, %v2741
    %v2743 = vadd.f32 %v2701, %v54
    %v2744 = vmul.f32 %v2722, %v2743
    %v2745 = vadd.f32 %v2639, %v2744
    %v2746 = vtanh.pop %v2745
    %v2747 = vsub.f32 1.0, %v2742
    %v2748 = vmul.f32 %v2747, %v2746
    %v2749 = vmul.f32 %v2742, %v2624
    %v2750 = vadd.f32 %v2748, %v2749
    %v2751 = vld [vmem:[%s5] sm:$0xff]
    %v2752 = vld [vmem:[%s5 + $0x8] sm:$0xff]
    %v2753 = vld [vmem:[%s5 + $0x10] sm:$0xff]
    %v2754 = vld [vmem:[%s5 + $0x18] sm:$0xff]
    %v2755 = vld [vmem:[%s5 + $0x20] sm:$0xff]
    %v2756 = vld [vmem:[%s5 + $0x28] sm:$0xff]
    %v2757 = vld [vmem:[%s5 + $0x30] sm:$0xff]
    %v2758 = vld [vmem:[%s5 + $0x38] sm:$0xff]
    %v2759 = vperm.slane %v57, 0
    %v2761 = vsel %vm470, %v2750, 0
    %2763 = vmatpush.msra.mxu0 0.0
    %2764 = vmatpush.msra.mxu0 0.0
    %2765 = vmatpush.msra.mxu0 0.0
    %2766 = vmatpush.msra.mxu0 0.0
    %2767 = vmatpush.msra.mxu0 0.0
    %2768 = vmatpush.msra.mxu0 0.0
    %2769 = vmatpush.msra.mxu0 0.0
    %2770 = vmatpush.msra.mxu0 0.0
    %2771 = vmatpush.msra.mxu0 %v2758
    %2772 = vmatpush.msra.mxu0 %v2757
    %2773 = vmatpush.msra.mxu0 %v2756
    %2774 = vmatpush.msra.mxu0 %v2755
    %2775 = vmatpush.msra.mxu0 %v2754
    %2776 = vmatpush.msra.mxu0 %v2753
    %2777 = vmatpush.msra.mxu0 %v2752
    %2778 = vmatpush.msra.mxu0 %v2751
    %2779 = vmatmul.f32.gmra.mxu0 %v1885
    %v2780 = vpop.f32.mrf.mxu0
    %v2781 = vadd.f32 %v2759, %v2780
    %2782 = vmatmul.f32.gmra.mxu0 %v2011
    %v2783 = vpop.f32.mrf.mxu0
    %v2784 = vadd.f32 %v2759, %v2783
    %2785 = vmatmul.f32.gmra.mxu0 %v2137
    %v2786 = vpop.f32.mrf.mxu0
    %v2787 = vadd.f32 %v2759, %v2786
    %2788 = vmatmul.f32.gmra.mxu0 %v2263
    %v2789 = vpop.f32.mrf.mxu0
    %v2790 = vadd.f32 %v2759, %v2789
    %2791 = vmatmul.f32.gmra.mxu0 %v2389
    %v2792 = vpop.f32.mrf.mxu0
    %v2793 = vadd.f32 %v2759, %v2792
    %2794 = vmatmul.f32.gmra.mxu0 %v2515
    %v2795 = vpop.f32.mrf.mxu0
    %v2796 = vadd.f32 %v2759, %v2795
    %2797 = vmatmul.f32.gmra.mxu0 %v2641
    %v2798 = vpop.f32.mrf.mxu0
    %v2799 = vadd.f32 %v2759, %v2798
    %2800 = vmatmul.f32.gmra.mxu0 %v2761
    %v2801 = vpop.f32.mrf.mxu0
    %v2802 = vadd.f32 %v2759, %v2801
    %2803 = vdwg.mxu0
    %vm2804 = vcmask 261120
    %2805 = vst.msk [vmem:[#allocation4] sm:$0xff] %vm2804, %v2781
    %s2806 = scalar_lea.vmem [#allocation4], 8
    %2807 = vst.msk [vmem:[%s2806] sm:$0xff] %vm2804, %v2784
    %s2808 = scalar_lea.vmem [#allocation4], 16
    %2809 = vst.msk [vmem:[%s2808] sm:$0xff] %vm2804, %v2787
    %s2810 = scalar_lea.vmem [#allocation4], 24
    %2811 = vst.msk [vmem:[%s2810] sm:$0xff] %vm2804, %v2790
    %s2812 = scalar_lea.vmem [#allocation4], 32
    %2813 = vst.msk [vmem:[%s2812] sm:$0xff] %vm2804, %v2793
    %s2814 = scalar_lea.vmem [#allocation4], 40
    %2815 = vst.msk [vmem:[%s2814] sm:$0xff] %vm2804, %v2796
    %s2816 = scalar_lea.vmem [#allocation4], 48
    %2817 = vst.msk [vmem:[%s2816] sm:$0xff] %vm2804, %v2799
    %s2818 = scalar_lea.vmem [#allocation4], 56
    %2819 = vst.msk [vmem:[%s2818] sm:$0xff] %vm2804, %v2802
    %s2820 = smul.u32 %s80, 8
    %s2821 = scalar_lea.vmem [#allocation4], %s2820
    %v2822 = vld [vmem:[%s2821] sm:$0xff]
    %s2823 = smul.u32 %s83, 8
    %s2824 = scalar_lea.vmem [#allocation4], %s2823
    %v2825 = vld [vmem:[%s2824] sm:$0xff]
    %v2826 = vsel %vm131, %v2825, %v2822
    %s2827 = smul.u32 %s86, 8
    %s2828 = scalar_lea.vmem [#allocation4], %s2827
    %v2829 = vld [vmem:[%s2828] sm:$0xff]
    %s2830 = smul.u32 %s89, 8
    %s2831 = scalar_lea.vmem [#allocation4], %s2830
    %v2832 = vld [vmem:[%s2831] sm:$0xff]
    %v2833 = vsel %vm131, %v2832, %v2829
    %s2834 = smul.u32 %s92, 8
    %s2835 = scalar_lea.vmem [#allocation4], %s2834
    %v2836 = vld [vmem:[%s2835] sm:$0xff]
    %s2837 = smul.u32 %s95, 8
    %s2838 = scalar_lea.vmem [#allocation4], %s2837
    %v2839 = vld [vmem:[%s2838] sm:$0xff]
    %v2840 = vsel %vm131, %v2839, %v2836
    %s2841 = smul.u32 %s98, 8
    %s2842 = scalar_lea.vmem [#allocation4], %s2841
    %v2843 = vld [vmem:[%s2842] sm:$0xff]
    %s2844 = smul.u32 %s101, 8
    %s2845 = scalar_lea.vmem [#allocation4], %s2844
    %v2846 = vld [vmem:[%s2845] sm:$0xff]
    %v2847 = vsel %vm131, %v2846, %v2843
    %s2848 = smul.u32 %s104, 8
    %s2849 = scalar_lea.vmem [#allocation4], %s2848
    %v2850 = vld [vmem:[%s2849] sm:$0xff]
    %s2851 = smul.u32 %s107, 8
    %s2852 = scalar_lea.vmem [#allocation4], %s2851
    %v2853 = vld [vmem:[%s2852] sm:$0xff]
    %v2854 = vsel %vm131, %v2853, %v2850
    %s2855 = smul.u32 %s110, 8
    %s2856 = scalar_lea.vmem [#allocation4], %s2855
    %v2857 = vld [vmem:[%s2856] sm:$0xff]
    %s2858 = smul.u32 %s113, 8
    %s2859 = scalar_lea.vmem [#allocation4], %s2858
    %v2860 = vld [vmem:[%s2859] sm:$0xff]
    %v2861 = vsel %vm131, %v2860, %v2857
    %s2862 = smul.u32 %s116, 8
    %s2863 = scalar_lea.vmem [#allocation4], %s2862
    %v2864 = vld [vmem:[%s2863] sm:$0xff]
    %s2865 = smul.u32 %s119, 8
    %s2866 = scalar_lea.vmem [#allocation4], %s2865
    %v2867 = vld [vmem:[%s2866] sm:$0xff]
    %v2868 = vsel %vm131, %v2867, %v2864
    %s2869 = smul.u32 %s122, 8
    %s2870 = scalar_lea.vmem [#allocation4], %s2869
    %v2871 = vld [vmem:[%s2870] sm:$0xff]
    %s2872 = smul.u32 %s125, 8
    %s2873 = scalar_lea.vmem [#allocation4], %s2872
    %v2874 = vld [vmem:[%s2873] sm:$0xff]
    %v2875 = vsel %vm131, %v2874, %v2871
    %v2876 = vld [vmem:[%s5 + $0x40] sm:$0xff]
    %v2877 = vld [vmem:[%s5 + $0x48] sm:$0xff]
    %v2878 = vld [vmem:[%s5 + $0x50] sm:$0xff]
    %v2879 = vld [vmem:[%s5 + $0x58] sm:$0xff]
    %v2880 = vld [vmem:[%s5 + $0x60] sm:$0xff]
    %v2881 = vld [vmem:[%s5 + $0x68] sm:$0xff]
    %v2882 = vld [vmem:[%s5 + $0x70] sm:$0xff]
    %v2883 = vld [vmem:[%s5 + $0x78] sm:$0xff]
    %v2884 = vld [vmem:[%s5 + $0x80] sm:$0xff]
    %v2885 = vld [vmem:[%s6] sm:$0xff]
    %v2886 = vld [vmem:[%s6 + $0x8] sm:$0xff]
    %v2887 = vld [vmem:[%s6 + $0x10] sm:$0xff]
    %v2888 = vld [vmem:[%s6 + $0x18] sm:$0xff]
    %v2889 = vld [vmem:[%s6 + $0x20] sm:$0xff]
    %v2890 = vld [vmem:[%s6 + $0x28] sm:$0xff]
    %v2891 = vld [vmem:[%s6 + $0x30] sm:$0xff]
    %v2892 = vld [vmem:[%s6 + $0x38] sm:$0xff]
    %v2893 = vld [vmem:[%s2] sm:$0xff]
    %v2894 = vld [vmem:[%s2 + $0x8] sm:$0xff]
    %v2895 = vld [vmem:[%s2 + $0x10] sm:$0xff]
    %v2896 = vld [vmem:[%s2 + $0x18] sm:$0xff]
    %v2897 = vld [vmem:[%s2 + $0x20] sm:$0xff]
    %v2898 = vld [vmem:[%s2 + $0x28] sm:$0xff]
    %v2899 = vld [vmem:[%s2 + $0x30] sm:$0xff]
    %v2900 = vld [vmem:[%s2 + $0x38] sm:$0xff]
    %vm2901 = vcmask 64512
    %v2902 = vsel %vm2901, 0.0, 0
    %2904 = vmatpush.msra.mxu0 0.0
    %2905 = vmatpush.msra.mxu0 0.0
    %2906 = vmatpush.msra.mxu0 0.0
    %2907 = vmatpush.msra.mxu0 0.0
    %2908 = vmatpush.msra.mxu0 0.0
    %2909 = vmatpush.msra.mxu0 0.0
    %2910 = vmatpush.msra.mxu0 0.0
    %2911 = vmatpush.msra.mxu0 0.0
    %2912 = vmatpush.msra.mxu0 0.0
    %2913 = vmatpush.msra.mxu0 0.0
    %2914 = vmatpush.msra.mxu0 0.0
    %2915 = vmatpush.msra.mxu0 0.0
    %2916 = vmatpush.msra.mxu0 0.0
    %2917 = vmatpush.msra.mxu0 0.0
    %2918 = vmatpush.msra.mxu0 0.0
    %2919 = vmatpush.msra.mxu0 %v2876
    %2920 = vmatmul.f32.gmra.mxu0 %v2902
    %v2921 = vpop.f32.mrf.mxu0
    %v2922 = vadd.f32 0.0, %v2921
    %2923 = vdwg.mxu0
    %v2924 = vadd.f32 %v2826, %v2922
    %vm2925 = vcmp.gt.f32.partialorder %v2924, 0.0
    %v2926 = vmul.f32 %v2924, 0.01
    %v2927 = vsel %vm2925, %v2924, %v2926
    %v2929 = vsel %vm2804, %v2927, 0
    %2931 = vmatpush.msra.mxu0 0.0
    %2932 = vmatpush.msra.mxu0 0.0
    %2933 = vmatpush.msra.mxu0 0.0
    %2934 = vmatpush.msra.mxu0 0.0
    %2935 = vmatpush.msra.mxu0 0.0
    %2936 = vmatpush.msra.mxu0 0.0
    %2937 = vmatpush.msra.mxu0 0.0
    %2938 = vmatpush.msra.mxu0 0.0
    %2939 = vmatpush.msra.mxu0 0.0
    %2940 = vmatpush.msra.mxu0 0.0
    %2941 = vmatpush.msra.mxu0 0.0
    %2942 = vmatpush.msra.mxu0 0.0
    %2943 = vmatpush.msra.mxu0 %v2880
    %2944 = vmatpush.msra.mxu0 %v2879
    %2945 = vmatpush.msra.mxu0 %v2878
    %2946 = vmatpush.msra.mxu0 %v2877
    %2947 = vmatmul.f32.gmra.mxu0 %v2929
    %v2948 = vpop.f32.mrf.mxu0
    %v2949 = vadd.f32 %v58, %v2948
    %2950 = vdwg.mxu0
    %vm2951 = vcmp.gt.f32.partialorder %v2949, 0.0
    %v2952 = vmul.f32 %v2949, 0.01
    %v2953 = vsel %vm2951, %v2949, %v2952
    %v2955 = vsel %vm2804, %v2953, 0
    %2957 = vmatpush.msra.mxu0 0.0
    %2958 = vmatpush.msra.mxu0 0.0
    %2959 = vmatpush.msra.mxu0 0.0
    %2960 = vmatpush.msra.mxu0 0.0
    %2961 = vmatpush.msra.mxu0 0.0
    %2962 = vmatpush.msra.mxu0 0.0
    %2963 = vmatpush.msra.mxu0 0.0
    %2964 = vmatpush.msra.mxu0 0.0
    %2965 = vmatpush.msra.mxu0 0.0
    %2966 = vmatpush.msra.mxu0 0.0
    %2967 = vmatpush.msra.mxu0 0.0
    %2968 = vmatpush.msra.mxu0 0.0
    %2969 = vmatpush.msra.mxu0 %v2884
    %2970 = vmatpush.msra.mxu0 %v2883
    %2971 = vmatpush.msra.mxu0 %v2882
    %2972 = vmatpush.msra.mxu0 %v2881
    %2973 = vmatmul.f32.gmra.mxu0 %v2955
    %v2974 = vpop.f32.mrf.mxu0
    %v2975 = vadd.f32 %v59, %v2974
    %2976 = vdwg.mxu0
    %vm2977 = vcmp.gt.f32.partialorder %v2975, 0.0
    %v2978 = vmul.f32 %v2975, 0.01
    %v2979 = vsel %vm2977, %v2975, %v2978
    %v2981 = vsel %vm2804, %v2979, 0
    %2983 = vmatpush.msra.mxu0 0.0
    %2984 = vmatpush.msra.mxu0 0.0
    %2985 = vmatpush.msra.mxu0 0.0
    %2986 = vmatpush.msra.mxu0 0.0
    %2987 = vmatpush.msra.mxu0 0.0
    %2988 = vmatpush.msra.mxu0 0.0
    %2989 = vmatpush.msra.mxu0 0.0
    %2990 = vmatpush.msra.mxu0 0.0
    %2991 = vmatpush.msra.mxu0 0.0
    %2992 = vmatpush.msra.mxu0 0.0
    %2993 = vmatpush.msra.mxu0 0.0
    %2994 = vmatpush.msra.mxu0 0.0
    %2995 = vmatpush.msra.mxu0 %v2891
    %2996 = vmatpush.msra.mxu0 %v2889
    %2997 = vmatpush.msra.mxu0 %v2887
    %2998 = vmatpush.msra.mxu0 %v2885
    %2999 = vmatmul.f32.gmra.mxu0 %v2981
    %v3000 = vpop.f32.mrf.mxu0
    %v3001 = vadd.f32 0.0, %v3000
    %3002 = vdwg.mxu0
    %3003 = vmatpush.msra.mxu0 0.0
    %3004 = vmatpush.msra.mxu0 0.0
    %3005 = vmatpush.msra.mxu0 0.0
    %3006 = vmatpush.msra.mxu0 0.0
    %3007 = vmatpush.msra.mxu0 0.0
    %3008 = vmatpush.msra.mxu0 0.0
    %3009 = vmatpush.msra.mxu0 0.0
    %3010 = vmatpush.msra.mxu0 0.0
    %3011 = vmatpush.msra.mxu0 0.0
    %3012 = vmatpush.msra.mxu0 0.0
    %3013 = vmatpush.msra.mxu0 0.0
    %3014 = vmatpush.msra.mxu0 0.0
    %3015 = vmatpush.msra.mxu0 %v2892
    %3016 = vmatpush.msra.mxu0 %v2890
    %3017 = vmatpush.msra.mxu0 %v2888
    %3018 = vmatpush.msra.mxu0 %v2886
    %3019 = vmatmul.f32.gmra.mxu0 %v2981
    %v3020 = vpop.f32.mrf.mxu0
    %v3021 = vadd.f32 0.0, %v3020
    %3022 = vdwg.mxu0
    %v3023 = vadd.f32 %v3001, %v65
    %v3024 = vadd.f32 %v3021, %v66
    %v3025 = vmax.f32 %v3024, 0.0
    %vm3026 = vcmp.ne.f32.partialorder %v3024, %v3024
    %v3027 = vadd.f32 %v3024, 0.0
    %v3028 = vand.u32 2147483647, %v3024
    %v3029 = vsub.f32 0.0, %v3028
    %v3030 = vmul.f32 %v3029, 1.442695
    %v3031 = vpow.pop %v3030
    %v3032 = vadd.f32 %v3031, 1.0
    %v3033 = vlog2.pop %v3032
    %v3034 = vmul.f32 %v3033, 0.6931472
    %v3035 = vmul.f32 -0.5, %v3031
    %v3036 = vadd.f32 %v3035, 1.0
    %v3037 = vmul.f32 %v3036, %v3031
    %v3038 = vand.u32 2147483647, %v3031
    %vm3039 = vcmp.lt.f32.partialorder %v3038, 0.0004427343
    %v3040 = vsel %vm3039, %v3037, %v3034
    %v3041 = vadd.f32 %v3025, %v3040
    %v3042 = vsel %vm3026, %v3027, %v3041
    %v3043 = vadd.f32 %v3042, 1e-06
    %v3044 = vmul.f32 %v3043, %v2893
    %v3045 = vadd.f32 %v3023, %v3044
    %v3047 = vsel %vm2901, %v3045, 0
    %3049 = vmatpush.msra.mxu0 0.0
    %3050 = vmatpush.msra.mxu0 0.0
    %3051 = vmatpush.msra.mxu0 0.0
    %3052 = vmatpush.msra.mxu0 0.0
    %3053 = vmatpush.msra.mxu0 0.0
    %3054 = vmatpush.msra.mxu0 0.0
    %3055 = vmatpush.msra.mxu0 0.0
    %3056 = vmatpush.msra.mxu0 0.0
    %3057 = vmatpush.msra.mxu0 0.0
    %3058 = vmatpush.msra.mxu0 0.0
    %3059 = vmatpush.msra.mxu0 0.0
    %3060 = vmatpush.msra.mxu0 0.0
    %3061 = vmatpush.msra.mxu0 0.0
    %3062 = vmatpush.msra.mxu0 0.0
    %3063 = vmatpush.msra.mxu0 0.0
    %3064 = vmatpush.msra.mxu0 %v2876
    %3065 = vmatmul.f32.gmra.mxu0 %v3047
    %v3066 = vpop.f32.mrf.mxu0
    %v3067 = vadd.f32 0.0, %v3066
    %3068 = vdwg.mxu0
    %v3069 = vadd.f32 %v2833, %v3067
    %vm3070 = vcmp.gt.f32.partialorder %v3069, 0.0
    %v3071 = vmul.f32 %v3069, 0.01
    %v3072 = vsel %vm3070, %v3069, %v3071
    %v3074 = vsel %vm2804, %v3072, 0
    %3076 = vmatpush.msra.mxu0 0.0
    %3077 = vmatpush.msra.mxu0 0.0
    %3078 = vmatpush.msra.mxu0 0.0
    %3079 = vmatpush.msra.mxu0 0.0
    %3080 = vmatpush.msra.mxu0 0.0
    %3081 = vmatpush.msra.mxu0 0.0
    %3082 = vmatpush.msra.mxu0 0.0
    %3083 = vmatpush.msra.mxu0 0.0
    %3084 = vmatpush.msra.mxu0 0.0
    %3085 = vmatpush.msra.mxu0 0.0
    %3086 = vmatpush.msra.mxu0 0.0
    %3087 = vmatpush.msra.mxu0 0.0
    %3088 = vmatpush.msra.mxu0 %v2880
    %3089 = vmatpush.msra.mxu0 %v2879
    %3090 = vmatpush.msra.mxu0 %v2878
    %3091 = vmatpush.msra.mxu0 %v2877
    %3092 = vmatmul.f32.gmra.mxu0 %v3074
    %v3093 = vpop.f32.mrf.mxu0
    %v3094 = vadd.f32 %v58, %v3093
    %3095 = vdwg.mxu0
    %vm3096 = vcmp.gt.f32.partialorder %v3094, 0.0
    %v3097 = vmul.f32 %v3094, 0.01
    %v3098 = vsel %vm3096, %v3094, %v3097
    %v3100 = vsel %vm2804, %v3098, 0
    %3102 = vmatpush.msra.mxu0 0.0
    %3103 = vmatpush.msra.mxu0 0.0
    %3104 = vmatpush.msra.mxu0 0.0
    %3105 = vmatpush.msra.mxu0 0.0
    %3106 = vmatpush.msra.mxu0 0.0
    %3107 = vmatpush.msra.mxu0 0.0
    %3108 = vmatpush.msra.mxu0 0.0
    %3109 = vmatpush.msra.mxu0 0.0
    %3110 = vmatpush.msra.mxu0 0.0
    %3111 = vmatpush.msra.mxu0 0.0
    %3112 = vmatpush.msra.mxu0 0.0
    %3113 = vmatpush.msra.mxu0 0.0
    %3114 = vmatpush.msra.mxu0 %v2884
    %3115 = vmatpush.msra.mxu0 %v2883
    %3116 = vmatpush.msra.mxu0 %v2882
    %3117 = vmatpush.msra.mxu0 %v2881
    %3118 = vmatmul.f32.gmra.mxu0 %v3100
    %v3119 = vpop.f32.mrf.mxu0
    %v3120 = vadd.f32 %v59, %v3119
    %3121 = vdwg.mxu0
    %vm3122 = vcmp.gt.f32.partialorder %v3120, 0.0
    %v3123 = vmul.f32 %v3120, 0.01
    %v3124 = vsel %vm3122, %v3120, %v3123
    %v3126 = vsel %vm2804, %v3124, 0
    %3128 = vmatpush.msra.mxu0 0.0
    %3129 = vmatpush.msra.mxu0 0.0
    %3130 = vmatpush.msra.mxu0 0.0
    %3131 = vmatpush.msra.mxu0 0.0
    %3132 = vmatpush.msra.mxu0 0.0
    %3133 = vmatpush.msra.mxu0 0.0
    %3134 = vmatpush.msra.mxu0 0.0
    %3135 = vmatpush.msra.mxu0 0.0
    %3136 = vmatpush.msra.mxu0 0.0
    %3137 = vmatpush.msra.mxu0 0.0
    %3138 = vmatpush.msra.mxu0 0.0
    %3139 = vmatpush.msra.mxu0 0.0
    %3140 = vmatpush.msra.mxu0 %v2891
    %3141 = vmatpush.msra.mxu0 %v2889
    %3142 = vmatpush.msra.mxu0 %v2887
    %3143 = vmatpush.msra.mxu0 %v2885
    %3144 = vmatmul.f32.gmra.mxu0 %v3126
    %v3145 = vpop.f32.mrf.mxu0
    %v3146 = vadd.f32 0.0, %v3145
    %3147 = vdwg.mxu0
    %3148 = vmatpush.msra.mxu0 0.0
    %3149 = vmatpush.msra.mxu0 0.0
    %3150 = vmatpush.msra.mxu0 0.0
    %3151 = vmatpush.msra.mxu0 0.0
    %3152 = vmatpush.msra.mxu0 0.0
    %3153 = vmatpush.msra.mxu0 0.0
    %3154 = vmatpush.msra.mxu0 0.0
    %3155 = vmatpush.msra.mxu0 0.0
    %3156 = vmatpush.msra.mxu0 0.0
    %3157 = vmatpush.msra.mxu0 0.0
    %3158 = vmatpush.msra.mxu0 0.0
    %3159 = vmatpush.msra.mxu0 0.0
    %3160 = vmatpush.msra.mxu0 %v2892
    %3161 = vmatpush.msra.mxu0 %v2890
    %3162 = vmatpush.msra.mxu0 %v2888
    %3163 = vmatpush.msra.mxu0 %v2886
    %3164 = vmatmul.f32.gmra.mxu0 %v3126
    %v3165 = vpop.f32.mrf.mxu0
    %v3166 = vadd.f32 0.0, %v3165
    %3167 = vdwg.mxu0
    %v3168 = vadd.f32 %v3146, %v65
    %v3169 = vadd.f32 %v3166, %v66
    %v3170 = vmax.f32 %v3169, 0.0
    %vm3171 = vcmp.ne.f32.partialorder %v3169, %v3169
    %v3172 = vadd.f32 %v3169, 0.0
    %v3173 = vand.u32 2147483647, %v3169
    %v3174 = vsub.f32 0.0, %v3173
    %v3175 = vmul.f32 %v3174, 1.442695
    %v3176 = vpow.pop %v3175
    %v3177 = vadd.f32 %v3176, 1.0
    %v3178 = vlog2.pop %v3177
    %v3179 = vmul.f32 %v3178, 0.6931472
    %v3180 = vmul.f32 -0.5, %v3176
    %v3181 = vadd.f32 %v3180, 1.0
    %v3182 = vmul.f32 %v3181, %v3176
    %v3183 = vand.u32 2147483647, %v3176
    %vm3184 = vcmp.lt.f32.partialorder %v3183, 0.0004427343
    %v3185 = vsel %vm3184, %v3182, %v3179
    %v3186 = vadd.f32 %v3170, %v3185
    %v3187 = vsel %vm3171, %v3172, %v3186
    %v3188 = vadd.f32 %v3187, 1e-06
    %v3189 = vmul.f32 %v3188, %v2894
    %v3190 = vadd.f32 %v3168, %v3189
    %v3192 = vsel %vm2901, %v3190, 0
    %3194 = vmatpush.msra.mxu0 0.0
    %3195 = vmatpush.msra.mxu0 0.0
    %3196 = vmatpush.msra.mxu0 0.0
    %3197 = vmatpush.msra.mxu0 0.0
    %3198 = vmatpush.msra.mxu0 0.0
    %3199 = vmatpush.msra.mxu0 0.0
    %3200 = vmatpush.msra.mxu0 0.0
    %3201 = vmatpush.msra.mxu0 0.0
    %3202 = vmatpush.msra.mxu0 0.0
    %3203 = vmatpush.msra.mxu0 0.0
    %3204 = vmatpush.msra.mxu0 0.0
    %3205 = vmatpush.msra.mxu0 0.0
    %3206 = vmatpush.msra.mxu0 0.0
    %3207 = vmatpush.msra.mxu0 0.0
    %3208 = vmatpush.msra.mxu0 0.0
    %3209 = vmatpush.msra.mxu0 %v2876
    %3210 = vmatmul.f32.gmra.mxu0 %v3192
    %v3211 = vpop.f32.mrf.mxu0
    %v3212 = vadd.f32 0.0, %v3211
    %3213 = vdwg.mxu0
    %v3214 = vadd.f32 %v2840, %v3212
    %vm3215 = vcmp.gt.f32.partialorder %v3214, 0.0
    %v3216 = vmul.f32 %v3214, 0.01
    %v3217 = vsel %vm3215, %v3214, %v3216
    %v3219 = vsel %vm2804, %v3217, 0
    %3221 = vmatpush.msra.mxu0 0.0
    %3222 = vmatpush.msra.mxu0 0.0
    %3223 = vmatpush.msra.mxu0 0.0
    %3224 = vmatpush.msra.mxu0 0.0
    %3225 = vmatpush.msra.mxu0 0.0
    %3226 = vmatpush.msra.mxu0 0.0
    %3227 = vmatpush.msra.mxu0 0.0
    %3228 = vmatpush.msra.mxu0 0.0
    %3229 = vmatpush.msra.mxu0 0.0
    %3230 = vmatpush.msra.mxu0 0.0
    %3231 = vmatpush.msra.mxu0 0.0
    %3232 = vmatpush.msra.mxu0 0.0
    %3233 = vmatpush.msra.mxu0 %v2880
    %3234 = vmatpush.msra.mxu0 %v2879
    %3235 = vmatpush.msra.mxu0 %v2878
    %3236 = vmatpush.msra.mxu0 %v2877
    %3237 = vmatmul.f32.gmra.mxu0 %v3219
    %v3238 = vpop.f32.mrf.mxu0
    %v3239 = vadd.f32 %v58, %v3238
    %3240 = vdwg.mxu0
    %vm3241 = vcmp.gt.f32.partialorder %v3239, 0.0
    %v3242 = vmul.f32 %v3239, 0.01
    %v3243 = vsel %vm3241, %v3239, %v3242
    %v3245 = vsel %vm2804, %v3243, 0
    %3247 = vmatpush.msra.mxu0 0.0
    %3248 = vmatpush.msra.mxu0 0.0
    %3249 = vmatpush.msra.mxu0 0.0
    %3250 = vmatpush.msra.mxu0 0.0
    %3251 = vmatpush.msra.mxu0 0.0
    %3252 = vmatpush.msra.mxu0 0.0
    %3253 = vmatpush.msra.mxu0 0.0
    %3254 = vmatpush.msra.mxu0 0.0
    %3255 = vmatpush.msra.mxu0 0.0
    %3256 = vmatpush.msra.mxu0 0.0
    %3257 = vmatpush.msra.mxu0 0.0
    %3258 = vmatpush.msra.mxu0 0.0
    %3259 = vmatpush.msra.mxu0 %v2884
    %3260 = vmatpush.msra.mxu0 %v2883
    %3261 = vmatpush.msra.mxu0 %v2882
    %3262 = vmatpush.msra.mxu0 %v2881
    %3263 = vmatmul.f32.gmra.mxu0 %v3245
    %v3264 = vpop.f32.mrf.mxu0
    %v3265 = vadd.f32 %v59, %v3264
    %3266 = vdwg.mxu0
    %vm3267 = vcmp.gt.f32.partialorder %v3265, 0.0
    %v3268 = vmul.f32 %v3265, 0.01
    %v3269 = vsel %vm3267, %v3265, %v3268
    %v3271 = vsel %vm2804, %v3269, 0
    %3273 = vmatpush.msra.mxu0 0.0
    %3274 = vmatpush.msra.mxu0 0.0
    %3275 = vmatpush.msra.mxu0 0.0
    %3276 = vmatpush.msra.mxu0 0.0
    %3277 = vmatpush.msra.mxu0 0.0
    %3278 = vmatpush.msra.mxu0 0.0
    %3279 = vmatpush.msra.mxu0 0.0
    %3280 = vmatpush.msra.mxu0 0.0
    %3281 = vmatpush.msra.mxu0 0.0
    %3282 = vmatpush.msra.mxu0 0.0
    %3283 = vmatpush.msra.mxu0 0.0
    %3284 = vmatpush.msra.mxu0 0.0
    %3285 = vmatpush.msra.mxu0 %v2891
    %3286 = vmatpush.msra.mxu0 %v2889
    %3287 = vmatpush.msra.mxu0 %v2887
    %3288 = vmatpush.msra.mxu0 %v2885
    %3289 = vmatmul.f32.gmra.mxu0 %v3271
    %v3290 = vpop.f32.mrf.mxu0
    %v3291 = vadd.f32 0.0, %v3290
    %3292 = vdwg.mxu0
    %3293 = vmatpush.msra.mxu0 0.0
    %3294 = vmatpush.msra.mxu0 0.0
    %3295 = vmatpush.msra.mxu0 0.0
    %3296 = vmatpush.msra.mxu0 0.0
    %3297 = vmatpush.msra.mxu0 0.0
    %3298 = vmatpush.msra.mxu0 0.0
    %3299 = vmatpush.msra.mxu0 0.0
    %3300 = vmatpush.msra.mxu0 0.0
    %3301 = vmatpush.msra.mxu0 0.0
    %3302 = vmatpush.msra.mxu0 0.0
    %3303 = vmatpush.msra.mxu0 0.0
    %3304 = vmatpush.msra.mxu0 0.0
    %3305 = vmatpush.msra.mxu0 %v2892
    %3306 = vmatpush.msra.mxu0 %v2890
    %3307 = vmatpush.msra.mxu0 %v2888
    %3308 = vmatpush.msra.mxu0 %v2886
    %3309 = vmatmul.f32.gmra.mxu0 %v3271
    %v3310 = vpop.f32.mrf.mxu0
    %v3311 = vadd.f32 0.0, %v3310
    %3312 = vdwg.mxu0
    %v3313 = vadd.f32 %v3291, %v65
    %v3314 = vadd.f32 %v3311, %v66
    %v3315 = vmax.f32 %v3314, 0.0
    %vm3316 = vcmp.ne.f32.partialorder %v3314, %v3314
    %v3317 = vadd.f32 %v3314, 0.0
    %v3318 = vand.u32 2147483647, %v3314
    %v3319 = vsub.f32 0.0, %v3318
    %v3320 = vmul.f32 %v3319, 1.442695
    %v3321 = vpow.pop %v3320
    %v3322 = vadd.f32 %v3321, 1.0
    %v3323 = vlog2.pop %v3322
    %v3324 = vmul.f32 %v3323, 0.6931472
    %v3325 = vmul.f32 -0.5, %v3321
    %v3326 = vadd.f32 %v3325, 1.0
    %v3327 = vmul.f32 %v3326, %v3321
    %v3328 = vand.u32 2147483647, %v3321
    %vm3329 = vcmp.lt.f32.partialorder %v3328, 0.0004427343
    %v3330 = vsel %vm3329, %v3327, %v3324
    %v3331 = vadd.f32 %v3315, %v3330
    %v3332 = vsel %vm3316, %v3317, %v3331
    %v3333 = vadd.f32 %v3332, 1e-06
    %v3334 = vmul.f32 %v3333, %v2895
    %v3335 = vadd.f32 %v3313, %v3334
    %v3337 = vsel %vm2901, %v3335, 0
    %3339 = vmatpush.msra.mxu0 0.0
    %3340 = vmatpush.msra.mxu0 0.0
    %3341 = vmatpush.msra.mxu0 0.0
    %3342 = vmatpush.msra.mxu0 0.0
    %3343 = vmatpush.msra.mxu0 0.0
    %3344 = vmatpush.msra.mxu0 0.0
    %3345 = vmatpush.msra.mxu0 0.0
    %3346 = vmatpush.msra.mxu0 0.0
    %3347 = vmatpush.msra.mxu0 0.0
    %3348 = vmatpush.msra.mxu0 0.0
    %3349 = vmatpush.msra.mxu0 0.0
    %3350 = vmatpush.msra.mxu0 0.0
    %3351 = vmatpush.msra.mxu0 0.0
    %3352 = vmatpush.msra.mxu0 0.0
    %3353 = vmatpush.msra.mxu0 0.0
    %3354 = vmatpush.msra.mxu0 %v2876
    %3355 = vmatmul.f32.gmra.mxu0 %v3337
    %v3356 = vpop.f32.mrf.mxu0
    %v3357 = vadd.f32 0.0, %v3356
    %3358 = vdwg.mxu0
    %v3359 = vadd.f32 %v2847, %v3357
    %vm3360 = vcmp.gt.f32.partialorder %v3359, 0.0
    %v3361 = vmul.f32 %v3359, 0.01
    %v3362 = vsel %vm3360, %v3359, %v3361
    %v3364 = vsel %vm2804, %v3362, 0
    %3366 = vmatpush.msra.mxu0 0.0
    %3367 = vmatpush.msra.mxu0 0.0
    %3368 = vmatpush.msra.mxu0 0.0
    %3369 = vmatpush.msra.mxu0 0.0
    %3370 = vmatpush.msra.mxu0 0.0
    %3371 = vmatpush.msra.mxu0 0.0
    %3372 = vmatpush.msra.mxu0 0.0
    %3373 = vmatpush.msra.mxu0 0.0
    %3374 = vmatpush.msra.mxu0 0.0
    %3375 = vmatpush.msra.mxu0 0.0
    %3376 = vmatpush.msra.mxu0 0.0
    %3377 = vmatpush.msra.mxu0 0.0
    %3378 = vmatpush.msra.mxu0 %v2880
    %3379 = vmatpush.msra.mxu0 %v2879
    %3380 = vmatpush.msra.mxu0 %v2878
    %3381 = vmatpush.msra.mxu0 %v2877
    %3382 = vmatmul.f32.gmra.mxu0 %v3364
    %v3383 = vpop.f32.mrf.mxu0
    %v3384 = vadd.f32 %v58, %v3383
    %3385 = vdwg.mxu0
    %vm3386 = vcmp.gt.f32.partialorder %v3384, 0.0
    %v3387 = vmul.f32 %v3384, 0.01
    %v3388 = vsel %vm3386, %v3384, %v3387
    %v3390 = vsel %vm2804, %v3388, 0
    %3392 = vmatpush.msra.mxu0 0.0
    %3393 = vmatpush.msra.mxu0 0.0
    %3394 = vmatpush.msra.mxu0 0.0
    %3395 = vmatpush.msra.mxu0 0.0
    %3396 = vmatpush.msra.mxu0 0.0
    %3397 = vmatpush.msra.mxu0 0.0
    %3398 = vmatpush.msra.mxu0 0.0
    %3399 = vmatpush.msra.mxu0 0.0
    %3400 = vmatpush.msra.mxu0 0.0
    %3401 = vmatpush.msra.mxu0 0.0
    %3402 = vmatpush.msra.mxu0 0.0
    %3403 = vmatpush.msra.mxu0 0.0
    %3404 = vmatpush.msra.mxu0 %v2884
    %3405 = vmatpush.msra.mxu0 %v2883
    %3406 = vmatpush.msra.mxu0 %v2882
    %3407 = vmatpush.msra.mxu0 %v2881
    %3408 = vmatmul.f32.gmra.mxu0 %v3390
    %v3409 = vpop.f32.mrf.mxu0
    %v3410 = vadd.f32 %v59, %v3409
    %3411 = vdwg.mxu0
    %vm3412 = vcmp.gt.f32.partialorder %v3410, 0.0
    %v3413 = vmul.f32 %v3410, 0.01
    %v3414 = vsel %vm3412, %v3410, %v3413
    %v3416 = vsel %vm2804, %v3414, 0
    %3418 = vmatpush.msra.mxu0 0.0
    %3419 = vmatpush.msra.mxu0 0.0
    %3420 = vmatpush.msra.mxu0 0.0
    %3421 = vmatpush.msra.mxu0 0.0
    %3422 = vmatpush.msra.mxu0 0.0
    %3423 = vmatpush.msra.mxu0 0.0
    %3424 = vmatpush.msra.mxu0 0.0
    %3425 = vmatpush.msra.mxu0 0.0
    %3426 = vmatpush.msra.mxu0 0.0
    %3427 = vmatpush.msra.mxu0 0.0
    %3428 = vmatpush.msra.mxu0 0.0
    %3429 = vmatpush.msra.mxu0 0.0
    %3430 = vmatpush.msra.mxu0 %v2891
    %3431 = vmatpush.msra.mxu0 %v2889
    %3432 = vmatpush.msra.mxu0 %v2887
    %3433 = vmatpush.msra.mxu0 %v2885
    %3434 = vmatmul.f32.gmra.mxu0 %v3416
    %v3435 = vpop.f32.mrf.mxu0
    %v3436 = vadd.f32 0.0, %v3435
    %3437 = vdwg.mxu0
    %3438 = vmatpush.msra.mxu0 0.0
    %3439 = vmatpush.msra.mxu0 0.0
    %3440 = vmatpush.msra.mxu0 0.0
    %3441 = vmatpush.msra.mxu0 0.0
    %3442 = vmatpush.msra.mxu0 0.0
    %3443 = vmatpush.msra.mxu0 0.0
    %3444 = vmatpush.msra.mxu0 0.0
    %3445 = vmatpush.msra.mxu0 0.0
    %3446 = vmatpush.msra.mxu0 0.0
    %3447 = vmatpush.msra.mxu0 0.0
    %3448 = vmatpush.msra.mxu0 0.0
    %3449 = vmatpush.msra.mxu0 0.0
    %3450 = vmatpush.msra.mxu0 %v2892
    %3451 = vmatpush.msra.mxu0 %v2890
    %3452 = vmatpush.msra.mxu0 %v2888
    %3453 = vmatpush.msra.mxu0 %v2886
    %3454 = vmatmul.f32.gmra.mxu0 %v3416
    %v3455 = vpop.f32.mrf.mxu0
    %v3456 = vadd.f32 0.0, %v3455
    %3457 = vdwg.mxu0
    %v3458 = vadd.f32 %v3436, %v65
    %v3459 = vadd.f32 %v3456, %v66
    %v3460 = vmax.f32 %v3459, 0.0
    %vm3461 = vcmp.ne.f32.partialorder %v3459, %v3459
    %v3462 = vadd.f32 %v3459, 0.0
    %v3463 = vand.u32 2147483647, %v3459
    %v3464 = vsub.f32 0.0, %v3463
    %v3465 = vmul.f32 %v3464, 1.442695
    %v3466 = vpow.pop %v3465
    %v3467 = vadd.f32 %v3466, 1.0
    %v3468 = vlog2.pop %v3467
    %v3469 = vmul.f32 %v3468, 0.6931472
    %v3470 = vmul.f32 -0.5, %v3466
    %v3471 = vadd.f32 %v3470, 1.0
    %v3472 = vmul.f32 %v3471, %v3466
    %v3473 = vand.u32 2147483647, %v3466
    %vm3474 = vcmp.lt.f32.partialorder %v3473, 0.0004427343
    %v3475 = vsel %vm3474, %v3472, %v3469
    %v3476 = vadd.f32 %v3460, %v3475
    %v3477 = vsel %vm3461, %v3462, %v3476
    %v3478 = vadd.f32 %v3477, 1e-06
    %v3479 = vmul.f32 %v3478, %v2896
    %v3480 = vadd.f32 %v3458, %v3479
    %v3482 = vsel %vm2901, %v3480, 0
    %3484 = vmatpush.msra.mxu0 0.0
    %3485 = vmatpush.msra.mxu0 0.0
    %3486 = vmatpush.msra.mxu0 0.0
    %3487 = vmatpush.msra.mxu0 0.0
    %3488 = vmatpush.msra.mxu0 0.0
    %3489 = vmatpush.msra.mxu0 0.0
    %3490 = vmatpush.msra.mxu0 0.0
    %3491 = vmatpush.msra.mxu0 0.0
    %3492 = vmatpush.msra.mxu0 0.0
    %3493 = vmatpush.msra.mxu0 0.0
    %3494 = vmatpush.msra.mxu0 0.0
    %3495 = vmatpush.msra.mxu0 0.0
    %3496 = vmatpush.msra.mxu0 0.0
    %3497 = vmatpush.msra.mxu0 0.0
    %3498 = vmatpush.msra.mxu0 0.0
    %3499 = vmatpush.msra.mxu0 %v2876
    %3500 = vmatmul.f32.gmra.mxu0 %v3482
    %v3501 = vpop.f32.mrf.mxu0
    %v3502 = vadd.f32 0.0, %v3501
    %3503 = vdwg.mxu0
    %v3504 = vadd.f32 %v2854, %v3502
    %vm3505 = vcmp.gt.f32.partialorder %v3504, 0.0
    %v3506 = vmul.f32 %v3504, 0.01
    %v3507 = vsel %vm3505, %v3504, %v3506
    %v3509 = vsel %vm2804, %v3507, 0
    %3511 = vmatpush.msra.mxu0 0.0
    %3512 = vmatpush.msra.mxu0 0.0
    %3513 = vmatpush.msra.mxu0 0.0
    %3514 = vmatpush.msra.mxu0 0.0
    %3515 = vmatpush.msra.mxu0 0.0
    %3516 = vmatpush.msra.mxu0 0.0
    %3517 = vmatpush.msra.mxu0 0.0
    %3518 = vmatpush.msra.mxu0 0.0
    %3519 = vmatpush.msra.mxu0 0.0
    %3520 = vmatpush.msra.mxu0 0.0
    %3521 = vmatpush.msra.mxu0 0.0
    %3522 = vmatpush.msra.mxu0 0.0
    %3523 = vmatpush.msra.mxu0 %v2880
    %3524 = vmatpush.msra.mxu0 %v2879
    %3525 = vmatpush.msra.mxu0 %v2878
    %3526 = vmatpush.msra.mxu0 %v2877
    %3527 = vmatmul.f32.gmra.mxu0 %v3509
    %v3528 = vpop.f32.mrf.mxu0
    %v3529 = vadd.f32 %v58, %v3528
    %3530 = vdwg.mxu0
    %vm3531 = vcmp.gt.f32.partialorder %v3529, 0.0
    %v3532 = vmul.f32 %v3529, 0.01
    %v3533 = vsel %vm3531, %v3529, %v3532
    %v3535 = vsel %vm2804, %v3533, 0
    %3537 = vmatpush.msra.mxu0 0.0
    %3538 = vmatpush.msra.mxu0 0.0
    %3539 = vmatpush.msra.mxu0 0.0
    %3540 = vmatpush.msra.mxu0 0.0
    %3541 = vmatpush.msra.mxu0 0.0
    %3542 = vmatpush.msra.mxu0 0.0
    %3543 = vmatpush.msra.mxu0 0.0
    %3544 = vmatpush.msra.mxu0 0.0
    %3545 = vmatpush.msra.mxu0 0.0
    %3546 = vmatpush.msra.mxu0 0.0
    %3547 = vmatpush.msra.mxu0 0.0
    %3548 = vmatpush.msra.mxu0 0.0
    %3549 = vmatpush.msra.mxu0 %v2884
    %3550 = vmatpush.msra.mxu0 %v2883
    %3551 = vmatpush.msra.mxu0 %v2882
    %3552 = vmatpush.msra.mxu0 %v2881
    %3553 = vmatmul.f32.gmra.mxu0 %v3535
    %v3554 = vpop.f32.mrf.mxu0
    %v3555 = vadd.f32 %v59, %v3554
    %3556 = vdwg.mxu0
    %vm3557 = vcmp.gt.f32.partialorder %v3555, 0.0
    %v3558 = vmul.f32 %v3555, 0.01
    %v3559 = vsel %vm3557, %v3555, %v3558
    %v3561 = vsel %vm2804, %v3559, 0
    %3563 = vmatpush.msra.mxu0 0.0
    %3564 = vmatpush.msra.mxu0 0.0
    %3565 = vmatpush.msra.mxu0 0.0
    %3566 = vmatpush.msra.mxu0 0.0
    %3567 = vmatpush.msra.mxu0 0.0
    %3568 = vmatpush.msra.mxu0 0.0
    %3569 = vmatpush.msra.mxu0 0.0
    %3570 = vmatpush.msra.mxu0 0.0
    %3571 = vmatpush.msra.mxu0 0.0
    %3572 = vmatpush.msra.mxu0 0.0
    %3573 = vmatpush.msra.mxu0 0.0
    %3574 = vmatpush.msra.mxu0 0.0
    %3575 = vmatpush.msra.mxu0 %v2891
    %3576 = vmatpush.msra.mxu0 %v2889
    %3577 = vmatpush.msra.mxu0 %v2887
    %3578 = vmatpush.msra.mxu0 %v2885
    %3579 = vmatmul.f32.gmra.mxu0 %v3561
    %v3580 = vpop.f32.mrf.mxu0
    %v3581 = vadd.f32 0.0, %v3580
    %3582 = vdwg.mxu0
    %3583 = vmatpush.msra.mxu0 0.0
    %3584 = vmatpush.msra.mxu0 0.0
    %3585 = vmatpush.msra.mxu0 0.0
    %3586 = vmatpush.msra.mxu0 0.0
    %3587 = vmatpush.msra.mxu0 0.0
    %3588 = vmatpush.msra.mxu0 0.0
    %3589 = vmatpush.msra.mxu0 0.0
    %3590 = vmatpush.msra.mxu0 0.0
    %3591 = vmatpush.msra.mxu0 0.0
    %3592 = vmatpush.msra.mxu0 0.0
    %3593 = vmatpush.msra.mxu0 0.0
    %3594 = vmatpush.msra.mxu0 0.0
    %3595 = vmatpush.msra.mxu0 %v2892
    %3596 = vmatpush.msra.mxu0 %v2890
    %3597 = vmatpush.msra.mxu0 %v2888
    %3598 = vmatpush.msra.mxu0 %v2886
    %3599 = vmatmul.f32.gmra.mxu0 %v3561
    %v3600 = vpop.f32.mrf.mxu0
    %v3601 = vadd.f32 0.0, %v3600
    %3602 = vdwg.mxu0
    %v3603 = vadd.f32 %v3581, %v65
    %v3604 = vadd.f32 %v3601, %v66
    %v3605 = vmax.f32 %v3604, 0.0
    %vm3606 = vcmp.ne.f32.partialorder %v3604, %v3604
    %v3607 = vadd.f32 %v3604, 0.0
    %v3608 = vand.u32 2147483647, %v3604
    %v3609 = vsub.f32 0.0, %v3608
    %v3610 = vmul.f32 %v3609, 1.442695
    %v3611 = vpow.pop %v3610
    %v3612 = vadd.f32 %v3611, 1.0
    %v3613 = vlog2.pop %v3612
    %v3614 = vmul.f32 %v3613, 0.6931472
    %v3615 = vmul.f32 -0.5, %v3611
    %v3616 = vadd.f32 %v3615, 1.0
    %v3617 = vmul.f32 %v3616, %v3611
    %v3618 = vand.u32 2147483647, %v3611
    %vm3619 = vcmp.lt.f32.partialorder %v3618, 0.0004427343
    %v3620 = vsel %vm3619, %v3617, %v3614
    %v3621 = vadd.f32 %v3605, %v3620
    %v3622 = vsel %vm3606, %v3607, %v3621
    %v3623 = vadd.f32 %v3622, 1e-06
    %v3624 = vmul.f32 %v3623, %v2897
    %v3625 = vadd.f32 %v3603, %v3624
    %v3627 = vsel %vm2901, %v3625, 0
    %3629 = vmatpush.msra.mxu0 0.0
    %3630 = vmatpush.msra.mxu0 0.0
    %3631 = vmatpush.msra.mxu0 0.0
    %3632 = vmatpush.msra.mxu0 0.0
    %3633 = vmatpush.msra.mxu0 0.0
    %3634 = vmatpush.msra.mxu0 0.0
    %3635 = vmatpush.msra.mxu0 0.0
    %3636 = vmatpush.msra.mxu0 0.0
    %3637 = vmatpush.msra.mxu0 0.0
    %3638 = vmatpush.msra.mxu0 0.0
    %3639 = vmatpush.msra.mxu0 0.0
    %3640 = vmatpush.msra.mxu0 0.0
    %3641 = vmatpush.msra.mxu0 0.0
    %3642 = vmatpush.msra.mxu0 0.0
    %3643 = vmatpush.msra.mxu0 0.0
    %3644 = vmatpush.msra.mxu0 %v2876
    %3645 = vmatmul.f32.gmra.mxu0 %v3627
    %v3646 = vpop.f32.mrf.mxu0
    %v3647 = vadd.f32 0.0, %v3646
    %3648 = vdwg.mxu0
    %v3649 = vadd.f32 %v2861, %v3647
    %vm3650 = vcmp.gt.f32.partialorder %v3649, 0.0
    %v3651 = vmul.f32 %v3649, 0.01
    %v3652 = vsel %vm3650, %v3649, %v3651
    %v3654 = vsel %vm2804, %v3652, 0
    %3656 = vmatpush.msra.mxu0 0.0
    %3657 = vmatpush.msra.mxu0 0.0
    %3658 = vmatpush.msra.mxu0 0.0
    %3659 = vmatpush.msra.mxu0 0.0
    %3660 = vmatpush.msra.mxu0 0.0
    %3661 = vmatpush.msra.mxu0 0.0
    %3662 = vmatpush.msra.mxu0 0.0
    %3663 = vmatpush.msra.mxu0 0.0
    %3664 = vmatpush.msra.mxu0 0.0
    %3665 = vmatpush.msra.mxu0 0.0
    %3666 = vmatpush.msra.mxu0 0.0
    %3667 = vmatpush.msra.mxu0 0.0
    %3668 = vmatpush.msra.mxu0 %v2880
    %3669 = vmatpush.msra.mxu0 %v2879
    %3670 = vmatpush.msra.mxu0 %v2878
    %3671 = vmatpush.msra.mxu0 %v2877
    %3672 = vmatmul.f32.gmra.mxu0 %v3654
    %v3673 = vpop.f32.mrf.mxu0
    %v3674 = vadd.f32 %v58, %v3673
    %3675 = vdwg.mxu0
    %vm3676 = vcmp.gt.f32.partialorder %v3674, 0.0
    %v3677 = vmul.f32 %v3674, 0.01
    %v3678 = vsel %vm3676, %v3674, %v3677
    %v3680 = vsel %vm2804, %v3678, 0
    %3682 = vmatpush.msra.mxu0 0.0
    %3683 = vmatpush.msra.mxu0 0.0
    %3684 = vmatpush.msra.mxu0 0.0
    %3685 = vmatpush.msra.mxu0 0.0
    %3686 = vmatpush.msra.mxu0 0.0
    %3687 = vmatpush.msra.mxu0 0.0
    %3688 = vmatpush.msra.mxu0 0.0
    %3689 = vmatpush.msra.mxu0 0.0
    %3690 = vmatpush.msra.mxu0 0.0
    %3691 = vmatpush.msra.mxu0 0.0
    %3692 = vmatpush.msra.mxu0 0.0
    %3693 = vmatpush.msra.mxu0 0.0
    %3694 = vmatpush.msra.mxu0 %v2884
    %3695 = vmatpush.msra.mxu0 %v2883
    %3696 = vmatpush.msra.mxu0 %v2882
    %3697 = vmatpush.msra.mxu0 %v2881
    %3698 = vmatmul.f32.gmra.mxu0 %v3680
    %v3699 = vpop.f32.mrf.mxu0
    %v3700 = vadd.f32 %v59, %v3699
    %3701 = vdwg.mxu0
    %vm3702 = vcmp.gt.f32.partialorder %v3700, 0.0
    %v3703 = vmul.f32 %v3700, 0.01
    %v3704 = vsel %vm3702, %v3700, %v3703
    %v3706 = vsel %vm2804, %v3704, 0
    %3708 = vmatpush.msra.mxu0 0.0
    %3709 = vmatpush.msra.mxu0 0.0
    %3710 = vmatpush.msra.mxu0 0.0
    %3711 = vmatpush.msra.mxu0 0.0
    %3712 = vmatpush.msra.mxu0 0.0
    %3713 = vmatpush.msra.mxu0 0.0
    %3714 = vmatpush.msra.mxu0 0.0
    %3715 = vmatpush.msra.mxu0 0.0
    %3716 = vmatpush.msra.mxu0 0.0
    %3717 = vmatpush.msra.mxu0 0.0
    %3718 = vmatpush.msra.mxu0 0.0
    %3719 = vmatpush.msra.mxu0 0.0
    %3720 = vmatpush.msra.mxu0 %v2891
    %3721 = vmatpush.msra.mxu0 %v2889
    %3722 = vmatpush.msra.mxu0 %v2887
    %3723 = vmatpush.msra.mxu0 %v2885
    %3724 = vmatmul.f32.gmra.mxu0 %v3706
    %v3725 = vpop.f32.mrf.mxu0
    %v3726 = vadd.f32 0.0, %v3725
    %3727 = vdwg.mxu0
    %3728 = vmatpush.msra.mxu0 0.0
    %3729 = vmatpush.msra.mxu0 0.0
    %3730 = vmatpush.msra.mxu0 0.0
    %3731 = vmatpush.msra.mxu0 0.0
    %3732 = vmatpush.msra.mxu0 0.0
    %3733 = vmatpush.msra.mxu0 0.0
    %3734 = vmatpush.msra.mxu0 0.0
    %3735 = vmatpush.msra.mxu0 0.0
    %3736 = vmatpush.msra.mxu0 0.0
    %3737 = vmatpush.msra.mxu0 0.0
    %3738 = vmatpush.msra.mxu0 0.0
    %3739 = vmatpush.msra.mxu0 0.0
    %3740 = vmatpush.msra.mxu0 %v2892
    %3741 = vmatpush.msra.mxu0 %v2890
    %3742 = vmatpush.msra.mxu0 %v2888
    %3743 = vmatpush.msra.mxu0 %v2886
    %3744 = vmatmul.f32.gmra.mxu0 %v3706
    %v3745 = vpop.f32.mrf.mxu0
    %v3746 = vadd.f32 0.0, %v3745
    %3747 = vdwg.mxu0
    %v3748 = vadd.f32 %v3726, %v65
    %v3749 = vadd.f32 %v3746, %v66
    %v3750 = vmax.f32 %v3749, 0.0
    %vm3751 = vcmp.ne.f32.partialorder %v3749, %v3749
    %v3752 = vadd.f32 %v3749, 0.0
    %v3753 = vand.u32 2147483647, %v3749
    %v3754 = vsub.f32 0.0, %v3753
    %v3755 = vmul.f32 %v3754, 1.442695
    %v3756 = vpow.pop %v3755
    %v3757 = vadd.f32 %v3756, 1.0
    %v3758 = vlog2.pop %v3757
    %v3759 = vmul.f32 %v3758, 0.6931472
    %v3760 = vmul.f32 -0.5, %v3756
    %v3761 = vadd.f32 %v3760, 1.0
    %v3762 = vmul.f32 %v3761, %v3756
    %v3763 = vand.u32 2147483647, %v3756
    %vm3764 = vcmp.lt.f32.partialorder %v3763, 0.0004427343
    %v3765 = vsel %vm3764, %v3762, %v3759
    %v3766 = vadd.f32 %v3750, %v3765
    %v3767 = vsel %vm3751, %v3752, %v3766
    %v3768 = vadd.f32 %v3767, 1e-06
    %v3769 = vmul.f32 %v3768, %v2898
    %v3770 = vadd.f32 %v3748, %v3769
    %v3772 = vsel %vm2901, %v3770, 0
    %3774 = vmatpush.msra.mxu0 0.0
    %3775 = vmatpush.msra.mxu0 0.0
    %3776 = vmatpush.msra.mxu0 0.0
    %3777 = vmatpush.msra.mxu0 0.0
    %3778 = vmatpush.msra.mxu0 0.0
    %3779 = vmatpush.msra.mxu0 0.0
    %3780 = vmatpush.msra.mxu0 0.0
    %3781 = vmatpush.msra.mxu0 0.0
    %3782 = vmatpush.msra.mxu0 0.0
    %3783 = vmatpush.msra.mxu0 0.0
    %3784 = vmatpush.msra.mxu0 0.0
    %3785 = vmatpush.msra.mxu0 0.0
    %3786 = vmatpush.msra.mxu0 0.0
    %3787 = vmatpush.msra.mxu0 0.0
    %3788 = vmatpush.msra.mxu0 0.0
    %3789 = vmatpush.msra.mxu0 %v2876
    %3790 = vmatmul.f32.gmra.mxu0 %v3772
    %v3791 = vpop.f32.mrf.mxu0
    %v3792 = vadd.f32 0.0, %v3791
    %3793 = vdwg.mxu0
    %v3794 = vadd.f32 %v2868, %v3792
    %vm3795 = vcmp.gt.f32.partialorder %v3794, 0.0
    %v3796 = vmul.f32 %v3794, 0.01
    %v3797 = vsel %vm3795, %v3794, %v3796
    %v3799 = vsel %vm2804, %v3797, 0
    %3801 = vmatpush.msra.mxu0 0.0
    %3802 = vmatpush.msra.mxu0 0.0
    %3803 = vmatpush.msra.mxu0 0.0
    %3804 = vmatpush.msra.mxu0 0.0
    %3805 = vmatpush.msra.mxu0 0.0
    %3806 = vmatpush.msra.mxu0 0.0
    %3807 = vmatpush.msra.mxu0 0.0
    %3808 = vmatpush.msra.mxu0 0.0
    %3809 = vmatpush.msra.mxu0 0.0
    %3810 = vmatpush.msra.mxu0 0.0
    %3811 = vmatpush.msra.mxu0 0.0
    %3812 = vmatpush.msra.mxu0 0.0
    %3813 = vmatpush.msra.mxu0 %v2880
    %3814 = vmatpush.msra.mxu0 %v2879
    %3815 = vmatpush.msra.mxu0 %v2878
    %3816 = vmatpush.msra.mxu0 %v2877
    %3817 = vmatmul.f32.gmra.mxu0 %v3799
    %v3818 = vpop.f32.mrf.mxu0
    %v3819 = vadd.f32 %v58, %v3818
    %3820 = vdwg.mxu0
    %vm3821 = vcmp.gt.f32.partialorder %v3819, 0.0
    %v3822 = vmul.f32 %v3819, 0.01
    %v3823 = vsel %vm3821, %v3819, %v3822
    %v3825 = vsel %vm2804, %v3823, 0
    %3827 = vmatpush.msra.mxu0 0.0
    %3828 = vmatpush.msra.mxu0 0.0
    %3829 = vmatpush.msra.mxu0 0.0
    %3830 = vmatpush.msra.mxu0 0.0
    %3831 = vmatpush.msra.mxu0 0.0
    %3832 = vmatpush.msra.mxu0 0.0
    %3833 = vmatpush.msra.mxu0 0.0
    %3834 = vmatpush.msra.mxu0 0.0
    %3835 = vmatpush.msra.mxu0 0.0
    %3836 = vmatpush.msra.mxu0 0.0
    %3837 = vmatpush.msra.mxu0 0.0
    %3838 = vmatpush.msra.mxu0 0.0
    %3839 = vmatpush.msra.mxu0 %v2884
    %3840 = vmatpush.msra.mxu0 %v2883
    %3841 = vmatpush.msra.mxu0 %v2882
    %3842 = vmatpush.msra.mxu0 %v2881
    %3843 = vmatmul.f32.gmra.mxu0 %v3825
    %v3844 = vpop.f32.mrf.mxu0
    %v3845 = vadd.f32 %v59, %v3844
    %3846 = vdwg.mxu0
    %vm3847 = vcmp.gt.f32.partialorder %v3845, 0.0
    %v3848 = vmul.f32 %v3845, 0.01
    %v3849 = vsel %vm3847, %v3845, %v3848
    %v3851 = vsel %vm2804, %v3849, 0
    %3853 = vmatpush.msra.mxu0 0.0
    %3854 = vmatpush.msra.mxu0 0.0
    %3855 = vmatpush.msra.mxu0 0.0
    %3856 = vmatpush.msra.mxu0 0.0
    %3857 = vmatpush.msra.mxu0 0.0
    %3858 = vmatpush.msra.mxu0 0.0
    %3859 = vmatpush.msra.mxu0 0.0
    %3860 = vmatpush.msra.mxu0 0.0
    %3861 = vmatpush.msra.mxu0 0.0
    %3862 = vmatpush.msra.mxu0 0.0
    %3863 = vmatpush.msra.mxu0 0.0
    %3864 = vmatpush.msra.mxu0 0.0
    %3865 = vmatpush.msra.mxu0 %v2891
    %3866 = vmatpush.msra.mxu0 %v2889
    %3867 = vmatpush.msra.mxu0 %v2887
    %3868 = vmatpush.msra.mxu0 %v2885
    %3869 = vmatmul.f32.gmra.mxu0 %v3851
    %v3870 = vpop.f32.mrf.mxu0
    %v3871 = vadd.f32 0.0, %v3870
    %3872 = vdwg.mxu0
    %3873 = vmatpush.msra.mxu0 0.0
    %3874 = vmatpush.msra.mxu0 0.0
    %3875 = vmatpush.msra.mxu0 0.0
    %3876 = vmatpush.msra.mxu0 0.0
    %3877 = vmatpush.msra.mxu0 0.0
    %3878 = vmatpush.msra.mxu0 0.0
    %3879 = vmatpush.msra.mxu0 0.0
    %3880 = vmatpush.msra.mxu0 0.0
    %3881 = vmatpush.msra.mxu0 0.0
    %3882 = vmatpush.msra.mxu0 0.0
    %3883 = vmatpush.msra.mxu0 0.0
    %3884 = vmatpush.msra.mxu0 0.0
    %3885 = vmatpush.msra.mxu0 %v2892
    %3886 = vmatpush.msra.mxu0 %v2890
    %3887 = vmatpush.msra.mxu0 %v2888
    %3888 = vmatpush.msra.mxu0 %v2886
    %3889 = vmatmul.f32.gmra.mxu0 %v3851
    %v3890 = vpop.f32.mrf.mxu0
    %v3891 = vadd.f32 0.0, %v3890
    %3892 = vdwg.mxu0
    %v3893 = vadd.f32 %v3871, %v65
    %v3894 = vadd.f32 %v3891, %v66
    %v3895 = vmax.f32 %v3894, 0.0
    %vm3896 = vcmp.ne.f32.partialorder %v3894, %v3894
    %v3897 = vadd.f32 %v3894, 0.0
    %v3898 = vand.u32 2147483647, %v3894
    %v3899 = vsub.f32 0.0, %v3898
    %v3900 = vmul.f32 %v3899, 1.442695
    %v3901 = vpow.pop %v3900
    %v3902 = vadd.f32 %v3901, 1.0
    %v3903 = vlog2.pop %v3902
    %v3904 = vmul.f32 %v3903, 0.6931472
    %v3905 = vmul.f32 -0.5, %v3901
    %v3906 = vadd.f32 %v3905, 1.0
    %v3907 = vmul.f32 %v3906, %v3901
    %v3908 = vand.u32 2147483647, %v3901
    %vm3909 = vcmp.lt.f32.partialorder %v3908, 0.0004427343
    %v3910 = vsel %vm3909, %v3907, %v3904
    %v3911 = vadd.f32 %v3895, %v3910
    %v3912 = vsel %vm3896, %v3897, %v3911
    %v3913 = vadd.f32 %v3912, 1e-06
    %v3914 = vmul.f32 %v3913, %v2899
    %v3915 = vadd.f32 %v3893, %v3914
    %v3917 = vsel %vm2901, %v3915, 0
    %3919 = vmatpush.msra.mxu0 0.0
    %3920 = vmatpush.msra.mxu0 0.0
    %3921 = vmatpush.msra.mxu0 0.0
    %3922 = vmatpush.msra.mxu0 0.0
    %3923 = vmatpush.msra.mxu0 0.0
    %3924 = vmatpush.msra.mxu0 0.0
    %3925 = vmatpush.msra.mxu0 0.0
    %3926 = vmatpush.msra.mxu0 0.0
    %3927 = vmatpush.msra.mxu0 0.0
    %3928 = vmatpush.msra.mxu0 0.0
    %3929 = vmatpush.msra.mxu0 0.0
    %3930 = vmatpush.msra.mxu0 0.0
    %3931 = vmatpush.msra.mxu0 0.0
    %3932 = vmatpush.msra.mxu0 0.0
    %3933 = vmatpush.msra.mxu0 0.0
    %3934 = vmatpush.msra.mxu0 %v2876
    %3935 = vmatmul.f32.gmra.mxu0 %v3917
    %v3936 = vpop.f32.mrf.mxu0
    %v3937 = vadd.f32 0.0, %v3936
    %3938 = vdwg.mxu0
    %v3939 = vadd.f32 %v2875, %v3937
    %vm3940 = vcmp.gt.f32.partialorder %v3939, 0.0
    %v3941 = vmul.f32 %v3939, 0.01
    %v3942 = vsel %vm3940, %v3939, %v3941
    %v3944 = vsel %vm2804, %v3942, 0
    %3946 = vmatpush.msra.mxu0 0.0
    %3947 = vmatpush.msra.mxu0 0.0
    %3948 = vmatpush.msra.mxu0 0.0
    %3949 = vmatpush.msra.mxu0 0.0
    %3950 = vmatpush.msra.mxu0 0.0
    %3951 = vmatpush.msra.mxu0 0.0
    %3952 = vmatpush.msra.mxu0 0.0
    %3953 = vmatpush.msra.mxu0 0.0
    %3954 = vmatpush.msra.mxu0 0.0
    %3955 = vmatpush.msra.mxu0 0.0
    %3956 = vmatpush.msra.mxu0 0.0
    %3957 = vmatpush.msra.mxu0 0.0
    %3958 = vmatpush.msra.mxu0 %v2880
    %3959 = vmatpush.msra.mxu0 %v2879
    %3960 = vmatpush.msra.mxu0 %v2878
    %3961 = vmatpush.msra.mxu0 %v2877
    %3962 = vmatmul.f32.gmra.mxu0 %v3944
    %v3963 = vpop.f32.mrf.mxu0
    %v3964 = vadd.f32 %v58, %v3963
    %3965 = vdwg.mxu0
    %vm3966 = vcmp.gt.f32.partialorder %v3964, 0.0
    %v3967 = vmul.f32 %v3964, 0.01
    %v3968 = vsel %vm3966, %v3964, %v3967
    %v3970 = vsel %vm2804, %v3968, 0
    %3972 = vmatpush.msra.mxu0 0.0
    %3973 = vmatpush.msra.mxu0 0.0
    %3974 = vmatpush.msra.mxu0 0.0
    %3975 = vmatpush.msra.mxu0 0.0
    %3976 = vmatpush.msra.mxu0 0.0
    %3977 = vmatpush.msra.mxu0 0.0
    %3978 = vmatpush.msra.mxu0 0.0
    %3979 = vmatpush.msra.mxu0 0.0
    %3980 = vmatpush.msra.mxu0 0.0
    %3981 = vmatpush.msra.mxu0 0.0
    %3982 = vmatpush.msra.mxu0 0.0
    %3983 = vmatpush.msra.mxu0 0.0
    %3984 = vmatpush.msra.mxu0 %v2884
    %3985 = vmatpush.msra.mxu0 %v2883
    %3986 = vmatpush.msra.mxu0 %v2882
    %3987 = vmatpush.msra.mxu0 %v2881
    %3988 = vmatmul.f32.gmra.mxu0 %v3970
    %v3989 = vpop.f32.mrf.mxu0
    %v3990 = vadd.f32 %v59, %v3989
    %3991 = vdwg.mxu0
    %vm3992 = vcmp.gt.f32.partialorder %v3990, 0.0
    %v3993 = vmul.f32 %v3990, 0.01
    %v3994 = vsel %vm3992, %v3990, %v3993
    %v3996 = vsel %vm2804, %v3994, 0
    %3998 = vmatpush.msra.mxu0 0.0
    %3999 = vmatpush.msra.mxu0 0.0
    %4000 = vmatpush.msra.mxu0 0.0
    %4001 = vmatpush.msra.mxu0 0.0
    %4002 = vmatpush.msra.mxu0 0.0
    %4003 = vmatpush.msra.mxu0 0.0
    %4004 = vmatpush.msra.mxu0 0.0
    %4005 = vmatpush.msra.mxu0 0.0
    %4006 = vmatpush.msra.mxu0 0.0
    %4007 = vmatpush.msra.mxu0 0.0
    %4008 = vmatpush.msra.mxu0 0.0
    %4009 = vmatpush.msra.mxu0 0.0
    %4010 = vmatpush.msra.mxu0 %v2891
    %4011 = vmatpush.msra.mxu0 %v2889
    %4012 = vmatpush.msra.mxu0 %v2887
    %4013 = vmatpush.msra.mxu0 %v2885
    %4014 = vmatmul.f32.gmra.mxu0 %v3996
    %v4015 = vpop.f32.mrf.mxu0
    %v4016 = vadd.f32 0.0, %v4015
    %4017 = vdwg.mxu0
    %4018 = vmatpush.msra.mxu0 0.0
    %4019 = vmatpush.msra.mxu0 0.0
    %4020 = vmatpush.msra.mxu0 0.0
    %4021 = vmatpush.msra.mxu0 0.0
    %4022 = vmatpush.msra.mxu0 0.0
    %4023 = vmatpush.msra.mxu0 0.0
    %4024 = vmatpush.msra.mxu0 0.0
    %4025 = vmatpush.msra.mxu0 0.0
    %4026 = vmatpush.msra.mxu0 0.0
    %4027 = vmatpush.msra.mxu0 0.0
    %4028 = vmatpush.msra.mxu0 0.0
    %4029 = vmatpush.msra.mxu0 0.0
    %4030 = vmatpush.msra.mxu0 %v2892
    %4031 = vmatpush.msra.mxu0 %v2890
    %4032 = vmatpush.msra.mxu0 %v2888
    %4033 = vmatpush.msra.mxu0 %v2886
    %4034 = vmatmul.f32.gmra.mxu0 %v3996
    %v4035 = vpop.f32.mrf.mxu0
    %v4036 = vadd.f32 0.0, %v4035
    %4037 = vdwg.mxu0
    %v4038 = vadd.f32 %v4016, %v65
    %v4039 = vadd.f32 %v4036, %v66
    %v4040 = vmax.f32 %v4039, 0.0
    %vm4041 = vcmp.ne.f32.partialorder %v4039, %v4039
    %v4042 = vadd.f32 %v4039, 0.0
    %v4043 = vand.u32 2147483647, %v4039
    %v4044 = vsub.f32 0.0, %v4043
    %v4045 = vmul.f32 %v4044, 1.442695
    %v4046 = vpow.pop %v4045
    %v4047 = vadd.f32 %v4046, 1.0
    %v4048 = vlog2.pop %v4047
    %v4049 = vmul.f32 %v4048, 0.6931472
    %v4050 = vmul.f32 -0.5, %v4046
    %v4051 = vadd.f32 %v4050, 1.0
    %v4052 = vmul.f32 %v4051, %v4046
    %v4053 = vand.u32 2147483647, %v4046
    %vm4054 = vcmp.lt.f32.partialorder %v4053, 0.0004427343
    %v4055 = vsel %vm4054, %v4052, %v4049
    %v4056 = vadd.f32 %v4040, %v4055
    %v4057 = vsel %vm4041, %v4042, %v4056
    %v4058 = vadd.f32 %v4057, 1e-06
    %v4059 = vmul.f32 %v4058, %v2900
    %v4060 = vadd.f32 %v4038, %v4059
    %v4061 = vld [vmem:[%s5 + $0x88] sm:$0xff]
    %v4062 = vld [vmem:[%s5 + $0x90] sm:$0xff]
    %v4063 = vld [vmem:[%s5 + $0x98] sm:$0xff]
    %v4064 = vld [vmem:[%s5 + $0xa0] sm:$0xff]
    %v4065 = vld [vmem:[%s5 + $0xa8] sm:$0xff]
    %v4066 = vld [vmem:[%s5 + $0xb0] sm:$0xff]
    %v4067 = vld [vmem:[%s5 + $0xb8] sm:$0xff]
    %v4068 = vld [vmem:[%s5 + $0xc0] sm:$0xff]
    %v4069 = vld [vmem:[%s5 + $0xc8] sm:$0xff]
    %v4070 = vld [vmem:[%s5 + $0xd0] sm:$0xff]
    %v4071 = vld [vmem:[%s5 + $0xd8] sm:$0xff]
    %v4072 = vld [vmem:[%s5 + $0xe0] sm:$0xff]
    %v4073 = vld [vmem:[%s5 + $0xe8] sm:$0xff]
    %v4074 = vld [vmem:[%s5 + $0xf0] sm:$0xff]
    %v4075 = vld [vmem:[%s5 + $0xf8] sm:$0xff]
    %v4076 = vld [vmem:[%s5 + $0x100] sm:$0xff]
    %v4077 = vld [vmem:[%s5 + $0x108] sm:$0xff]
    %v4078 = vld [vmem:[%s6 + $0x40] sm:$0xff]
    %v4079 = vld [vmem:[%s6 + $0x48] sm:$0xff]
    %v4080 = vld [vmem:[%s6 + $0x50] sm:$0xff]
    %v4081 = vld [vmem:[%s6 + $0x58] sm:$0xff]
    %v4082 = vld [vmem:[%s6 + $0x60] sm:$0xff]
    %v4083 = vld [vmem:[%s6 + $0x68] sm:$0xff]
    %v4084 = vld [vmem:[%s6 + $0x70] sm:$0xff]
    %v4085 = vld [vmem:[%s6 + $0x78] sm:$0xff]
    %4086 = vmatpush.msra.mxu0 0.0
    %4087 = vmatpush.msra.mxu0 0.0
    %4088 = vmatpush.msra.mxu0 0.0
    %4089 = vmatpush.msra.mxu0 0.0
    %4090 = vmatpush.msra.mxu0 0.0
    %4091 = vmatpush.msra.mxu0 0.0
    %4092 = vmatpush.msra.mxu0 0.0
    %4093 = vmatpush.msra.mxu0 0.0
    %4094 = vmatpush.msra.mxu0 0.0
    %4095 = vmatpush.msra.mxu0 0.0
    %4096 = vmatpush.msra.mxu0 0.0
    %4097 = vmatpush.msra.mxu0 0.0
    %4098 = vmatpush.msra.mxu0 0.0
    %4099 = vmatpush.msra.mxu0 0.0
    %4100 = vmatpush.msra.mxu0 0.0
    %4101 = vmatpush.msra.mxu0 %v4069
    %4102 = vmatmul.f32.gmra.mxu0 %v2902
    %v4103 = vpop.f32.mrf.mxu0
    %v4104 = vadd.f32 0.0, %v4103
    %4105 = vmatmul.f32.gmra.mxu0 %v3047
    %v4106 = vpop.f32.mrf.mxu0
    %v4107 = vadd.f32 0.0, %v4106
    %4108 = vmatmul.f32.gmra.mxu0 %v3192
    %v4109 = vpop.f32.mrf.mxu0
    %v4110 = vadd.f32 0.0, %v4109
    %4111 = vmatmul.f32.gmra.mxu0 %v3337
    %v4112 = vpop.f32.mrf.mxu0
    %v4113 = vadd.f32 0.0, %v4112
    %4114 = vmatmul.f32.gmra.mxu0 %v3482
    %v4115 = vpop.f32.mrf.mxu0
    %v4116 = vadd.f32 0.0, %v4115
    %4117 = vmatmul.f32.gmra.mxu0 %v3627
    %v4118 = vpop.f32.mrf.mxu0
    %v4119 = vadd.f32 0.0, %v4118
    %4120 = vmatmul.f32.gmra.mxu0 %v3772
    %v4121 = vpop.f32.mrf.mxu0
    %v4122 = vadd.f32 0.0, %v4121
    %4123 = vmatmul.f32.gmra.mxu0 %v3917
    %v4124 = vpop.f32.mrf.mxu0
    %v4125 = vadd.f32 0.0, %v4124
    %4126 = vdwg.mxu0
    %4127 = vmatpush.msra.mxu0 0.0
    %4128 = vmatpush.msra.mxu0 0.0
    %4129 = vmatpush.msra.mxu0 0.0
    %4130 = vmatpush.msra.mxu0 0.0
    %4131 = vmatpush.msra.mxu0 0.0
    %4132 = vmatpush.msra.mxu0 0.0
    %4133 = vmatpush.msra.mxu0 0.0
    %4134 = vmatpush.msra.mxu0 0.0
    %4135 = vmatpush.msra.mxu0 %v4068
    %4136 = vmatpush.msra.mxu0 %v4067
    %4137 = vmatpush.msra.mxu0 %v4066
    %4138 = vmatpush.msra.mxu0 %v4065
    %4139 = vmatpush.msra.mxu0 %v4064
    %4140 = vmatpush.msra.mxu0 %v4063
    %4141 = vmatpush.msra.mxu0 %v4062
    %4142 = vmatpush.msra.mxu0 %v4061
    %4143 = vmatmul.f32.gmra.mxu0 %v471
    %v4144 = vpop.f32.mrf.mxu0
    %v4145 = vadd.f32 %v4104, %v4144
    %4146 = vmatmul.f32.gmra.mxu0 %v585
    %v4147 = vpop.f32.mrf.mxu0
    %v4148 = vadd.f32 %v4107, %v4147
    %4149 = vmatmul.f32.gmra.mxu0 %v699
    %v4150 = vpop.f32.mrf.mxu0
    %v4151 = vadd.f32 %v4110, %v4150
    %4152 = vmatmul.f32.gmra.mxu0 %v813
    %v4153 = vpop.f32.mrf.mxu0
    %v4154 = vadd.f32 %v4113, %v4153
    %4155 = vmatmul.f32.gmra.mxu0 %v927
    %v4156 = vpop.f32.mrf.mxu0
    %v4157 = vadd.f32 %v4116, %v4156
    %4158 = vmatmul.f32.gmra.mxu0 %v1041
    %v4159 = vpop.f32.mrf.mxu0
    %v4160 = vadd.f32 %v4119, %v4159
    %4161 = vmatmul.f32.gmra.mxu0 %v1155
    %v4162 = vpop.f32.mrf.mxu0
    %v4163 = vadd.f32 %v4122, %v4162
    %4164 = vmatmul.f32.gmra.mxu0 %v1269
    %v4165 = vpop.f32.mrf.mxu0
    %v4166 = vadd.f32 %v4125, %v4165
    %4167 = vdwg.mxu0
    %v4168 = vperm.slane %v61, 0
    %v4169 = vadd.f32 %v4145, %v4168
    %v4170 = vadd.f32 %v4148, %v4168
    %v4171 = vadd.f32 %v4151, %v4168
    %v4172 = vadd.f32 %v4154, %v4168
    %v4173 = vadd.f32 %v4157, %v4168
    %v4174 = vadd.f32 %v4160, %v4168
    %v4175 = vadd.f32 %v4163, %v4168
    %v4176 = vadd.f32 %v4166, %v4168
    %vm4177 = vcmp.gt.f32.partialorder %v4169, 0.0
    %vm4178 = vcmp.gt.f32.partialorder %v4170, 0.0
    %vm4179 = vcmp.gt.f32.partialorder %v4171, 0.0
    %vm4180 = vcmp.gt.f32.partialorder %v4172, 0.0
    %vm4181 = vcmp.gt.f32.partialorder %v4173, 0.0
    %vm4182 = vcmp.gt.f32.partialorder %v4174, 0.0
    %vm4183 = vcmp.gt.f32.partialorder %v4175, 0.0
    %vm4184 = vcmp.gt.f32.partialorder %v4176, 0.0
    %v4185 = vmul.f32 %v4169, 0.01
    %v4186 = vmul.f32 %v4170, 0.01
    %v4187 = vmul.f32 %v4171, 0.01
    %v4188 = vmul.f32 %v4172, 0.01
    %v4189 = vmul.f32 %v4173, 0.01
    %v4190 = vmul.f32 %v4174, 0.01
    %v4191 = vmul.f32 %v4175, 0.01
    %v4192 = vmul.f32 %v4176, 0.01
    %v4193 = vsel %vm4177, %v4169, %v4185
    %v4194 = vsel %vm4178, %v4170, %v4186
    %v4195 = vsel %vm4179, %v4171, %v4187
    %v4196 = vsel %vm4180, %v4172, %v4188
    %v4197 = vsel %vm4181, %v4173, %v4189
    %v4198 = vsel %vm4182, %v4174, %v4190
    %v4199 = vsel %vm4183, %v4175, %v4191
    %v4200 = vsel %vm4184, %v4176, %v4192
    %v4201 = vperm.slane %v62, 0
    %v4203 = vsel %vm2804, %v4193, 0
    %v4206 = vsel %vm2804, %v4194, 0
    %v4209 = vsel %vm2804, %v4195, 0
    %v4212 = vsel %vm2804, %v4196, 0
    %v4215 = vsel %vm2804, %v4197, 0
    %v4218 = vsel %vm2804, %v4198, 0
    %v4221 = vsel %vm2804, %v4199, 0
    %v4224 = vsel %vm2804, %v4200, 0
    %4226 = vmatpush.msra.mxu0 0.0
    %4227 = vmatpush.msra.mxu0 0.0
    %4228 = vmatpush.msra.mxu0 0.0
    %4229 = vmatpush.msra.mxu0 0.0
    %4230 = vmatpush.msra.mxu0 0.0
    %4231 = vmatpush.msra.mxu0 0.0
    %4232 = vmatpush.msra.mxu0 0.0
    %4233 = vmatpush.msra.mxu0 0.0
    %4234 = vmatpush.msra.mxu0 0.0
    %4235 = vmatpush.msra.mxu0 0.0
    %4236 = vmatpush.msra.mxu0 0.0
    %4237 = vmatpush.msra.mxu0 0.0
    %4238 = vmatpush.msra.mxu0 %v4073
    %4239 = vmatpush.msra.mxu0 %v4072
    %4240 = vmatpush.msra.mxu0 %v4071
    %4241 = vmatpush.msra.mxu0 %v4070
    %4242 = vmatmul.f32.gmra.mxu0 %v4203
    %v4243 = vpop.f32.mrf.mxu0
    %v4244 = vadd.f32 %v4201, %v4243
    %4245 = vmatmul.f32.gmra.mxu0 %v4206
    %v4246 = vpop.f32.mrf.mxu0
    %v4247 = vadd.f32 %v4201, %v4246
    %4248 = vmatmul.f32.gmra.mxu0 %v4209
    %v4249 = vpop.f32.mrf.mxu0
    %v4250 = vadd.f32 %v4201, %v4249
    %4251 = vmatmul.f32.gmra.mxu0 %v4212
    %v4252 = vpop.f32.mrf.mxu0
    %v4253 = vadd.f32 %v4201, %v4252
    %4254 = vmatmul.f32.gmra.mxu0 %v4215
    %v4255 = vpop.f32.mrf.mxu0
    %v4256 = vadd.f32 %v4201, %v4255
    %4257 = vmatmul.f32.gmra.mxu0 %v4218
    %v4258 = vpop.f32.mrf.mxu0
    %v4259 = vadd.f32 %v4201, %v4258
    %4260 = vmatmul.f32.gmra.mxu0 %v4221
    %v4261 = vpop.f32.mrf.mxu0
    %v4262 = vadd.f32 %v4201, %v4261
    %4263 = vmatmul.f32.gmra.mxu0 %v4224
    %v4264 = vpop.f32.mrf.mxu0
    %v4265 = vadd.f32 %v4201, %v4264
    %4266 = vdwg.mxu0
    %vm4267 = vcmp.gt.f32.partialorder %v4244, 0.0
    %vm4268 = vcmp.gt.f32.partialorder %v4247, 0.0
    %vm4269 = vcmp.gt.f32.partialorder %v4250, 0.0
    %vm4270 = vcmp.gt.f32.partialorder %v4253, 0.0
    %vm4271 = vcmp.gt.f32.partialorder %v4256, 0.0
    %vm4272 = vcmp.gt.f32.partialorder %v4259, 0.0
    %vm4273 = vcmp.gt.f32.partialorder %v4262, 0.0
    %vm4274 = vcmp.gt.f32.partialorder %v4265, 0.0
    %v4275 = vmul.f32 %v4244, 0.01
    %v4276 = vmul.f32 %v4247, 0.01
    %v4277 = vmul.f32 %v4250, 0.01
    %v4278 = vmul.f32 %v4253, 0.01
    %v4279 = vmul.f32 %v4256, 0.01
    %v4280 = vmul.f32 %v4259, 0.01
    %v4281 = vmul.f32 %v4262, 0.01
    %v4282 = vmul.f32 %v4265, 0.01
    %v4283 = vsel %vm4267, %v4244, %v4275
    %v4284 = vsel %vm4268, %v4247, %v4276
    %v4285 = vsel %vm4269, %v4250, %v4277
    %v4286 = vsel %vm4270, %v4253, %v4278
    %v4287 = vsel %vm4271, %v4256, %v4279
    %v4288 = vsel %vm4272, %v4259, %v4280
    %v4289 = vsel %vm4273, %v4262, %v4281
    %v4290 = vsel %vm4274, %v4265, %v4282
    %v4291 = vperm.slane %v63, 0
    %v4293 = vsel %vm2804, %v4283, 0
    %v4296 = vsel %vm2804, %v4284, 0
    %v4299 = vsel %vm2804, %v4285, 0
    %v4302 = vsel %vm2804, %v4286, 0
    %v4305 = vsel %vm2804, %v4287, 0
    %v4308 = vsel %vm2804, %v4288, 0
    %v4311 = vsel %vm2804, %v4289, 0
    %v4314 = vsel %vm2804, %v4290, 0
    %4316 = vmatpush.msra.mxu0 0.0
    %4317 = vmatpush.msra.mxu0 0.0
    %4318 = vmatpush.msra.mxu0 0.0
    %4319 = vmatpush.msra.mxu0 0.0
    %4320 = vmatpush.msra.mxu0 0.0
    %4321 = vmatpush.msra.mxu0 0.0
    %4322 = vmatpush.msra.mxu0 0.0
    %4323 = vmatpush.msra.mxu0 0.0
    %4324 = vmatpush.msra.mxu0 0.0
    %4325 = vmatpush.msra.mxu0 0.0
    %4326 = vmatpush.msra.mxu0 0.0
    %4327 = vmatpush.msra.mxu0 0.0
    %4328 = vmatpush.msra.mxu0 %v4077
    %4329 = vmatpush.msra.mxu0 %v4076
    %4330 = vmatpush.msra.mxu0 %v4075
    %4331 = vmatpush.msra.mxu0 %v4074
    %4332 = vmatmul.f32.gmra.mxu0 %v4293
    %v4333 = vpop.f32.mrf.mxu0
    %v4334 = vadd.f32 %v4291, %v4333
    %4335 = vmatmul.f32.gmra.mxu0 %v4296
    %v4336 = vpop.f32.mrf.mxu0
    %v4337 = vadd.f32 %v4291, %v4336
    %4338 = vmatmul.f32.gmra.mxu0 %v4299
    %v4339 = vpop.f32.mrf.mxu0
    %v4340 = vadd.f32 %v4291, %v4339
    %4341 = vmatmul.f32.gmra.mxu0 %v4302
    %v4342 = vpop.f32.mrf.mxu0
    %v4343 = vadd.f32 %v4291, %v4342
    %4344 = vmatmul.f32.gmra.mxu0 %v4305
    %v4345 = vpop.f32.mrf.mxu0
    %v4346 = vadd.f32 %v4291, %v4345
    %4347 = vmatmul.f32.gmra.mxu0 %v4308
    %v4348 = vpop.f32.mrf.mxu0
    %v4349 = vadd.f32 %v4291, %v4348
    %4350 = vmatmul.f32.gmra.mxu0 %v4311
    %v4351 = vpop.f32.mrf.mxu0
    %v4352 = vadd.f32 %v4291, %v4351
    %4353 = vmatmul.f32.gmra.mxu0 %v4314
    %v4354 = vpop.f32.mrf.mxu0
    %v4355 = vadd.f32 %v4291, %v4354
    %4356 = vdwg.mxu0
    %vm4357 = vcmp.gt.f32.partialorder %v4334, 0.0
    %vm4358 = vcmp.gt.f32.partialorder %v4337, 0.0
    %vm4359 = vcmp.gt.f32.partialorder %v4340, 0.0
    %vm4360 = vcmp.gt.f32.partialorder %v4343, 0.0
    %vm4361 = vcmp.gt.f32.partialorder %v4346, 0.0
    %vm4362 = vcmp.gt.f32.partialorder %v4349, 0.0
    %vm4363 = vcmp.gt.f32.partialorder %v4352, 0.0
    %vm4364 = vcmp.gt.f32.partialorder %v4355, 0.0
    %v4365 = vmul.f32 %v4334, 0.01
    %v4366 = vmul.f32 %v4337, 0.01
    %v4367 = vmul.f32 %v4340, 0.01
    %v4368 = vmul.f32 %v4343, 0.01
    %v4369 = vmul.f32 %v4346, 0.01
    %v4370 = vmul.f32 %v4349, 0.01
    %v4371 = vmul.f32 %v4352, 0.01
    %v4372 = vmul.f32 %v4355, 0.01
    %v4373 = vsel %vm4357, %v4334, %v4365
    %v4374 = vsel %vm4358, %v4337, %v4366
    %v4375 = vsel %vm4359, %v4340, %v4367
    %v4376 = vsel %vm4360, %v4343, %v4368
    %v4377 = vsel %vm4361, %v4346, %v4369
    %v4378 = vsel %vm4362, %v4349, %v4370
    %v4379 = vsel %vm4363, %v4352, %v4371
    %v4380 = vsel %vm4364, %v4355, %v4372
    %v4382 = vsel %vm2804, %v4373, 0
    %v4385 = vsel %vm2804, %v4374, 0
    %v4388 = vsel %vm2804, %v4375, 0
    %v4391 = vsel %vm2804, %v4376, 0
    %v4394 = vsel %vm2804, %v4377, 0
    %v4397 = vsel %vm2804, %v4378, 0
    %v4400 = vsel %vm2804, %v4379, 0
    %v4403 = vsel %vm2804, %v4380, 0
    %4405 = vmatpush.msra.mxu0 0.0
    %4406 = vmatpush.msra.mxu0 0.0
    %4407 = vmatpush.msra.mxu0 0.0
    %4408 = vmatpush.msra.mxu0 0.0
    %4409 = vmatpush.msra.mxu0 0.0
    %4410 = vmatpush.msra.mxu0 0.0
    %4411 = vmatpush.msra.mxu0 0.0
    %4412 = vmatpush.msra.mxu0 0.0
    %4413 = vmatpush.msra.mxu0 0.0
    %4414 = vmatpush.msra.mxu0 0.0
    %4415 = vmatpush.msra.mxu0 0.0
    %4416 = vmatpush.msra.mxu0 0.0
    %4417 = vmatpush.msra.mxu0 %v4084
    %4418 = vmatpush.msra.mxu0 %v4082
    %4419 = vmatpush.msra.mxu0 %v4080
    %4420 = vmatpush.msra.mxu0 %v4078
    %4421 = vmatmul.f32.gmra.mxu0 %v4382
    %v4422 = vpop.f32.mrf.mxu0
    %v4423 = vadd.f32 0.0, %v4422
    %4424 = vmatmul.f32.gmra.mxu0 %v4385
    %v4425 = vpop.f32.mrf.mxu0
    %v4426 = vadd.f32 0.0, %v4425
    %4427 = vmatmul.f32.gmra.mxu0 %v4388
    %v4428 = vpop.f32.mrf.mxu0
    %v4429 = vadd.f32 0.0, %v4428
    %4430 = vmatmul.f32.gmra.mxu0 %v4391
    %v4431 = vpop.f32.mrf.mxu0
    %v4432 = vadd.f32 0.0, %v4431
    %4433 = vmatmul.f32.gmra.mxu0 %v4394
    %v4434 = vpop.f32.mrf.mxu0
    %v4435 = vadd.f32 0.0, %v4434
    %4436 = vmatmul.f32.gmra.mxu0 %v4397
    %v4437 = vpop.f32.mrf.mxu0
    %v4438 = vadd.f32 0.0, %v4437
    %4439 = vmatmul.f32.gmra.mxu0 %v4400
    %v4440 = vpop.f32.mrf.mxu0
    %v4441 = vadd.f32 0.0, %v4440
    %4442 = vmatmul.f32.gmra.mxu0 %v4403
    %v4443 = vpop.f32.mrf.mxu0
    %v4444 = vadd.f32 0.0, %v4443
    %4445 = vdwg.mxu0
    %4446 = vmatpush.msra.mxu0 0.0
    %4447 = vmatpush.msra.mxu0 0.0
    %4448 = vmatpush.msra.mxu0 0.0
    %4449 = vmatpush.msra.mxu0 0.0
    %4450 = vmatpush.msra.mxu0 0.0
    %4451 = vmatpush.msra.mxu0 0.0
    %4452 = vmatpush.msra.mxu0 0.0
    %4453 = vmatpush.msra.mxu0 0.0
    %4454 = vmatpush.msra.mxu0 0.0
    %4455 = vmatpush.msra.mxu0 0.0
    %4456 = vmatpush.msra.mxu0 0.0
    %4457 = vmatpush.msra.mxu0 0.0
    %4458 = vmatpush.msra.mxu0 %v4085
    %4459 = vmatpush.msra.mxu0 %v4083
    %4460 = vmatpush.msra.mxu0 %v4081
    %4461 = vmatpush.msra.mxu0 %v4079
    %4462 = vmatmul.f32.gmra.mxu0 %v4382
    %v4463 = vpop.f32.mrf.mxu0
    %v4464 = vadd.f32 0.0, %v4463
    %4465 = vmatmul.f32.gmra.mxu0 %v4385
    %v4466 = vpop.f32.mrf.mxu0
    %v4467 = vadd.f32 0.0, %v4466
    %4468 = vmatmul.f32.gmra.mxu0 %v4388
    %v4469 = vpop.f32.mrf.mxu0
    %v4470 = vadd.f32 0.0, %v4469
    %4471 = vmatmul.f32.gmra.mxu0 %v4391
    %v4472 = vpop.f32.mrf.mxu0
    %v4473 = vadd.f32 0.0, %v4472
    %4474 = vmatmul.f32.gmra.mxu0 %v4394
    %v4475 = vpop.f32.mrf.mxu0
    %v4476 = vadd.f32 0.0, %v4475
    %4477 = vmatmul.f32.gmra.mxu0 %v4397
    %v4478 = vpop.f32.mrf.mxu0
    %v4479 = vadd.f32 0.0, %v4478
    %4480 = vmatmul.f32.gmra.mxu0 %v4400
    %v4481 = vpop.f32.mrf.mxu0
    %v4482 = vadd.f32 0.0, %v4481
    %4483 = vmatmul.f32.gmra.mxu0 %v4403
    %v4484 = vpop.f32.mrf.mxu0
    %v4485 = vadd.f32 0.0, %v4484
    %4486 = vdwg.mxu0
    %v4487 = vperm.slane %v69, 0
    %v4488 = vadd.f32 %v4423, %v4487
    %v4489 = vadd.f32 %v4426, %v4487
    %v4490 = vadd.f32 %v4429, %v4487
    %v4491 = vadd.f32 %v4432, %v4487
    %v4492 = vadd.f32 %v4435, %v4487
    %v4493 = vadd.f32 %v4438, %v4487
    %v4494 = vadd.f32 %v4441, %v4487
    %v4495 = vadd.f32 %v4444, %v4487
    %v4496 = vperm.slane %v70, 0
    %v4497 = vadd.f32 %v4464, %v4496
    %v4498 = vadd.f32 %v4467, %v4496
    %v4499 = vadd.f32 %v4470, %v4496
    %v4500 = vadd.f32 %v4473, %v4496
    %v4501 = vadd.f32 %v4476, %v4496
    %v4502 = vadd.f32 %v4479, %v4496
    %v4503 = vadd.f32 %v4482, %v4496
    %v4504 = vadd.f32 %v4485, %v4496
    %v4505 = vmax.f32 %v4497, 0.0
    %v4506 = vmax.f32 %v4498, 0.0
    %v4507 = vmax.f32 %v4499, 0.0
    %v4508 = vmax.f32 %v4500, 0.0
    %v4509 = vmax.f32 %v4501, 0.0
    %v4510 = vmax.f32 %v4502, 0.0
    %v4511 = vmax.f32 %v4503, 0.0
    %v4512 = vmax.f32 %v4504, 0.0
    %vm4513 = vcmp.ne.f32.partialorder %v4497, %v4497
    %vm4514 = vcmp.ne.f32.partialorder %v4498, %v4498
    %vm4515 = vcmp.ne.f32.partialorder %v4499, %v4499
    %vm4516 = vcmp.ne.f32.partialorder %v4500, %v4500
    %vm4517 = vcmp.ne.f32.partialorder %v4501, %v4501
    %vm4518 = vcmp.ne.f32.partialorder %v4502, %v4502
    %vm4519 = vcmp.ne.f32.partialorder %v4503, %v4503
    %vm4520 = vcmp.ne.f32.partialorder %v4504, %v4504
    %v4521 = vadd.f32 %v4497, 0.0
    %v4522 = vadd.f32 %v4498, 0.0
    %v4523 = vadd.f32 %v4499, 0.0
    %v4524 = vadd.f32 %v4500, 0.0
    %v4525 = vadd.f32 %v4501, 0.0
    %v4526 = vadd.f32 %v4502, 0.0
    %v4527 = vadd.f32 %v4503, 0.0
    %v4528 = vadd.f32 %v4504, 0.0
    %v4529 = vand.u32 2147483647, %v4497
    %v4530 = vand.u32 2147483647, %v4498
    %v4531 = vand.u32 2147483647, %v4499
    %v4532 = vand.u32 2147483647, %v4500
    %v4533 = vand.u32 2147483647, %v4501
    %v4534 = vand.u32 2147483647, %v4502
    %v4535 = vand.u32 2147483647, %v4503
    %v4536 = vand.u32 2147483647, %v4504
    %v4537 = vsub.f32 0.0, %v4529
    %v4538 = vsub.f32 0.0, %v4530
    %v4539 = vsub.f32 0.0, %v4531
    %v4540 = vsub.f32 0.0, %v4532
    %v4541 = vsub.f32 0.0, %v4533
    %v4542 = vsub.f32 0.0, %v4534
    %v4543 = vsub.f32 0.0, %v4535
    %v4544 = vsub.f32 0.0, %v4536
    %v4545 = vmul.f32 %v4537, 1.442695
    %v4546 = vpow.pop %v4545
    %v4547 = vmul.f32 %v4538, 1.442695
    %v4548 = vpow.pop %v4547
    %v4549 = vmul.f32 %v4539, 1.442695
    %v4550 = vpow.pop %v4549
    %v4551 = vmul.f32 %v4540, 1.442695
    %v4552 = vpow.pop %v4551
    %v4553 = vmul.f32 %v4541, 1.442695
    %v4554 = vpow.pop %v4553
    %v4555 = vmul.f32 %v4542, 1.442695
    %v4556 = vpow.pop %v4555
    %v4557 = vmul.f32 %v4543, 1.442695
    %v4558 = vpow.pop %v4557
    %v4559 = vmul.f32 %v4544, 1.442695
    %v4560 = vpow.pop %v4559
    %v4561 = vadd.f32 %v4546, 1.0
    %v4562 = vlog2.pop %v4561
    %v4563 = vmul.f32 %v4562, 0.6931472
    %v4564 = vmul.f32 -0.5, %v4546
    %v4565 = vadd.f32 %v4564, 1.0
    %v4566 = vmul.f32 %v4565, %v4546
    %v4567 = vand.u32 2147483647, %v4546
    %vm4568 = vcmp.lt.f32.partialorder %v4567, 0.0004427343
    %v4569 = vsel %vm4568, %v4566, %v4563
    %v4570 = vadd.f32 %v4548, 1.0
    %v4571 = vlog2.pop %v4570
    %v4572 = vmul.f32 %v4571, 0.6931472
    %v4573 = vmul.f32 -0.5, %v4548
    %v4574 = vadd.f32 %v4573, 1.0
    %v4575 = vmul.f32 %v4574, %v4548
    %v4576 = vand.u32 2147483647, %v4548
    %vm4577 = vcmp.lt.f32.partialorder %v4576, 0.0004427343
    %v4578 = vsel %vm4577, %v4575, %v4572
    %v4579 = vadd.f32 %v4550, 1.0
    %v4580 = vlog2.pop %v4579
    %v4581 = vmul.f32 %v4580, 0.6931472
    %v4582 = vmul.f32 -0.5, %v4550
    %v4583 = vadd.f32 %v4582, 1.0
    %v4584 = vmul.f32 %v4583, %v4550
    %v4585 = vand.u32 2147483647, %v4550
    %vm4586 = vcmp.lt.f32.partialorder %v4585, 0.0004427343
    %v4587 = vsel %vm4586, %v4584, %v4581
    %v4588 = vadd.f32 %v4552, 1.0
    %v4589 = vlog2.pop %v4588
    %v4590 = vmul.f32 %v4589, 0.6931472
    %v4591 = vmul.f32 -0.5, %v4552
    %v4592 = vadd.f32 %v4591, 1.0
    %v4593 = vmul.f32 %v4592, %v4552
    %v4594 = vand.u32 2147483647, %v4552
    %vm4595 = vcmp.lt.f32.partialorder %v4594, 0.0004427343
    %v4596 = vsel %vm4595, %v4593, %v4590
    %v4597 = vadd.f32 %v4554, 1.0
    %v4598 = vlog2.pop %v4597
    %v4599 = vmul.f32 %v4598, 0.6931472
    %v4600 = vmul.f32 -0.5, %v4554
    %v4601 = vadd.f32 %v4600, 1.0
    %v4602 = vmul.f32 %v4601, %v4554
    %v4603 = vand.u32 2147483647, %v4554
    %vm4604 = vcmp.lt.f32.partialorder %v4603, 0.0004427343
    %v4605 = vsel %vm4604, %v4602, %v4599
    %v4606 = vadd.f32 %v4556, 1.0
    %v4607 = vlog2.pop %v4606
    %v4608 = vmul.f32 %v4607, 0.6931472
    %v4609 = vmul.f32 -0.5, %v4556
    %v4610 = vadd.f32 %v4609, 1.0
    %v4611 = vmul.f32 %v4610, %v4556
    %v4612 = vand.u32 2147483647, %v4556
    %vm4613 = vcmp.lt.f32.partialorder %v4612, 0.0004427343
    %v4614 = vsel %vm4613, %v4611, %v4608
    %v4615 = vadd.f32 %v4558, 1.0
    %v4616 = vlog2.pop %v4615
    %v4617 = vmul.f32 %v4616, 0.6931472
    %v4618 = vmul.f32 -0.5, %v4558
    %v4619 = vadd.f32 %v4618, 1.0
    %v4620 = vmul.f32 %v4619, %v4558
    %v4621 = vand.u32 2147483647, %v4558
    %vm4622 = vcmp.lt.f32.partialorder %v4621, 0.0004427343
    %v4623 = vsel %vm4622, %v4620, %v4617
    %v4624 = vadd.f32 %v4560, 1.0
    %v4625 = vlog2.pop %v4624
    %v4626 = vmul.f32 %v4625, 0.6931472
    %v4627 = vmul.f32 -0.5, %v4560
    %v4628 = vadd.f32 %v4627, 1.0
    %v4629 = vmul.f32 %v4628, %v4560
    %v4630 = vand.u32 2147483647, %v4560
    %vm4631 = vcmp.lt.f32.partialorder %v4630, 0.0004427343
    %v4632 = vsel %vm4631, %v4629, %v4626
    %v4633 = vadd.f32 %v4505, %v4569
    %v4634 = vadd.f32 %v4506, %v4578
    %v4635 = vadd.f32 %v4507, %v4587
    %v4636 = vadd.f32 %v4508, %v4596
    %v4637 = vadd.f32 %v4509, %v4605
    %v4638 = vadd.f32 %v4510, %v4614
    %v4639 = vadd.f32 %v4511, %v4623
    %v4640 = vadd.f32 %v4512, %v4632
    %v4641 = vsel %vm4513, %v4521, %v4633
    %v4642 = vsel %vm4514, %v4522, %v4634
    %v4643 = vsel %vm4515, %v4523, %v4635
    %v4644 = vsel %vm4516, %v4524, %v4636
    %v4645 = vsel %vm4517, %v4525, %v4637
    %v4646 = vsel %vm4518, %v4526, %v4638
    %v4647 = vsel %vm4519, %v4527, %v4639
    %v4648 = vsel %vm4520, %v4528, %v4640
    %v4649 = vadd.f32 %v4641, 1e-06
    %v4650 = vadd.f32 %v4642, 1e-06
    %v4651 = vadd.f32 %v4643, 1e-06
    %v4652 = vadd.f32 %v4644, 1e-06
    %v4653 = vadd.f32 %v4645, 1e-06
    %v4654 = vadd.f32 %v4646, 1e-06
    %v4655 = vadd.f32 %v4647, 1e-06
    %v4656 = vadd.f32 %v4648, 1e-06
    %v4657 = vld [vmem:[%s5 + $0x110] sm:$0xff]
    %v4658 = vld [vmem:[%s5 + $0x118] sm:$0xff]
    %v4659 = vld [vmem:[%s5 + $0x120] sm:$0xff]
    %v4660 = vld [vmem:[%s5 + $0x128] sm:$0xff]
    %v4661 = vld [vmem:[%s5 + $0x130] sm:$0xff]
    %v4662 = vld [vmem:[%s5 + $0x138] sm:$0xff]
    %v4663 = vld [vmem:[%s5 + $0x140] sm:$0xff]
    %v4664 = vld [vmem:[%s5 + $0x148] sm:$0xff]
    %v4665 = vld [vmem:[%s5 + $0x150] sm:$0xff]
    %v4666 = vld [vmem:[%s5 + $0x158] sm:$0xff]
    %v4667 = vld [vmem:[%s5 + $0x160] sm:$0xff]
    %v4668 = vld [vmem:[%s5 + $0x168] sm:$0xff]
    %v4669 = vld [vmem:[%s5 + $0x170] sm:$0xff]
    %v4670 = vld [vmem:[%s6 + $0x80] sm:$0xff]
    %v4671 = vld [vmem:[%s6 + $0x88] sm:$0xff]
    %v4672 = vld [vmem:[%s6 + $0x90] sm:$0xff]
    %v4673 = vld [vmem:[%s6 + $0x98] sm:$0xff]
    %v4674 = vld [vmem:[%s6 + $0xa0] sm:$0xff]
    %v4675 = vld [vmem:[%s6 + $0xa8] sm:$0xff]
    %v4676 = vld [vmem:[%s6 + $0xb0] sm:$0xff]
    %v4677 = vld [vmem:[%s6 + $0xb8] sm:$0xff]
    %4678 = vmatpush.msra.mxu0 0.0
    %4679 = vmatpush.msra.mxu0 0.0
    %4680 = vmatpush.msra.mxu0 0.0
    %4681 = vmatpush.msra.mxu0 0.0
    %4682 = vmatpush.msra.mxu0 0.0
    %4683 = vmatpush.msra.mxu0 0.0
    %4684 = vmatpush.msra.mxu0 0.0
    %4685 = vmatpush.msra.mxu0 0.0
    %4686 = vmatpush.msra.mxu0 %v4665
    %4687 = vmatpush.msra.mxu0 %v4664
    %4688 = vmatpush.msra.mxu0 %v4663
    %4689 = vmatpush.msra.mxu0 %v4662
    %4690 = vmatpush.msra.mxu0 %v4661
    %4691 = vmatpush.msra.mxu0 %v4660
    %4692 = vmatpush.msra.mxu0 %v4659
    %4693 = vmatpush.msra.mxu0 %v4658
    %4694 = vmatmul.f32.gmra.mxu0 %v471
    %v4695 = vpop.f32.mrf.mxu0
    %v4696 = vadd.f32 0.0, %v4695
    %4697 = vmatmul.f32.gmra.mxu0 %v585
    %v4698 = vpop.f32.mrf.mxu0
    %v4699 = vadd.f32 0.0, %v4698
    %4700 = vmatmul.f32.gmra.mxu0 %v699
    %v4701 = vpop.f32.mrf.mxu0
    %v4702 = vadd.f32 0.0, %v4701
    %4703 = vmatmul.f32.gmra.mxu0 %v813
    %v4704 = vpop.f32.mrf.mxu0
    %v4705 = vadd.f32 0.0, %v4704
    %4706 = vmatmul.f32.gmra.mxu0 %v927
    %v4707 = vpop.f32.mrf.mxu0
    %v4708 = vadd.f32 0.0, %v4707
    %4709 = vmatmul.f32.gmra.mxu0 %v1041
    %v4710 = vpop.f32.mrf.mxu0
    %v4711 = vadd.f32 0.0, %v4710
    %4712 = vmatmul.f32.gmra.mxu0 %v1155
    %v4713 = vpop.f32.mrf.mxu0
    %v4714 = vadd.f32 0.0, %v4713
    %4715 = vmatmul.f32.gmra.mxu0 %v1269
    %v4716 = vpop.f32.mrf.mxu0
    %v4717 = vadd.f32 0.0, %v4716
    %4718 = vdwg.mxu0
    %v4720 = vsel %vm2901, %v4060, 0
    %4722 = vmatpush.msra.mxu0 0.0
    %4723 = vmatpush.msra.mxu0 0.0
    %4724 = vmatpush.msra.mxu0 0.0
    %4725 = vmatpush.msra.mxu0 0.0
    %4726 = vmatpush.msra.mxu0 0.0
    %4727 = vmatpush.msra.mxu0 0.0
    %4728 = vmatpush.msra.mxu0 0.0
    %4729 = vmatpush.msra.mxu0 0.0
    %4730 = vmatpush.msra.mxu0 0.0
    %4731 = vmatpush.msra.mxu0 0.0
    %4732 = vmatpush.msra.mxu0 0.0
    %4733 = vmatpush.msra.mxu0 0.0
    %4734 = vmatpush.msra.mxu0 0.0
    %4735 = vmatpush.msra.mxu0 0.0
    %4736 = vmatpush.msra.mxu0 0.0
    %4737 = vmatpush.msra.mxu0 %v4657
    %4738 = vmatmul.f32.gmra.mxu0 %v3047
    %v4739 = vpop.f32.mrf.mxu0
    %v4740 = vadd.f32 %v4696, %v4739
    %4741 = vmatmul.f32.gmra.mxu0 %v3192
    %v4742 = vpop.f32.mrf.mxu0
    %v4743 = vadd.f32 %v4699, %v4742
    %4744 = vmatmul.f32.gmra.mxu0 %v3337
    %v4745 = vpop.f32.mrf.mxu0
    %v4746 = vadd.f32 %v4702, %v4745
    %4747 = vmatmul.f32.gmra.mxu0 %v3482
    %v4748 = vpop.f32.mrf.mxu0
    %v4749 = vadd.f32 %v4705, %v4748
    %4750 = vmatmul.f32.gmra.mxu0 %v3627
    %v4751 = vpop.f32.mrf.mxu0
    %v4752 = vadd.f32 %v4708, %v4751
    %4753 = vmatmul.f32.gmra.mxu0 %v3772
    %v4754 = vpop.f32.mrf.mxu0
    %v4755 = vadd.f32 %v4711, %v4754
    %4756 = vmatmul.f32.gmra.mxu0 %v3917
    %v4757 = vpop.f32.mrf.mxu0
    %v4758 = vadd.f32 %v4714, %v4757
    %4759 = vmatmul.f32.gmra.mxu0 %v4720
    %v4760 = vpop.f32.mrf.mxu0
    %v4761 = vadd.f32 %v4717, %v4760
    %4762 = vdwg.mxu0
    %v4763 = vperm.slane %v55, 0
    %v4764 = vadd.f32 %v4740, %v4763
    %v4765 = vadd.f32 %v4743, %v4763
    %v4766 = vadd.f32 %v4746, %v4763
    %v4767 = vadd.f32 %v4749, %v4763
    %v4768 = vadd.f32 %v4752, %v4763
    %v4769 = vadd.f32 %v4755, %v4763
    %v4770 = vadd.f32 %v4758, %v4763
    %v4771 = vadd.f32 %v4761, %v4763
    %vm4772 = vcmp.gt.f32.partialorder %v4764, 0.0
    %vm4773 = vcmp.gt.f32.partialorder %v4765, 0.0
    %vm4774 = vcmp.gt.f32.partialorder %v4766, 0.0
    %vm4775 = vcmp.gt.f32.partialorder %v4767, 0.0
    %vm4776 = vcmp.gt.f32.partialorder %v4768, 0.0
    %vm4777 = vcmp.gt.f32.partialorder %v4769, 0.0
    %vm4778 = vcmp.gt.f32.partialorder %v4770, 0.0
    %vm4779 = vcmp.gt.f32.partialorder %v4771, 0.0
    %v4780 = vmul.f32 %v4764, 0.01
    %v4781 = vmul.f32 %v4765, 0.01
    %v4782 = vmul.f32 %v4766, 0.01
    %v4783 = vmul.f32 %v4767, 0.01
    %v4784 = vmul.f32 %v4768, 0.01
    %v4785 = vmul.f32 %v4769, 0.01
    %v4786 = vmul.f32 %v4770, 0.01
    %v4787 = vmul.f32 %v4771, 0.01
    %v4788 = vsel %vm4772, %v4764, %v4780
    %v4789 = vsel %vm4773, %v4765, %v4781
    %v4790 = vsel %vm4774, %v4766, %v4782
    %v4791 = vsel %vm4775, %v4767, %v4783
    %v4792 = vsel %vm4776, %v4768, %v4784
    %v4793 = vsel %vm4777, %v4769, %v4785
    %v4794 = vsel %vm4778, %v4770, %v4786
    %v4795 = vsel %vm4779, %v4771, %v4787
    %v4796 = vperm.slane %v67, 0
    %v4798 = vsel %vm2804, %v4788, 0
    %v4801 = vsel %vm2804, %v4789, 0
    %v4804 = vsel %vm2804, %v4790, 0
    %v4807 = vsel %vm2804, %v4791, 0
    %v4810 = vsel %vm2804, %v4792, 0
    %v4813 = vsel %vm2804, %v4793, 0
    %v4816 = vsel %vm2804, %v4794, 0
    %v4819 = vsel %vm2804, %v4795, 0
    %4821 = vmatpush.msra.mxu0 0.0
    %4822 = vmatpush.msra.mxu0 0.0
    %4823 = vmatpush.msra.mxu0 0.0
    %4824 = vmatpush.msra.mxu0 0.0
    %4825 = vmatpush.msra.mxu0 0.0
    %4826 = vmatpush.msra.mxu0 0.0
    %4827 = vmatpush.msra.mxu0 0.0
    %4828 = vmatpush.msra.mxu0 0.0
    %4829 = vmatpush.msra.mxu0 0.0
    %4830 = vmatpush.msra.mxu0 0.0
    %4831 = vmatpush.msra.mxu0 0.0
    %4832 = vmatpush.msra.mxu0 0.0
    %4833 = vmatpush.msra.mxu0 %v4669
    %4834 = vmatpush.msra.mxu0 %v4668
    %4835 = vmatpush.msra.mxu0 %v4667
    %4836 = vmatpush.msra.mxu0 %v4666
    %4837 = vmatmul.f32.gmra.mxu0 %v4798
    %v4838 = vpop.f32.mrf.mxu0
    %v4839 = vadd.f32 %v4796, %v4838
    %4840 = vmatmul.f32.gmra.mxu0 %v4801
    %v4841 = vpop.f32.mrf.mxu0
    %v4842 = vadd.f32 %v4796, %v4841
    %4843 = vmatmul.f32.gmra.mxu0 %v4804
    %v4844 = vpop.f32.mrf.mxu0
    %v4845 = vadd.f32 %v4796, %v4844
    %4846 = vmatmul.f32.gmra.mxu0 %v4807
    %v4847 = vpop.f32.mrf.mxu0
    %v4848 = vadd.f32 %v4796, %v4847
    %4849 = vmatmul.f32.gmra.mxu0 %v4810
    %v4850 = vpop.f32.mrf.mxu0
    %v4851 = vadd.f32 %v4796, %v4850
    %4852 = vmatmul.f32.gmra.mxu0 %v4813
    %v4853 = vpop.f32.mrf.mxu0
    %v4854 = vadd.f32 %v4796, %v4853
    %4855 = vmatmul.f32.gmra.mxu0 %v4816
    %v4856 = vpop.f32.mrf.mxu0
    %v4857 = vadd.f32 %v4796, %v4856
    %4858 = vmatmul.f32.gmra.mxu0 %v4819
    %v4859 = vpop.f32.mrf.mxu0
    %v4860 = vadd.f32 %v4796, %v4859
    %4861 = vdwg.mxu0
    %vm4862 = vcmp.gt.f32.partialorder %v4839, 0.0
    %vm4863 = vcmp.gt.f32.partialorder %v4842, 0.0
    %vm4864 = vcmp.gt.f32.partialorder %v4845, 0.0
    %vm4865 = vcmp.gt.f32.partialorder %v4848, 0.0
    %vm4866 = vcmp.gt.f32.partialorder %v4851, 0.0
    %vm4867 = vcmp.gt.f32.partialorder %v4854, 0.0
    %vm4868 = vcmp.gt.f32.partialorder %v4857, 0.0
    %vm4869 = vcmp.gt.f32.partialorder %v4860, 0.0
    %v4870 = vmul.f32 %v4839, 0.01
    %v4871 = vmul.f32 %v4842, 0.01
    %v4872 = vmul.f32 %v4845, 0.01
    %v4873 = vmul.f32 %v4848, 0.01
    %v4874 = vmul.f32 %v4851, 0.01
    %v4875 = vmul.f32 %v4854, 0.01
    %v4876 = vmul.f32 %v4857, 0.01
    %v4877 = vmul.f32 %v4860, 0.01
    %v4878 = vsel %vm4862, %v4839, %v4870
    %v4879 = vsel %vm4863, %v4842, %v4871
    %v4880 = vsel %vm4864, %v4845, %v4872
    %v4881 = vsel %vm4865, %v4848, %v4873
    %v4882 = vsel %vm4866, %v4851, %v4874
    %v4883 = vsel %vm4867, %v4854, %v4875
    %v4884 = vsel %vm4868, %v4857, %v4876
    %v4885 = vsel %vm4869, %v4860, %v4877
    %v4887 = vsel %vm2804, %v4878, 0
    %v4890 = vsel %vm2804, %v4879, 0
    %v4893 = vsel %vm2804, %v4880, 0
    %v4896 = vsel %vm2804, %v4881, 0
    %v4899 = vsel %vm2804, %v4882, 0
    %v4902 = vsel %vm2804, %v4883, 0
    %v4905 = vsel %vm2804, %v4884, 0
    %v4908 = vsel %vm2804, %v4885, 0
    %4910 = vmatpush.msra.mxu0 0.0
    %4911 = vmatpush.msra.mxu0 0.0
    %4912 = vmatpush.msra.mxu0 0.0
    %4913 = vmatpush.msra.mxu0 0.0
    %4914 = vmatpush.msra.mxu0 0.0
    %4915 = vmatpush.msra.mxu0 0.0
    %4916 = vmatpush.msra.mxu0 0.0
    %4917 = vmatpush.msra.mxu0 0.0
    %4918 = vmatpush.msra.mxu0 0.0
    %4919 = vmatpush.msra.mxu0 0.0
    %4920 = vmatpush.msra.mxu0 0.0
    %4921 = vmatpush.msra.mxu0 0.0
    %4922 = vmatpush.msra.mxu0 %v4676
    %4923 = vmatpush.msra.mxu0 %v4674
    %4924 = vmatpush.msra.mxu0 %v4672
    %4925 = vmatpush.msra.mxu0 %v4670
    %4926 = vmatmul.f32.gmra.mxu0 %v4887
    %v4927 = vpop.f32.mrf.mxu0
    %v4928 = vadd.f32 0.0, %v4927
    %4929 = vmatmul.f32.gmra.mxu0 %v4890
    %v4930 = vpop.f32.mrf.mxu0
    %v4931 = vadd.f32 0.0, %v4930
    %4932 = vmatmul.f32.gmra.mxu0 %v4893
    %v4933 = vpop.f32.mrf.mxu0
    %v4934 = vadd.f32 0.0, %v4933
    %4935 = vmatmul.f32.gmra.mxu0 %v4896
    %v4936 = vpop.f32.mrf.mxu0
    %v4937 = vadd.f32 0.0, %v4936
    %4938 = vmatmul.f32.gmra.mxu0 %v4899
    %v4939 = vpop.f32.mrf.mxu0
    %v4940 = vadd.f32 0.0, %v4939
    %4941 = vmatmul.f32.gmra.mxu0 %v4902
    %v4942 = vpop.f32.mrf.mxu0
    %v4943 = vadd.f32 0.0, %v4942
    %4944 = vmatmul.f32.gmra.mxu0 %v4905
    %v4945 = vpop.f32.mrf.mxu0
    %v4946 = vadd.f32 0.0, %v4945
    %4947 = vmatmul.f32.gmra.mxu0 %v4908
    %v4948 = vpop.f32.mrf.mxu0
    %v4949 = vadd.f32 0.0, %v4948
    %4950 = vdwg.mxu0
    %4951 = vmatpush.msra.mxu0 0.0
    %4952 = vmatpush.msra.mxu0 0.0
    %4953 = vmatpush.msra.mxu0 0.0
    %4954 = vmatpush.msra.mxu0 0.0
    %4955 = vmatpush.msra.mxu0 0.0
    %4956 = vmatpush.msra.mxu0 0.0
    %4957 = vmatpush.msra.mxu0 0.0
    %4958 = vmatpush.msra.mxu0 0.0
    %4959 = vmatpush.msra.mxu0 0.0
    %4960 = vmatpush.msra.mxu0 0.0
    %4961 = vmatpush.msra.mxu0 0.0
    %4962 = vmatpush.msra.mxu0 0.0
    %4963 = vmatpush.msra.mxu0 %v4677
    %4964 = vmatpush.msra.mxu0 %v4675
    %4965 = vmatpush.msra.mxu0 %v4673
    %4966 = vmatpush.msra.mxu0 %v4671
    %4967 = vmatmul.f32.gmra.mxu0 %v4887
    %v4968 = vpop.f32.mrf.mxu0
    %v4969 = vadd.f32 0.0, %v4968
    %4970 = vmatmul.f32.gmra.mxu0 %v4890
    %v4971 = vpop.f32.mrf.mxu0
    %v4972 = vadd.f32 0.0, %v4971
    %4973 = vmatmul.f32.gmra.mxu0 %v4893
    %v4974 = vpop.f32.mrf.mxu0
    %v4975 = vadd.f32 0.0, %v4974
    %4976 = vmatmul.f32.gmra.mxu0 %v4896
    %v4977 = vpop.f32.mrf.mxu0
    %v4978 = vadd.f32 0.0, %v4977
    %4979 = vmatmul.f32.gmra.mxu0 %v4899
    %v4980 = vpop.f32.mrf.mxu0
    %v4981 = vadd.f32 0.0, %v4980
    %4982 = vmatmul.f32.gmra.mxu0 %v4902
    %v4983 = vpop.f32.mrf.mxu0
    %v4984 = vadd.f32 0.0, %v4983
    %4985 = vmatmul.f32.gmra.mxu0 %v4905
    %v4986 = vpop.f32.mrf.mxu0
    %v4987 = vadd.f32 0.0, %v4986
    %4988 = vmatmul.f32.gmra.mxu0 %v4908
    %v4989 = vpop.f32.mrf.mxu0
    %v4990 = vadd.f32 0.0, %v4989
    %4991 = vdwg.mxu0
    %v4992 = vperm.slane %v74, 0
    %v4993 = vadd.f32 %v4928, %v4992
    %v4994 = vadd.f32 %v4931, %v4992
    %v4995 = vadd.f32 %v4934, %v4992
    %v4996 = vadd.f32 %v4937, %v4992
    %v4997 = vadd.f32 %v4940, %v4992
    %v4998 = vadd.f32 %v4943, %v4992
    %v4999 = vadd.f32 %v4946, %v4992
    %v5000 = vadd.f32 %v4949, %v4992
    %v5001 = vperm.slane %v75, 0
    %v5002 = vadd.f32 %v4969, %v5001
    %v5003 = vadd.f32 %v4972, %v5001
    %v5004 = vadd.f32 %v4975, %v5001
    %v5005 = vadd.f32 %v4978, %v5001
    %v5006 = vadd.f32 %v4981, %v5001
    %v5007 = vadd.f32 %v4984, %v5001
    %v5008 = vadd.f32 %v4987, %v5001
    %v5009 = vadd.f32 %v4990, %v5001
    %v5010 = vmax.f32 %v5002, 0.0
    %v5011 = vmax.f32 %v5003, 0.0
    %v5012 = vmax.f32 %v5004, 0.0
    %v5013 = vmax.f32 %v5005, 0.0
    %v5014 = vmax.f32 %v5006, 0.0
    %v5015 = vmax.f32 %v5007, 0.0
    %v5016 = vmax.f32 %v5008, 0.0
    %v5017 = vmax.f32 %v5009, 0.0
    %vm5018 = vcmp.ne.f32.partialorder %v5002, %v5002
    %vm5019 = vcmp.ne.f32.partialorder %v5003, %v5003
    %vm5020 = vcmp.ne.f32.partialorder %v5004, %v5004
    %vm5021 = vcmp.ne.f32.partialorder %v5005, %v5005
    %vm5022 = vcmp.ne.f32.partialorder %v5006, %v5006
    %vm5023 = vcmp.ne.f32.partialorder %v5007, %v5007
    %vm5024 = vcmp.ne.f32.partialorder %v5008, %v5008
    %vm5025 = vcmp.ne.f32.partialorder %v5009, %v5009
    %v5026 = vadd.f32 %v5002, 0.0
    %v5027 = vadd.f32 %v5003, 0.0
    %v5028 = vadd.f32 %v5004, 0.0
    %v5029 = vadd.f32 %v5005, 0.0
    %v5030 = vadd.f32 %v5006, 0.0
    %v5031 = vadd.f32 %v5007, 0.0
    %v5032 = vadd.f32 %v5008, 0.0
    %v5033 = vadd.f32 %v5009, 0.0
    %v5034 = vand.u32 2147483647, %v5002
    %v5035 = vand.u32 2147483647, %v5003
    %v5036 = vand.u32 2147483647, %v5004
    %v5037 = vand.u32 2147483647, %v5005
    %v5038 = vand.u32 2147483647, %v5006
    %v5039 = vand.u32 2147483647, %v5007
    %v5040 = vand.u32 2147483647, %v5008
    %v5041 = vand.u32 2147483647, %v5009
    %v5042 = vsub.f32 0.0, %v5034
    %v5043 = vsub.f32 0.0, %v5035
    %v5044 = vsub.f32 0.0, %v5036
    %v5045 = vsub.f32 0.0, %v5037
    %v5046 = vsub.f32 0.0, %v5038
    %v5047 = vsub.f32 0.0, %v5039
    %v5048 = vsub.f32 0.0, %v5040
    %v5049 = vsub.f32 0.0, %v5041
    %v5050 = vmul.f32 %v5042, 1.442695
    %v5051 = vpow.pop %v5050
    %v5052 = vmul.f32 %v5043, 1.442695
    %v5053 = vpow.pop %v5052
    %v5054 = vmul.f32 %v5044, 1.442695
    %v5055 = vpow.pop %v5054
    %v5056 = vmul.f32 %v5045, 1.442695
    %v5057 = vpow.pop %v5056
    %v5058 = vmul.f32 %v5046, 1.442695
    %v5059 = vpow.pop %v5058
    %v5060 = vmul.f32 %v5047, 1.442695
    %v5061 = vpow.pop %v5060
    %v5062 = vmul.f32 %v5048, 1.442695
    %v5063 = vpow.pop %v5062
    %v5064 = vmul.f32 %v5049, 1.442695
    %v5065 = vpow.pop %v5064
    %v5066 = vadd.f32 %v5051, 1.0
    %v5067 = vlog2.pop %v5066
    %v5068 = vmul.f32 %v5067, 0.6931472
    %v5069 = vmul.f32 -0.5, %v5051
    %v5070 = vadd.f32 %v5069, 1.0
    %v5071 = vmul.f32 %v5070, %v5051
    %v5072 = vand.u32 2147483647, %v5051
    %vm5073 = vcmp.lt.f32.partialorder %v5072, 0.0004427343
    %v5074 = vsel %vm5073, %v5071, %v5068
    %v5075 = vadd.f32 %v5053, 1.0
    %v5076 = vlog2.pop %v5075
    %v5077 = vmul.f32 %v5076, 0.6931472
    %v5078 = vmul.f32 -0.5, %v5053
    %v5079 = vadd.f32 %v5078, 1.0
    %v5080 = vmul.f32 %v5079, %v5053
    %v5081 = vand.u32 2147483647, %v5053
    %vm5082 = vcmp.lt.f32.partialorder %v5081, 0.0004427343
    %v5083 = vsel %vm5082, %v5080, %v5077
    %v5084 = vadd.f32 %v5055, 1.0
    %v5085 = vlog2.pop %v5084
    %v5086 = vmul.f32 %v5085, 0.6931472
    %v5087 = vmul.f32 -0.5, %v5055
    %v5088 = vadd.f32 %v5087, 1.0
    %v5089 = vmul.f32 %v5088, %v5055
    %v5090 = vand.u32 2147483647, %v5055
    %vm5091 = vcmp.lt.f32.partialorder %v5090, 0.0004427343
    %v5092 = vsel %vm5091, %v5089, %v5086
    %v5093 = vadd.f32 %v5057, 1.0
    %v5094 = vlog2.pop %v5093
    %v5095 = vmul.f32 %v5094, 0.6931472
    %v5096 = vmul.f32 -0.5, %v5057
    %v5097 = vadd.f32 %v5096, 1.0
    %v5098 = vmul.f32 %v5097, %v5057
    %v5099 = vand.u32 2147483647, %v5057
    %vm5100 = vcmp.lt.f32.partialorder %v5099, 0.0004427343
    %v5101 = vsel %vm5100, %v5098, %v5095
    %v5102 = vadd.f32 %v5059, 1.0
    %v5103 = vlog2.pop %v5102
    %v5104 = vmul.f32 %v5103, 0.6931472
    %v5105 = vmul.f32 -0.5, %v5059
    %v5106 = vadd.f32 %v5105, 1.0
    %v5107 = vmul.f32 %v5106, %v5059
    %v5108 = vand.u32 2147483647, %v5059
    %vm5109 = vcmp.lt.f32.partialorder %v5108, 0.0004427343
    %v5110 = vsel %vm5109, %v5107, %v5104
    %v5111 = vadd.f32 %v5061, 1.0
    %v5112 = vlog2.pop %v5111
    %v5113 = vmul.f32 %v5112, 0.6931472
    %v5114 = vmul.f32 -0.5, %v5061
    %v5115 = vadd.f32 %v5114, 1.0
    %v5116 = vmul.f32 %v5115, %v5061
    %v5117 = vand.u32 2147483647, %v5061
    %vm5118 = vcmp.lt.f32.partialorder %v5117, 0.0004427343
    %v5119 = vsel %vm5118, %v5116, %v5113
    %v5120 = vadd.f32 %v5063, 1.0
    %v5121 = vlog2.pop %v5120
    %v5122 = vmul.f32 %v5121, 0.6931472
    %v5123 = vmul.f32 -0.5, %v5063
    %v5124 = vadd.f32 %v5123, 1.0
    %v5125 = vmul.f32 %v5124, %v5063
    %v5126 = vand.u32 2147483647, %v5063
    %vm5127 = vcmp.lt.f32.partialorder %v5126, 0.0004427343
    %v5128 = vsel %vm5127, %v5125, %v5122
    %v5129 = vadd.f32 %v5065, 1.0
    %v5130 = vlog2.pop %v5129
    %v5131 = vmul.f32 %v5130, 0.6931472
    %v5132 = vmul.f32 -0.5, %v5065
    %v5133 = vadd.f32 %v5132, 1.0
    %v5134 = vmul.f32 %v5133, %v5065
    %v5135 = vand.u32 2147483647, %v5065
    %vm5136 = vcmp.lt.f32.partialorder %v5135, 0.0004427343
    %v5137 = vsel %vm5136, %v5134, %v5131
    %v5138 = vadd.f32 %v5010, %v5074
    %v5139 = vadd.f32 %v5011, %v5083
    %v5140 = vadd.f32 %v5012, %v5092
    %v5141 = vadd.f32 %v5013, %v5101
    %v5142 = vadd.f32 %v5014, %v5110
    %v5143 = vadd.f32 %v5015, %v5119
    %v5144 = vadd.f32 %v5016, %v5128
    %v5145 = vadd.f32 %v5017, %v5137
    %v5146 = vsel %vm5018, %v5026, %v5138
    %v5147 = vsel %vm5019, %v5027, %v5139
    %v5148 = vsel %vm5020, %v5028, %v5140
    %v5149 = vsel %vm5021, %v5029, %v5141
    %v5150 = vsel %vm5022, %v5030, %v5142
    %v5151 = vsel %vm5023, %v5031, %v5143
    %v5152 = vsel %vm5024, %v5032, %v5144
    %v5153 = vsel %vm5025, %v5033, %v5145
    %v5154 = vadd.f32 %v5146, 1e-06
    %v5155 = vadd.f32 %v5147, 1e-06
    %v5156 = vadd.f32 %v5148, 1e-06
    %v5157 = vadd.f32 %v5149, 1e-06
    %v5158 = vadd.f32 %v5150, 1e-06
    %v5159 = vadd.f32 %v5151, 1e-06
    %v5160 = vadd.f32 %v5152, 1e-06
    %v5161 = vadd.f32 %v5153, 1e-06
    %v5162 = vlog2.pop %v4649
    %v5163 = vmul.f32 %v5162, 0.6931472
    %v5164 = vlog2.pop %v4650
    %v5165 = vmul.f32 %v5164, 0.6931472
    %v5166 = vlog2.pop %v4651
    %v5167 = vmul.f32 %v5166, 0.6931472
    %v5168 = vlog2.pop %v4652
    %v5169 = vmul.f32 %v5168, 0.6931472
    %v5170 = vlog2.pop %v4653
    %v5171 = vmul.f32 %v5170, 0.6931472
    %v5172 = vlog2.pop %v4654
    %v5173 = vmul.f32 %v5172, 0.6931472
    %v5174 = vlog2.pop %v4655
    %v5175 = vmul.f32 %v5174, 0.6931472
    %v5176 = vlog2.pop %v4656
    %v5177 = vmul.f32 %v5176, 0.6931472
    %v5178 = vlog2.pop %v3043
    %v5179 = vmul.f32 %v5178, 0.6931472
    %v5180 = vlog2.pop %v3188
    %v5181 = vmul.f32 %v5180, 0.6931472
    %v5182 = vlog2.pop %v3333
    %v5183 = vmul.f32 %v5182, 0.6931472
    %v5184 = vlog2.pop %v3478
    %v5185 = vmul.f32 %v5184, 0.6931472
    %v5186 = vlog2.pop %v3623
    %v5187 = vmul.f32 %v5186, 0.6931472
    %v5188 = vlog2.pop %v3768
    %v5189 = vmul.f32 %v5188, 0.6931472
    %v5190 = vlog2.pop %v3913
    %v5191 = vmul.f32 %v5190, 0.6931472
    %v5192 = vlog2.pop %v4058
    %v5193 = vmul.f32 %v5192, 0.6931472
    %v5194 = vsub.f32 %v5163, %v5179
    %v5195 = vsub.f32 %v5165, %v5181
    %v5196 = vsub.f32 %v5167, %v5183
    %v5197 = vsub.f32 %v5169, %v5185
    %v5198 = vsub.f32 %v5171, %v5187
    %v5199 = vsub.f32 %v5173, %v5189
    %v5200 = vsub.f32 %v5175, %v5191
    %v5201 = vsub.f32 %v5177, %v5193
    %v5202 = vmul.f32 %v3043, %v3043
    %v5203 = vmul.f32 %v3188, %v3188
    %v5204 = vmul.f32 %v3333, %v3333
    %v5205 = vmul.f32 %v3478, %v3478
    %v5206 = vmul.f32 %v3623, %v3623
    %v5207 = vmul.f32 %v3768, %v3768
    %v5208 = vmul.f32 %v3913, %v3913
    %v5209 = vmul.f32 %v4058, %v4058
    %v5210 = vsub.f32 %v3023, %v4488
    %v5211 = vsub.f32 %v3168, %v4489
    %v5212 = vsub.f32 %v3313, %v4490
    %v5213 = vsub.f32 %v3458, %v4491
    %v5214 = vsub.f32 %v3603, %v4492
    %v5215 = vsub.f32 %v3748, %v4493
    %v5216 = vsub.f32 %v3893, %v4494
    %v5217 = vsub.f32 %v4038, %v4495
    %v5218 = vmul.f32 %v5210, %v5210
    %v5219 = vmul.f32 %v5211, %v5211
    %v5220 = vmul.f32 %v5212, %v5212
    %v5221 = vmul.f32 %v5213, %v5213
    %v5222 = vmul.f32 %v5214, %v5214
    %v5223 = vmul.f32 %v5215, %v5215
    %v5224 = vmul.f32 %v5216, %v5216
    %v5225 = vmul.f32 %v5217, %v5217
    %v5226 = vadd.f32 %v5202, %v5218
    %v5227 = vadd.f32 %v5203, %v5219
    %v5228 = vadd.f32 %v5204, %v5220
    %v5229 = vadd.f32 %v5205, %v5221
    %v5230 = vadd.f32 %v5206, %v5222
    %v5231 = vadd.f32 %v5207, %v5223
    %v5232 = vadd.f32 %v5208, %v5224
    %v5233 = vadd.f32 %v5209, %v5225
    %v5234 = vmul.f32 %v4649, 2.0
    %v5235 = vmul.f32 %v4650, 2.0
    %v5236 = vmul.f32 %v4651, 2.0
    %v5237 = vmul.f32 %v4652, 2.0
    %v5238 = vmul.f32 %v4653, 2.0
    %v5239 = vmul.f32 %v4654, 2.0
    %v5240 = vmul.f32 %v4655, 2.0
    %v5241 = vmul.f32 %v4656, 2.0
    %v5242 = vmul.f32 %v5234, %v4649
    %v5243 = vmul.f32 %v5235, %v4650
    %v5244 = vmul.f32 %v5236, %v4651
    %v5245 = vmul.f32 %v5237, %v4652
    %v5246 = vmul.f32 %v5238, %v4653
    %v5247 = vmul.f32 %v5239, %v4654
    %v5248 = vmul.f32 %v5240, %v4655
    %v5249 = vmul.f32 %v5241, %v4656
    %v5250 = vrcp.pop %v5242
    %v5251 = vmul.f32 %v5242, %v5250
    %v5252 = vsub.f32 1.0, %v5251
    %v5253 = vmul.f32 %v5250, %v5252
    %v5254 = vadd.f32 %v5250, %v5253
    %vm5255 = vweird.f32 %v5242
    %vm5256 = vweird.f32 %v5250
    %vm5257 = vmor %vm5255, %vm5256
    %v5258 = vsel %vm5257, %v5250, %v5254
    %v5259 = vand.u32 2147483647, %v5242
    %vm5260 = vcmp.eq.f32.partialorder %v5259, 8.507059e+37
    %v5261 = vand.u32 %v5242, 2147483648
    %v5262 = vor.u32 1.1754944e-38, %v5261
    %v5263 = vsel %vm5260, %v5262, %v5258
    %v5264 = vmul.f32 %v5226, %v5263
    %v5265 = vrcp.pop %v5243
    %v5266 = vmul.f32 %v5243, %v5265
    %v5267 = vsub.f32 1.0, %v5266
    %v5268 = vmul.f32 %v5265, %v5267
    %v5269 = vadd.f32 %v5265, %v5268
    %vm5270 = vweird.f32 %v5243
    %vm5271 = vweird.f32 %v5265
    %vm5272 = vmor %vm5270, %vm5271
    %v5273 = vsel %vm5272, %v5265, %v5269
    %v5274 = vand.u32 2147483647, %v5243
    %vm5275 = vcmp.eq.f32.partialorder %v5274, 8.507059e+37
    %v5276 = vand.u32 %v5243, 2147483648
    %v5277 = vor.u32 1.1754944e-38, %v5276
    %v5278 = vsel %vm5275, %v5277, %v5273
    %v5279 = vmul.f32 %v5227, %v5278
    %v5280 = vrcp.pop %v5244
    %v5281 = vmul.f32 %v5244, %v5280
    %v5282 = vsub.f32 1.0, %v5281
    %v5283 = vmul.f32 %v5280, %v5282
    %v5284 = vadd.f32 %v5280, %v5283
    %vm5285 = vweird.f32 %v5244
    %vm5286 = vweird.f32 %v5280
    %vm5287 = vmor %vm5285, %vm5286
    %v5288 = vsel %vm5287, %v5280, %v5284
    %v5289 = vand.u32 2147483647, %v5244
    %vm5290 = vcmp.eq.f32.partialorder %v5289, 8.507059e+37
    %v5291 = vand.u32 %v5244, 2147483648
    %v5292 = vor.u32 1.1754944e-38, %v5291
    %v5293 = vsel %vm5290, %v5292, %v5288
    %v5294 = vmul.f32 %v5228, %v5293
    %v5295 = vrcp.pop %v5245
    %v5296 = vmul.f32 %v5245, %v5295
    %v5297 = vsub.f32 1.0, %v5296
    %v5298 = vmul.f32 %v5295, %v5297
    %v5299 = vadd.f32 %v5295, %v5298
    %vm5300 = vweird.f32 %v5245
    %vm5301 = vweird.f32 %v5295
    %vm5302 = vmor %vm5300, %vm5301
    %v5303 = vsel %vm5302, %v5295, %v5299
    %v5304 = vand.u32 2147483647, %v5245
    %vm5305 = vcmp.eq.f32.partialorder %v5304, 8.507059e+37
    %v5306 = vand.u32 %v5245, 2147483648
    %v5307 = vor.u32 1.1754944e-38, %v5306
    %v5308 = vsel %vm5305, %v5307, %v5303
    %v5309 = vmul.f32 %v5229, %v5308
    %v5310 = vrcp.pop %v5246
    %v5311 = vmul.f32 %v5246, %v5310
    %v5312 = vsub.f32 1.0, %v5311
    %v5313 = vmul.f32 %v5310, %v5312
    %v5314 = vadd.f32 %v5310, %v5313
    %vm5315 = vweird.f32 %v5246
    %vm5316 = vweird.f32 %v5310
    %vm5317 = vmor %vm5315, %vm5316
    %v5318 = vsel %vm5317, %v5310, %v5314
    %v5319 = vand.u32 2147483647, %v5246
    %vm5320 = vcmp.eq.f32.partialorder %v5319, 8.507059e+37
    %v5321 = vand.u32 %v5246, 2147483648
    %v5322 = vor.u32 1.1754944e-38, %v5321
    %v5323 = vsel %vm5320, %v5322, %v5318
    %v5324 = vmul.f32 %v5230, %v5323
    %v5325 = vrcp.pop %v5247
    %v5326 = vmul.f32 %v5247, %v5325
    %v5327 = vsub.f32 1.0, %v5326
    %v5328 = vmul.f32 %v5325, %v5327
    %v5329 = vadd.f32 %v5325, %v5328
    %vm5330 = vweird.f32 %v5247
    %vm5331 = vweird.f32 %v5325
    %vm5332 = vmor %vm5330, %vm5331
    %v5333 = vsel %vm5332, %v5325, %v5329
    %v5334 = vand.u32 2147483647, %v5247
    %vm5335 = vcmp.eq.f32.partialorder %v5334, 8.507059e+37
    %v5336 = vand.u32 %v5247, 2147483648
    %v5337 = vor.u32 1.1754944e-38, %v5336
    %v5338 = vsel %vm5335, %v5337, %v5333
    %v5339 = vmul.f32 %v5231, %v5338
    %v5340 = vrcp.pop %v5248
    %v5341 = vmul.f32 %v5248, %v5340
    %v5342 = vsub.f32 1.0, %v5341
    %v5343 = vmul.f32 %v5340, %v5342
    %v5344 = vadd.f32 %v5340, %v5343
    %vm5345 = vweird.f32 %v5248
    %vm5346 = vweird.f32 %v5340
    %vm5347 = vmor %vm5345, %vm5346
    %v5348 = vsel %vm5347, %v5340, %v5344
    %v5349 = vand.u32 2147483647, %v5248
    %vm5350 = vcmp.eq.f32.partialorder %v5349, 8.507059e+37
    %v5351 = vand.u32 %v5248, 2147483648
    %v5352 = vor.u32 1.1754944e-38, %v5351
    %v5353 = vsel %vm5350, %v5352, %v5348
    %v5354 = vmul.f32 %v5232, %v5353
    %v5355 = vrcp.pop %v5249
    %v5356 = vmul.f32 %v5249, %v5355
    %v5357 = vsub.f32 1.0, %v5356
    %v5358 = vmul.f32 %v5355, %v5357
    %v5359 = vadd.f32 %v5355, %v5358
    %vm5360 = vweird.f32 %v5249
    %vm5361 = vweird.f32 %v5355
    %vm5362 = vmor %vm5360, %vm5361
    %v5363 = vsel %vm5362, %v5355, %v5359
    %v5364 = vand.u32 2147483647, %v5249
    %vm5365 = vcmp.eq.f32.partialorder %v5364, 8.507059e+37
    %v5366 = vand.u32 %v5249, 2147483648
    %v5367 = vor.u32 1.1754944e-38, %v5366
    %v5368 = vsel %vm5365, %v5367, %v5363
    %v5369 = vmul.f32 %v5233, %v5368
    %v5370 = vadd.f32 %v5194, %v5264
    %v5371 = vadd.f32 %v5195, %v5279
    %v5372 = vadd.f32 %v5196, %v5294
    %v5373 = vadd.f32 %v5197, %v5309
    %v5374 = vadd.f32 %v5198, %v5324
    %v5375 = vadd.f32 %v5199, %v5339
    %v5376 = vadd.f32 %v5200, %v5354
    %v5377 = vadd.f32 %v5201, %v5369
    %v5378 = vsub.f32 %v5370, 0.5
    %v5379 = vsub.f32 %v5371, 0.5
    %v5380 = vsub.f32 %v5372, 0.5
    %v5381 = vsub.f32 %v5373, 0.5
    %v5382 = vsub.f32 %v5374, 0.5
    %v5383 = vsub.f32 %v5375, 0.5
    %v5384 = vsub.f32 %v5376, 0.5
    %v5385 = vsub.f32 %v5377, 0.5
    %v5386 = vsel %vm2901, %v5378, 0.0
    %5387 = vadd.xlane.f32.xlu0 %v5386
    %v5388 = vpop.xlane.xlu0 %5387
    %v5389 = vsel %vm2901, %v5379, 0.0
    %5390 = vadd.xlane.f32.xlu0 %v5389
    %v5391 = vpop.xlane.xlu0 %5390
    %v5392 = vsel %vm2901, %v5380, 0.0
    %5393 = vadd.xlane.f32.xlu0 %v5392
    %v5394 = vpop.xlane.xlu0 %5393
    %v5395 = vsel %vm2901, %v5381, 0.0
    %5396 = vadd.xlane.f32.xlu0 %v5395
    %v5397 = vpop.xlane.xlu0 %5396
    %v5398 = vsel %vm2901, %v5382, 0.0
    %5399 = vadd.xlane.f32.xlu0 %v5398
    %v5400 = vpop.xlane.xlu0 %5399
    %v5401 = vsel %vm2901, %v5383, 0.0
    %5402 = vadd.xlane.f32.xlu0 %v5401
    %v5403 = vpop.xlane.xlu0 %5402
    %v5404 = vsel %vm2901, %v5384, 0.0
    %5405 = vadd.xlane.f32.xlu0 %v5404
    %v5406 = vpop.xlane.xlu0 %5405
    %v5407 = vsel %vm2901, %v5385, 0.0
    %5408 = vadd.xlane.f32.xlu0 %v5407
    %v5409 = vpop.xlane.xlu0 %5408
    %v5410 = vmul.f32 %v5388, %v136
    %v5411 = vmul.f32 %v5391, %v139
    %v5412 = vmul.f32 %v5394, %v142
    %v5413 = vmul.f32 %v5397, %v145
    %v5414 = vmul.f32 %v5400, %v148
    %v5415 = vmul.f32 %v5403, %v151
    %v5416 = vmul.f32 %v5406, %v154
    %v5417 = vmul.f32 %v5409, %v157
    %v5418 = vlog2.pop %v5154
    %v5419 = vmul.f32 %v5418, 0.6931472
    %v5420 = vlog2.pop %v5155
    %v5421 = vmul.f32 %v5420, 0.6931472
    %v5422 = vlog2.pop %v5156
    %v5423 = vmul.f32 %v5422, 0.6931472
    %v5424 = vlog2.pop %v5157
    %v5425 = vmul.f32 %v5424, 0.6931472
    %v5426 = vlog2.pop %v5158
    %v5427 = vmul.f32 %v5426, 0.6931472
    %v5428 = vlog2.pop %v5159
    %v5429 = vmul.f32 %v5428, 0.6931472
    %v5430 = vlog2.pop %v5160
    %v5431 = vmul.f32 %v5430, 0.6931472
    %v5432 = vlog2.pop %v5161
    %v5433 = vmul.f32 %v5432, 0.6931472
    %v5434 = vsub.f32 -0.9189385, %v5419
    %v5435 = vsub.f32 -0.9189385, %v5421
    %v5436 = vsub.f32 -0.9189385, %v5423
    %v5437 = vsub.f32 -0.9189385, %v5425
    %v5438 = vsub.f32 -0.9189385, %v5427
    %v5439 = vsub.f32 -0.9189385, %v5429
    %v5440 = vsub.f32 -0.9189385, %v5431
    %v5441 = vsub.f32 -0.9189385, %v5433
    %v5442 = vsub.f32 %v158, %v4993
    %v5443 = vsub.f32 %v159, %v4994
    %v5444 = vsub.f32 %v160, %v4995
    %v5445 = vsub.f32 %v161, %v4996
    %v5446 = vsub.f32 %v162, %v4997
    %v5447 = vsub.f32 %v163, %v4998
    %v5448 = vsub.f32 %v164, %v4999
    %v5449 = vsub.f32 %v165, %v5000
    %v5450 = vrcp.pop %v5154
    %v5451 = vmul.f32 %v5154, %v5450
    %v5452 = vsub.f32 1.0, %v5451
    %v5453 = vmul.f32 %v5450, %v5452
    %v5454 = vadd.f32 %v5450, %v5453
    %vm5455 = vweird.f32 %v5154
    %vm5456 = vweird.f32 %v5450
    %vm5457 = vmor %vm5455, %vm5456
    %v5458 = vsel %vm5457, %v5450, %v5454
    %v5459 = vand.u32 2147483647, %v5154
    %vm5460 = vcmp.eq.f32.partialorder %v5459, 8.507059e+37
    %v5461 = vand.u32 %v5154, 2147483648
    %v5462 = vor.u32 1.1754944e-38, %v5461
    %v5463 = vsel %vm5460, %v5462, %v5458
    %v5464 = vmul.f32 %v5442, %v5463
    %v5465 = vrcp.pop %v5155
    %v5466 = vmul.f32 %v5155, %v5465
    %v5467 = vsub.f32 1.0, %v5466
    %v5468 = vmul.f32 %v5465, %v5467
    %v5469 = vadd.f32 %v5465, %v5468
    %vm5470 = vweird.f32 %v5155
    %vm5471 = vweird.f32 %v5465
    %vm5472 = vmor %vm5470, %vm5471
    %v5473 = vsel %vm5472, %v5465, %v5469
    %v5474 = vand.u32 2147483647, %v5155
    %vm5475 = vcmp.eq.f32.partialorder %v5474, 8.507059e+37
    %v5476 = vand.u32 %v5155, 2147483648
    %v5477 = vor.u32 1.1754944e-38, %v5476
    %v5478 = vsel %vm5475, %v5477, %v5473
    %v5479 = vmul.f32 %v5443, %v5478
    %v5480 = vrcp.pop %v5156
    %v5481 = vmul.f32 %v5156, %v5480
    %v5482 = vsub.f32 1.0, %v5481
    %v5483 = vmul.f32 %v5480, %v5482
    %v5484 = vadd.f32 %v5480, %v5483
    %vm5485 = vweird.f32 %v5156
    %vm5486 = vweird.f32 %v5480
    %vm5487 = vmor %vm5485, %vm5486
    %v5488 = vsel %vm5487, %v5480, %v5484
    %v5489 = vand.u32 2147483647, %v5156
    %vm5490 = vcmp.eq.f32.partialorder %v5489, 8.507059e+37
    %v5491 = vand.u32 %v5156, 2147483648
    %v5492 = vor.u32 1.1754944e-38, %v5491
    %v5493 = vsel %vm5490, %v5492, %v5488
    %v5494 = vmul.f32 %v5444, %v5493
    %v5495 = vrcp.pop %v5157
    %v5496 = vmul.f32 %v5157, %v5495
    %v5497 = vsub.f32 1.0, %v5496
    %v5498 = vmul.f32 %v5495, %v5497
    %v5499 = vadd.f32 %v5495, %v5498
    %vm5500 = vweird.f32 %v5157
    %vm5501 = vweird.f32 %v5495
    %vm5502 = vmor %vm5500, %vm5501
    %v5503 = vsel %vm5502, %v5495, %v5499
    %v5504 = vand.u32 2147483647, %v5157
    %vm5505 = vcmp.eq.f32.partialorder %v5504, 8.507059e+37
    %v5506 = vand.u32 %v5157, 2147483648
    %v5507 = vor.u32 1.1754944e-38, %v5506
    %v5508 = vsel %vm5505, %v5507, %v5503
    %v5509 = vmul.f32 %v5445, %v5508
    %v5510 = vrcp.pop %v5158
    %v5511 = vmul.f32 %v5158, %v5510
    %v5512 = vsub.f32 1.0, %v5511
    %v5513 = vmul.f32 %v5510, %v5512
    %v5514 = vadd.f32 %v5510, %v5513
    %vm5515 = vweird.f32 %v5158
    %vm5516 = vweird.f32 %v5510
    %vm5517 = vmor %vm5515, %vm5516
    %v5518 = vsel %vm5517, %v5510, %v5514
    %v5519 = vand.u32 2147483647, %v5158
    %vm5520 = vcmp.eq.f32.partialorder %v5519, 8.507059e+37
    %v5521 = vand.u32 %v5158, 2147483648
    %v5522 = vor.u32 1.1754944e-38, %v5521
    %v5523 = vsel %vm5520, %v5522, %v5518
    %v5524 = vmul.f32 %v5446, %v5523
    %v5525 = vrcp.pop %v5159
    %v5526 = vmul.f32 %v5159, %v5525
    %v5527 = vsub.f32 1.0, %v5526
    %v5528 = vmul.f32 %v5525, %v5527
    %v5529 = vadd.f32 %v5525, %v5528
    %vm5530 = vweird.f32 %v5159
    %vm5531 = vweird.f32 %v5525
    %vm5532 = vmor %vm5530, %vm5531
    %v5533 = vsel %vm5532, %v5525, %v5529
    %v5534 = vand.u32 2147483647, %v5159
    %vm5535 = vcmp.eq.f32.partialorder %v5534, 8.507059e+37
    %v5536 = vand.u32 %v5159, 2147483648
    %v5537 = vor.u32 1.1754944e-38, %v5536
    %v5538 = vsel %vm5535, %v5537, %v5533
    %v5539 = vmul.f32 %v5447, %v5538
    %v5540 = vrcp.pop %v5160
    %v5541 = vmul.f32 %v5160, %v5540
    %v5542 = vsub.f32 1.0, %v5541
    %v5543 = vmul.f32 %v5540, %v5542
    %v5544 = vadd.f32 %v5540, %v5543
    %vm5545 = vweird.f32 %v5160
    %vm5546 = vweird.f32 %v5540
    %vm5547 = vmor %vm5545, %vm5546
    %v5548 = vsel %vm5547, %v5540, %v5544
    %v5549 = vand.u32 2147483647, %v5160
    %vm5550 = vcmp.eq.f32.partialorder %v5549, 8.507059e+37
    %v5551 = vand.u32 %v5160, 2147483648
    %v5552 = vor.u32 1.1754944e-38, %v5551
    %v5553 = vsel %vm5550, %v5552, %v5548
    %v5554 = vmul.f32 %v5448, %v5553
    %v5555 = vrcp.pop %v5161
    %v5556 = vmul.f32 %v5161, %v5555
    %v5557 = vsub.f32 1.0, %v5556
    %v5558 = vmul.f32 %v5555, %v5557
    %v5559 = vadd.f32 %v5555, %v5558
    %vm5560 = vweird.f32 %v5161
    %vm5561 = vweird.f32 %v5555
    %vm5562 = vmor %vm5560, %vm5561
    %v5563 = vsel %vm5562, %v5555, %v5559
    %v5564 = vand.u32 2147483647, %v5161
    %vm5565 = vcmp.eq.f32.partialorder %v5564, 8.507059e+37
    %v5566 = vand.u32 %v5161, 2147483648
    %v5567 = vor.u32 1.1754944e-38, %v5566
    %v5568 = vsel %vm5565, %v5567, %v5563
    %v5569 = vmul.f32 %v5449, %v5568
    %v5570 = vmul.f32 %v5464, %v5464
    %v5571 = vmul.f32 %v5479, %v5479
    %v5572 = vmul.f32 %v5494, %v5494
    %v5573 = vmul.f32 %v5509, %v5509
    %v5574 = vmul.f32 %v5524, %v5524
    %v5575 = vmul.f32 %v5539, %v5539
    %v5576 = vmul.f32 %v5554, %v5554
    %v5577 = vmul.f32 %v5569, %v5569
    %v5578 = vmul.f32 %v5570, 0.5
    %v5579 = vmul.f32 %v5571, 0.5
    %v5580 = vmul.f32 %v5572, 0.5
    %v5581 = vmul.f32 %v5573, 0.5
    %v5582 = vmul.f32 %v5574, 0.5
    %v5583 = vmul.f32 %v5575, 0.5
    %v5584 = vmul.f32 %v5576, 0.5
    %v5585 = vmul.f32 %v5577, 0.5
    %v5586 = vsub.f32 %v5434, %v5578
    %v5587 = vsub.f32 %v5435, %v5579
    %v5588 = vsub.f32 %v5436, %v5580
    %v5589 = vsub.f32 %v5437, %v5581
    %v5590 = vsub.f32 %v5438, %v5582
    %v5591 = vsub.f32 %v5439, %v5583
    %v5592 = vsub.f32 %v5440, %v5584
    %v5593 = vsub.f32 %v5441, %v5585
    %v5594 = vmul.f32 %v5586, %v136
    %v5595 = vmul.f32 %v5587, %v139
    %v5596 = vmul.f32 %v5588, %v142
    %v5597 = vmul.f32 %v5589, %v145
    %v5598 = vmul.f32 %v5590, %v148
    %v5599 = vmul.f32 %v5591, %v151
    %v5600 = vmul.f32 %v5592, %v154
    %v5601 = vmul.f32 %v5593, %v157
    %v5602 = vadd.f32 %v5594, 0.0
    %v5603 = vadd.f32 %v5410, 0.0
    %v5604 = vadd.f32 %v5602, %v5595
    %v5605 = vadd.f32 %v5603, %v5411
    %v5606 = vadd.f32 %v5604, %v5596
    %v5607 = vadd.f32 %v5605, %v5412
    %v5608 = vadd.f32 %v5606, %v5597
    %v5609 = vadd.f32 %v5607, %v5413
    %v5610 = vadd.f32 %v5608, %v5598
    %v5611 = vadd.f32 %v5609, %v5414
    %v5612 = vadd.f32 %v5610, %v5599
    %v5613 = vadd.f32 %v5611, %v5415
    %v5614 = vadd.f32 %v5612, %v5600
    %v5615 = vadd.f32 %v5613, %v5416
    %v5616 = vadd.f32 %v5614, %v5601
    %v5617 = vadd.f32 %v5615, %v5417
    %v5618 = vsub.f32 %v5616, %v5617
    %s5619 = scvt.s32.f32 %s76
    %s5620 = scvt.s32.f32 %s77
    %s5621 = sadd.f32 %s5619, %s5620
    %vm5622 = vcmask 7168
    %v5623 = vsel %vm5622, %v5618, 0.0
    %5624 = vadd.xlane.f32.xlu0 %v5623
    %v5625 = vpop.xlane.xlu0 %5624
    %v5626 = vrot.slane %v5625, 4
    %v5627 = vadd.f32 %v5625, %v5626
    %v5628 = vrot.slane %v5627, 2
    %v5629 = vadd.f32 %v5627, %v5628
    %v5630 = vrot.slane %v5629, 1
    %v5631 = vadd.f32 %v5629, %v5630
    %s5632 = vtos %v5631
    %v5633 = vstv %s5632
    %v5634 = vsub.f32 0.0, %v5633
    %v5635 = vstv %s5621
    %v5636 = vrcp.pop %v5635
    %v5637 = vmul.f32 %v5635, %v5636
    %v5638 = vsub.f32 1.0, %v5637
    %v5639 = vmul.f32 %v5636, %v5638
    %v5640 = vadd.f32 %v5636, %v5639
    %vm5641 = vweird.f32 %v5635
    %vm5642 = vweird.f32 %v5636
    %vm5643 = vmor %vm5641, %vm5642
    %v5644 = vsel %vm5643, %v5636, %v5640
    %v5645 = vand.u32 2147483647, %v5635
    %vm5646 = vcmp.eq.f32.partialorder %v5645, 8.507059e+37
    %v5647 = vand.u32 %v5635, 2147483648
    %v5648 = vor.u32 1.1754944e-38, %v5647
    %v5649 = vsel %vm5646, %v5648, %v5644
    %v5650 = vmul.f32 %v5634, %v5649
    %v5651 = vld [vmem:[%s3] sm:$0xff]
    %v5652 = vld [vmem:[%s3 + $0x8] sm:$0xff]
    %v5653 = vld [vmem:[%s3 + $0x10] sm:$0xff]
    %v5654 = vld [vmem:[%s3 + $0x18] sm:$0xff]
    %v5655 = vld [vmem:[%s3 + $0x20] sm:$0xff]
    %v5656 = vld [vmem:[%s3 + $0x28] sm:$0xff]
    %v5657 = vld [vmem:[%s3 + $0x30] sm:$0xff]
    %v5658 = vld [vmem:[%s3 + $0x38] sm:$0xff]
    %v5659 = vmul.f32 %v5154, %v5651
    %v5660 = vmul.f32 %v5155, %v5652
    %v5661 = vmul.f32 %v5156, %v5653
    %v5662 = vmul.f32 %v5157, %v5654
    %v5663 = vmul.f32 %v5158, %v5655
    %v5664 = vmul.f32 %v5159, %v5656
    %v5665 = vmul.f32 %v5160, %v5657
    %v5666 = vmul.f32 %v5161, %v5658
    %v5667 = vadd.f32 %v4993, %v5659
    %v5668 = vadd.f32 %v4994, %v5660
    %v5669 = vadd.f32 %v4995, %v5661
    %v5670 = vadd.f32 %v4996, %v5662
    %v5671 = vadd.f32 %v4997, %v5663
    %v5672 = vadd.f32 %v4998, %v5664
    %v5673 = vadd.f32 %v4999, %v5665
    %v5674 = vadd.f32 %v5000, %v5666
    %5683 = vrot.lane.b32.xlu0 %v4993, 8
    %v5684 = vpop.permute.xlu0 %5683
    %5685 = vrot.lane.b32.xlu0 %v4994, 8
    %v5686 = vpop.permute.xlu0 %5685
    %5687 = vrot.lane.b32.xlu0 %v4995, 8
    %v5688 = vpop.permute.xlu0 %5687
    %5689 = vrot.lane.b32.xlu0 %v4996, 8
    %v5690 = vpop.permute.xlu0 %5689
    %5691 = vrot.lane.b32.xlu0 %v4997, 8
    %v5692 = vpop.permute.xlu0 %5691
    %5693 = vrot.lane.b32.xlu0 %v4998, 8
    %v5694 = vpop.permute.xlu0 %5693
    %5695 = vrot.lane.b32.xlu0 %v4999, 8
    %v5696 = vpop.permute.xlu0 %5695
    %5697 = vrot.lane.b32.xlu0 %v5000, 8
    %v5698 = vpop.permute.xlu0 %5697
    %5715 = vrot.lane.b32.xlu0 %v5002, 9
    %v5716 = vpop.permute.xlu0 %5715
    %5717 = vrot.lane.b32.xlu0 %v5003, 9
    %v5718 = vpop.permute.xlu0 %5717
    %5719 = vrot.lane.b32.xlu0 %v5004, 9
    %v5720 = vpop.permute.xlu0 %5719
    %5721 = vrot.lane.b32.xlu0 %v5005, 9
    %v5722 = vpop.permute.xlu0 %5721
    %5723 = vrot.lane.b32.xlu0 %v5006, 9
    %v5724 = vpop.permute.xlu0 %5723
    %5725 = vrot.lane.b32.xlu0 %v5007, 9
    %v5726 = vpop.permute.xlu0 %5725
    %5727 = vrot.lane.b32.xlu0 %v5008, 9
    %v5728 = vpop.permute.xlu0 %5727
    %5729 = vrot.lane.b32.xlu0 %v5009, 9
    %v5730 = vpop.permute.xlu0 %5729
    %5747 = vrot.lane.b32.xlu0 %v136, 10
    %v5748 = vpop.permute.xlu0 %5747
    %5749 = vrot.lane.b32.xlu0 %v139, 10
    %v5750 = vpop.permute.xlu0 %5749
    %5751 = vrot.lane.b32.xlu0 %v142, 10
    %v5752 = vpop.permute.xlu0 %5751
    %5753 = vrot.lane.b32.xlu0 %v145, 10
    %v5754 = vpop.permute.xlu0 %5753
    %5755 = vrot.lane.b32.xlu0 %v148, 10
    %v5756 = vpop.permute.xlu0 %5755
    %5757 = vrot.lane.b32.xlu0 %v151, 10
    %v5758 = vpop.permute.xlu0 %5757
    %5759 = vrot.lane.b32.xlu0 %v154, 10
    %v5760 = vpop.permute.xlu0 %5759
    %5761 = vrot.lane.b32.xlu0 %v157, 10
    %v5762 = vpop.permute.xlu0 %5761
    %5779 = vrot.lane.b32.xlu0 %v5667, 11
    %v5780 = vpop.permute.xlu0 %5779
    %5781 = vrot.lane.b32.xlu0 %v5668, 11
    %v5782 = vpop.permute.xlu0 %5781
    %5783 = vrot.lane.b32.xlu0 %v5669, 11
    %v5784 = vpop.permute.xlu0 %5783
    %5785 = vrot.lane.b32.xlu0 %v5670, 11
    %v5786 = vpop.permute.xlu0 %5785
    %5787 = vrot.lane.b32.xlu0 %v5671, 11
    %v5788 = vpop.permute.xlu0 %5787
    %5789 = vrot.lane.b32.xlu0 %v5672, 11
    %v5790 = vpop.permute.xlu0 %5789
    %5791 = vrot.lane.b32.xlu0 %v5673, 11
    %v5792 = vpop.permute.xlu0 %5791
    %5793 = vrot.lane.b32.xlu0 %v5674, 11
    %v5794 = vpop.permute.xlu0 %5793
    %5803 = vrot.lane.b32.xlu0 %v4993, 12
    %v5804 = vpop.permute.xlu0 %5803
    %5805 = vrot.lane.b32.xlu0 %v4994, 12
    %v5806 = vpop.permute.xlu0 %5805
    %5807 = vrot.lane.b32.xlu0 %v4995, 12
    %v5808 = vpop.permute.xlu0 %5807
    %5809 = vrot.lane.b32.xlu0 %v4996, 12
    %v5810 = vpop.permute.xlu0 %5809
    %5811 = vrot.lane.b32.xlu0 %v4997, 12
    %v5812 = vpop.permute.xlu0 %5811
    %5813 = vrot.lane.b32.xlu0 %v4998, 12
    %v5814 = vpop.permute.xlu0 %5813
    %5815 = vrot.lane.b32.xlu0 %v4999, 12
    %v5816 = vpop.permute.xlu0 %5815
    %5817 = vrot.lane.b32.xlu0 %v5000, 12
    %v5818 = vpop.permute.xlu0 %5817
    %v5827 = vsel %vm2901, %v3045, %v5684
    %v5828 = vsel %vm2901, %v3190, %v5686
    %v5829 = vsel %vm2901, %v3335, %v5688
    %v5830 = vsel %vm2901, %v3480, %v5690
    %v5831 = vsel %vm2901, %v3625, %v5692
    %v5832 = vsel %vm2901, %v3770, %v5694
    %v5833 = vsel %vm2901, %v3915, %v5696
    %v5834 = vsel %vm2901, %v4060, %v5698
    %vm5835 = vcmask 72704
    %v5836 = vsel %vm5835, %v5827, %v5716
    %v5837 = vsel %vm5835, %v5828, %v5718
    %v5838 = vsel %vm5835, %v5829, %v5720
    %v5839 = vsel %vm5835, %v5830, %v5722
    %v5840 = vsel %vm5835, %v5831, %v5724
    %v5841 = vsel %vm5835, %v5832, %v5726
    %v5842 = vsel %vm5835, %v5833, %v5728
    %v5843 = vsel %vm5835, %v5834, %v5730
    %vm5844 = vcmask 80896
    %v5845 = vsel %vm5844, %v5836, %v5748
    %v5846 = vsel %vm5844, %v5837, %v5750
    %v5847 = vsel %vm5844, %v5838, %v5752
    %v5848 = vsel %vm5844, %v5839, %v5754
    %v5849 = vsel %vm5844, %v5840, %v5756
    %v5850 = vsel %vm5844, %v5841, %v5758
    %v5851 = vsel %vm5844, %v5842, %v5760
    %v5852 = vsel %vm5844, %v5843, %v5762
    %vm5853 = vcmask 89088
    %v5854 = vsel %vm5853, %v5845, %v5780
    %v5855 = vsel %vm5853, %v5846, %v5782
    %v5856 = vsel %vm5853, %v5847, %v5784
    %v5857 = vsel %vm5853, %v5848, %v5786
    %v5858 = vsel %vm5853, %v5849, %v5788
    %v5859 = vsel %vm5853, %v5850, %v5790
    %v5860 = vsel %vm5853, %v5851, %v5792
    %v5861 = vsel %vm5853, %v5852, %v5794
    %vm5862 = vcmask 97280
    %v5863 = vsel %vm5862, %v5854, %v5804
    %v5864 = vsel %vm5862, %v5855, %v5806
    %v5865 = vsel %vm5862, %v5856, %v5808
    %v5866 = vsel %vm5862, %v5857, %v5810
    %v5867 = vsel %vm5862, %v5858, %v5812
    %v5868 = vsel %vm5862, %v5859, %v5814
    %v5869 = vsel %vm5862, %v5860, %v5816
    %v5870 = vsel %vm5862, %v5861, %v5818
    %vm5871 = vcmask 105472
    %v5872 = vsel %vm5871, %v5863, %v5388
    %v5873 = vsel %vm5871, %v5864, %v5391
    %v5874 = vsel %vm5871, %v5865, %v5394
    %v5875 = vsel %vm5871, %v5866, %v5397
    %v5876 = vsel %vm5871, %v5867, %v5400
    %v5877 = vsel %vm5871, %v5868, %v5403
    %v5878 = vsel %vm5871, %v5869, %v5406
    %v5879 = vsel %vm5871, %v5870, %v5409
    %vm5880 = vcmask 113664
    %v5881 = vsel %vm5880, %v5872, 0.0
    %v5882 = vsel %vm5880, %v5873, 0.0
    %v5883 = vsel %vm5880, %v5874, 0.0
    %v5884 = vsel %vm5880, %v5875, 0.0
    %v5885 = vsel %vm5880, %v5876, 0.0
    %v5886 = vsel %vm5880, %v5877, 0.0
    %v5887 = vsel %vm5880, %v5878, 0.0
    %v5888 = vsel %vm5880, %v5879, 0.0
    %vm5889 = vcmask 130048
    %5890 = vst.msk [vmem:[%s8] sm:$0xff] %vm5889, %v5881
    %5891 = vst.msk [vmem:[%s8 + $0x8] sm:$0xff] %vm5889, %v5882
    %5892 = vst.msk [vmem:[%s8 + $0x10] sm:$0xff] %vm5889, %v5883
    %5893 = vst.msk [vmem:[%s8 + $0x18] sm:$0xff] %vm5889, %v5884
    %5894 = vst.msk [vmem:[%s8 + $0x20] sm:$0xff] %vm5889, %v5885
    %5895 = vst.msk [vmem:[%s8 + $0x28] sm:$0xff] %vm5889, %v5886
    %5896 = vst.msk [vmem:[%s8 + $0x30] sm:$0xff] %vm5889, %v5887
    %5897 = vst.msk [vmem:[%s8 + $0x38] sm:$0xff] %vm5889, %v5888
    %5898 = vrot.lane.b32.xlu0 %v2750, 64
    %v5899 = vpop.permute.xlu0 %5898
    %v5901 = vsel %vm470, %v1378, %v5899
    %5902 = vst [vmem:[%s9] sm:$0xff] %v5901
    %v5903 = vadd.f32 %v5650, 0.0
    %5905 = vrot.lane.b32.xlu0 %v5616, 1
    %v5906 = vpop.permute.xlu0 %5905
    %5909 = vrot.lane.b32.xlu0 %v5617, 2
    %v5910 = vpop.permute.xlu0 %5909
    %v5912 = vsel %vm5622, %v5618, %v5906
    %vm5913 = vcmask 15360
    %v5914 = vsel %vm5913, %v5912, %v5910
    %vm5915 = vcmask 23552
    %v5916 = vsel %vm5915, %v5914, %v5903
    %v5917 = vsel %vm278, %v5916, 0.0
    %5918 = vst.msk [vmem:[%s10] sm:$0xff] %vm2901, %v5917
    // Predicated region
    $region38: #{srnn_forward.1} parent=1 // pred_check
      _
    $region39: #{srnn_forward.1} parent=1 // pred_check_branch
      %5920 = sbr.rel (0) target = $region41
    $region40: #{srnn_forward.1} parent=1 // pred_region
      _
    $region41: #{srnn_forward.1} parent=1 // pred_fallthru
      _
    // Predicated region
    $region42: #{srnn_forward.1} parent=1 // pred_check
      _
    $region43: #{srnn_forward.1} parent=1 // pred_check_branch
      %5922 = sbr.rel (0) target = $region45
    $region44: #{srnn_forward.1} parent=1 // pred_region
      _
    $region45: #{srnn_forward.1} parent=1 // pred_fallthru
      _
    // Predicated region
    $region46: #{srnn_forward.1} parent=1 // pred_check
      _
    $region47: #{srnn_forward.1} parent=1 // pred_check_branch
      %5924 = sbr.rel (0) target = $region49
    $region48: #{srnn_forward.1} parent=1 // pred_region
      _
    $region49: #{srnn_forward.1} parent=1 // pred_fallthru
      _
    // Predicated region
    $region50: #{srnn_forward.1} parent=1 // pred_check
      _
    $region51: #{srnn_forward.1} parent=1 // pred_check_branch
      %5926 = sbr.rel (0) target = $region53
    $region52: #{srnn_forward.1} parent=1 // pred_region
      _
    $region53: #{srnn_forward.1} parent=1 // pred_fallthru
      _
    // Predicated region
    $region54: #{srnn_forward.1} parent=1 // pred_check
      _
    $region55: #{srnn_forward.1} parent=1 // pred_check_branch
      %5928 = sbr.rel (0) target = $region57
    $region56: #{srnn_forward.1} parent=1 // pred_region
      _
    $region57: #{srnn_forward.1} parent=1 // pred_fallthru
      _
    // Predicated region
    $region58: #{srnn_forward.1} parent=1 // pred_check
      _
    $region59: #{srnn_forward.1} parent=1 // pred_check_branch
      %5930 = sbr.rel (0) target = $region61
    $region60: #{srnn_forward.1} parent=1 // pred_region
      _
    $region61: #{srnn_forward.1} parent=1 // pred_fallthru
      _
    %5931 = vsyncpa [#allocation6], 1

</llo_original>
